<compile_context>
chip_gen: v7x
topology: tpu7x:2x2x1
jax: 0.10.0
libtpu: 0.0.40
codegen_flags: <defaults>
</compile_context>

<pallas_src>
import functools

import jax
import jax.numpy as jnp
from jax.experimental import pallas as pl
from jax.experimental.pallas import tpu as pltpu

ROW_COUNT = 6        # H
COLUMN_COUNT = 7     # W
C1, C2, F1 = 32, 64, 128
TAPS = [(di, dj) for di in range(3) for dj in range(3)]   # 3x3 kernel offsets
ACT_DT = jnp.bfloat16                                     # MXU operand dtype


# ---------------------------------------------------------------------------
# Fused kernel: one grid step processes a batch tile of `bt` boards.
#   x_ref     : (H+2, W+2, bt, 1)  bf16 zero-padded boards, spatial-major
#   w1_ref    : (9, C1)            f32 conv1 weight, tap-major (Cin = 1)
#   w2_ref    : (9*C1, C2)         bf16 conv2 im2col weight (rows = tap*32+cin)
#   w3_ref    : (H*W*C2, F1)       bf16 fc1 weight, rows = p*64 + c
#   w4_ref    : (1, F1)            f32 fc2 weight row
#   out_ref   : (bt, F1)           f32 value broadcast across lanes
#   pad_ref   : (H+2, W+2, bt, C1) bf16 scratch (padded conv1 output)
#   col_ref   : (H*W*bt, 9*C1)     bf16 scratch (conv2 im2col, rows = (p, b))
#   h2_ref    : (H*W*bt, C2)       bf16 scratch (conv2 output, rows = (p, b))
#   hflat_ref : (bt, H*W*C2)       bf16 scratch (fc1 lhs, batch-major flatten)
# ---------------------------------------------------------------------------
def _fused_kernel(x_ref, w1_ref, b1_ref, w2_ref, b2_ref, w3_ref, b3_ref,
                  w4_ref, b4_ref, out_ref, pad_ref, col_ref, h2_ref,
                  hflat_ref, *, bt, bchunk):
    H, W = ROW_COUNT, COLUMN_COUNT

    # ---- conv2's zero padding: clear only the 4 border slabs of pad_ref. ---
    # (Done every step, not @pl.when(step == 0): under megacore "parallel"
    #  the second core never executes step 0, so its border would be garbage.)
    zrow = jnp.zeros((1, W + 2, bt, C1), ACT_DT)
    zcol = jnp.zeros((H, 1, bt, C1), ACT_DT)
    pad_ref[0:1, :, :, :] = zrow
    pad_ref[H + 1:H + 2, :, :, :] = zrow
    pad_ref[1:H + 1, 0:1, :, :] = zcol
    pad_ref[1:H + 1, W + 1:W + 2, :, :] = zcol

    # ---- conv1: 1 -> 32, 3x3 "same", ReLU (VPU broadcast-MACs, f32). -------
    # Tiled over (spatial row, batch chunk) so each accumulator fits in vregs;
    # the accumulator is initialised from the first tap (no zero pass).
    for i in range(H):
        for b0 in range(0, bt, bchunk):
            acc = None
            for t, (di, dj) in enumerate(TAPS):
                patch = x_ref[i + di:i + di + 1, dj:dj + W,
                              b0:b0 + bchunk, :].astype(jnp.float32)
                term = patch * w1_ref[t]               # (1, W, bchunk, C1)
                acc = term if acc is None else acc + term
            h1 = jnp.maximum(acc + b1_ref[...], 0.0)
            pad_ref[i + 1:i + 2, 1:W + 1, b0:b0 + bchunk, :] = h1.astype(ACT_DT)

    # ---- im2col: 9 shifted patches lane-concatenated -> (42*bt, 288). ------
    # Rows ordered (p, b) with p = i*7 + j; columns ordered (tap, cin), which
    # matches the host-side repack of the conv2 weight.
    patches = [pad_ref[di:di + H, dj:dj + W, :, :] for (di, dj) in TAPS]
    col_ref[...] = jnp.concatenate(patches, axis=-1).reshape(H * W * bt,
                                                             9 * C1)

    # ---- conv2: ONE (42*bt, 288) x (288, 64) MXU matmul + bias + ReLU. -----
    h2 = jnp.dot(col_ref[...], w2_ref[...], preferred_element_type=jnp.float32)
    h2_ref[...] = jnp.maximum(h2 + b2_ref[...], 0.0).astype(ACT_DT)

    # ---- relayout (p, b)-major rows -> batch-major flatten (bt, 42*64). ----
    # Column order (p, c) matches the host-side repack of the fc1 weight.
    for p in range(H * W):
        hflat_ref[:, p * C2:(p + 1) * C2] = h2_ref[p * bt:(p + 1) * bt, :]

    # ---- fc1: ONE (bt, 2688) x (2688, 128) MXU matmul + bias + ReLU. -------
    h3 = jnp.dot(hflat_ref[...], w3_ref[...],
                 preferred_element_type=jnp.float32)
    h3 = jnp.maximum(h3 + b3_ref[...], 0.0)                    # (bt, F1) f32

    # ---- fc2: 128 -> 1 as VPU multiply + lane reduction; lane-dense store. -
    val = jnp.sum(h3 * w4_ref[...], axis=1, keepdims=True) + b4_ref[...]
    out_ref[...] = jnp.broadcast_to(val, (bt, F1))


def _round_up(n, m):
    return ((n + m - 1) // m) * m


# ---------------------------------------------------------------------------
# Wrapper: tiny host-side layout prep + one pallas_call over batch tiles.
# ---------------------------------------------------------------------------
@jax.jit
def connect_four_cnn_forward(params, x):
    """x: (B, 6, 7) float board -> (B, 1) value (PyTorch ConnectFourCNN)."""
    B = x.shape[0]
    H, W = ROW_COUNT, COLUMN_COUNT

    # Batch tile: 128 boards/step fills the MXU M-dim on v5e and amortises the
    # grid overhead; small batches run as one sublane-aligned tile.  (On
    # v6e/v7x bt could be raised to 256 together with vmem_limit_bytes.)
    if B > 128:
        bt = 128
    else:
        bt = max(8, _round_up(B, 8))
    b_pad = _round_up(B, bt)
    bchunk = max(c for c in (32, 16, 8) if bt % c == 0)

    # Input prep (tiny): spatial-major, zero-pad spatial (for "same" conv1)
    # and batch (to whole tiles); trailing singleton keeps batch in sublanes
    # with a lane-replicated channel dim.  bf16 is exact for {-1, 0, 1}.
    xt = jnp.transpose(x.astype(jnp.float32), (1, 2, 0))        # (6, 7, B)
    xt = jnp.pad(xt, ((1, 1), (1, 1), (0, b_pad - B)))          # (8, 9, b_pad)
    xp = xt[..., None].astype(ACT_DT)                           # (8, 9, b_pad, 1)

    kernel = functools.partial(_fused_kernel, bt=bt, bchunk=bchunk)
    out = pl.pallas_call(
        kernel,
        out_shape=jax.ShapeDtypeStruct((b_pad, F1), jnp.float32),
        grid=(b_pad // bt,),
        in_specs=[
            pl.BlockSpec((H + 2, W + 2, bt, 1), lambda i: (0, 0, i, 0)),  # x
            pl.BlockSpec((9, C1), lambda i: (0, 0)),                      # w1
            pl.BlockSpec((1, C1), lambda i: (0, 0)),                      # b1
            pl.BlockSpec((9 * C1, C2), lambda i: (0, 0)),                 # w2
            pl.BlockSpec((1, C2), lambda i: (0, 0)),                      # b2
            pl.BlockSpec((H * W * C2, F1), lambda i: (0, 0)),             # w3
            pl.BlockSpec((1, F1), lambda i: (0, 0)),                      # b3
            pl.BlockSpec((1, F1), lambda i: (0, 0)),                      # w4
            pl.BlockSpec((1, 1), lambda i: (0, 0)),                       # b4
        ],
        out_specs=pl.BlockSpec((bt, F1), lambda i: (i, 0)),
        scratch_shapes=[
            pltpu.VMEM((H + 2, W + 2, bt, C1), ACT_DT),   # padded conv1 out
            pltpu.VMEM((H * W * bt, 9 * C1), ACT_DT),     # conv2 im2col
            pltpu.VMEM((H * W * bt, C2), ACT_DT),         # conv2 out, (p,b) rows
            pltpu.VMEM((bt, H * W * C2), ACT_DT),         # fc1 lhs, batch-major
        ],
        compiler_params=pltpu.CompilerParams(
            dimension_semantics=("parallel",)),
    )(xp, params["w1"], params["b1"], params["w2"], params["b2"],
      params["w3"], params["b3"], params["w4"], params["b4"])
    return out[:B, :1]


# ---------------------------------------------------------------------------
# Parameters: synthetic weights in the original PyTorch layout, plus a
# one-time host-side repack into the kernel's layout (flatten permutation and
# im2col tap order are baked into w3 / w2, so the kernel needs no runtime
# transpose of weights).
# ---------------------------------------------------------------------------
def init_torch_params(key):
    ks = jax.random.split(key, 8)
    flat = C2 * ROW_COUNT * COLUMN_COUNT  # 2688
    return {
        "conv1_w": 0.1 * jax.random.normal(ks[0], (C1, 1, 3, 3), jnp.float32),
        "conv1_b": 0.01 * jax.random.normal(ks[1], (C1,), jnp.float32),
        "conv2_w": 0.05 * jax.random.normal(ks[2], (C2, C1, 3, 3), jnp.float32),
        "conv2_b": 0.01 * jax.random.normal(ks[3], (C2,), jnp.float32),
        "fc1_w": 0.02 * jax.random.normal(ks[4], (F1, flat), jnp.float32),
        "fc1_b": 0.01 * jax.random.normal(ks[5], (F1,), jnp.float32),
        "fc2_w": 0.1 * jax.random.normal(ks[6], (1, F1), jnp.float32),
        "fc2_b": 0.01 * jax.random.normal(ks[7], (1,), jnp.float32),
    }


def pack_params(tp):
    """PyTorch-layout weights -> kernel-layout weights (one-time, host side)."""
    H, W = ROW_COUNT, COLUMN_COUNT
    # conv1: (C1, 1, 3, 3) -> (tap = kh*3+kw, C1), f32 (VPU operand).
    w1 = jnp.transpose(tp["conv1_w"], (2, 3, 1, 0)).reshape(9, C1)
    # conv2: (C2, C1, 3, 3) -> im2col weight (tap*32 + cin, C2), bf16 (MXU).
    w2 = jnp.transpose(tp["conv2_w"], (2, 3, 1, 0)).reshape(9 * C1, C2)
    # fc1: (F1, C2*H*W) with columns in NCHW-flatten order (c*42 + p)
    #   -> rows reordered to (p*C2 + c) so the kernel's batch-major (p, c)
    #      flatten multiplies it directly, bf16 (MXU).
    w3 = (tp["fc1_w"].T.reshape(C2, H * W, F1)
          .transpose(1, 0, 2).reshape(H * W * C2, F1))
    return {
        "w1": w1.astype(jnp.float32),
        "b1": tp["conv1_b"].reshape(1, C1).astype(jnp.float32),
        "w2": w2.astype(ACT_DT),
        "b2": tp["conv2_b"].reshape(1, C2).astype(jnp.float32),
        "w3": w3.astype(ACT_DT),
        "b3": tp["fc1_b"].reshape(1, F1).astype(jnp.float32),
        "w4": tp["fc2_w"].reshape(1, F1).astype(jnp.float32),
        "b4": tp["fc2_b"].reshape(1, 1).astype(jnp.float32),
    }


# ---------------------------------------------------------------------------
# Pure-JAX reference (mirrors the PyTorch module exactly) for validation.
# ---------------------------------------------------------------------------
def reference_forward(tp, x):
    B = x.shape[0]
    h = x[:, None, :, :].astype(jnp.float32)                   # (B,1,6,7) NCHW

    def conv(h, w, b):
        y = jax.lax.conv_general_dilated(
            h, w, window_strides=(1, 1), padding=((1, 1), (1, 1)),
            dimension_numbers=("NCHW", "OIHW", "NCHW"))
        return jax.nn.relu(y + b[None, :, None, None])

    h = conv(h, tp["conv1_w"], tp["conv1_b"])                  # (B,32,6,7)
    h = conv(h, tp["conv2_w"], tp["conv2_b"])                  # (B,64,6,7)
    h = h.reshape(B, -1)                                       # NCHW flatten
    h = jax.nn.relu(h @ tp["fc1_w"].T + tp["fc1_b"])           # (B,128)
    return h @ tp["fc2_w"].T + tp["fc2_b"]                     # (B,1)


if __name__ == "__main__":
    key = jax.random.PRNGKey(0)
    pkey, xkey = jax.random.split(key)
    torch_params = init_torch_params(pkey)
    params = pack_params(torch_params)

    # Connect-Four board: batch=2, 6 rows x 7 columns, values in {-1, 0, 1}.
    x = jax.random.randint(xkey, (2, ROW_COUNT, COLUMN_COUNT), -1, 2).astype(
        jnp.float32)

    y = connect_four_cnn_forward(params, x)
    y = jax.block_until_ready(y)
    assert y.shape == (2, 1), y.shape

    y_ref = jax.block_until_ready(reference_forward(torch_params, x))
    assert jnp.allclose(y, y_ref, rtol=2e-2, atol=2e-2), (y, y_ref)

    print("KERNEL_OK")
</pallas_src>

<mosaic_0001>
module attributes {stable_mosaic.version = 11 : i64} {
  func.func @_fused_kernel(%arg0: i32, %arg1: memref<8x9x8x1xbf16, #tpu.memory_space<vmem>>, %arg2: memref<9x32xf32, #tpu.memory_space<vmem>>, %arg3: memref<1x32xf32, #tpu.memory_space<vmem>>, %arg4: memref<288x64xbf16, #tpu.memory_space<vmem>>, %arg5: memref<1x64xf32, #tpu.memory_space<vmem>>, %arg6: memref<2688x128xbf16, #tpu.memory_space<vmem>>, %arg7: memref<1x128xf32, #tpu.memory_space<vmem>>, %arg8: memref<1x128xf32, #tpu.memory_space<vmem>>, %arg9: memref<1x1xf32, #tpu.memory_space<vmem>>, %arg10: memref<8x128xf32, #tpu.memory_space<vmem>>, %arg11: memref<8x9x8x32xbf16, #tpu.memory_space<vmem>>, %arg12: memref<336x288xbf16, #tpu.memory_space<vmem>>, %arg13: memref<336x64xbf16, #tpu.memory_space<vmem>>, %arg14: memref<8x2688xbf16, #tpu.memory_space<vmem>>) attributes {dimension_semantics = [#tpu.dimension_semantics<parallel>], iteration_bounds = array<i64: 1>, scalar_prefetch = 0 : i64, scratch_operands = 4 : i64, tpu.core_type = #tpu.core_type<tc>, window_params = [{transform_indices = @transform_0, window_bounds = array<i64: 8, 9, 8, 1>}, {pipeline_mode = #tpu.pipeline_mode<synchronous>, transform_indices = @transform_1, window_bounds = array<i64: 9, 32>}, {pipeline_mode = #tpu.pipeline_mode<synchronous>, transform_indices = @transform_2, window_bounds = array<i64: 1, 32>}, {pipeline_mode = #tpu.pipeline_mode<synchronous>, transform_indices = @transform_3, window_bounds = array<i64: 288, 64>}, {pipeline_mode = #tpu.pipeline_mode<synchronous>, transform_indices = @transform_4, window_bounds = array<i64: 1, 64>}, {pipeline_mode = #tpu.pipeline_mode<synchronous>, transform_indices = @transform_5, window_bounds = array<i64: 2688, 128>}, {pipeline_mode = #tpu.pipeline_mode<synchronous>, transform_indices = @transform_6, window_bounds = array<i64: 1, 128>}, {pipeline_mode = #tpu.pipeline_mode<synchronous>, transform_indices = @transform_7, window_bounds = array<i64: 1, 128>}, {pipeline_mode = #tpu.pipeline_mode<synchronous>, transform_indices = @transform_8, window_bounds = array<i64: 1, 1>}, {transform_indices = @transform_9, window_bounds = array<i64: 8, 128>}]} {
    %cst = arith.constant 0.000000e+00 : bf16
    %0 = vector.broadcast %cst : bf16 to vector<1x9x8x32xbf16>
    %cst_0 = arith.constant 0.000000e+00 : bf16
    %1 = vector.broadcast %cst_0 : bf16 to vector<6x1x8x32xbf16>
    %c0 = arith.constant 0 : index
    %c0_1 = arith.constant 0 : index
    %c0_2 = arith.constant 0 : index
    %c0_3 = arith.constant 0 : index
    %2 = vector.load %arg11[%c0, %c0_1, %c0_2, %c0_3] : memref<8x9x8x32xbf16, #tpu.memory_space<vmem>>, vector<1x9x8x32xbf16>
    tpu.vector_store %arg11[%c0, %c0_1, %c0_2, %c0_3], %0 {strides = array<i32>} : memref<8x9x8x32xbf16, #tpu.memory_space<vmem>>, vector<1x9x8x32xbf16>,
    %c7 = arith.constant 7 : index
    %c0_4 = arith.constant 0 : index
    %c0_5 = arith.constant 0 : index
    %c0_6 = arith.constant 0 : index
    %3 = vector.load %arg11[%c7, %c0_4, %c0_5, %c0_6] : memref<8x9x8x32xbf16, #tpu.memory_space<vmem>>, vector<1x9x8x32xbf16>
    tpu.vector_store %arg11[%c7, %c0_4, %c0_5, %c0_6], %0 {strides = array<i32>} : memref<8x9x8x32xbf16, #tpu.memory_space<vmem>>, vector<1x9x8x32xbf16>,
    %c1 = arith.constant 1 : index
    %c0_7 = arith.constant 0 : index
    %c0_8 = arith.constant 0 : index
    %c0_9 = arith.constant 0 : index
    %4 = vector.load %arg11[%c1, %c0_7, %c0_8, %c0_9] : memref<8x9x8x32xbf16, #tpu.memory_space<vmem>>, vector<6x1x8x32xbf16>
    tpu.vector_store %arg11[%c1, %c0_7, %c0_8, %c0_9], %1 {strides = array<i32>} : memref<8x9x8x32xbf16, #tpu.memory_space<vmem>>, vector<6x1x8x32xbf16>,
    %c1_10 = arith.constant 1 : index
    %c8 = arith.constant 8 : index
    %c0_11 = arith.constant 0 : index
    %c0_12 = arith.constant 0 : index
    %5 = vector.load %arg11[%c1_10, %c8, %c0_11, %c0_12] : memref<8x9x8x32xbf16, #tpu.memory_space<vmem>>, vector<6x1x8x32xbf16>
    tpu.vector_store %arg11[%c1_10, %c8, %c0_11, %c0_12], %1 {strides = array<i32>} : memref<8x9x8x32xbf16, #tpu.memory_space<vmem>>, vector<6x1x8x32xbf16>,
    %c0_13 = arith.constant 0 : index
    %c0_14 = arith.constant 0 : index
    %c0_15 = arith.constant 0 : index
    %c0_16 = arith.constant 0 : index
    %6 = vector.load %arg1[%c0_13, %c0_14, %c0_15, %c0_16] : memref<8x9x8x1xbf16, #tpu.memory_space<vmem>>, vector<1x7x8x1xbf16>
    %7 = arith.extf %6 : vector<1x7x8x1xbf16> to vector<1x7x8x1xf32>
    %c0_17 = arith.constant 0 : index
    %c0_18 = arith.constant 0 : index
    %8 = vector.load %arg2[%c0_17, %c0_18] : memref<9x32xf32, #tpu.memory_space<vmem>>, vector<1x32xf32>
    %9 = vector.shape_cast %8 : vector<1x32xf32> to vector<32xf32>
    %10 = vector.shape_cast %9 : vector<32xf32> to vector<1x1x1x32xf32>
    %11 = vector.broadcast %7 : vector<1x7x8x1xf32> to vector<1x7x8x32xf32>
    %12 = vector.broadcast %10 : vector<1x1x1x32xf32> to vector<1x7x8x32xf32>
    %13 = arith.mulf %11, %12 : vector<1x7x8x32xf32>
    %c0_19 = arith.constant 0 : index
    %c1_20 = arith.constant 1 : index
    %c0_21 = arith.constant 0 : index
    %c0_22 = arith.constant 0 : index
    %14 = vector.load %arg1[%c0_19, %c1_20, %c0_21, %c0_22] : memref<8x9x8x1xbf16, #tpu.memory_space<vmem>>, vector<1x7x8x1xbf16>
    %15 = arith.extf %14 : vector<1x7x8x1xbf16> to vector<1x7x8x1xf32>
    %c1_23 = arith.constant 1 : index
    %c0_24 = arith.constant 0 : index
    %16 = vector.load %arg2[%c1_23, %c0_24] : memref<9x32xf32, #tpu.memory_space<vmem>>, vector<1x32xf32>
    %17 = vector.shape_cast %16 : vector<1x32xf32> to vector<32xf32>
    %18 = vector.shape_cast %17 : vector<32xf32> to vector<1x1x1x32xf32>
    %19 = vector.broadcast %15 : vector<1x7x8x1xf32> to vector<1x7x8x32xf32>
    %20 = vector.broadcast %18 : vector<1x1x1x32xf32> to vector<1x7x8x32xf32>
    %21 = arith.mulf %19, %20 : vector<1x7x8x32xf32>
    %22 = arith.addf %13, %21 : vector<1x7x8x32xf32>
    %c0_25 = arith.constant 0 : index
    %c2 = arith.constant 2 : index
    %c0_26 = arith.constant 0 : index
    %c0_27 = arith.constant 0 : index
    %23 = vector.load %arg1[%c0_25, %c2, %c0_26, %c0_27] : memref<8x9x8x1xbf16, #tpu.memory_space<vmem>>, vector<1x7x8x1xbf16>
    %24 = arith.extf %23 : vector<1x7x8x1xbf16> to vector<1x7x8x1xf32>
    %c2_28 = arith.constant 2 : index
    %c0_29 = arith.constant 0 : index
    %25 = vector.load %arg2[%c2_28, %c0_29] : memref<9x32xf32, #tpu.memory_space<vmem>>, vector<1x32xf32>
    %26 = vector.shape_cast %25 : vector<1x32xf32> to vector<32xf32>
    %27 = vector.shape_cast %26 : vector<32xf32> to vector<1x1x1x32xf32>
    %28 = vector.broadcast %24 : vector<1x7x8x1xf32> to vector<1x7x8x32xf32>
    %29 = vector.broadcast %27 : vector<1x1x1x32xf32> to vector<1x7x8x32xf32>
    %30 = arith.mulf %28, %29 : vector<1x7x8x32xf32>
    %31 = arith.addf %22, %30 : vector<1x7x8x32xf32>
    %c1_30 = arith.constant 1 : index
    %c0_31 = arith.constant 0 : index
    %c0_32 = arith.constant 0 : index
    %c0_33 = arith.constant 0 : index
    %32 = vector.load %arg1[%c1_30, %c0_31, %c0_32, %c0_33] : memref<8x9x8x1xbf16, #tpu.memory_space<vmem>>, vector<1x7x8x1xbf16>
    %33 = arith.extf %32 : vector<1x7x8x1xbf16> to vector<1x7x8x1xf32>
    %c3 = arith.constant 3 : index
    %c0_34 = arith.constant 0 : index
    %34 = vector.load %arg2[%c3, %c0_34] : memref<9x32xf32, #tpu.memory_space<vmem>>, vector<1x32xf32>
    %35 = vector.shape_cast %34 : vector<1x32xf32> to vector<32xf32>
    %36 = vector.shape_cast %35 : vector<32xf32> to vector<1x1x1x32xf32>
    %37 = vector.broadcast %33 : vector<1x7x8x1xf32> to vector<1x7x8x32xf32>
    %38 = vector.broadcast %36 : vector<1x1x1x32xf32> to vector<1x7x8x32xf32>
    %39 = arith.mulf %37, %38 : vector<1x7x8x32xf32>
    %40 = arith.addf %31, %39 : vector<1x7x8x32xf32>
    %c1_35 = arith.constant 1 : index
    %c1_36 = arith.constant 1 : index
    %c0_37 = arith.constant 0 : index
    %c0_38 = arith.constant 0 : index
    %41 = vector.load %arg1[%c1_35, %c1_36, %c0_37, %c0_38] : memref<8x9x8x1xbf16, #tpu.memory_space<vmem>>, vector<1x7x8x1xbf16>
    %42 = arith.extf %41 : vector<1x7x8x1xbf16> to vector<1x7x8x1xf32>
    %c4 = arith.constant 4 : index
    %c0_39 = arith.constant 0 : index
    %43 = vector.load %arg2[%c4, %c0_39] : memref<9x32xf32, #tpu.memory_space<vmem>>, vector<1x32xf32>
    %44 = vector.shape_cast %43 : vector<1x32xf32> to vector<32xf32>
    %45 = vector.shape_cast %44 : vector<32xf32> to vector<1x1x1x32xf32>
    %46 = vector.broadcast %42 : vector<1x7x8x1xf32> to vector<1x7x8x32xf32>
    %47 = vector.broadcast %45 : vector<1x1x1x32xf32> to vector<1x7x8x32xf32>
    %48 = arith.mulf %46, %47 : vector<1x7x8x32xf32>
    %49 = arith.addf %40, %48 : vector<1x7x8x32xf32>
    %c1_40 = arith.constant 1 : index
    %c2_41 = arith.constant 2 : index
    %c0_42 = arith.constant 0 : index
    %c0_43 = arith.constant 0 : index
    %50 = vector.load %arg1[%c1_40, %c2_41, %c0_42, %c0_43] : memref<8x9x8x1xbf16, #tpu.memory_space<vmem>>, vector<1x7x8x1xbf16>
    %51 = arith.extf %50 : vector<1x7x8x1xbf16> to vector<1x7x8x1xf32>
    %c5 = arith.constant 5 : index
    %c0_44 = arith.constant 0 : index
    %52 = vector.load %arg2[%c5, %c0_44] : memref<9x32xf32, #tpu.memory_space<vmem>>, vector<1x32xf32>
    %53 = vector.shape_cast %52 : vector<1x32xf32> to vector<32xf32>
    %54 = vector.shape_cast %53 : vector<32xf32> to vector<1x1x1x32xf32>
    %55 = vector.broadcast %51 : vector<1x7x8x1xf32> to vector<1x7x8x32xf32>
    %56 = vector.broadcast %54 : vector<1x1x1x32xf32> to vector<1x7x8x32xf32>
    %57 = arith.mulf %55, %56 : vector<1x7x8x32xf32>
    %58 = arith.addf %49, %57 : vector<1x7x8x32xf32>
    %c2_45 = arith.constant 2 : index
    %c0_46 = arith.constant 0 : index
    %c0_47 = arith.constant 0 : index
    %c0_48 = arith.constant 0 : index
    %59 = vector.load %arg1[%c2_45, %c0_46, %c0_47, %c0_48] : memref<8x9x8x1xbf16, #tpu.memory_space<vmem>>, vector<1x7x8x1xbf16>
    %60 = arith.extf %59 : vector<1x7x8x1xbf16> to vector<1x7x8x1xf32>
    %c6 = arith.constant 6 : index
    %c0_49 = arith.constant 0 : index
    %61 = vector.load %arg2[%c6, %c0_49] : memref<9x32xf32, #tpu.memory_space<vmem>>, vector<1x32xf32>
    %62 = vector.shape_cast %61 : vector<1x32xf32> to vector<32xf32>
    %63 = vector.shape_cast %62 : vector<32xf32> to vector<1x1x1x32xf32>
    %64 = vector.broadcast %60 : vector<1x7x8x1xf32> to vector<1x7x8x32xf32>
    %65 = vector.broadcast %63 : vector<1x1x1x32xf32> to vector<1x7x8x32xf32>
    %66 = arith.mulf %64, %65 : vector<1x7x8x32xf32>
    %67 = arith.addf %58, %66 : vector<1x7x8x32xf32>
    %c2_50 = arith.constant 2 : index
    %c1_51 = arith.constant 1 : index
    %c0_52 = arith.constant 0 : index
    %c0_53 = arith.constant 0 : index
    %68 = vector.load %arg1[%c2_50, %c1_51, %c0_52, %c0_53] : memref<8x9x8x1xbf16, #tpu.memory_space<vmem>>, vector<1x7x8x1xbf16>
    %69 = arith.extf %68 : vector<1x7x8x1xbf16> to vector<1x7x8x1xf32>
    %c7_54 = arith.constant 7 : index
    %c0_55 = arith.constant 0 : index
    %70 = vector.load %arg2[%c7_54, %c0_55] : memref<9x32xf32, #tpu.memory_space<vmem>>, vector<1x32xf32>
    %71 = vector.shape_cast %70 : vector<1x32xf32> to vector<32xf32>
    %72 = vector.shape_cast %71 : vector<32xf32> to vector<1x1x1x32xf32>
    %73 = vector.broadcast %69 : vector<1x7x8x1xf32> to vector<1x7x8x32xf32>
    %74 = vector.broadcast %72 : vector<1x1x1x32xf32> to vector<1x7x8x32xf32>
    %75 = arith.mulf %73, %74 : vector<1x7x8x32xf32>
    %76 = arith.addf %67, %75 : vector<1x7x8x32xf32>
    %c2_56 = arith.constant 2 : index
    %c2_57 = arith.constant 2 : index
    %c0_58 = arith.constant 0 : index
    %c0_59 = arith.constant 0 : index
    %77 = vector.load %arg1[%c2_56, %c2_57, %c0_58, %c0_59] : memref<8x9x8x1xbf16, #tpu.memory_space<vmem>>, vector<1x7x8x1xbf16>
    %78 = arith.extf %77 : vector<1x7x8x1xbf16> to vector<1x7x8x1xf32>
    %c8_60 = arith.constant 8 : index
    %c0_61 = arith.constant 0 : index
    %79 = vector.load %arg2[%c8_60, %c0_61] : memref<9x32xf32, #tpu.memory_space<vmem>>, vector<1x32xf32>
    %80 = vector.shape_cast %79 : vector<1x32xf32> to vector<32xf32>
    %81 = vector.shape_cast %80 : vector<32xf32> to vector<1x1x1x32xf32>
    %82 = vector.broadcast %78 : vector<1x7x8x1xf32> to vector<1x7x8x32xf32>
    %83 = vector.broadcast %81 : vector<1x1x1x32xf32> to vector<1x7x8x32xf32>
    %84 = arith.mulf %82, %83 : vector<1x7x8x32xf32>
    %85 = arith.addf %76, %84 : vector<1x7x8x32xf32>
    %c0_62 = arith.constant 0 : index
    %c0_63 = arith.constant 0 : index
    %86 = vector.load %arg3[%c0_62, %c0_63] : memref<1x32xf32, #tpu.memory_space<vmem>>, vector<1x32xf32>
    %87 = vector.shape_cast %86 : vector<1x32xf32> to vector<1x1x1x32xf32>
    %88 = vector.broadcast %87 : vector<1x1x1x32xf32> to vector<1x7x8x32xf32>
    %89 = arith.addf %85, %88 : vector<1x7x8x32xf32>
    %cst_64 = arith.constant 0.000000e+00 : f32
    %90 = vector.broadcast %cst_64 : f32 to vector<1x7x8x32xf32>
    %91 = arith.maximumf %89, %90 : vector<1x7x8x32xf32>
    %92 = arith.truncf %91 : vector<1x7x8x32xf32> to vector<1x7x8x32xbf16>
    %c1_65 = arith.constant 1 : index
    %c1_66 = arith.constant 1 : index
    %c0_67 = arith.constant 0 : index
    %c0_68 = arith.constant 0 : index
    %93 = vector.load %arg11[%c1_65, %c1_66, %c0_67, %c0_68] : memref<8x9x8x32xbf16, #tpu.memory_space<vmem>>, vector<1x7x8x32xbf16>
    tpu.vector_store %arg11[%c1_65, %c1_66, %c0_67, %c0_68], %92 {strides = array<i32>} : memref<8x9x8x32xbf16, #tpu.memory_space<vmem>>, vector<1x7x8x32xbf16>,
    %c1_69 = arith.constant 1 : index
    %c0_70 = arith.constant 0 : index
    %c0_71 = arith.constant 0 : index
    %c0_72 = arith.constant 0 : index
    %94 = vector.load %arg1[%c1_69, %c0_70, %c0_71, %c0_72] : memref<8x9x8x1xbf16, #tpu.memory_space<vmem>>, vector<1x7x8x1xbf16>
    %95 = arith.extf %94 : vector<1x7x8x1xbf16> to vector<1x7x8x1xf32>
    %c0_73 = arith.constant 0 : index
    %c0_74 = arith.constant 0 : index
    %96 = vector.load %arg2[%c0_73, %c0_74] : memref<9x32xf32, #tpu.memory_space<vmem>>, vector<1x32xf32>
    %97 = vector.shape_cast %96 : vector<1x32xf32> to vector<32xf32>
    %98 = vector.shape_cast %97 : vector<32xf32> to vector<1x1x1x32xf32>
    %99 = vector.broadcast %95 : vector<1x7x8x1xf32> to vector<1x7x8x32xf32>
    %100 = vector.broadcast %98 : vector<1x1x1x32xf32> to vector<1x7x8x32xf32>
    %101 = arith.mulf %99, %100 : vector<1x7x8x32xf32>
    %c1_75 = arith.constant 1 : index
    %c1_76 = arith.constant 1 : index
    %c0_77 = arith.constant 0 : index
    %c0_78 = arith.constant 0 : index
    %102 = vector.load %arg1[%c1_75, %c1_76, %c0_77, %c0_78] : memref<8x9x8x1xbf16, #tpu.memory_space<vmem>>, vector<1x7x8x1xbf16>
    %103 = arith.extf %102 : vector<1x7x8x1xbf16> to vector<1x7x8x1xf32>
    %c1_79 = arith.constant 1 : index
    %c0_80 = arith.constant 0 : index
    %104 = vector.load %arg2[%c1_79, %c0_80] : memref<9x32xf32, #tpu.memory_space<vmem>>, vector<1x32xf32>
    %105 = vector.shape_cast %104 : vector<1x32xf32> to vector<32xf32>
    %106 = vector.shape_cast %105 : vector<32xf32> to vector<1x1x1x32xf32>
    %107 = vector.broadcast %103 : vector<1x7x8x1xf32> to vector<1x7x8x32xf32>
    %108 = vector.broadcast %106 : vector<1x1x1x32xf32> to vector<1x7x8x32xf32>
    %109 = arith.mulf %107, %108 : vector<1x7x8x32xf32>
    %110 = arith.addf %101, %109 : vector<1x7x8x32xf32>
    %c1_81 = arith.constant 1 : index
    %c2_82 = arith.constant 2 : index
    %c0_83 = arith.constant 0 : index
    %c0_84 = arith.constant 0 : index
    %111 = vector.load %arg1[%c1_81, %c2_82, %c0_83, %c0_84] : memref<8x9x8x1xbf16, #tpu.memory_space<vmem>>, vector<1x7x8x1xbf16>
    %112 = arith.extf %111 : vector<1x7x8x1xbf16> to vector<1x7x8x1xf32>
    %c2_85 = arith.constant 2 : index
    %c0_86 = arith.constant 0 : index
    %113 = vector.load %arg2[%c2_85, %c0_86] : memref<9x32xf32, #tpu.memory_space<vmem>>, vector<1x32xf32>
    %114 = vector.shape_cast %113 : vector<1x32xf32> to vector<32xf32>
    %115 = vector.shape_cast %114 : vector<32xf32> to vector<1x1x1x32xf32>
    %116 = vector.broadcast %112 : vector<1x7x8x1xf32> to vector<1x7x8x32xf32>
    %117 = vector.broadcast %115 : vector<1x1x1x32xf32> to vector<1x7x8x32xf32>
    %118 = arith.mulf %116, %117 : vector<1x7x8x32xf32>
    %119 = arith.addf %110, %118 : vector<1x7x8x32xf32>
    %c2_87 = arith.constant 2 : index
    %c0_88 = arith.constant 0 : index
    %c0_89 = arith.constant 0 : index
    %c0_90 = arith.constant 0 : index
    %120 = vector.load %arg1[%c2_87, %c0_88, %c0_89, %c0_90] : memref<8x9x8x1xbf16, #tpu.memory_space<vmem>>, vector<1x7x8x1xbf16>
    %121 = arith.extf %120 : vector<1x7x8x1xbf16> to vector<1x7x8x1xf32>
    %c3_91 = arith.constant 3 : index
    %c0_92 = arith.constant 0 : index
    %122 = vector.load %arg2[%c3_91, %c0_92] : memref<9x32xf32, #tpu.memory_space<vmem>>, vector<1x32xf32>
    %123 = vector.shape_cast %122 : vector<1x32xf32> to vector<32xf32>
    %124 = vector.shape_cast %123 : vector<32xf32> to vector<1x1x1x32xf32>
    %125 = vector.broadcast %121 : vector<1x7x8x1xf32> to vector<1x7x8x32xf32>
    %126 = vector.broadcast %124 : vector<1x1x1x32xf32> to vector<1x7x8x32xf32>
    %127 = arith.mulf %125, %126 : vector<1x7x8x32xf32>
    %128 = arith.addf %119, %127 : vector<1x7x8x32xf32>
    %c2_93 = arith.constant 2 : index
    %c1_94 = arith.constant 1 : index
    %c0_95 = arith.constant 0 : index
    %c0_96 = arith.constant 0 : index
    %129 = vector.load %arg1[%c2_93, %c1_94, %c0_95, %c0_96] : memref<8x9x8x1xbf16, #tpu.memory_space<vmem>>, vector<1x7x8x1xbf16>
    %130 = arith.extf %129 : vector<1x7x8x1xbf16> to vector<1x7x8x1xf32>
    %c4_97 = arith.constant 4 : index
    %c0_98 = arith.constant 0 : index
    %131 = vector.load %arg2[%c4_97, %c0_98] : memref<9x32xf32, #tpu.memory_space<vmem>>, vector<1x32xf32>
    %132 = vector.shape_cast %131 : vector<1x32xf32> to vector<32xf32>
    %133 = vector.shape_cast %132 : vector<32xf32> to vector<1x1x1x32xf32>
    %134 = vector.broadcast %130 : vector<1x7x8x1xf32> to vector<1x7x8x32xf32>
    %135 = vector.broadcast %133 : vector<1x1x1x32xf32> to vector<1x7x8x32xf32>
    %136 = arith.mulf %134, %135 : vector<1x7x8x32xf32>
    %137 = arith.addf %128, %136 : vector<1x7x8x32xf32>
    %c2_99 = arith.constant 2 : index
    %c2_100 = arith.constant 2 : index
    %c0_101 = arith.constant 0 : index
    %c0_102 = arith.constant 0 : index
    %138 = vector.load %arg1[%c2_99, %c2_100, %c0_101, %c0_102] : memref<8x9x8x1xbf16, #tpu.memory_space<vmem>>, vector<1x7x8x1xbf16>
    %139 = arith.extf %138 : vector<1x7x8x1xbf16> to vector<1x7x8x1xf32>
    %c5_103 = arith.constant 5 : index
    %c0_104 = arith.constant 0 : index
    %140 = vector.load %arg2[%c5_103, %c0_104] : memref<9x32xf32, #tpu.memory_space<vmem>>, vector<1x32xf32>
    %141 = vector.shape_cast %140 : vector<1x32xf32> to vector<32xf32>
    %142 = vector.shape_cast %141 : vector<32xf32> to vector<1x1x1x32xf32>
    %143 = vector.broadcast %139 : vector<1x7x8x1xf32> to vector<1x7x8x32xf32>
    %144 = vector.broadcast %142 : vector<1x1x1x32xf32> to vector<1x7x8x32xf32>
    %145 = arith.mulf %143, %144 : vector<1x7x8x32xf32>
    %146 = arith.addf %137, %145 : vector<1x7x8x32xf32>
    %c3_105 = arith.constant 3 : index
    %c0_106 = arith.constant 0 : index
    %c0_107 = arith.constant 0 : index
    %c0_108 = arith.constant 0 : index
    %147 = vector.load %arg1[%c3_105, %c0_106, %c0_107, %c0_108] : memref<8x9x8x1xbf16, #tpu.memory_space<vmem>>, vector<1x7x8x1xbf16>
    %148 = arith.extf %147 : vector<1x7x8x1xbf16> to vector<1x7x8x1xf32>
    %c6_109 = arith.constant 6 : index
    %c0_110 = arith.constant 0 : index
    %149 = vector.load %arg2[%c6_109, %c0_110] : memref<9x32xf32, #tpu.memory_space<vmem>>, vector<1x32xf32>
    %150 = vector.shape_cast %149 : vector<1x32xf32> to vector<32xf32>
    %151 = vector.shape_cast %150 : vector<32xf32> to vector<1x1x1x32xf32>
    %152 = vector.broadcast %148 : vector<1x7x8x1xf32> to vector<1x7x8x32xf32>
    %153 = vector.broadcast %151 : vector<1x1x1x32xf32> to vector<1x7x8x32xf32>
    %154 = arith.mulf %152, %153 : vector<1x7x8x32xf32>
    %155 = arith.addf %146, %154 : vector<1x7x8x32xf32>
    %c3_111 = arith.constant 3 : index
    %c1_112 = arith.constant 1 : index
    %c0_113 = arith.constant 0 : index
    %c0_114 = arith.constant 0 : index
    %156 = vector.load %arg1[%c3_111, %c1_112, %c0_113, %c0_114] : memref<8x9x8x1xbf16, #tpu.memory_space<vmem>>, vector<1x7x8x1xbf16>
    %157 = arith.extf %156 : vector<1x7x8x1xbf16> to vector<1x7x8x1xf32>
    %c7_115 = arith.constant 7 : index
    %c0_116 = arith.constant 0 : index
    %158 = vector.load %arg2[%c7_115, %c0_116] : memref<9x32xf32, #tpu.memory_space<vmem>>, vector<1x32xf32>
    %159 = vector.shape_cast %158 : vector<1x32xf32> to vector<32xf32>
    %160 = vector.shape_cast %159 : vector<32xf32> to vector<1x1x1x32xf32>
    %161 = vector.broadcast %157 : vector<1x7x8x1xf32> to vector<1x7x8x32xf32>
    %162 = vector.broadcast %160 : vector<1x1x1x32xf32> to vector<1x7x8x32xf32>
    %163 = arith.mulf %161, %162 : vector<1x7x8x32xf32>
    %164 = arith.addf %155, %163 : vector<1x7x8x32xf32>
    %c3_117 = arith.constant 3 : index
    %c2_118 = arith.constant 2 : index
    %c0_119 = arith.constant 0 : index
    %c0_120 = arith.constant 0 : index
    %165 = vector.load %arg1[%c3_117, %c2_118, %c0_119, %c0_120] : memref<8x9x8x1xbf16, #tpu.memory_space<vmem>>, vector<1x7x8x1xbf16>
    %166 = arith.extf %165 : vector<1x7x8x1xbf16> to vector<1x7x8x1xf32>
    %c8_121 = arith.constant 8 : index
    %c0_122 = arith.constant 0 : index
    %167 = vector.load %arg2[%c8_121, %c0_122] : memref<9x32xf32, #tpu.memory_space<vmem>>, vector<1x32xf32>
    %168 = vector.shape_cast %167 : vector<1x32xf32> to vector<32xf32>
    %169 = vector.shape_cast %168 : vector<32xf32> to vector<1x1x1x32xf32>
    %170 = vector.broadcast %166 : vector<1x7x8x1xf32> to vector<1x7x8x32xf32>
    %171 = vector.broadcast %169 : vector<1x1x1x32xf32> to vector<1x7x8x32xf32>
    %172 = arith.mulf %170, %171 : vector<1x7x8x32xf32>
    %173 = arith.addf %164, %172 : vector<1x7x8x32xf32>
    %c0_123 = arith.constant 0 : index
    %c0_124 = arith.constant 0 : index
    %174 = vector.load %arg3[%c0_123, %c0_124] : memref<1x32xf32, #tpu.memory_space<vmem>>, vector<1x32xf32>
    %175 = vector.shape_cast %174 : vector<1x32xf32> to vector<1x1x1x32xf32>
    %176 = vector.broadcast %175 : vector<1x1x1x32xf32> to vector<1x7x8x32xf32>
    %177 = arith.addf %173, %176 : vector<1x7x8x32xf32>
    %cst_125 = arith.constant 0.000000e+00 : f32
    %178 = vector.broadcast %cst_125 : f32 to vector<1x7x8x32xf32>
    %179 = arith.maximumf %177, %178 : vector<1x7x8x32xf32>
    %180 = arith.truncf %179 : vector<1x7x8x32xf32> to vector<1x7x8x32xbf16>
    %c2_126 = arith.constant 2 : index
    %c1_127 = arith.constant 1 : index
    %c0_128 = arith.constant 0 : index
    %c0_129 = arith.constant 0 : index
    %181 = vector.load %arg11[%c2_126, %c1_127, %c0_128, %c0_129] : memref<8x9x8x32xbf16, #tpu.memory_space<vmem>>, vector<1x7x8x32xbf16>
    tpu.vector_store %arg11[%c2_126, %c1_127, %c0_128, %c0_129], %180 {strides = array<i32>} : memref<8x9x8x32xbf16, #tpu.memory_space<vmem>>, vector<1x7x8x32xbf16>,
    %c2_130 = arith.constant 2 : index
    %c0_131 = arith.constant 0 : index
    %c0_132 = arith.constant 0 : index
    %c0_133 = arith.constant 0 : index
    %182 = vector.load %arg1[%c2_130, %c0_131, %c0_132, %c0_133] : memref<8x9x8x1xbf16, #tpu.memory_space<vmem>>, vector<1x7x8x1xbf16>
    %183 = arith.extf %182 : vector<1x7x8x1xbf16> to vector<1x7x8x1xf32>
    %c0_134 = arith.constant 0 : index
    %c0_135 = arith.constant 0 : index
    %184 = vector.load %arg2[%c0_134, %c0_135] : memref<9x32xf32, #tpu.memory_space<vmem>>, vector<1x32xf32>
    %185 = vector.shape_cast %184 : vector<1x32xf32> to vector<32xf32>
    %186 = vector.shape_cast %185 : vector<32xf32> to vector<1x1x1x32xf32>
    %187 = vector.broadcast %183 : vector<1x7x8x1xf32> to vector<1x7x8x32xf32>
    %188 = vector.broadcast %186 : vector<1x1x1x32xf32> to vector<1x7x8x32xf32>
    %189 = arith.mulf %187, %188 : vector<1x7x8x32xf32>
    %c2_136 = arith.constant 2 : index
    %c1_137 = arith.constant 1 : index
    %c0_138 = arith.constant 0 : index
    %c0_139 = arith.constant 0 : index
    %190 = vector.load %arg1[%c2_136, %c1_137, %c0_138, %c0_139] : memref<8x9x8x1xbf16, #tpu.memory_space<vmem>>, vector<1x7x8x1xbf16>
    %191 = arith.extf %190 : vector<1x7x8x1xbf16> to vector<1x7x8x1xf32>
    %c1_140 = arith.constant 1 : index
    %c0_141 = arith.constant 0 : index
    %192 = vector.load %arg2[%c1_140, %c0_141] : memref<9x32xf32, #tpu.memory_space<vmem>>, vector<1x32xf32>
    %193 = vector.shape_cast %192 : vector<1x32xf32> to vector<32xf32>
    %194 = vector.shape_cast %193 : vector<32xf32> to vector<1x1x1x32xf32>
    %195 = vector.broadcast %191 : vector<1x7x8x1xf32> to vector<1x7x8x32xf32>
    %196 = vector.broadcast %194 : vector<1x1x1x32xf32> to vector<1x7x8x32xf32>
    %197 = arith.mulf %195, %196 : vector<1x7x8x32xf32>
    %198 = arith.addf %189, %197 : vector<1x7x8x32xf32>
    %c2_142 = arith.constant 2 : index
    %c2_143 = arith.constant 2 : index
    %c0_144 = arith.constant 0 : index
    %c0_145 = arith.constant 0 : index
    %199 = vector.load %arg1[%c2_142, %c2_143, %c0_144, %c0_145] : memref<8x9x8x1xbf16, #tpu.memory_space<vmem>>, vector<1x7x8x1xbf16>
    %200 = arith.extf %199 : vector<1x7x8x1xbf16> to vector<1x7x8x1xf32>
    %c2_146 = arith.constant 2 : index
    %c0_147 = arith.constant 0 : index
    %201 = vector.load %arg2[%c2_146, %c0_147] : memref<9x32xf32, #tpu.memory_space<vmem>>, vector<1x32xf32>
    %202 = vector.shape_cast %201 : vector<1x32xf32> to vector<32xf32>
    %203 = vector.shape_cast %202 : vector<32xf32> to vector<1x1x1x32xf32>
    %204 = vector.broadcast %200 : vector<1x7x8x1xf32> to vector<1x7x8x32xf32>
    %205 = vector.broadcast %203 : vector<1x1x1x32xf32> to vector<1x7x8x32xf32>
    %206 = arith.mulf %204, %205 : vector<1x7x8x32xf32>
    %207 = arith.addf %198, %206 : vector<1x7x8x32xf32>
    %c3_148 = arith.constant 3 : index
    %c0_149 = arith.constant 0 : index
    %c0_150 = arith.constant 0 : index
    %c0_151 = arith.constant 0 : index
    %208 = vector.load %arg1[%c3_148, %c0_149, %c0_150, %c0_151] : memref<8x9x8x1xbf16, #tpu.memory_space<vmem>>, vector<1x7x8x1xbf16>
    %209 = arith.extf %208 : vector<1x7x8x1xbf16> to vector<1x7x8x1xf32>
    %c3_152 = arith.constant 3 : index
    %c0_153 = arith.constant 0 : index
    %210 = vector.load %arg2[%c3_152, %c0_153] : memref<9x32xf32, #tpu.memory_space<vmem>>, vector<1x32xf32>
    %211 = vector.shape_cast %210 : vector<1x32xf32> to vector<32xf32>
    %212 = vector.shape_cast %211 : vector<32xf32> to vector<1x1x1x32xf32>
    %213 = vector.broadcast %209 : vector<1x7x8x1xf32> to vector<1x7x8x32xf32>
    %214 = vector.broadcast %212 : vector<1x1x1x32xf32> to vector<1x7x8x32xf32>
    %215 = arith.mulf %213, %214 : vector<1x7x8x32xf32>
    %216 = arith.addf %207, %215 : vector<1x7x8x32xf32>
    %c3_154 = arith.constant 3 : index
    %c1_155 = arith.constant 1 : index
    %c0_156 = arith.constant 0 : index
    %c0_157 = arith.constant 0 : index
    %217 = vector.load %arg1[%c3_154, %c1_155, %c0_156, %c0_157] : memref<8x9x8x1xbf16, #tpu.memory_space<vmem>>, vector<1x7x8x1xbf16>
    %218 = arith.extf %217 : vector<1x7x8x1xbf16> to vector<1x7x8x1xf32>
    %c4_158 = arith.constant 4 : index
    %c0_159 = arith.constant 0 : index
    %219 = vector.load %arg2[%c4_158, %c0_159] : memref<9x32xf32, #tpu.memory_space<vmem>>, vector<1x32xf32>
    %220 = vector.shape_cast %219 : vector<1x32xf32> to vector<32xf32>
    %221 = vector.shape_cast %220 : vector<32xf32> to vector<1x1x1x32xf32>
    %222 = vector.broadcast %218 : vector<1x7x8x1xf32> to vector<1x7x8x32xf32>
    %223 = vector.broadcast %221 : vector<1x1x1x32xf32> to vector<1x7x8x32xf32>
    %224 = arith.mulf %222, %223 : vector<1x7x8x32xf32>
    %225 = arith.addf %216, %224 : vector<1x7x8x32xf32>
    %c3_160 = arith.constant 3 : index
    %c2_161 = arith.constant 2 : index
    %c0_162 = arith.constant 0 : index
    %c0_163 = arith.constant 0 : index
    %226 = vector.load %arg1[%c3_160, %c2_161, %c0_162, %c0_163] : memref<8x9x8x1xbf16, #tpu.memory_space<vmem>>, vector<1x7x8x1xbf16>
    %227 = arith.extf %226 : vector<1x7x8x1xbf16> to vector<1x7x8x1xf32>
    %c5_164 = arith.constant 5 : index
    %c0_165 = arith.constant 0 : index
    %228 = vector.load %arg2[%c5_164, %c0_165] : memref<9x32xf32, #tpu.memory_space<vmem>>, vector<1x32xf32>
    %229 = vector.shape_cast %228 : vector<1x32xf32> to vector<32xf32>
    %230 = vector.shape_cast %229 : vector<32xf32> to vector<1x1x1x32xf32>
    %231 = vector.broadcast %227 : vector<1x7x8x1xf32> to vector<1x7x8x32xf32>
    %232 = vector.broadcast %230 : vector<1x1x1x32xf32> to vector<1x7x8x32xf32>
    %233 = arith.mulf %231, %232 : vector<1x7x8x32xf32>
    %234 = arith.addf %225, %233 : vector<1x7x8x32xf32>
    %c4_166 = arith.constant 4 : index
    %c0_167 = arith.constant 0 : index
    %c0_168 = arith.constant 0 : index
    %c0_169 = arith.constant 0 : index
    %235 = vector.load %arg1[%c4_166, %c0_167, %c0_168, %c0_169] : memref<8x9x8x1xbf16, #tpu.memory_space<vmem>>, vector<1x7x8x1xbf16>
    %236 = arith.extf %235 : vector<1x7x8x1xbf16> to vector<1x7x8x1xf32>
    %c6_170 = arith.constant 6 : index
    %c0_171 = arith.constant 0 : index
    %237 = vector.load %arg2[%c6_170, %c0_171] : memref<9x32xf32, #tpu.memory_space<vmem>>, vector<1x32xf32>
    %238 = vector.shape_cast %237 : vector<1x32xf32> to vector<32xf32>
    %239 = vector.shape_cast %238 : vector<32xf32> to vector<1x1x1x32xf32>
    %240 = vector.broadcast %236 : vector<1x7x8x1xf32> to vector<1x7x8x32xf32>
    %241 = vector.broadcast %239 : vector<1x1x1x32xf32> to vector<1x7x8x32xf32>
    %242 = arith.mulf %240, %241 : vector<1x7x8x32xf32>
    %243 = arith.addf %234, %242 : vector<1x7x8x32xf32>
    %c4_172 = arith.constant 4 : index
    %c1_173 = arith.constant 1 : index
    %c0_174 = arith.constant 0 : index
    %c0_175 = arith.constant 0 : index
    %244 = vector.load %arg1[%c4_172, %c1_173, %c0_174, %c0_175] : memref<8x9x8x1xbf16, #tpu.memory_space<vmem>>, vector<1x7x8x1xbf16>
    %245 = arith.extf %244 : vector<1x7x8x1xbf16> to vector<1x7x8x1xf32>
    %c7_176 = arith.constant 7 : index
    %c0_177 = arith.constant 0 : index
    %246 = vector.load %arg2[%c7_176, %c0_177] : memref<9x32xf32, #tpu.memory_space<vmem>>, vector<1x32xf32>
    %247 = vector.shape_cast %246 : vector<1x32xf32> to vector<32xf32>
    %248 = vector.shape_cast %247 : vector<32xf32> to vector<1x1x1x32xf32>
    %249 = vector.broadcast %245 : vector<1x7x8x1xf32> to vector<1x7x8x32xf32>
    %250 = vector.broadcast %248 : vector<1x1x1x32xf32> to vector<1x7x8x32xf32>
    %251 = arith.mulf %249, %250 : vector<1x7x8x32xf32>
    %252 = arith.addf %243, %251 : vector<1x7x8x32xf32>
    %c4_178 = arith.constant 4 : index
    %c2_179 = arith.constant 2 : index
    %c0_180 = arith.constant 0 : index
    %c0_181 = arith.constant 0 : index
    %253 = vector.load %arg1[%c4_178, %c2_179, %c0_180, %c0_181] : memref<8x9x8x1xbf16, #tpu.memory_space<vmem>>, vector<1x7x8x1xbf16>
    %254 = arith.extf %253 : vector<1x7x8x1xbf16> to vector<1x7x8x1xf32>
    %c8_182 = arith.constant 8 : index
    %c0_183 = arith.constant 0 : index
    %255 = vector.load %arg2[%c8_182, %c0_183] : memref<9x32xf32, #tpu.memory_space<vmem>>, vector<1x32xf32>
    %256 = vector.shape_cast %255 : vector<1x32xf32> to vector<32xf32>
    %257 = vector.shape_cast %256 : vector<32xf32> to vector<1x1x1x32xf32>
    %258 = vector.broadcast %254 : vector<1x7x8x1xf32> to vector<1x7x8x32xf32>
    %259 = vector.broadcast %257 : vector<1x1x1x32xf32> to vector<1x7x8x32xf32>
    %260 = arith.mulf %258, %259 : vector<1x7x8x32xf32>
    %261 = arith.addf %252, %260 : vector<1x7x8x32xf32>
    %c0_184 = arith.constant 0 : index
    %c0_185 = arith.constant 0 : index
    %262 = vector.load %arg3[%c0_184, %c0_185] : memref<1x32xf32, #tpu.memory_space<vmem>>, vector<1x32xf32>
    %263 = vector.shape_cast %262 : vector<1x32xf32> to vector<1x1x1x32xf32>
    %264 = vector.broadcast %263 : vector<1x1x1x32xf32> to vector<1x7x8x32xf32>
    %265 = arith.addf %261, %264 : vector<1x7x8x32xf32>
    %cst_186 = arith.constant 0.000000e+00 : f32
    %266 = vector.broadcast %cst_186 : f32 to vector<1x7x8x32xf32>
    %267 = arith.maximumf %265, %266 : vector<1x7x8x32xf32>
    %268 = arith.truncf %267 : vector<1x7x8x32xf32> to vector<1x7x8x32xbf16>
    %c3_187 = arith.constant 3 : index
    %c1_188 = arith.constant 1 : index
    %c0_189 = arith.constant 0 : index
    %c0_190 = arith.constant 0 : index
    %269 = vector.load %arg11[%c3_187, %c1_188, %c0_189, %c0_190] : memref<8x9x8x32xbf16, #tpu.memory_space<vmem>>, vector<1x7x8x32xbf16>
    tpu.vector_store %arg11[%c3_187, %c1_188, %c0_189, %c0_190], %268 {strides = array<i32>} : memref<8x9x8x32xbf16, #tpu.memory_space<vmem>>, vector<1x7x8x32xbf16>,
    %c3_191 = arith.constant 3 : index
    %c0_192 = arith.constant 0 : index
    %c0_193 = arith.constant 0 : index
    %c0_194 = arith.constant 0 : index
    %270 = vector.load %arg1[%c3_191, %c0_192, %c0_193, %c0_194] : memref<8x9x8x1xbf16, #tpu.memory_space<vmem>>, vector<1x7x8x1xbf16>
    %271 = arith.extf %270 : vector<1x7x8x1xbf16> to vector<1x7x8x1xf32>
    %c0_195 = arith.constant 0 : index
    %c0_196 = arith.constant 0 : index
    %272 = vector.load %arg2[%c0_195, %c0_196] : memref<9x32xf32, #tpu.memory_space<vmem>>, vector<1x32xf32>
    %273 = vector.shape_cast %272 : vector<1x32xf32> to vector<32xf32>
    %274 = vector.shape_cast %273 : vector<32xf32> to vector<1x1x1x32xf32>
    %275 = vector.broadcast %271 : vector<1x7x8x1xf32> to vector<1x7x8x32xf32>
    %276 = vector.broadcast %274 : vector<1x1x1x32xf32> to vector<1x7x8x32xf32>
    %277 = arith.mulf %275, %276 : vector<1x7x8x32xf32>
    %c3_197 = arith.constant 3 : index
    %c1_198 = arith.constant 1 : index
    %c0_199 = arith.constant 0 : index
    %c0_200 = arith.constant 0 : index
    %278 = vector.load %arg1[%c3_197, %c1_198, %c0_199, %c0_200] : memref<8x9x8x1xbf16, #tpu.memory_space<vmem>>, vector<1x7x8x1xbf16>
    %279 = arith.extf %278 : vector<1x7x8x1xbf16> to vector<1x7x8x1xf32>
    %c1_201 = arith.constant 1 : index
    %c0_202 = arith.constant 0 : index
    %280 = vector.load %arg2[%c1_201, %c0_202] : memref<9x32xf32, #tpu.memory_space<vmem>>, vector<1x32xf32>
    %281 = vector.shape_cast %280 : vector<1x32xf32> to vector<32xf32>
    %282 = vector.shape_cast %281 : vector<32xf32> to vector<1x1x1x32xf32>
    %283 = vector.broadcast %279 : vector<1x7x8x1xf32> to vector<1x7x8x32xf32>
    %284 = vector.broadcast %282 : vector<1x1x1x32xf32> to vector<1x7x8x32xf32>
    %285 = arith.mulf %283, %284 : vector<1x7x8x32xf32>
    %286 = arith.addf %277, %285 : vector<1x7x8x32xf32>
    %c3_203 = arith.constant 3 : index
    %c2_204 = arith.constant 2 : index
    %c0_205 = arith.constant 0 : index
    %c0_206 = arith.constant 0 : index
    %287 = vector.load %arg1[%c3_203, %c2_204, %c0_205, %c0_206] : memref<8x9x8x1xbf16, #tpu.memory_space<vmem>>, vector<1x7x8x1xbf16>
    %288 = arith.extf %287 : vector<1x7x8x1xbf16> to vector<1x7x8x1xf32>
    %c2_207 = arith.constant 2 : index
    %c0_208 = arith.constant 0 : index
    %289 = vector.load %arg2[%c2_207, %c0_208] : memref<9x32xf32, #tpu.memory_space<vmem>>, vector<1x32xf32>
    %290 = vector.shape_cast %289 : vector<1x32xf32> to vector<32xf32>
    %291 = vector.shape_cast %290 : vector<32xf32> to vector<1x1x1x32xf32>
    %292 = vector.broadcast %288 : vector<1x7x8x1xf32> to vector<1x7x8x32xf32>
    %293 = vector.broadcast %291 : vector<1x1x1x32xf32> to vector<1x7x8x32xf32>
    %294 = arith.mulf %292, %293 : vector<1x7x8x32xf32>
    %295 = arith.addf %286, %294 : vector<1x7x8x32xf32>
    %c4_209 = arith.constant 4 : index
    %c0_210 = arith.constant 0 : index
    %c0_211 = arith.constant 0 : index
    %c0_212 = arith.constant 0 : index
    %296 = vector.load %arg1[%c4_209, %c0_210, %c0_211, %c0_212] : memref<8x9x8x1xbf16, #tpu.memory_space<vmem>>, vector<1x7x8x1xbf16>
    %297 = arith.extf %296 : vector<1x7x8x1xbf16> to vector<1x7x8x1xf32>
    %c3_213 = arith.constant 3 : index
    %c0_214 = arith.constant 0 : index
    %298 = vector.load %arg2[%c3_213, %c0_214] : memref<9x32xf32, #tpu.memory_space<vmem>>, vector<1x32xf32>
    %299 = vector.shape_cast %298 : vector<1x32xf32> to vector<32xf32>
    %300 = vector.shape_cast %299 : vector<32xf32> to vector<1x1x1x32xf32>
    %301 = vector.broadcast %297 : vector<1x7x8x1xf32> to vector<1x7x8x32xf32>
    %302 = vector.broadcast %300 : vector<1x1x1x32xf32> to vector<1x7x8x32xf32>
    %303 = arith.mulf %301, %302 : vector<1x7x8x32xf32>
    %304 = arith.addf %295, %303 : vector<1x7x8x32xf32>
    %c4_215 = arith.constant 4 : index
    %c1_216 = arith.constant 1 : index
    %c0_217 = arith.constant 0 : index
    %c0_218 = arith.constant 0 : index
    %305 = vector.load %arg1[%c4_215, %c1_216, %c0_217, %c0_218] : memref<8x9x8x1xbf16, #tpu.memory_space<vmem>>, vector<1x7x8x1xbf16>
    %306 = arith.extf %305 : vector<1x7x8x1xbf16> to vector<1x7x8x1xf32>
    %c4_219 = arith.constant 4 : index
    %c0_220 = arith.constant 0 : index
    %307 = vector.load %arg2[%c4_219, %c0_220] : memref<9x32xf32, #tpu.memory_space<vmem>>, vector<1x32xf32>
    %308 = vector.shape_cast %307 : vector<1x32xf32> to vector<32xf32>
    %309 = vector.shape_cast %308 : vector<32xf32> to vector<1x1x1x32xf32>
    %310 = vector.broadcast %306 : vector<1x7x8x1xf32> to vector<1x7x8x32xf32>
    %311 = vector.broadcast %309 : vector<1x1x1x32xf32> to vector<1x7x8x32xf32>
    %312 = arith.mulf %310, %311 : vector<1x7x8x32xf32>
    %313 = arith.addf %304, %312 : vector<1x7x8x32xf32>
    %c4_221 = arith.constant 4 : index
    %c2_222 = arith.constant 2 : index
    %c0_223 = arith.constant 0 : index
    %c0_224 = arith.constant 0 : index
    %314 = vector.load %arg1[%c4_221, %c2_222, %c0_223, %c0_224] : memref<8x9x8x1xbf16, #tpu.memory_space<vmem>>, vector<1x7x8x1xbf16>
    %315 = arith.extf %314 : vector<1x7x8x1xbf16> to vector<1x7x8x1xf32>
    %c5_225 = arith.constant 5 : index
    %c0_226 = arith.constant 0 : index
    %316 = vector.load %arg2[%c5_225, %c0_226] : memref<9x32xf32, #tpu.memory_space<vmem>>, vector<1x32xf32>
    %317 = vector.shape_cast %316 : vector<1x32xf32> to vector<32xf32>
    %318 = vector.shape_cast %317 : vector<32xf32> to vector<1x1x1x32xf32>
    %319 = vector.broadcast %315 : vector<1x7x8x1xf32> to vector<1x7x8x32xf32>
    %320 = vector.broadcast %318 : vector<1x1x1x32xf32> to vector<1x7x8x32xf32>
    %321 = arith.mulf %319, %320 : vector<1x7x8x32xf32>
    %322 = arith.addf %313, %321 : vector<1x7x8x32xf32>
    %c5_227 = arith.constant 5 : index
    %c0_228 = arith.constant 0 : index
    %c0_229 = arith.constant 0 : index
    %c0_230 = arith.constant 0 : index
    %323 = vector.load %arg1[%c5_227, %c0_228, %c0_229, %c0_230] : memref<8x9x8x1xbf16, #tpu.memory_space<vmem>>, vector<1x7x8x1xbf16>
    %324 = arith.extf %323 : vector<1x7x8x1xbf16> to vector<1x7x8x1xf32>
    %c6_231 = arith.constant 6 : index
    %c0_232 = arith.constant 0 : index
    %325 = vector.load %arg2[%c6_231, %c0_232] : memref<9x32xf32, #tpu.memory_space<vmem>>, vector<1x32xf32>
    %326 = vector.shape_cast %325 : vector<1x32xf32> to vector<32xf32>
    %327 = vector.shape_cast %326 : vector<32xf32> to vector<1x1x1x32xf32>
    %328 = vector.broadcast %324 : vector<1x7x8x1xf32> to vector<1x7x8x32xf32>
    %329 = vector.broadcast %327 : vector<1x1x1x32xf32> to vector<1x7x8x32xf32>
    %330 = arith.mulf %328, %329 : vector<1x7x8x32xf32>
    %331 = arith.addf %322, %330 : vector<1x7x8x32xf32>
    %c5_233 = arith.constant 5 : index
    %c1_234 = arith.constant 1 : index
    %c0_235 = arith.constant 0 : index
    %c0_236 = arith.constant 0 : index
    %332 = vector.load %arg1[%c5_233, %c1_234, %c0_235, %c0_236] : memref<8x9x8x1xbf16, #tpu.memory_space<vmem>>, vector<1x7x8x1xbf16>
    %333 = arith.extf %332 : vector<1x7x8x1xbf16> to vector<1x7x8x1xf32>
    %c7_237 = arith.constant 7 : index
    %c0_238 = arith.constant 0 : index
    %334 = vector.load %arg2[%c7_237, %c0_238] : memref<9x32xf32, #tpu.memory_space<vmem>>, vector<1x32xf32>
    %335 = vector.shape_cast %334 : vector<1x32xf32> to vector<32xf32>
    %336 = vector.shape_cast %335 : vector<32xf32> to vector<1x1x1x32xf32>
    %337 = vector.broadcast %333 : vector<1x7x8x1xf32> to vector<1x7x8x32xf32>
    %338 = vector.broadcast %336 : vector<1x1x1x32xf32> to vector<1x7x8x32xf32>
    %339 = arith.mulf %337, %338 : vector<1x7x8x32xf32>
    %340 = arith.addf %331, %339 : vector<1x7x8x32xf32>
    %c5_239 = arith.constant 5 : index
    %c2_240 = arith.constant 2 : index
    %c0_241 = arith.constant 0 : index
    %c0_242 = arith.constant 0 : index
    %341 = vector.load %arg1[%c5_239, %c2_240, %c0_241, %c0_242] : memref<8x9x8x1xbf16, #tpu.memory_space<vmem>>, vector<1x7x8x1xbf16>
    %342 = arith.extf %341 : vector<1x7x8x1xbf16> to vector<1x7x8x1xf32>
    %c8_243 = arith.constant 8 : index
    %c0_244 = arith.constant 0 : index
    %343 = vector.load %arg2[%c8_243, %c0_244] : memref<9x32xf32, #tpu.memory_space<vmem>>, vector<1x32xf32>
    %344 = vector.shape_cast %343 : vector<1x32xf32> to vector<32xf32>
    %345 = vector.shape_cast %344 : vector<32xf32> to vector<1x1x1x32xf32>
    %346 = vector.broadcast %342 : vector<1x7x8x1xf32> to vector<1x7x8x32xf32>
    %347 = vector.broadcast %345 : vector<1x1x1x32xf32> to vector<1x7x8x32xf32>
    %348 = arith.mulf %346, %347 : vector<1x7x8x32xf32>
    %349 = arith.addf %340, %348 : vector<1x7x8x32xf32>
    %c0_245 = arith.constant 0 : index
    %c0_246 = arith.constant 0 : index
    %350 = vector.load %arg3[%c0_245, %c0_246] : memref<1x32xf32, #tpu.memory_space<vmem>>, vector<1x32xf32>
    %351 = vector.shape_cast %350 : vector<1x32xf32> to vector<1x1x1x32xf32>
    %352 = vector.broadcast %351 : vector<1x1x1x32xf32> to vector<1x7x8x32xf32>
    %353 = arith.addf %349, %352 : vector<1x7x8x32xf32>
    %cst_247 = arith.constant 0.000000e+00 : f32
    %354 = vector.broadcast %cst_247 : f32 to vector<1x7x8x32xf32>
    %355 = arith.maximumf %353, %354 : vector<1x7x8x32xf32>
    %356 = arith.truncf %355 : vector<1x7x8x32xf32> to vector<1x7x8x32xbf16>
    %c4_248 = arith.constant 4 : index
    %c1_249 = arith.constant 1 : index
    %c0_250 = arith.constant 0 : index
    %c0_251 = arith.constant 0 : index
    %357 = vector.load %arg11[%c4_248, %c1_249, %c0_250, %c0_251] : memref<8x9x8x32xbf16, #tpu.memory_space<vmem>>, vector<1x7x8x32xbf16>
    tpu.vector_store %arg11[%c4_248, %c1_249, %c0_250, %c0_251], %356 {strides = array<i32>} : memref<8x9x8x32xbf16, #tpu.memory_space<vmem>>, vector<1x7x8x32xbf16>,
    %c4_252 = arith.constant 4 : index
    %c0_253 = arith.constant 0 : index
    %c0_254 = arith.constant 0 : index
    %c0_255 = arith.constant 0 : index
    %358 = vector.load %arg1[%c4_252, %c0_253, %c0_254, %c0_255] : memref<8x9x8x1xbf16, #tpu.memory_space<vmem>>, vector<1x7x8x1xbf16>
    %359 = arith.extf %358 : vector<1x7x8x1xbf16> to vector<1x7x8x1xf32>
    %c0_256 = arith.constant 0 : index
    %c0_257 = arith.constant 0 : index
    %360 = vector.load %arg2[%c0_256, %c0_257] : memref<9x32xf32, #tpu.memory_space<vmem>>, vector<1x32xf32>
    %361 = vector.shape_cast %360 : vector<1x32xf32> to vector<32xf32>
    %362 = vector.shape_cast %361 : vector<32xf32> to vector<1x1x1x32xf32>
    %363 = vector.broadcast %359 : vector<1x7x8x1xf32> to vector<1x7x8x32xf32>
    %364 = vector.broadcast %362 : vector<1x1x1x32xf32> to vector<1x7x8x32xf32>
    %365 = arith.mulf %363, %364 : vector<1x7x8x32xf32>
    %c4_258 = arith.constant 4 : index
    %c1_259 = arith.constant 1 : index
    %c0_260 = arith.constant 0 : index
    %c0_261 = arith.constant 0 : index
    %366 = vector.load %arg1[%c4_258, %c1_259, %c0_260, %c0_261] : memref<8x9x8x1xbf16, #tpu.memory_space<vmem>>, vector<1x7x8x1xbf16>
    %367 = arith.extf %366 : vector<1x7x8x1xbf16> to vector<1x7x8x1xf32>
    %c1_262 = arith.constant 1 : index
    %c0_263 = arith.constant 0 : index
    %368 = vector.load %arg2[%c1_262, %c0_263] : memref<9x32xf32, #tpu.memory_space<vmem>>, vector<1x32xf32>
    %369 = vector.shape_cast %368 : vector<1x32xf32> to vector<32xf32>
    %370 = vector.shape_cast %369 : vector<32xf32> to vector<1x1x1x32xf32>
    %371 = vector.broadcast %367 : vector<1x7x8x1xf32> to vector<1x7x8x32xf32>
    %372 = vector.broadcast %370 : vector<1x1x1x32xf32> to vector<1x7x8x32xf32>
    %373 = arith.mulf %371, %372 : vector<1x7x8x32xf32>
    %374 = arith.addf %365, %373 : vector<1x7x8x32xf32>
    %c4_264 = arith.constant 4 : index
    %c2_265 = arith.constant 2 : index
    %c0_266 = arith.constant 0 : index
    %c0_267 = arith.constant 0 : index
    %375 = vector.load %arg1[%c4_264, %c2_265, %c0_266, %c0_267] : memref<8x9x8x1xbf16, #tpu.memory_space<vmem>>, vector<1x7x8x1xbf16>
    %376 = arith.extf %375 : vector<1x7x8x1xbf16> to vector<1x7x8x1xf32>
    %c2_268 = arith.constant 2 : index
    %c0_269 = arith.constant 0 : index
    %377 = vector.load %arg2[%c2_268, %c0_269] : memref<9x32xf32, #tpu.memory_space<vmem>>, vector<1x32xf32>
    %378 = vector.shape_cast %377 : vector<1x32xf32> to vector<32xf32>
    %379 = vector.shape_cast %378 : vector<32xf32> to vector<1x1x1x32xf32>
    %380 = vector.broadcast %376 : vector<1x7x8x1xf32> to vector<1x7x8x32xf32>
    %381 = vector.broadcast %379 : vector<1x1x1x32xf32> to vector<1x7x8x32xf32>
    %382 = arith.mulf %380, %381 : vector<1x7x8x32xf32>
    %383 = arith.addf %374, %382 : vector<1x7x8x32xf32>
    %c5_270 = arith.constant 5 : index
    %c0_271 = arith.constant 0 : index
    %c0_272 = arith.constant 0 : index
    %c0_273 = arith.constant 0 : index
    %384 = vector.load %arg1[%c5_270, %c0_271, %c0_272, %c0_273] : memref<8x9x8x1xbf16, #tpu.memory_space<vmem>>, vector<1x7x8x1xbf16>
    %385 = arith.extf %384 : vector<1x7x8x1xbf16> to vector<1x7x8x1xf32>
    %c3_274 = arith.constant 3 : index
    %c0_275 = arith.constant 0 : index
    %386 = vector.load %arg2[%c3_274, %c0_275] : memref<9x32xf32, #tpu.memory_space<vmem>>, vector<1x32xf32>
    %387 = vector.shape_cast %386 : vector<1x32xf32> to vector<32xf32>
    %388 = vector.shape_cast %387 : vector<32xf32> to vector<1x1x1x32xf32>
    %389 = vector.broadcast %385 : vector<1x7x8x1xf32> to vector<1x7x8x32xf32>
    %390 = vector.broadcast %388 : vector<1x1x1x32xf32> to vector<1x7x8x32xf32>
    %391 = arith.mulf %389, %390 : vector<1x7x8x32xf32>
    %392 = arith.addf %383, %391 : vector<1x7x8x32xf32>
    %c5_276 = arith.constant 5 : index
    %c1_277 = arith.constant 1 : index
    %c0_278 = arith.constant 0 : index
    %c0_279 = arith.constant 0 : index
    %393 = vector.load %arg1[%c5_276, %c1_277, %c0_278, %c0_279] : memref<8x9x8x1xbf16, #tpu.memory_space<vmem>>, vector<1x7x8x1xbf16>
    %394 = arith.extf %393 : vector<1x7x8x1xbf16> to vector<1x7x8x1xf32>
    %c4_280 = arith.constant 4 : index
    %c0_281 = arith.constant 0 : index
    %395 = vector.load %arg2[%c4_280, %c0_281] : memref<9x32xf32, #tpu.memory_space<vmem>>, vector<1x32xf32>
    %396 = vector.shape_cast %395 : vector<1x32xf32> to vector<32xf32>
    %397 = vector.shape_cast %396 : vector<32xf32> to vector<1x1x1x32xf32>
    %398 = vector.broadcast %394 : vector<1x7x8x1xf32> to vector<1x7x8x32xf32>
    %399 = vector.broadcast %397 : vector<1x1x1x32xf32> to vector<1x7x8x32xf32>
    %400 = arith.mulf %398, %399 : vector<1x7x8x32xf32>
    %401 = arith.addf %392, %400 : vector<1x7x8x32xf32>
    %c5_282 = arith.constant 5 : index
    %c2_283 = arith.constant 2 : index
    %c0_284 = arith.constant 0 : index
    %c0_285 = arith.constant 0 : index
    %402 = vector.load %arg1[%c5_282, %c2_283, %c0_284, %c0_285] : memref<8x9x8x1xbf16, #tpu.memory_space<vmem>>, vector<1x7x8x1xbf16>
    %403 = arith.extf %402 : vector<1x7x8x1xbf16> to vector<1x7x8x1xf32>
    %c5_286 = arith.constant 5 : index
    %c0_287 = arith.constant 0 : index
    %404 = vector.load %arg2[%c5_286, %c0_287] : memref<9x32xf32, #tpu.memory_space<vmem>>, vector<1x32xf32>
    %405 = vector.shape_cast %404 : vector<1x32xf32> to vector<32xf32>
    %406 = vector.shape_cast %405 : vector<32xf32> to vector<1x1x1x32xf32>
    %407 = vector.broadcast %403 : vector<1x7x8x1xf32> to vector<1x7x8x32xf32>
    %408 = vector.broadcast %406 : vector<1x1x1x32xf32> to vector<1x7x8x32xf32>
    %409 = arith.mulf %407, %408 : vector<1x7x8x32xf32>
    %410 = arith.addf %401, %409 : vector<1x7x8x32xf32>
    %c6_288 = arith.constant 6 : index
    %c0_289 = arith.constant 0 : index
    %c0_290 = arith.constant 0 : index
    %c0_291 = arith.constant 0 : index
    %411 = vector.load %arg1[%c6_288, %c0_289, %c0_290, %c0_291] : memref<8x9x8x1xbf16, #tpu.memory_space<vmem>>, vector<1x7x8x1xbf16>
    %412 = arith.extf %411 : vector<1x7x8x1xbf16> to vector<1x7x8x1xf32>
    %c6_292 = arith.constant 6 : index
    %c0_293 = arith.constant 0 : index
    %413 = vector.load %arg2[%c6_292, %c0_293] : memref<9x32xf32, #tpu.memory_space<vmem>>, vector<1x32xf32>
    %414 = vector.shape_cast %413 : vector<1x32xf32> to vector<32xf32>
    %415 = vector.shape_cast %414 : vector<32xf32> to vector<1x1x1x32xf32>
    %416 = vector.broadcast %412 : vector<1x7x8x1xf32> to vector<1x7x8x32xf32>
    %417 = vector.broadcast %415 : vector<1x1x1x32xf32> to vector<1x7x8x32xf32>
    %418 = arith.mulf %416, %417 : vector<1x7x8x32xf32>
    %419 = arith.addf %410, %418 : vector<1x7x8x32xf32>
    %c6_294 = arith.constant 6 : index
    %c1_295 = arith.constant 1 : index
    %c0_296 = arith.constant 0 : index
    %c0_297 = arith.constant 0 : index
    %420 = vector.load %arg1[%c6_294, %c1_295, %c0_296, %c0_297] : memref<8x9x8x1xbf16, #tpu.memory_space<vmem>>, vector<1x7x8x1xbf16>
    %421 = arith.extf %420 : vector<1x7x8x1xbf16> to vector<1x7x8x1xf32>
    %c7_298 = arith.constant 7 : index
    %c0_299 = arith.constant 0 : index
    %422 = vector.load %arg2[%c7_298, %c0_299] : memref<9x32xf32, #tpu.memory_space<vmem>>, vector<1x32xf32>
    %423 = vector.shape_cast %422 : vector<1x32xf32> to vector<32xf32>
    %424 = vector.shape_cast %423 : vector<32xf32> to vector<1x1x1x32xf32>
    %425 = vector.broadcast %421 : vector<1x7x8x1xf32> to vector<1x7x8x32xf32>
    %426 = vector.broadcast %424 : vector<1x1x1x32xf32> to vector<1x7x8x32xf32>
    %427 = arith.mulf %425, %426 : vector<1x7x8x32xf32>
    %428 = arith.addf %419, %427 : vector<1x7x8x32xf32>
    %c6_300 = arith.constant 6 : index
    %c2_301 = arith.constant 2 : index
    %c0_302 = arith.constant 0 : index
    %c0_303 = arith.constant 0 : index
    %429 = vector.load %arg1[%c6_300, %c2_301, %c0_302, %c0_303] : memref<8x9x8x1xbf16, #tpu.memory_space<vmem>>, vector<1x7x8x1xbf16>
    %430 = arith.extf %429 : vector<1x7x8x1xbf16> to vector<1x7x8x1xf32>
    %c8_304 = arith.constant 8 : index
    %c0_305 = arith.constant 0 : index
    %431 = vector.load %arg2[%c8_304, %c0_305] : memref<9x32xf32, #tpu.memory_space<vmem>>, vector<1x32xf32>
    %432 = vector.shape_cast %431 : vector<1x32xf32> to vector<32xf32>
    %433 = vector.shape_cast %432 : vector<32xf32> to vector<1x1x1x32xf32>
    %434 = vector.broadcast %430 : vector<1x7x8x1xf32> to vector<1x7x8x32xf32>
    %435 = vector.broadcast %433 : vector<1x1x1x32xf32> to vector<1x7x8x32xf32>
    %436 = arith.mulf %434, %435 : vector<1x7x8x32xf32>
    %437 = arith.addf %428, %436 : vector<1x7x8x32xf32>
    %c0_306 = arith.constant 0 : index
    %c0_307 = arith.constant 0 : index
    %438 = vector.load %arg3[%c0_306, %c0_307] : memref<1x32xf32, #tpu.memory_space<vmem>>, vector<1x32xf32>
    %439 = vector.shape_cast %438 : vector<1x32xf32> to vector<1x1x1x32xf32>
    %440 = vector.broadcast %439 : vector<1x1x1x32xf32> to vector<1x7x8x32xf32>
    %441 = arith.addf %437, %440 : vector<1x7x8x32xf32>
    %cst_308 = arith.constant 0.000000e+00 : f32
    %442 = vector.broadcast %cst_308 : f32 to vector<1x7x8x32xf32>
    %443 = arith.maximumf %441, %442 : vector<1x7x8x32xf32>
    %444 = arith.truncf %443 : vector<1x7x8x32xf32> to vector<1x7x8x32xbf16>
    %c5_309 = arith.constant 5 : index
    %c1_310 = arith.constant 1 : index
    %c0_311 = arith.constant 0 : index
    %c0_312 = arith.constant 0 : index
    %445 = vector.load %arg11[%c5_309, %c1_310, %c0_311, %c0_312] : memref<8x9x8x32xbf16, #tpu.memory_space<vmem>>, vector<1x7x8x32xbf16>
    tpu.vector_store %arg11[%c5_309, %c1_310, %c0_311, %c0_312], %444 {strides = array<i32>} : memref<8x9x8x32xbf16, #tpu.memory_space<vmem>>, vector<1x7x8x32xbf16>,
    %c5_313 = arith.constant 5 : index
    %c0_314 = arith.constant 0 : index
    %c0_315 = arith.constant 0 : index
    %c0_316 = arith.constant 0 : index
    %446 = vector.load %arg1[%c5_313, %c0_314, %c0_315, %c0_316] : memref<8x9x8x1xbf16, #tpu.memory_space<vmem>>, vector<1x7x8x1xbf16>
    %447 = arith.extf %446 : vector<1x7x8x1xbf16> to vector<1x7x8x1xf32>
    %c0_317 = arith.constant 0 : index
    %c0_318 = arith.constant 0 : index
    %448 = vector.load %arg2[%c0_317, %c0_318] : memref<9x32xf32, #tpu.memory_space<vmem>>, vector<1x32xf32>
    %449 = vector.shape_cast %448 : vector<1x32xf32> to vector<32xf32>
    %450 = vector.shape_cast %449 : vector<32xf32> to vector<1x1x1x32xf32>
    %451 = vector.broadcast %447 : vector<1x7x8x1xf32> to vector<1x7x8x32xf32>
    %452 = vector.broadcast %450 : vector<1x1x1x32xf32> to vector<1x7x8x32xf32>
    %453 = arith.mulf %451, %452 : vector<1x7x8x32xf32>
    %c5_319 = arith.constant 5 : index
    %c1_320 = arith.constant 1 : index
    %c0_321 = arith.constant 0 : index
    %c0_322 = arith.constant 0 : index
    %454 = vector.load %arg1[%c5_319, %c1_320, %c0_321, %c0_322] : memref<8x9x8x1xbf16, #tpu.memory_space<vmem>>, vector<1x7x8x1xbf16>
    %455 = arith.extf %454 : vector<1x7x8x1xbf16> to vector<1x7x8x1xf32>
    %c1_323 = arith.constant 1 : index
    %c0_324 = arith.constant 0 : index
    %456 = vector.load %arg2[%c1_323, %c0_324] : memref<9x32xf32, #tpu.memory_space<vmem>>, vector<1x32xf32>
    %457 = vector.shape_cast %456 : vector<1x32xf32> to vector<32xf32>
    %458 = vector.shape_cast %457 : vector<32xf32> to vector<1x1x1x32xf32>
    %459 = vector.broadcast %455 : vector<1x7x8x1xf32> to vector<1x7x8x32xf32>
    %460 = vector.broadcast %458 : vector<1x1x1x32xf32> to vector<1x7x8x32xf32>
    %461 = arith.mulf %459, %460 : vector<1x7x8x32xf32>
    %462 = arith.addf %453, %461 : vector<1x7x8x32xf32>
    %c5_325 = arith.constant 5 : index
    %c2_326 = arith.constant 2 : index
    %c0_327 = arith.constant 0 : index
    %c0_328 = arith.constant 0 : index
    %463 = vector.load %arg1[%c5_325, %c2_326, %c0_327, %c0_328] : memref<8x9x8x1xbf16, #tpu.memory_space<vmem>>, vector<1x7x8x1xbf16>
    %464 = arith.extf %463 : vector<1x7x8x1xbf16> to vector<1x7x8x1xf32>
    %c2_329 = arith.constant 2 : index
    %c0_330 = arith.constant 0 : index
    %465 = vector.load %arg2[%c2_329, %c0_330] : memref<9x32xf32, #tpu.memory_space<vmem>>, vector<1x32xf32>
    %466 = vector.shape_cast %465 : vector<1x32xf32> to vector<32xf32>
    %467 = vector.shape_cast %466 : vector<32xf32> to vector<1x1x1x32xf32>
    %468 = vector.broadcast %464 : vector<1x7x8x1xf32> to vector<1x7x8x32xf32>
    %469 = vector.broadcast %467 : vector<1x1x1x32xf32> to vector<1x7x8x32xf32>
    %470 = arith.mulf %468, %469 : vector<1x7x8x32xf32>
    %471 = arith.addf %462, %470 : vector<1x7x8x32xf32>
    %c6_331 = arith.constant 6 : index
    %c0_332 = arith.constant 0 : index
    %c0_333 = arith.constant 0 : index
    %c0_334 = arith.constant 0 : index
    %472 = vector.load %arg1[%c6_331, %c0_332, %c0_333, %c0_334] : memref<8x9x8x1xbf16, #tpu.memory_space<vmem>>, vector<1x7x8x1xbf16>
    %473 = arith.extf %472 : vector<1x7x8x1xbf16> to vector<1x7x8x1xf32>
    %c3_335 = arith.constant 3 : index
    %c0_336 = arith.constant 0 : index
    %474 = vector.load %arg2[%c3_335, %c0_336] : memref<9x32xf32, #tpu.memory_space<vmem>>, vector<1x32xf32>
    %475 = vector.shape_cast %474 : vector<1x32xf32> to vector<32xf32>
    %476 = vector.shape_cast %475 : vector<32xf32> to vector<1x1x1x32xf32>
    %477 = vector.broadcast %473 : vector<1x7x8x1xf32> to vector<1x7x8x32xf32>
    %478 = vector.broadcast %476 : vector<1x1x1x32xf32> to vector<1x7x8x32xf32>
    %479 = arith.mulf %477, %478 : vector<1x7x8x32xf32>
    %480 = arith.addf %471, %479 : vector<1x7x8x32xf32>
    %c6_337 = arith.constant 6 : index
    %c1_338 = arith.constant 1 : index
    %c0_339 = arith.constant 0 : index
    %c0_340 = arith.constant 0 : index
    %481 = vector.load %arg1[%c6_337, %c1_338, %c0_339, %c0_340] : memref<8x9x8x1xbf16, #tpu.memory_space<vmem>>, vector<1x7x8x1xbf16>
    %482 = arith.extf %481 : vector<1x7x8x1xbf16> to vector<1x7x8x1xf32>
    %c4_341 = arith.constant 4 : index
    %c0_342 = arith.constant 0 : index
    %483 = vector.load %arg2[%c4_341, %c0_342] : memref<9x32xf32, #tpu.memory_space<vmem>>, vector<1x32xf32>
    %484 = vector.shape_cast %483 : vector<1x32xf32> to vector<32xf32>
    %485 = vector.shape_cast %484 : vector<32xf32> to vector<1x1x1x32xf32>
    %486 = vector.broadcast %482 : vector<1x7x8x1xf32> to vector<1x7x8x32xf32>
    %487 = vector.broadcast %485 : vector<1x1x1x32xf32> to vector<1x7x8x32xf32>
    %488 = arith.mulf %486, %487 : vector<1x7x8x32xf32>
    %489 = arith.addf %480, %488 : vector<1x7x8x32xf32>
    %c6_343 = arith.constant 6 : index
    %c2_344 = arith.constant 2 : index
    %c0_345 = arith.constant 0 : index
    %c0_346 = arith.constant 0 : index
    %490 = vector.load %arg1[%c6_343, %c2_344, %c0_345, %c0_346] : memref<8x9x8x1xbf16, #tpu.memory_space<vmem>>, vector<1x7x8x1xbf16>
    %491 = arith.extf %490 : vector<1x7x8x1xbf16> to vector<1x7x8x1xf32>
    %c5_347 = arith.constant 5 : index
    %c0_348 = arith.constant 0 : index
    %492 = vector.load %arg2[%c5_347, %c0_348] : memref<9x32xf32, #tpu.memory_space<vmem>>, vector<1x32xf32>
    %493 = vector.shape_cast %492 : vector<1x32xf32> to vector<32xf32>
    %494 = vector.shape_cast %493 : vector<32xf32> to vector<1x1x1x32xf32>
    %495 = vector.broadcast %491 : vector<1x7x8x1xf32> to vector<1x7x8x32xf32>
    %496 = vector.broadcast %494 : vector<1x1x1x32xf32> to vector<1x7x8x32xf32>
    %497 = arith.mulf %495, %496 : vector<1x7x8x32xf32>
    %498 = arith.addf %489, %497 : vector<1x7x8x32xf32>
    %c7_349 = arith.constant 7 : index
    %c0_350 = arith.constant 0 : index
    %c0_351 = arith.constant 0 : index
    %c0_352 = arith.constant 0 : index
    %499 = vector.load %arg1[%c7_349, %c0_350, %c0_351, %c0_352] : memref<8x9x8x1xbf16, #tpu.memory_space<vmem>>, vector<1x7x8x1xbf16>
    %500 = arith.extf %499 : vector<1x7x8x1xbf16> to vector<1x7x8x1xf32>
    %c6_353 = arith.constant 6 : index
    %c0_354 = arith.constant 0 : index
    %501 = vector.load %arg2[%c6_353, %c0_354] : memref<9x32xf32, #tpu.memory_space<vmem>>, vector<1x32xf32>
    %502 = vector.shape_cast %501 : vector<1x32xf32> to vector<32xf32>
    %503 = vector.shape_cast %502 : vector<32xf32> to vector<1x1x1x32xf32>
    %504 = vector.broadcast %500 : vector<1x7x8x1xf32> to vector<1x7x8x32xf32>
    %505 = vector.broadcast %503 : vector<1x1x1x32xf32> to vector<1x7x8x32xf32>
    %506 = arith.mulf %504, %505 : vector<1x7x8x32xf32>
    %507 = arith.addf %498, %506 : vector<1x7x8x32xf32>
    %c7_355 = arith.constant 7 : index
    %c1_356 = arith.constant 1 : index
    %c0_357 = arith.constant 0 : index
    %c0_358 = arith.constant 0 : index
    %508 = vector.load %arg1[%c7_355, %c1_356, %c0_357, %c0_358] : memref<8x9x8x1xbf16, #tpu.memory_space<vmem>>, vector<1x7x8x1xbf16>
    %509 = arith.extf %508 : vector<1x7x8x1xbf16> to vector<1x7x8x1xf32>
    %c7_359 = arith.constant 7 : index
    %c0_360 = arith.constant 0 : index
    %510 = vector.load %arg2[%c7_359, %c0_360] : memref<9x32xf32, #tpu.memory_space<vmem>>, vector<1x32xf32>
    %511 = vector.shape_cast %510 : vector<1x32xf32> to vector<32xf32>
    %512 = vector.shape_cast %511 : vector<32xf32> to vector<1x1x1x32xf32>
    %513 = vector.broadcast %509 : vector<1x7x8x1xf32> to vector<1x7x8x32xf32>
    %514 = vector.broadcast %512 : vector<1x1x1x32xf32> to vector<1x7x8x32xf32>
    %515 = arith.mulf %513, %514 : vector<1x7x8x32xf32>
    %516 = arith.addf %507, %515 : vector<1x7x8x32xf32>
    %c7_361 = arith.constant 7 : index
    %c2_362 = arith.constant 2 : index
    %c0_363 = arith.constant 0 : index
    %c0_364 = arith.constant 0 : index
    %517 = vector.load %arg1[%c7_361, %c2_362, %c0_363, %c0_364] : memref<8x9x8x1xbf16, #tpu.memory_space<vmem>>, vector<1x7x8x1xbf16>
    %518 = arith.extf %517 : vector<1x7x8x1xbf16> to vector<1x7x8x1xf32>
    %c8_365 = arith.constant 8 : index
    %c0_366 = arith.constant 0 : index
    %519 = vector.load %arg2[%c8_365, %c0_366] : memref<9x32xf32, #tpu.memory_space<vmem>>, vector<1x32xf32>
    %520 = vector.shape_cast %519 : vector<1x32xf32> to vector<32xf32>
    %521 = vector.shape_cast %520 : vector<32xf32> to vector<1x1x1x32xf32>
    %522 = vector.broadcast %518 : vector<1x7x8x1xf32> to vector<1x7x8x32xf32>
    %523 = vector.broadcast %521 : vector<1x1x1x32xf32> to vector<1x7x8x32xf32>
    %524 = arith.mulf %522, %523 : vector<1x7x8x32xf32>
    %525 = arith.addf %516, %524 : vector<1x7x8x32xf32>
    %c0_367 = arith.constant 0 : index
    %c0_368 = arith.constant 0 : index
    %526 = vector.load %arg3[%c0_367, %c0_368] : memref<1x32xf32, #tpu.memory_space<vmem>>, vector<1x32xf32>
    %527 = vector.shape_cast %526 : vector<1x32xf32> to vector<1x1x1x32xf32>
    %528 = vector.broadcast %527 : vector<1x1x1x32xf32> to vector<1x7x8x32xf32>
    %529 = arith.addf %525, %528 : vector<1x7x8x32xf32>
    %cst_369 = arith.constant 0.000000e+00 : f32
    %530 = vector.broadcast %cst_369 : f32 to vector<1x7x8x32xf32>
    %531 = arith.maximumf %529, %530 : vector<1x7x8x32xf32>
    %532 = arith.truncf %531 : vector<1x7x8x32xf32> to vector<1x7x8x32xbf16>
    %c6_370 = arith.constant 6 : index
    %c1_371 = arith.constant 1 : index
    %c0_372 = arith.constant 0 : index
    %c0_373 = arith.constant 0 : index
    %533 = vector.load %arg11[%c6_370, %c1_371, %c0_372, %c0_373] : memref<8x9x8x32xbf16, #tpu.memory_space<vmem>>, vector<1x7x8x32xbf16>
    tpu.vector_store %arg11[%c6_370, %c1_371, %c0_372, %c0_373], %532 {strides = array<i32>} : memref<8x9x8x32xbf16, #tpu.memory_space<vmem>>, vector<1x7x8x32xbf16>,
    %c0_374 = arith.constant 0 : index
    %c0_375 = arith.constant 0 : index
    %c0_376 = arith.constant 0 : index
    %c0_377 = arith.constant 0 : index
    %534 = vector.load %arg11[%c0_374, %c0_375, %c0_376, %c0_377] : memref<8x9x8x32xbf16, #tpu.memory_space<vmem>>, vector<6x7x8x32xbf16>
    %c0_378 = arith.constant 0 : index
    %c1_379 = arith.constant 1 : index
    %c0_380 = arith.constant 0 : index
    %c0_381 = arith.constant 0 : index
    %535 = vector.load %arg11[%c0_378, %c1_379, %c0_380, %c0_381] : memref<8x9x8x32xbf16, #tpu.memory_space<vmem>>, vector<6x7x8x32xbf16>
    %c0_382 = arith.constant 0 : index
    %c2_383 = arith.constant 2 : index
    %c0_384 = arith.constant 0 : index
    %c0_385 = arith.constant 0 : index
    %536 = vector.load %arg11[%c0_382, %c2_383, %c0_384, %c0_385] : memref<8x9x8x32xbf16, #tpu.memory_space<vmem>>, vector<6x7x8x32xbf16>
    %c1_386 = arith.constant 1 : index
    %c0_387 = arith.constant 0 : index
    %c0_388 = arith.constant 0 : index
    %c0_389 = arith.constant 0 : index
    %537 = vector.load %arg11[%c1_386, %c0_387, %c0_388, %c0_389] : memref<8x9x8x32xbf16, #tpu.memory_space<vmem>>, vector<6x7x8x32xbf16>
    %c1_390 = arith.constant 1 : index
    %c1_391 = arith.constant 1 : index
    %c0_392 = arith.constant 0 : index
    %c0_393 = arith.constant 0 : index
    %538 = vector.load %arg11[%c1_390, %c1_391, %c0_392, %c0_393] : memref<8x9x8x32xbf16, #tpu.memory_space<vmem>>, vector<6x7x8x32xbf16>
    %c1_394 = arith.constant 1 : index
    %c2_395 = arith.constant 2 : index
    %c0_396 = arith.constant 0 : index
    %c0_397 = arith.constant 0 : index
    %539 = vector.load %arg11[%c1_394, %c2_395, %c0_396, %c0_397] : memref<8x9x8x32xbf16, #tpu.memory_space<vmem>>, vector<6x7x8x32xbf16>
    %c2_398 = arith.constant 2 : index
    %c0_399 = arith.constant 0 : index
    %c0_400 = arith.constant 0 : index
    %c0_401 = arith.constant 0 : index
    %540 = vector.load %arg11[%c2_398, %c0_399, %c0_400, %c0_401] : memref<8x9x8x32xbf16, #tpu.memory_space<vmem>>, vector<6x7x8x32xbf16>
    %c2_402 = arith.constant 2 : index
    %c1_403 = arith.constant 1 : index
    %c0_404 = arith.constant 0 : index
    %c0_405 = arith.constant 0 : index
    %541 = vector.load %arg11[%c2_402, %c1_403, %c0_404, %c0_405] : memref<8x9x8x32xbf16, #tpu.memory_space<vmem>>, vector<6x7x8x32xbf16>
    %c2_406 = arith.constant 2 : index
    %c2_407 = arith.constant 2 : index
    %c0_408 = arith.constant 0 : index
    %c0_409 = arith.constant 0 : index
    %542 = vector.load %arg11[%c2_406, %c2_407, %c0_408, %c0_409] : memref<8x9x8x32xbf16, #tpu.memory_space<vmem>>, vector<6x7x8x32xbf16>
    %543 = tpu.concatenate %534, %535, %536, %537, %538, %539, %540, %541, %542 in 3 : vector<6x7x8x32xbf16>, vector<6x7x8x32xbf16>, vector<6x7x8x32xbf16>, vector<6x7x8x32xbf16>, vector<6x7x8x32xbf16>, vector<6x7x8x32xbf16>, vector<6x7x8x32xbf16>, vector<6x7x8x32xbf16>, vector<6x7x8x32xbf16> -> vector<6x7x8x288xbf16>
    %544 = vector.shape_cast %543 : vector<6x7x8x288xbf16> to vector<336x288xbf16>
    %c0_410 = arith.constant 0 : index
    %c0_411 = arith.constant 0 : index
    %545 = vector.load %arg12[%c0_410, %c0_411] : memref<336x288xbf16, #tpu.memory_space<vmem>>, vector<336x288xbf16>
    tpu.vector_store %arg12[%c0_410, %c0_411], %544 {strides = array<i32>} : memref<336x288xbf16, #tpu.memory_space<vmem>>, vector<336x288xbf16>,
    %c0_412 = arith.constant 0 : index
    %c0_413 = arith.constant 0 : index
    %546 = vector.load %arg12[%c0_412, %c0_413] : memref<336x288xbf16, #tpu.memory_space<vmem>>, vector<336x288xbf16>
    %c0_414 = arith.constant 0 : index
    %c0_415 = arith.constant 0 : index
    %547 = vector.load %arg4[%c0_414, %c0_415] : memref<288x64xbf16, #tpu.memory_space<vmem>>, vector<288x64xbf16>
    %cst_416 = arith.constant dense<0.000000e+00> : vector<336x64xf32>
    %548 = tpu.matmul %546, %547, %cst_416 {dimension_numbers = #tpu.dot_dimension_numbers<[1], [0], [0], [1], [0, 0, 1, 1], [], []>} : vector<336x288xbf16>, vector<288x64xbf16>, vector<336x64xf32> -> vector<336x64xf32>
    %c0_417 = arith.constant 0 : index
    %c0_418 = arith.constant 0 : index
    %549 = vector.load %arg5[%c0_417, %c0_418] : memref<1x64xf32, #tpu.memory_space<vmem>>, vector<1x64xf32>
    %550 = vector.broadcast %549 : vector<1x64xf32> to vector<336x64xf32>
    %551 = arith.addf %548, %550 : vector<336x64xf32>
    %cst_419 = arith.constant 0.000000e+00 : f32
    %552 = vector.broadcast %cst_419 : f32 to vector<336x64xf32>
    %553 = arith.maximumf %551, %552 : vector<336x64xf32>
    %554 = arith.truncf %553 : vector<336x64xf32> to vector<336x64xbf16>
    %c0_420 = arith.constant 0 : index
    %c0_421 = arith.constant 0 : index
    %555 = vector.load %arg13[%c0_420, %c0_421] : memref<336x64xbf16, #tpu.memory_space<vmem>>, vector<336x64xbf16>
    tpu.vector_store %arg13[%c0_420, %c0_421], %554 {strides = array<i32>} : memref<336x64xbf16, #tpu.memory_space<vmem>>, vector<336x64xbf16>,
    %c0_422 = arith.constant 0 : index
    %c0_423 = arith.constant 0 : index
    %556 = vector.load %arg13[%c0_422, %c0_423] : memref<336x64xbf16, #tpu.memory_space<vmem>>, vector<8x64xbf16>
    %c0_424 = arith.constant 0 : index
    %c0_425 = arith.constant 0 : index
    %557 = vector.load %arg14[%c0_424, %c0_425] : memref<8x2688xbf16, #tpu.memory_space<vmem>>, vector<8x64xbf16>
    tpu.vector_store %arg14[%c0_424, %c0_425], %556 {strides = array<i32>} : memref<8x2688xbf16, #tpu.memory_space<vmem>>, vector<8x64xbf16>,
    %c8_426 = arith.constant 8 : index
    %c0_427 = arith.constant 0 : index
    %558 = vector.load %arg13[%c8_426, %c0_427] : memref<336x64xbf16, #tpu.memory_space<vmem>>, vector<8x64xbf16>
    %c0_428 = arith.constant 0 : index
    %c64 = arith.constant 64 : index
    %559 = vector.load %arg14[%c0_428, %c64] : memref<8x2688xbf16, #tpu.memory_space<vmem>>, vector<8x64xbf16>
    tpu.vector_store %arg14[%c0_428, %c64], %558 {strides = array<i32>} : memref<8x2688xbf16, #tpu.memory_space<vmem>>, vector<8x64xbf16>,
    %c16 = arith.constant 16 : index
    %c0_429 = arith.constant 0 : index
    %560 = vector.load %arg13[%c16, %c0_429] : memref<336x64xbf16, #tpu.memory_space<vmem>>, vector<8x64xbf16>
    %c0_430 = arith.constant 0 : index
    %c128 = arith.constant 128 : index
    %561 = vector.load %arg14[%c0_430, %c128] : memref<8x2688xbf16, #tpu.memory_space<vmem>>, vector<8x64xbf16>
    tpu.vector_store %arg14[%c0_430, %c128], %560 {strides = array<i32>} : memref<8x2688xbf16, #tpu.memory_space<vmem>>, vector<8x64xbf16>,
    %c24 = arith.constant 24 : index
    %c0_431 = arith.constant 0 : index
    %562 = vector.load %arg13[%c24, %c0_431] : memref<336x64xbf16, #tpu.memory_space<vmem>>, vector<8x64xbf16>
    %c0_432 = arith.constant 0 : index
    %c192 = arith.constant 192 : index
    %563 = vector.load %arg14[%c0_432, %c192] : memref<8x2688xbf16, #tpu.memory_space<vmem>>, vector<8x64xbf16>
    tpu.vector_store %arg14[%c0_432, %c192], %562 {strides = array<i32>} : memref<8x2688xbf16, #tpu.memory_space<vmem>>, vector<8x64xbf16>,
    %c32 = arith.constant 32 : index
    %c0_433 = arith.constant 0 : index
    %564 = vector.load %arg13[%c32, %c0_433] : memref<336x64xbf16, #tpu.memory_space<vmem>>, vector<8x64xbf16>
    %c0_434 = arith.constant 0 : index
    %c256 = arith.constant 256 : index
    %565 = vector.load %arg14[%c0_434, %c256] : memref<8x2688xbf16, #tpu.memory_space<vmem>>, vector<8x64xbf16>
    tpu.vector_store %arg14[%c0_434, %c256], %564 {strides = array<i32>} : memref<8x2688xbf16, #tpu.memory_space<vmem>>, vector<8x64xbf16>,
    %c40 = arith.constant 40 : index
    %c0_435 = arith.constant 0 : index
    %566 = vector.load %arg13[%c40, %c0_435] : memref<336x64xbf16, #tpu.memory_space<vmem>>, vector<8x64xbf16>
    %c0_436 = arith.constant 0 : index
    %c320 = arith.constant 320 : index
    %567 = vector.load %arg14[%c0_436, %c320] : memref<8x2688xbf16, #tpu.memory_space<vmem>>, vector<8x64xbf16>
    tpu.vector_store %arg14[%c0_436, %c320], %566 {strides = array<i32>} : memref<8x2688xbf16, #tpu.memory_space<vmem>>, vector<8x64xbf16>,
    %c48 = arith.constant 48 : index
    %c0_437 = arith.constant 0 : index
    %568 = vector.load %arg13[%c48, %c0_437] : memref<336x64xbf16, #tpu.memory_space<vmem>>, vector<8x64xbf16>
    %c0_438 = arith.constant 0 : index
    %c384 = arith.constant 384 : index
    %569 = vector.load %arg14[%c0_438, %c384] : memref<8x2688xbf16, #tpu.memory_space<vmem>>, vector<8x64xbf16>
    tpu.vector_store %arg14[%c0_438, %c384], %568 {strides = array<i32>} : memref<8x2688xbf16, #tpu.memory_space<vmem>>, vector<8x64xbf16>,
    %c56 = arith.constant 56 : index
    %c0_439 = arith.constant 0 : index
    %570 = vector.load %arg13[%c56, %c0_439] : memref<336x64xbf16, #tpu.memory_space<vmem>>, vector<8x64xbf16>
    %c0_440 = arith.constant 0 : index
    %c448 = arith.constant 448 : index
    %571 = vector.load %arg14[%c0_440, %c448] : memref<8x2688xbf16, #tpu.memory_space<vmem>>, vector<8x64xbf16>
    tpu.vector_store %arg14[%c0_440, %c448], %570 {strides = array<i32>} : memref<8x2688xbf16, #tpu.memory_space<vmem>>, vector<8x64xbf16>,
    %c64_441 = arith.constant 64 : index
    %c0_442 = arith.constant 0 : index
    %572 = vector.load %arg13[%c64_441, %c0_442] : memref<336x64xbf16, #tpu.memory_space<vmem>>, vector<8x64xbf16>
    %c0_443 = arith.constant 0 : index
    %c512 = arith.constant 512 : index
    %573 = vector.load %arg14[%c0_443, %c512] : memref<8x2688xbf16, #tpu.memory_space<vmem>>, vector<8x64xbf16>
    tpu.vector_store %arg14[%c0_443, %c512], %572 {strides = array<i32>} : memref<8x2688xbf16, #tpu.memory_space<vmem>>, vector<8x64xbf16>,
    %c72 = arith.constant 72 : index
    %c0_444 = arith.constant 0 : index
    %574 = vector.load %arg13[%c72, %c0_444] : memref<336x64xbf16, #tpu.memory_space<vmem>>, vector<8x64xbf16>
    %c0_445 = arith.constant 0 : index
    %c576 = arith.constant 576 : index
    %575 = vector.load %arg14[%c0_445, %c576] : memref<8x2688xbf16, #tpu.memory_space<vmem>>, vector<8x64xbf16>
    tpu.vector_store %arg14[%c0_445, %c576], %574 {strides = array<i32>} : memref<8x2688xbf16, #tpu.memory_space<vmem>>, vector<8x64xbf16>,
    %c80 = arith.constant 80 : index
    %c0_446 = arith.constant 0 : index
    %576 = vector.load %arg13[%c80, %c0_446] : memref<336x64xbf16, #tpu.memory_space<vmem>>, vector<8x64xbf16>
    %c0_447 = arith.constant 0 : index
    %c640 = arith.constant 640 : index
    %577 = vector.load %arg14[%c0_447, %c640] : memref<8x2688xbf16, #tpu.memory_space<vmem>>, vector<8x64xbf16>
    tpu.vector_store %arg14[%c0_447, %c640], %576 {strides = array<i32>} : memref<8x2688xbf16, #tpu.memory_space<vmem>>, vector<8x64xbf16>,
    %c88 = arith.constant 88 : index
    %c0_448 = arith.constant 0 : index
    %578 = vector.load %arg13[%c88, %c0_448] : memref<336x64xbf16, #tpu.memory_space<vmem>>, vector<8x64xbf16>
    %c0_449 = arith.constant 0 : index
    %c704 = arith.constant 704 : index
    %579 = vector.load %arg14[%c0_449, %c704] : memref<8x2688xbf16, #tpu.memory_space<vmem>>, vector<8x64xbf16>
    tpu.vector_store %arg14[%c0_449, %c704], %578 {strides = array<i32>} : memref<8x2688xbf16, #tpu.memory_space<vmem>>, vector<8x64xbf16>,
    %c96 = arith.constant 96 : index
    %c0_450 = arith.constant 0 : index
    %580 = vector.load %arg13[%c96, %c0_450] : memref<336x64xbf16, #tpu.memory_space<vmem>>, vector<8x64xbf16>
    %c0_451 = arith.constant 0 : index
    %c768 = arith.constant 768 : index
    %581 = vector.load %arg14[%c0_451, %c768] : memref<8x2688xbf16, #tpu.memory_space<vmem>>, vector<8x64xbf16>
    tpu.vector_store %arg14[%c0_451, %c768], %580 {strides = array<i32>} : memref<8x2688xbf16, #tpu.memory_space<vmem>>, vector<8x64xbf16>,
    %c104 = arith.constant 104 : index
    %c0_452 = arith.constant 0 : index
    %582 = vector.load %arg13[%c104, %c0_452] : memref<336x64xbf16, #tpu.memory_space<vmem>>, vector<8x64xbf16>
    %c0_453 = arith.constant 0 : index
    %c832 = arith.constant 832 : index
    %583 = vector.load %arg14[%c0_453, %c832] : memref<8x2688xbf16, #tpu.memory_space<vmem>>, vector<8x64xbf16>
    tpu.vector_store %arg14[%c0_453, %c832], %582 {strides = array<i32>} : memref<8x2688xbf16, #tpu.memory_space<vmem>>, vector<8x64xbf16>,
    %c112 = arith.constant 112 : index
    %c0_454 = arith.constant 0 : index
    %584 = vector.load %arg13[%c112, %c0_454] : memref<336x64xbf16, #tpu.memory_space<vmem>>, vector<8x64xbf16>
    %c0_455 = arith.constant 0 : index
    %c896 = arith.constant 896 : index
    %585 = vector.load %arg14[%c0_455, %c896] : memref<8x2688xbf16, #tpu.memory_space<vmem>>, vector<8x64xbf16>
    tpu.vector_store %arg14[%c0_455, %c896], %584 {strides = array<i32>} : memref<8x2688xbf16, #tpu.memory_space<vmem>>, vector<8x64xbf16>,
    %c120 = arith.constant 120 : index
    %c0_456 = arith.constant 0 : index
    %586 = vector.load %arg13[%c120, %c0_456] : memref<336x64xbf16, #tpu.memory_space<vmem>>, vector<8x64xbf16>
    %c0_457 = arith.constant 0 : index
    %c960 = arith.constant 960 : index
    %587 = vector.load %arg14[%c0_457, %c960] : memref<8x2688xbf16, #tpu.memory_space<vmem>>, vector<8x64xbf16>
    tpu.vector_store %arg14[%c0_457, %c960], %586 {strides = array<i32>} : memref<8x2688xbf16, #tpu.memory_space<vmem>>, vector<8x64xbf16>,
    %c128_458 = arith.constant 128 : index
    %c0_459 = arith.constant 0 : index
    %588 = vector.load %arg13[%c128_458, %c0_459] : memref<336x64xbf16, #tpu.memory_space<vmem>>, vector<8x64xbf16>
    %c0_460 = arith.constant 0 : index
    %c1024 = arith.constant 1024 : index
    %589 = vector.load %arg14[%c0_460, %c1024] : memref<8x2688xbf16, #tpu.memory_space<vmem>>, vector<8x64xbf16>
    tpu.vector_store %arg14[%c0_460, %c1024], %588 {strides = array<i32>} : memref<8x2688xbf16, #tpu.memory_space<vmem>>, vector<8x64xbf16>,
    %c136 = arith.constant 136 : index
    %c0_461 = arith.constant 0 : index
    %590 = vector.load %arg13[%c136, %c0_461] : memref<336x64xbf16, #tpu.memory_space<vmem>>, vector<8x64xbf16>
    %c0_462 = arith.constant 0 : index
    %c1088 = arith.constant 1088 : index
    %591 = vector.load %arg14[%c0_462, %c1088] : memref<8x2688xbf16, #tpu.memory_space<vmem>>, vector<8x64xbf16>
    tpu.vector_store %arg14[%c0_462, %c1088], %590 {strides = array<i32>} : memref<8x2688xbf16, #tpu.memory_space<vmem>>, vector<8x64xbf16>,
    %c144 = arith.constant 144 : index
    %c0_463 = arith.constant 0 : index
    %592 = vector.load %arg13[%c144, %c0_463] : memref<336x64xbf16, #tpu.memory_space<vmem>>, vector<8x64xbf16>
    %c0_464 = arith.constant 0 : index
    %c1152 = arith.constant 1152 : index
    %593 = vector.load %arg14[%c0_464, %c1152] : memref<8x2688xbf16, #tpu.memory_space<vmem>>, vector<8x64xbf16>
    tpu.vector_store %arg14[%c0_464, %c1152], %592 {strides = array<i32>} : memref<8x2688xbf16, #tpu.memory_space<vmem>>, vector<8x64xbf16>,
    %c152 = arith.constant 152 : index
    %c0_465 = arith.constant 0 : index
    %594 = vector.load %arg13[%c152, %c0_465] : memref<336x64xbf16, #tpu.memory_space<vmem>>, vector<8x64xbf16>
    %c0_466 = arith.constant 0 : index
    %c1216 = arith.constant 1216 : index
    %595 = vector.load %arg14[%c0_466, %c1216] : memref<8x2688xbf16, #tpu.memory_space<vmem>>, vector<8x64xbf16>
    tpu.vector_store %arg14[%c0_466, %c1216], %594 {strides = array<i32>} : memref<8x2688xbf16, #tpu.memory_space<vmem>>, vector<8x64xbf16>,
    %c160 = arith.constant 160 : index
    %c0_467 = arith.constant 0 : index
    %596 = vector.load %arg13[%c160, %c0_467] : memref<336x64xbf16, #tpu.memory_space<vmem>>, vector<8x64xbf16>
    %c0_468 = arith.constant 0 : index
    %c1280 = arith.constant 1280 : index
    %597 = vector.load %arg14[%c0_468, %c1280] : memref<8x2688xbf16, #tpu.memory_space<vmem>>, vector<8x64xbf16>
    tpu.vector_store %arg14[%c0_468, %c1280], %596 {strides = array<i32>} : memref<8x2688xbf16, #tpu.memory_space<vmem>>, vector<8x64xbf16>,
    %c168 = arith.constant 168 : index
    %c0_469 = arith.constant 0 : index
    %598 = vector.load %arg13[%c168, %c0_469] : memref<336x64xbf16, #tpu.memory_space<vmem>>, vector<8x64xbf16>
    %c0_470 = arith.constant 0 : index
    %c1344 = arith.constant 1344 : index
    %599 = vector.load %arg14[%c0_470, %c1344] : memref<8x2688xbf16, #tpu.memory_space<vmem>>, vector<8x64xbf16>
    tpu.vector_store %arg14[%c0_470, %c1344], %598 {strides = array<i32>} : memref<8x2688xbf16, #tpu.memory_space<vmem>>, vector<8x64xbf16>,
    %c176 = arith.constant 176 : index
    %c0_471 = arith.constant 0 : index
    %600 = vector.load %arg13[%c176, %c0_471] : memref<336x64xbf16, #tpu.memory_space<vmem>>, vector<8x64xbf16>
    %c0_472 = arith.constant 0 : index
    %c1408 = arith.constant 1408 : index
    %601 = vector.load %arg14[%c0_472, %c1408] : memref<8x2688xbf16, #tpu.memory_space<vmem>>, vector<8x64xbf16>
    tpu.vector_store %arg14[%c0_472, %c1408], %600 {strides = array<i32>} : memref<8x2688xbf16, #tpu.memory_space<vmem>>, vector<8x64xbf16>,
    %c184 = arith.constant 184 : index
    %c0_473 = arith.constant 0 : index
    %602 = vector.load %arg13[%c184, %c0_473] : memref<336x64xbf16, #tpu.memory_space<vmem>>, vector<8x64xbf16>
    %c0_474 = arith.constant 0 : index
    %c1472 = arith.constant 1472 : index
    %603 = vector.load %arg14[%c0_474, %c1472] : memref<8x2688xbf16, #tpu.memory_space<vmem>>, vector<8x64xbf16>
    tpu.vector_store %arg14[%c0_474, %c1472], %602 {strides = array<i32>} : memref<8x2688xbf16, #tpu.memory_space<vmem>>, vector<8x64xbf16>,
    %c192_475 = arith.constant 192 : index
    %c0_476 = arith.constant 0 : index
    %604 = vector.load %arg13[%c192_475, %c0_476] : memref<336x64xbf16, #tpu.memory_space<vmem>>, vector<8x64xbf16>
    %c0_477 = arith.constant 0 : index
    %c1536 = arith.constant 1536 : index
    %605 = vector.load %arg14[%c0_477, %c1536] : memref<8x2688xbf16, #tpu.memory_space<vmem>>, vector<8x64xbf16>
    tpu.vector_store %arg14[%c0_477, %c1536], %604 {strides = array<i32>} : memref<8x2688xbf16, #tpu.memory_space<vmem>>, vector<8x64xbf16>,
    %c200 = arith.constant 200 : index
    %c0_478 = arith.constant 0 : index
    %606 = vector.load %arg13[%c200, %c0_478] : memref<336x64xbf16, #tpu.memory_space<vmem>>, vector<8x64xbf16>
    %c0_479 = arith.constant 0 : index
    %c1600 = arith.constant 1600 : index
    %607 = vector.load %arg14[%c0_479, %c1600] : memref<8x2688xbf16, #tpu.memory_space<vmem>>, vector<8x64xbf16>
    tpu.vector_store %arg14[%c0_479, %c1600], %606 {strides = array<i32>} : memref<8x2688xbf16, #tpu.memory_space<vmem>>, vector<8x64xbf16>,
    %c208 = arith.constant 208 : index
    %c0_480 = arith.constant 0 : index
    %608 = vector.load %arg13[%c208, %c0_480] : memref<336x64xbf16, #tpu.memory_space<vmem>>, vector<8x64xbf16>
    %c0_481 = arith.constant 0 : index
    %c1664 = arith.constant 1664 : index
    %609 = vector.load %arg14[%c0_481, %c1664] : memref<8x2688xbf16, #tpu.memory_space<vmem>>, vector<8x64xbf16>
    tpu.vector_store %arg14[%c0_481, %c1664], %608 {strides = array<i32>} : memref<8x2688xbf16, #tpu.memory_space<vmem>>, vector<8x64xbf16>,
    %c216 = arith.constant 216 : index
    %c0_482 = arith.constant 0 : index
    %610 = vector.load %arg13[%c216, %c0_482] : memref<336x64xbf16, #tpu.memory_space<vmem>>, vector<8x64xbf16>
    %c0_483 = arith.constant 0 : index
    %c1728 = arith.constant 1728 : index
    %611 = vector.load %arg14[%c0_483, %c1728] : memref<8x2688xbf16, #tpu.memory_space<vmem>>, vector<8x64xbf16>
    tpu.vector_store %arg14[%c0_483, %c1728], %610 {strides = array<i32>} : memref<8x2688xbf16, #tpu.memory_space<vmem>>, vector<8x64xbf16>,
    %c224 = arith.constant 224 : index
    %c0_484 = arith.constant 0 : index
    %612 = vector.load %arg13[%c224, %c0_484] : memref<336x64xbf16, #tpu.memory_space<vmem>>, vector<8x64xbf16>
    %c0_485 = arith.constant 0 : index
    %c1792 = arith.constant 1792 : index
    %613 = vector.load %arg14[%c0_485, %c1792] : memref<8x2688xbf16, #tpu.memory_space<vmem>>, vector<8x64xbf16>
    tpu.vector_store %arg14[%c0_485, %c1792], %612 {strides = array<i32>} : memref<8x2688xbf16, #tpu.memory_space<vmem>>, vector<8x64xbf16>,
    %c232 = arith.constant 232 : index
    %c0_486 = arith.constant 0 : index
    %614 = vector.load %arg13[%c232, %c0_486] : memref<336x64xbf16, #tpu.memory_space<vmem>>, vector<8x64xbf16>
    %c0_487 = arith.constant 0 : index
    %c1856 = arith.constant 1856 : index
    %615 = vector.load %arg14[%c0_487, %c1856] : memref<8x2688xbf16, #tpu.memory_space<vmem>>, vector<8x64xbf16>
    tpu.vector_store %arg14[%c0_487, %c1856], %614 {strides = array<i32>} : memref<8x2688xbf16, #tpu.memory_space<vmem>>, vector<8x64xbf16>,
    %c240 = arith.constant 240 : index
    %c0_488 = arith.constant 0 : index
    %616 = vector.load %arg13[%c240, %c0_488] : memref<336x64xbf16, #tpu.memory_space<vmem>>, vector<8x64xbf16>
    %c0_489 = arith.constant 0 : index
    %c1920 = arith.constant 1920 : index
    %617 = vector.load %arg14[%c0_489, %c1920] : memref<8x2688xbf16, #tpu.memory_space<vmem>>, vector<8x64xbf16>
    tpu.vector_store %arg14[%c0_489, %c1920], %616 {strides = array<i32>} : memref<8x2688xbf16, #tpu.memory_space<vmem>>, vector<8x64xbf16>,
    %c248 = arith.constant 248 : index
    %c0_490 = arith.constant 0 : index
    %618 = vector.load %arg13[%c248, %c0_490] : memref<336x64xbf16, #tpu.memory_space<vmem>>, vector<8x64xbf16>
    %c0_491 = arith.constant 0 : index
    %c1984 = arith.constant 1984 : index
    %619 = vector.load %arg14[%c0_491, %c1984] : memref<8x2688xbf16, #tpu.memory_space<vmem>>, vector<8x64xbf16>
    tpu.vector_store %arg14[%c0_491, %c1984], %618 {strides = array<i32>} : memref<8x2688xbf16, #tpu.memory_space<vmem>>, vector<8x64xbf16>,
    %c256_492 = arith.constant 256 : index
    %c0_493 = arith.constant 0 : index
    %620 = vector.load %arg13[%c256_492, %c0_493] : memref<336x64xbf16, #tpu.memory_space<vmem>>, vector<8x64xbf16>
    %c0_494 = arith.constant 0 : index
    %c2048 = arith.constant 2048 : index
    %621 = vector.load %arg14[%c0_494, %c2048] : memref<8x2688xbf16, #tpu.memory_space<vmem>>, vector<8x64xbf16>
    tpu.vector_store %arg14[%c0_494, %c2048], %620 {strides = array<i32>} : memref<8x2688xbf16, #tpu.memory_space<vmem>>, vector<8x64xbf16>,
    %c264 = arith.constant 264 : index
    %c0_495 = arith.constant 0 : index
    %622 = vector.load %arg13[%c264, %c0_495] : memref<336x64xbf16, #tpu.memory_space<vmem>>, vector<8x64xbf16>
    %c0_496 = arith.constant 0 : index
    %c2112 = arith.constant 2112 : index
    %623 = vector.load %arg14[%c0_496, %c2112] : memref<8x2688xbf16, #tpu.memory_space<vmem>>, vector<8x64xbf16>
    tpu.vector_store %arg14[%c0_496, %c2112], %622 {strides = array<i32>} : memref<8x2688xbf16, #tpu.memory_space<vmem>>, vector<8x64xbf16>,
    %c272 = arith.constant 272 : index
    %c0_497 = arith.constant 0 : index
    %624 = vector.load %arg13[%c272, %c0_497] : memref<336x64xbf16, #tpu.memory_space<vmem>>, vector<8x64xbf16>
    %c0_498 = arith.constant 0 : index
    %c2176 = arith.constant 2176 : index
    %625 = vector.load %arg14[%c0_498, %c2176] : memref<8x2688xbf16, #tpu.memory_space<vmem>>, vector<8x64xbf16>
    tpu.vector_store %arg14[%c0_498, %c2176], %624 {strides = array<i32>} : memref<8x2688xbf16, #tpu.memory_space<vmem>>, vector<8x64xbf16>,
    %c280 = arith.constant 280 : index
    %c0_499 = arith.constant 0 : index
    %626 = vector.load %arg13[%c280, %c0_499] : memref<336x64xbf16, #tpu.memory_space<vmem>>, vector<8x64xbf16>
    %c0_500 = arith.constant 0 : index
    %c2240 = arith.constant 2240 : index
    %627 = vector.load %arg14[%c0_500, %c2240] : memref<8x2688xbf16, #tpu.memory_space<vmem>>, vector<8x64xbf16>
    tpu.vector_store %arg14[%c0_500, %c2240], %626 {strides = array<i32>} : memref<8x2688xbf16, #tpu.memory_space<vmem>>, vector<8x64xbf16>,
    %c288 = arith.constant 288 : index
    %c0_501 = arith.constant 0 : index
    %628 = vector.load %arg13[%c288, %c0_501] : memref<336x64xbf16, #tpu.memory_space<vmem>>, vector<8x64xbf16>
    %c0_502 = arith.constant 0 : index
    %c2304 = arith.constant 2304 : index
    %629 = vector.load %arg14[%c0_502, %c2304] : memref<8x2688xbf16, #tpu.memory_space<vmem>>, vector<8x64xbf16>
    tpu.vector_store %arg14[%c0_502, %c2304], %628 {strides = array<i32>} : memref<8x2688xbf16, #tpu.memory_space<vmem>>, vector<8x64xbf16>,
    %c296 = arith.constant 296 : index
    %c0_503 = arith.constant 0 : index
    %630 = vector.load %arg13[%c296, %c0_503] : memref<336x64xbf16, #tpu.memory_space<vmem>>, vector<8x64xbf16>
    %c0_504 = arith.constant 0 : index
    %c2368 = arith.constant 2368 : index
    %631 = vector.load %arg14[%c0_504, %c2368] : memref<8x2688xbf16, #tpu.memory_space<vmem>>, vector<8x64xbf16>
    tpu.vector_store %arg14[%c0_504, %c2368], %630 {strides = array<i32>} : memref<8x2688xbf16, #tpu.memory_space<vmem>>, vector<8x64xbf16>,
    %c304 = arith.constant 304 : index
    %c0_505 = arith.constant 0 : index
    %632 = vector.load %arg13[%c304, %c0_505] : memref<336x64xbf16, #tpu.memory_space<vmem>>, vector<8x64xbf16>
    %c0_506 = arith.constant 0 : index
    %c2432 = arith.constant 2432 : index
    %633 = vector.load %arg14[%c0_506, %c2432] : memref<8x2688xbf16, #tpu.memory_space<vmem>>, vector<8x64xbf16>
    tpu.vector_store %arg14[%c0_506, %c2432], %632 {strides = array<i32>} : memref<8x2688xbf16, #tpu.memory_space<vmem>>, vector<8x64xbf16>,
    %c312 = arith.constant 312 : index
    %c0_507 = arith.constant 0 : index
    %634 = vector.load %arg13[%c312, %c0_507] : memref<336x64xbf16, #tpu.memory_space<vmem>>, vector<8x64xbf16>
    %c0_508 = arith.constant 0 : index
    %c2496 = arith.constant 2496 : index
    %635 = vector.load %arg14[%c0_508, %c2496] : memref<8x2688xbf16, #tpu.memory_space<vmem>>, vector<8x64xbf16>
    tpu.vector_store %arg14[%c0_508, %c2496], %634 {strides = array<i32>} : memref<8x2688xbf16, #tpu.memory_space<vmem>>, vector<8x64xbf16>,
    %c320_509 = arith.constant 320 : index
    %c0_510 = arith.constant 0 : index
    %636 = vector.load %arg13[%c320_509, %c0_510] : memref<336x64xbf16, #tpu.memory_space<vmem>>, vector<8x64xbf16>
    %c0_511 = arith.constant 0 : index
    %c2560 = arith.constant 2560 : index
    %637 = vector.load %arg14[%c0_511, %c2560] : memref<8x2688xbf16, #tpu.memory_space<vmem>>, vector<8x64xbf16>
    tpu.vector_store %arg14[%c0_511, %c2560], %636 {strides = array<i32>} : memref<8x2688xbf16, #tpu.memory_space<vmem>>, vector<8x64xbf16>,
    %c328 = arith.constant 328 : index
    %c0_512 = arith.constant 0 : index
    %638 = vector.load %arg13[%c328, %c0_512] : memref<336x64xbf16, #tpu.memory_space<vmem>>, vector<8x64xbf16>
    %c0_513 = arith.constant 0 : index
    %c2624 = arith.constant 2624 : index
    %639 = vector.load %arg14[%c0_513, %c2624] : memref<8x2688xbf16, #tpu.memory_space<vmem>>, vector<8x64xbf16>
    tpu.vector_store %arg14[%c0_513, %c2624], %638 {strides = array<i32>} : memref<8x2688xbf16, #tpu.memory_space<vmem>>, vector<8x64xbf16>,
    %c0_514 = arith.constant 0 : index
    %c0_515 = arith.constant 0 : index
    %640 = vector.load %arg14[%c0_514, %c0_515] : memref<8x2688xbf16, #tpu.memory_space<vmem>>, vector<8x2688xbf16>
    %c0_516 = arith.constant 0 : index
    %c0_517 = arith.constant 0 : index
    %641 = vector.load %arg6[%c0_516, %c0_517] : memref<2688x128xbf16, #tpu.memory_space<vmem>>, vector<2688x128xbf16>
    %cst_518 = arith.constant dense<0.000000e+00> : vector<8x128xf32>
    %642 = tpu.matmul %640, %641, %cst_518 {dimension_numbers = #tpu.dot_dimension_numbers<[1], [0], [0], [1], [0, 0, 1, 1], [], []>} : vector<8x2688xbf16>, vector<2688x128xbf16>, vector<8x128xf32> -> vector<8x128xf32>
    %c0_519 = arith.constant 0 : index
    %c0_520 = arith.constant 0 : index
    %643 = vector.load %arg7[%c0_519, %c0_520] : memref<1x128xf32, #tpu.memory_space<vmem>>, vector<1x128xf32>
    %644 = vector.broadcast %643 : vector<1x128xf32> to vector<8x128xf32>
    %645 = arith.addf %642, %644 : vector<8x128xf32>
    %cst_521 = arith.constant 0.000000e+00 : f32
    %646 = vector.broadcast %cst_521 : f32 to vector<8x128xf32>
    %647 = arith.maximumf %645, %646 : vector<8x128xf32>
    %c0_522 = arith.constant 0 : index
    %c0_523 = arith.constant 0 : index
    %648 = vector.load %arg8[%c0_522, %c0_523] : memref<1x128xf32, #tpu.memory_space<vmem>>, vector<1x128xf32>
    %649 = vector.broadcast %648 : vector<1x128xf32> to vector<8x128xf32>
    %650 = arith.mulf %647, %649 : vector<8x128xf32>
    %cst_524 = arith.constant dense<0.000000e+00> : vector<8xf32>
    %651 = vector.multi_reduction <add>, %650, %cst_524 [1] : vector<8x128xf32> to vector<8xf32>
    %652 = vector.shape_cast %651 : vector<8xf32> to vector<8x1xf32>
    %c0_525 = arith.constant 0 : index
    %c0_526 = arith.constant 0 : index
    %653 = vector.load %arg9[%c0_525, %c0_526] : memref<1x1xf32, #tpu.memory_space<vmem>>, vector<1x1xf32>
    %654 = vector.broadcast %653 : vector<1x1xf32> to vector<8x1xf32>
    %655 = arith.addf %652, %654 : vector<8x1xf32>
    %656 = vector.shape_cast %655 : vector<8x1xf32> to vector<8x1xf32>
    %657 = vector.broadcast %656 : vector<8x1xf32> to vector<8x128xf32>
    %c0_527 = arith.constant 0 : index
    %c0_528 = arith.constant 0 : index
    %658 = vector.load %arg10[%c0_527, %c0_528] : memref<8x128xf32, #tpu.memory_space<vmem>>, vector<8x128xf32>
    tpu.vector_store %arg10[%c0_527, %c0_528], %657 {strides = array<i32>} : memref<8x128xf32, #tpu.memory_space<vmem>>, vector<8x128xf32>,
    return
  }
  func.func @transform_0(%arg0: i32) -> (i32, i32, i32, i32) {
    %c0_i32 = arith.constant 0 : i32
    %c0_i32_0 = arith.constant 0 : i32
    %c0_i32_1 = arith.constant 0 : i32
    %c0_i32_2 = arith.constant 0 : i32
    return %c0_i32, %c0_i32_0, %arg0, %c0_i32_1 : i32, i32, i32, i32
  }
  func.func @transform_1(%arg0: i32) -> (i32, i32) {
    %c0_i32 = arith.constant 0 : i32
    %c0_i32_0 = arith.constant 0 : i32
    %c0_i32_1 = arith.constant 0 : i32
    return %c0_i32, %c0_i32_0 : i32, i32
  }
  func.func @transform_2(%arg0: i32) -> (i32, i32) {
    %c0_i32 = arith.constant 0 : i32
    %c0_i32_0 = arith.constant 0 : i32
    %c0_i32_1 = arith.constant 0 : i32
    return %c0_i32, %c0_i32_0 : i32, i32
  }
  func.func @transform_3(%arg0: i32) -> (i32, i32) {
    %c0_i32 = arith.constant 0 : i32
    %c0_i32_0 = arith.constant 0 : i32
    %c0_i32_1 = arith.constant 0 : i32
    return %c0_i32, %c0_i32_0 : i32, i32
  }
  func.func @transform_4(%arg0: i32) -> (i32, i32) {
    %c0_i32 = arith.constant 0 : i32
    %c0_i32_0 = arith.constant 0 : i32
    %c0_i32_1 = arith.constant 0 : i32
    return %c0_i32, %c0_i32_0 : i32, i32
  }
  func.func @transform_5(%arg0: i32) -> (i32, i32) {
    %c0_i32 = arith.constant 0 : i32
    %c0_i32_0 = arith.constant 0 : i32
    %c0_i32_1 = arith.constant 0 : i32
    return %c0_i32, %c0_i32_0 : i32, i32
  }
  func.func @transform_6(%arg0: i32) -> (i32, i32) {
    %c0_i32 = arith.constant 0 : i32
    %c0_i32_0 = arith.constant 0 : i32
    %c0_i32_1 = arith.constant 0 : i32
    return %c0_i32, %c0_i32_0 : i32, i32
  }
  func.func @transform_7(%arg0: i32) -> (i32, i32) {
    %c0_i32 = arith.constant 0 : i32
    %c0_i32_0 = arith.constant 0 : i32
    %c0_i32_1 = arith.constant 0 : i32
    return %c0_i32, %c0_i32_0 : i32, i32
  }
  func.func @transform_8(%arg0: i32) -> (i32, i32) {
    %c0_i32 = arith.constant 0 : i32
    %c0_i32_0 = arith.constant 0 : i32
    %c0_i32_1 = arith.constant 0 : i32
    return %c0_i32, %c0_i32_0 : i32, i32
  }
  func.func @transform_9(%arg0: i32) -> (i32, i32) {
    %c0_i32 = arith.constant 0 : i32
    %c0_i32_0 = arith.constant 0 : i32
    return %arg0, %c0_i32 : i32, i32
  }
}

</mosaic_0001>

<llo_original>
// kernel: connect_four_cnn_forward.1
$region0: #{connect_four_cnn_forward.1}
  #allocation0 [shape = 'u32[]', space=smem, size = 0x4, offset = 0x4, fixed_abs, tag = 'smem constant byte address 0x4 - core index']
  #allocation1 [shape = 'u32[144,128]{1,0:T(1,128)}', space=vmem, size = 0x12000, scoped, tag = 'internal scratch']
  #allocation2 [shape = 'bf16[8,9,8,32]{3,2,1,0:T(8,128)(2,1)}', space=vmem, size = 0x24000, scoped, tag = 'scratch operand']
  #allocation3 [shape = 'bf16[336,288]{1,0:T(16,128)(2,1)}', space=vmem, size = 0x3f000, scoped, tag = 'scratch operand']
  #allocation4 [shape = 'bf16[336,64]{1,0:T(16,128)(2,1)}', space=vmem, size = 0x15000, scoped, tag = 'scratch operand']
  #allocation5 [shape = 'bf16[8,2688]{1,0:T(8,128)(2,1)}', space=vmem, size = 0xa800, scoped, tag = 'scratch operand']
  #allocation6 [shape = 'f32[1,1]{1,0:T(1,128)S(1)}', space=vmem, size = 0x200, scoped, tag = 'scoped memory for connect_four_cnn_forward.1']
  %s0 = inlined_call_operand.vmem [shape: bf16[8,9,8,1], index: 0, kind: input, shape index: {}]
  %s1 = inlined_call_operand.vmem [shape: f32[9,32], index: 1, kind: input, shape index: {}]
  %s2 = inlined_call_operand.vmem [shape: f32[1,32], index: 2, kind: input, shape index: {}]
  %s3 = inlined_call_operand.vmem [shape: bf16[288,64], index: 3, kind: input, shape index: {}]
  %s4 = inlined_call_operand.vmem [shape: f32[1,64], index: 4, kind: input, shape index: {}]
  %s5 = inlined_call_operand.hbm [shape: bf16[2688,128], index: 5, kind: input, shape index: {}]
  %s6 = inlined_call_operand.vmem [shape: f32[1,128], index: 6, kind: input, shape index: {}]
  %s7 = inlined_call_operand.vmem [shape: f32[1,128], index: 7, kind: input, shape index: {}]
  %s8 = inlined_call_operand.<no memory space> [shape: f32[1,1], index: 8, kind: input, shape index: {}]
  %s9 = inlined_call_operand.vmem [shape: f32[8,128], index: 9, kind: output, shape index: {}]
  %s10 = sld [smem:[#allocation0]]
  $region50: #{connect_four_cnn_forward.1} parent=0
    _
  %s12 = ssub.s32 1, %s10
  %s13 = scalar_select 0, %s12, %s10
  %v14 = vstv %s8
  %15 = vst [vmem:[#allocation6] sm:$0x1] %v14
  $region1: #{connect_four_cnn_forward.1} parent=0
    #allocation7 [shape = 'u8[688128]{0}', space=vmem, size = 0xa8000, scoped, tag = 'input window, operand 5, single buffered']
    #allocation8 [shape = 's32[1]{0}', space=sflag, size = 0x4, scoped, tag = 'scoped memory for connect_four_cnn_forward.1']
    %16 = vsyncpa [#allocation8], 0
    // Predicated region
    $region2: #{connect_four_cnn_forward.1} parent=1 // pred_check
      _
    $region3: #{connect_four_cnn_forward.1} parent=1 // pred_check_branch
      %18 = sbr.rel (0) target = $region5
    $region4: #{connect_four_cnn_forward.1} parent=1 // pred_region
      _
    $region5: #{connect_four_cnn_forward.1} parent=1 // pred_fallthru
      _
    // Predicated region
    $region6: #{connect_four_cnn_forward.1} parent=1 // pred_check
      _
    $region7: #{connect_four_cnn_forward.1} parent=1 // pred_check_branch
      %20 = sbr.rel (0) target = $region9
    $region8: #{connect_four_cnn_forward.1} parent=1 // pred_region
      _
    $region9: #{connect_four_cnn_forward.1} parent=1 // pred_fallthru
      _
    // Predicated region
    $region10: #{connect_four_cnn_forward.1} parent=1 // pred_check
      _
    $region11: #{connect_four_cnn_forward.1} parent=1 // pred_check_branch
      %22 = sbr.rel (0) target = $region13
    $region12: #{connect_four_cnn_forward.1} parent=1 // pred_region
      _
    $region13: #{connect_four_cnn_forward.1} parent=1 // pred_fallthru
      _
    // Predicated region
    $region14: #{connect_four_cnn_forward.1} parent=1 // pred_check
      _
    $region15: #{connect_four_cnn_forward.1} parent=1 // pred_check_branch
      %24 = sbr.rel (0) target = $region17
    $region16: #{connect_four_cnn_forward.1} parent=1 // pred_region
      _
    $region17: #{connect_four_cnn_forward.1} parent=1 // pred_fallthru
      _
    // Predicated region
    $region18: #{connect_four_cnn_forward.1} parent=1 // pred_check
      _
    $region19: #{connect_four_cnn_forward.1} parent=1 // pred_check_branch
      %26 = sbr.rel (0) target = $region21
    $region20: #{connect_four_cnn_forward.1} parent=1 // pred_region
      _
    $region21: #{connect_four_cnn_forward.1} parent=1 // pred_fallthru
      _
    // Predicated region
    $region22: #{connect_four_cnn_forward.1} parent=1 // pred_check
      _
    $region23: #{connect_four_cnn_forward.1} parent=1 // pred_check_branch
      %28 = sbr.rel (0) target = $region25
    $region24: #{connect_four_cnn_forward.1} parent=1 // pred_region
      %s30 = ssub.s32 21504, 21504
      %31 = vsyncadd [#allocation8], %s30
      %s32 = sshll.u32 [#allocation7], 4
      %s33 = int_to_ptr.vmem [resolvable:$true] %s32
      %38 = dma.hbm_to_vmem [thread:$0]  %s5, 21504, %s33, [#allocation8], 64, 64, 4
    $region25: #{connect_four_cnn_forward.1} parent=1 // pred_fallthru
      _
    // Predicated region
    $region26: #{connect_four_cnn_forward.1} parent=1 // pred_check
      _
    $region27: #{connect_four_cnn_forward.1} parent=1 // pred_check_branch
      %40 = sbr.rel (0) target = $region29
    $region28: #{connect_four_cnn_forward.1} parent=1 // pred_region
      _
    $region29: #{connect_four_cnn_forward.1} parent=1 // pred_fallthru
      _
    // Predicated region
    $region30: #{connect_four_cnn_forward.1} parent=1 // pred_check
      _
    $region31: #{connect_four_cnn_forward.1} parent=1 // pred_check_branch
      %42 = sbr.rel (0) target = $region33
    $region32: #{connect_four_cnn_forward.1} parent=1 // pred_region
      _
    $region33: #{connect_four_cnn_forward.1} parent=1 // pred_fallthru
      _
    // Predicated region
    $region34: #{connect_four_cnn_forward.1} parent=1 // pred_check
      _
    $region35: #{connect_four_cnn_forward.1} parent=1 // pred_check_branch
      %44 = sbr.rel (0) target = $region37
    $region36: #{connect_four_cnn_forward.1} parent=1 // pred_region
      _
    $region37: #{connect_four_cnn_forward.1} parent=1 // pred_fallthru
      _
    // Predicated region
    $region38: #{connect_four_cnn_forward.1} parent=1 // pred_check
      _
    $region39: #{connect_four_cnn_forward.1} parent=1 // pred_check_branch
      %46 = sbr.rel (0) target = $region41
    $region40: #{connect_four_cnn_forward.1} parent=1 // pred_region
      %47 = dma.done [#allocation8], 21504
    $region41: #{connect_four_cnn_forward.1} parent=1 // pred_fallthru
      _
    %vm49 = vcmask 257024
    %50 = vst.msk [vmem:[#allocation2] sm:$0xf] %vm49, 0
    %51 = vst.msk [vmem:[#allocation2 + $0x4] sm:$0xf] %vm49, 0
    %52 = vst.msk [vmem:[#allocation2 + $0x8] sm:$0xf] %vm49, 0
    %53 = vst.msk [vmem:[#allocation2 + $0xc] sm:$0xf] %vm49, 0
    %54 = vst.msk [vmem:[#allocation2 + $0x10] sm:$0xf] %vm49, 0
    %55 = vst.msk [vmem:[#allocation2 + $0x14] sm:$0xf] %vm49, 0
    %56 = vst.msk [vmem:[#allocation2 + $0x18] sm:$0xf] %vm49, 0
    %57 = vst.msk [vmem:[#allocation2 + $0x1c] sm:$0xf] %vm49, 0
    %58 = vst.msk [vmem:[#allocation2 + $0x20] sm:$0xf] %vm49, 0
    %s59 = scalar_lea.vmem [#allocation2], 252
    %60 = vst.msk [vmem:[%s59] sm:$0xf] %vm49, 0
    %61 = vst.msk [vmem:[%s59 + $0x4] sm:$0xf] %vm49, 0
    %62 = vst.msk [vmem:[%s59 + $0x8] sm:$0xf] %vm49, 0
    %63 = vst.msk [vmem:[%s59 + $0xc] sm:$0xf] %vm49, 0
    %64 = vst.msk [vmem:[%s59 + $0x10] sm:$0xf] %vm49, 0
    %65 = vst.msk [vmem:[%s59 + $0x14] sm:$0xf] %vm49, 0
    %66 = vst.msk [vmem:[%s59 + $0x18] sm:$0xf] %vm49, 0
    %67 = vst.msk [vmem:[%s59 + $0x1c] sm:$0xf] %vm49, 0
    %68 = vst.msk [vmem:[%s59 + $0x20] sm:$0xf] %vm49, 0
    %s69 = scalar_lea.vmem [#allocation2], 36
    %70 = vst.msk [vmem:[%s69] sm:$0xf] %vm49, 0
    %71 = vst.msk [vmem:[%s69 + $0x24] sm:$0xf] %vm49, 0
    %72 = vst.msk [vmem:[%s69 + $0x48] sm:$0xf] %vm49, 0
    %73 = vst.msk [vmem:[%s69 + $0x6c] sm:$0xf] %vm49, 0
    %74 = vst.msk [vmem:[%s69 + $0x90] sm:$0xf] %vm49, 0
    %75 = vst.msk [vmem:[%s69 + $0xb4] sm:$0xf] %vm49, 0
    %s76 = scalar_lea.vmem [#allocation2], 68
    %77 = vst.msk [vmem:[%s76] sm:$0xf] %vm49, 0
    %78 = vst.msk [vmem:[%s76 + $0x24] sm:$0xf] %vm49, 0
    %79 = vst.msk [vmem:[%s76 + $0x48] sm:$0xf] %vm49, 0
    %80 = vst.msk [vmem:[%s76 + $0x6c] sm:$0xf] %vm49, 0
    %81 = vst.msk [vmem:[%s76 + $0x90] sm:$0xf] %vm49, 0
    %82 = vst.msk [vmem:[%s76 + $0xb4] sm:$0xf] %vm49, 0
    %v83 = vld [vmem:[%s0] sm:$0xf]
    %v84 = vld [vmem:[%s0 + $0x4] sm:$0xf]
    %v85 = vld [vmem:[%s0 + $0x8] sm:$0xf]
    %v86 = vld [vmem:[%s0 + $0xc] sm:$0xf]
    %v87 = vld [vmem:[%s0 + $0x10] sm:$0xf]
    %v88 = vld [vmem:[%s0 + $0x14] sm:$0xf]
    %v89 = vld [vmem:[%s0 + $0x18] sm:$0xf]
    %v90 = vunpack.c.l.bf16 %v83
    %v91 = vunpack.c.l.bf16 %v84
    %v92 = vunpack.c.l.bf16 %v85
    %v93 = vunpack.c.l.bf16 %v86
    %v94 = vunpack.c.l.bf16 %v87
    %v95 = vunpack.c.l.bf16 %v88
    %v96 = vunpack.c.l.bf16 %v89
    %v97 = vld [vmem:[%s1] sm:$0x1]
    %99 = vset.pattern.permute.xlu0 0
    %100 = vperm.xlu0 %99, %v90
    %v101 = vpop.permute.xlu0 %100
    %104 = vset.pattern.permute.xlu0 0
    %105 = vperm.xlu0 %104, %v91
    %v106 = vpop.permute.xlu0 %105
    %109 = vset.pattern.permute.xlu0 0
    %110 = vperm.xlu0 %109, %v92
    %v111 = vpop.permute.xlu0 %110
    %114 = vset.pattern.permute.xlu0 0
    %115 = vperm.xlu0 %114, %v93
    %v116 = vpop.permute.xlu0 %115
    %119 = vset.pattern.permute.xlu0 0
    %120 = vperm.xlu0 %119, %v94
    %v121 = vpop.permute.xlu0 %120
    %124 = vset.pattern.permute.xlu0 0
    %125 = vperm.xlu0 %124, %v95
    %v126 = vpop.permute.xlu0 %125
    %129 = vset.pattern.permute.xlu0 0
    %130 = vperm.xlu0 %129, %v96
    %v131 = vpop.permute.xlu0 %130
    %v133 = vlaneseq
    %v134 = vshrl.u32 %v133, 7
    %v135 = vsub.s32 0, %v134
    %v136 = vrot.slane %v97, %v135
    %v137 = vmul.f32 %v101, %v136
    %v138 = vmul.f32 %v106, %v136
    %v139 = vmul.f32 %v111, %v136
    %v140 = vmul.f32 %v116, %v136
    %v141 = vmul.f32 %v121, %v136
    %v142 = vmul.f32 %v126, %v136
    %v143 = vmul.f32 %v131, %v136
    %s144 = scalar_lea.vmem %s0, 4
    %v145 = vld [vmem:[%s144] sm:$0xf]
    %v146 = vld [vmem:[%s144 + $0x4] sm:$0xf]
    %v147 = vld [vmem:[%s144 + $0x8] sm:$0xf]
    %v148 = vld [vmem:[%s144 + $0xc] sm:$0xf]
    %v149 = vld [vmem:[%s144 + $0x10] sm:$0xf]
    %v150 = vld [vmem:[%s144 + $0x14] sm:$0xf]
    %v151 = vld [vmem:[%s144 + $0x18] sm:$0xf]
    %v152 = vunpack.c.l.bf16 %v145
    %v153 = vunpack.c.l.bf16 %v146
    %v154 = vunpack.c.l.bf16 %v147
    %v155 = vunpack.c.l.bf16 %v148
    %v156 = vunpack.c.l.bf16 %v149
    %v157 = vunpack.c.l.bf16 %v150
    %v158 = vunpack.c.l.bf16 %v151
    %v159 = vld [vmem:[%s1 + $0x1] sm:$0x1]
    %161 = vset.pattern.permute.xlu0 0
    %162 = vperm.xlu0 %161, %v152
    %v163 = vpop.permute.xlu0 %162
    %166 = vset.pattern.permute.xlu0 0
    %167 = vperm.xlu0 %166, %v153
    %v168 = vpop.permute.xlu0 %167
    %171 = vset.pattern.permute.xlu0 0
    %172 = vperm.xlu0 %171, %v154
    %v173 = vpop.permute.xlu0 %172
    %176 = vset.pattern.permute.xlu0 0
    %177 = vperm.xlu0 %176, %v155
    %v178 = vpop.permute.xlu0 %177
    %181 = vset.pattern.permute.xlu0 0
    %182 = vperm.xlu0 %181, %v156
    %v183 = vpop.permute.xlu0 %182
    %186 = vset.pattern.permute.xlu0 0
    %187 = vperm.xlu0 %186, %v157
    %v188 = vpop.permute.xlu0 %187
    %191 = vset.pattern.permute.xlu0 0
    %192 = vperm.xlu0 %191, %v158
    %v193 = vpop.permute.xlu0 %192
    %v195 = vlaneseq
    %v196 = vshrl.u32 %v195, 7
    %v197 = vsub.s32 0, %v196
    %v198 = vrot.slane %v159, %v197
    %v199 = vmul.f32 %v163, %v198
    %v200 = vmul.f32 %v168, %v198
    %v201 = vmul.f32 %v173, %v198
    %v202 = vmul.f32 %v178, %v198
    %v203 = vmul.f32 %v183, %v198
    %v204 = vmul.f32 %v188, %v198
    %v205 = vmul.f32 %v193, %v198
    %v206 = vadd.f32 %v137, %v199
    %v207 = vadd.f32 %v138, %v200
    %v208 = vadd.f32 %v139, %v201
    %v209 = vadd.f32 %v140, %v202
    %v210 = vadd.f32 %v141, %v203
    %v211 = vadd.f32 %v142, %v204
    %v212 = vadd.f32 %v143, %v205
    %s213 = scalar_lea.vmem %s0, 8
    %v214 = vld [vmem:[%s213] sm:$0xf]
    %v215 = vld [vmem:[%s213 + $0x4] sm:$0xf]
    %v216 = vld [vmem:[%s213 + $0x8] sm:$0xf]
    %v217 = vld [vmem:[%s213 + $0xc] sm:$0xf]
    %v218 = vld [vmem:[%s213 + $0x10] sm:$0xf]
    %v219 = vld [vmem:[%s213 + $0x14] sm:$0xf]
    %v220 = vld [vmem:[%s213 + $0x18] sm:$0xf]
    %v221 = vunpack.c.l.bf16 %v214
    %v222 = vunpack.c.l.bf16 %v215
    %v223 = vunpack.c.l.bf16 %v216
    %v224 = vunpack.c.l.bf16 %v217
    %v225 = vunpack.c.l.bf16 %v218
    %v226 = vunpack.c.l.bf16 %v219
    %v227 = vunpack.c.l.bf16 %v220
    %v228 = vld [vmem:[%s1 + $0x2] sm:$0x1]
    %230 = vset.pattern.permute.xlu0 0
    %231 = vperm.xlu0 %230, %v221
    %v232 = vpop.permute.xlu0 %231
    %235 = vset.pattern.permute.xlu0 0
    %236 = vperm.xlu0 %235, %v222
    %v237 = vpop.permute.xlu0 %236
    %240 = vset.pattern.permute.xlu0 0
    %241 = vperm.xlu0 %240, %v223
    %v242 = vpop.permute.xlu0 %241
    %245 = vset.pattern.permute.xlu0 0
    %246 = vperm.xlu0 %245, %v224
    %v247 = vpop.permute.xlu0 %246
    %250 = vset.pattern.permute.xlu0 0
    %251 = vperm.xlu0 %250, %v225
    %v252 = vpop.permute.xlu0 %251
    %255 = vset.pattern.permute.xlu0 0
    %256 = vperm.xlu0 %255, %v226
    %v257 = vpop.permute.xlu0 %256
    %260 = vset.pattern.permute.xlu0 0
    %261 = vperm.xlu0 %260, %v227
    %v262 = vpop.permute.xlu0 %261
    %v264 = vlaneseq
    %v265 = vshrl.u32 %v264, 7
    %v266 = vsub.s32 0, %v265
    %v267 = vrot.slane %v228, %v266
    %v268 = vmul.f32 %v232, %v267
    %v269 = vmul.f32 %v237, %v267
    %v270 = vmul.f32 %v242, %v267
    %v271 = vmul.f32 %v247, %v267
    %v272 = vmul.f32 %v252, %v267
    %v273 = vmul.f32 %v257, %v267
    %v274 = vmul.f32 %v262, %v267
    %v275 = vadd.f32 %v206, %v268
    %v276 = vadd.f32 %v207, %v269
    %v277 = vadd.f32 %v208, %v270
    %v278 = vadd.f32 %v209, %v271
    %v279 = vadd.f32 %v210, %v272
    %v280 = vadd.f32 %v211, %v273
    %v281 = vadd.f32 %v212, %v274
    %s282 = scalar_lea.vmem %s0, 36
    %v283 = vld [vmem:[%s282] sm:$0xf]
    %v284 = vld [vmem:[%s282 + $0x4] sm:$0xf]
    %v285 = vld [vmem:[%s282 + $0x8] sm:$0xf]
    %v286 = vld [vmem:[%s282 + $0xc] sm:$0xf]
    %v287 = vld [vmem:[%s282 + $0x10] sm:$0xf]
    %v288 = vld [vmem:[%s282 + $0x14] sm:$0xf]
    %v289 = vld [vmem:[%s282 + $0x18] sm:$0xf]
    %v290 = vunpack.c.l.bf16 %v283
    %v291 = vunpack.c.l.bf16 %v284
    %v292 = vunpack.c.l.bf16 %v285
    %v293 = vunpack.c.l.bf16 %v286
    %v294 = vunpack.c.l.bf16 %v287
    %v295 = vunpack.c.l.bf16 %v288
    %v296 = vunpack.c.l.bf16 %v289
    %v297 = vld [vmem:[%s1 + $0x3] sm:$0x1]
    %299 = vset.pattern.permute.xlu0 0
    %300 = vperm.xlu0 %299, %v290
    %v301 = vpop.permute.xlu0 %300
    %304 = vset.pattern.permute.xlu0 0
    %305 = vperm.xlu0 %304, %v291
    %v306 = vpop.permute.xlu0 %305
    %309 = vset.pattern.permute.xlu0 0
    %310 = vperm.xlu0 %309, %v292
    %v311 = vpop.permute.xlu0 %310
    %314 = vset.pattern.permute.xlu0 0
    %315 = vperm.xlu0 %314, %v293
    %v316 = vpop.permute.xlu0 %315
    %319 = vset.pattern.permute.xlu0 0
    %320 = vperm.xlu0 %319, %v294
    %v321 = vpop.permute.xlu0 %320
    %324 = vset.pattern.permute.xlu0 0
    %325 = vperm.xlu0 %324, %v295
    %v326 = vpop.permute.xlu0 %325
    %329 = vset.pattern.permute.xlu0 0
    %330 = vperm.xlu0 %329, %v296
    %v331 = vpop.permute.xlu0 %330
    %v333 = vlaneseq
    %v334 = vshrl.u32 %v333, 7
    %v335 = vsub.s32 0, %v334
    %v336 = vrot.slane %v297, %v335
    %v337 = vmul.f32 %v301, %v336
    %v338 = vmul.f32 %v306, %v336
    %v339 = vmul.f32 %v311, %v336
    %v340 = vmul.f32 %v316, %v336
    %v341 = vmul.f32 %v321, %v336
    %v342 = vmul.f32 %v326, %v336
    %v343 = vmul.f32 %v331, %v336
    %v344 = vadd.f32 %v275, %v337
    %v345 = vadd.f32 %v276, %v338
    %v346 = vadd.f32 %v277, %v339
    %v347 = vadd.f32 %v278, %v340
    %v348 = vadd.f32 %v279, %v341
    %v349 = vadd.f32 %v280, %v342
    %v350 = vadd.f32 %v281, %v343
    %s351 = scalar_lea.vmem %s0, 40
    %v352 = vld [vmem:[%s351] sm:$0xf]
    %v353 = vld [vmem:[%s351 + $0x4] sm:$0xf]
    %v354 = vld [vmem:[%s351 + $0x8] sm:$0xf]
    %v355 = vld [vmem:[%s351 + $0xc] sm:$0xf]
    %v356 = vld [vmem:[%s351 + $0x10] sm:$0xf]
    %v357 = vld [vmem:[%s351 + $0x14] sm:$0xf]
    %v358 = vld [vmem:[%s351 + $0x18] sm:$0xf]
    %v359 = vunpack.c.l.bf16 %v352
    %v360 = vunpack.c.l.bf16 %v353
    %v361 = vunpack.c.l.bf16 %v354
    %v362 = vunpack.c.l.bf16 %v355
    %v363 = vunpack.c.l.bf16 %v356
    %v364 = vunpack.c.l.bf16 %v357
    %v365 = vunpack.c.l.bf16 %v358
    %v366 = vld [vmem:[%s1 + $0x4] sm:$0x1]
    %368 = vset.pattern.permute.xlu0 0
    %369 = vperm.xlu0 %368, %v359
    %v370 = vpop.permute.xlu0 %369
    %373 = vset.pattern.permute.xlu0 0
    %374 = vperm.xlu0 %373, %v360
    %v375 = vpop.permute.xlu0 %374
    %378 = vset.pattern.permute.xlu0 0
    %379 = vperm.xlu0 %378, %v361
    %v380 = vpop.permute.xlu0 %379
    %383 = vset.pattern.permute.xlu0 0
    %384 = vperm.xlu0 %383, %v362
    %v385 = vpop.permute.xlu0 %384
    %388 = vset.pattern.permute.xlu0 0
    %389 = vperm.xlu0 %388, %v363
    %v390 = vpop.permute.xlu0 %389
    %393 = vset.pattern.permute.xlu0 0
    %394 = vperm.xlu0 %393, %v364
    %v395 = vpop.permute.xlu0 %394
    %398 = vset.pattern.permute.xlu0 0
    %399 = vperm.xlu0 %398, %v365
    %v400 = vpop.permute.xlu0 %399
    %v402 = vlaneseq
    %v403 = vshrl.u32 %v402, 7
    %v404 = vsub.s32 0, %v403
    %v405 = vrot.slane %v366, %v404
    %v406 = vmul.f32 %v370, %v405
    %v407 = vmul.f32 %v375, %v405
    %v408 = vmul.f32 %v380, %v405
    %v409 = vmul.f32 %v385, %v405
    %v410 = vmul.f32 %v390, %v405
    %v411 = vmul.f32 %v395, %v405
    %v412 = vmul.f32 %v400, %v405
    %v413 = vadd.f32 %v344, %v406
    %v414 = vadd.f32 %v345, %v407
    %v415 = vadd.f32 %v346, %v408
    %v416 = vadd.f32 %v347, %v409
    %v417 = vadd.f32 %v348, %v410
    %v418 = vadd.f32 %v349, %v411
    %v419 = vadd.f32 %v350, %v412
    %s420 = scalar_lea.vmem %s0, 44
    %v421 = vld [vmem:[%s420] sm:$0xf]
    %v422 = vld [vmem:[%s420 + $0x4] sm:$0xf]
    %v423 = vld [vmem:[%s420 + $0x8] sm:$0xf]
    %v424 = vld [vmem:[%s420 + $0xc] sm:$0xf]
    %v425 = vld [vmem:[%s420 + $0x10] sm:$0xf]
    %v426 = vld [vmem:[%s420 + $0x14] sm:$0xf]
    %v427 = vld [vmem:[%s420 + $0x18] sm:$0xf]
    %v428 = vunpack.c.l.bf16 %v421
    %v429 = vunpack.c.l.bf16 %v422
    %v430 = vunpack.c.l.bf16 %v423
    %v431 = vunpack.c.l.bf16 %v424
    %v432 = vunpack.c.l.bf16 %v425
    %v433 = vunpack.c.l.bf16 %v426
    %v434 = vunpack.c.l.bf16 %v427
    %v435 = vld [vmem:[%s1 + $0x5] sm:$0x1]
    %437 = vset.pattern.permute.xlu0 0
    %438 = vperm.xlu0 %437, %v428
    %v439 = vpop.permute.xlu0 %438
    %442 = vset.pattern.permute.xlu0 0
    %443 = vperm.xlu0 %442, %v429
    %v444 = vpop.permute.xlu0 %443
    %447 = vset.pattern.permute.xlu0 0
    %448 = vperm.xlu0 %447, %v430
    %v449 = vpop.permute.xlu0 %448
    %452 = vset.pattern.permute.xlu0 0
    %453 = vperm.xlu0 %452, %v431
    %v454 = vpop.permute.xlu0 %453
    %457 = vset.pattern.permute.xlu0 0
    %458 = vperm.xlu0 %457, %v432
    %v459 = vpop.permute.xlu0 %458
    %462 = vset.pattern.permute.xlu0 0
    %463 = vperm.xlu0 %462, %v433
    %v464 = vpop.permute.xlu0 %463
    %467 = vset.pattern.permute.xlu0 0
    %468 = vperm.xlu0 %467, %v434
    %v469 = vpop.permute.xlu0 %468
    %v471 = vlaneseq
    %v472 = vshrl.u32 %v471, 7
    %v473 = vsub.s32 0, %v472
    %v474 = vrot.slane %v435, %v473
    %v475 = vmul.f32 %v439, %v474
    %v476 = vmul.f32 %v444, %v474
    %v477 = vmul.f32 %v449, %v474
    %v478 = vmul.f32 %v454, %v474
    %v479 = vmul.f32 %v459, %v474
    %v480 = vmul.f32 %v464, %v474
    %v481 = vmul.f32 %v469, %v474
    %v482 = vadd.f32 %v413, %v475
    %v483 = vadd.f32 %v414, %v476
    %v484 = vadd.f32 %v415, %v477
    %v485 = vadd.f32 %v416, %v478
    %v486 = vadd.f32 %v417, %v479
    %v487 = vadd.f32 %v418, %v480
    %v488 = vadd.f32 %v419, %v481
    %s489 = scalar_lea.vmem %s0, 72
    %v490 = vld [vmem:[%s489] sm:$0xf]
    %v491 = vld [vmem:[%s489 + $0x4] sm:$0xf]
    %v492 = vld [vmem:[%s489 + $0x8] sm:$0xf]
    %v493 = vld [vmem:[%s489 + $0xc] sm:$0xf]
    %v494 = vld [vmem:[%s489 + $0x10] sm:$0xf]
    %v495 = vld [vmem:[%s489 + $0x14] sm:$0xf]
    %v496 = vld [vmem:[%s489 + $0x18] sm:$0xf]
    %v497 = vunpack.c.l.bf16 %v490
    %v498 = vunpack.c.l.bf16 %v491
    %v499 = vunpack.c.l.bf16 %v492
    %v500 = vunpack.c.l.bf16 %v493
    %v501 = vunpack.c.l.bf16 %v494
    %v502 = vunpack.c.l.bf16 %v495
    %v503 = vunpack.c.l.bf16 %v496
    %v504 = vld [vmem:[%s1 + $0x6] sm:$0x1]
    %506 = vset.pattern.permute.xlu0 0
    %507 = vperm.xlu0 %506, %v497
    %v508 = vpop.permute.xlu0 %507
    %511 = vset.pattern.permute.xlu0 0
    %512 = vperm.xlu0 %511, %v498
    %v513 = vpop.permute.xlu0 %512
    %516 = vset.pattern.permute.xlu0 0
    %517 = vperm.xlu0 %516, %v499
    %v518 = vpop.permute.xlu0 %517
    %521 = vset.pattern.permute.xlu0 0
    %522 = vperm.xlu0 %521, %v500
    %v523 = vpop.permute.xlu0 %522
    %526 = vset.pattern.permute.xlu0 0
    %527 = vperm.xlu0 %526, %v501
    %v528 = vpop.permute.xlu0 %527
    %531 = vset.pattern.permute.xlu0 0
    %532 = vperm.xlu0 %531, %v502
    %v533 = vpop.permute.xlu0 %532
    %536 = vset.pattern.permute.xlu0 0
    %537 = vperm.xlu0 %536, %v503
    %v538 = vpop.permute.xlu0 %537
    %v540 = vlaneseq
    %v541 = vshrl.u32 %v540, 7
    %v542 = vsub.s32 0, %v541
    %v543 = vrot.slane %v504, %v542
    %v544 = vmul.f32 %v508, %v543
    %v545 = vmul.f32 %v513, %v543
    %v546 = vmul.f32 %v518, %v543
    %v547 = vmul.f32 %v523, %v543
    %v548 = vmul.f32 %v528, %v543
    %v549 = vmul.f32 %v533, %v543
    %v550 = vmul.f32 %v538, %v543
    %v551 = vadd.f32 %v482, %v544
    %v552 = vadd.f32 %v483, %v545
    %v553 = vadd.f32 %v484, %v546
    %v554 = vadd.f32 %v485, %v547
    %v555 = vadd.f32 %v486, %v548
    %v556 = vadd.f32 %v487, %v549
    %v557 = vadd.f32 %v488, %v550
    %s558 = scalar_lea.vmem %s0, 76
    %v559 = vld [vmem:[%s558] sm:$0xf]
    %v560 = vld [vmem:[%s558 + $0x4] sm:$0xf]
    %v561 = vld [vmem:[%s558 + $0x8] sm:$0xf]
    %v562 = vld [vmem:[%s558 + $0xc] sm:$0xf]
    %v563 = vld [vmem:[%s558 + $0x10] sm:$0xf]
    %v564 = vld [vmem:[%s558 + $0x14] sm:$0xf]
    %v565 = vld [vmem:[%s558 + $0x18] sm:$0xf]
    %v566 = vunpack.c.l.bf16 %v559
    %v567 = vunpack.c.l.bf16 %v560
    %v568 = vunpack.c.l.bf16 %v561
    %v569 = vunpack.c.l.bf16 %v562
    %v570 = vunpack.c.l.bf16 %v563
    %v571 = vunpack.c.l.bf16 %v564
    %v572 = vunpack.c.l.bf16 %v565
    %v573 = vld [vmem:[%s1 + $0x7] sm:$0x1]
    %575 = vset.pattern.permute.xlu0 0
    %576 = vperm.xlu0 %575, %v566
    %v577 = vpop.permute.xlu0 %576
    %580 = vset.pattern.permute.xlu0 0
    %581 = vperm.xlu0 %580, %v567
    %v582 = vpop.permute.xlu0 %581
    %585 = vset.pattern.permute.xlu0 0
    %586 = vperm.xlu0 %585, %v568
    %v587 = vpop.permute.xlu0 %586
    %590 = vset.pattern.permute.xlu0 0
    %591 = vperm.xlu0 %590, %v569
    %v592 = vpop.permute.xlu0 %591
    %595 = vset.pattern.permute.xlu0 0
    %596 = vperm.xlu0 %595, %v570
    %v597 = vpop.permute.xlu0 %596
    %600 = vset.pattern.permute.xlu0 0
    %601 = vperm.xlu0 %600, %v571
    %v602 = vpop.permute.xlu0 %601
    %605 = vset.pattern.permute.xlu0 0
    %606 = vperm.xlu0 %605, %v572
    %v607 = vpop.permute.xlu0 %606
    %v609 = vlaneseq
    %v610 = vshrl.u32 %v609, 7
    %v611 = vsub.s32 0, %v610
    %v612 = vrot.slane %v573, %v611
    %v613 = vmul.f32 %v577, %v612
    %v614 = vmul.f32 %v582, %v612
    %v615 = vmul.f32 %v587, %v612
    %v616 = vmul.f32 %v592, %v612
    %v617 = vmul.f32 %v597, %v612
    %v618 = vmul.f32 %v602, %v612
    %v619 = vmul.f32 %v607, %v612
    %v620 = vadd.f32 %v551, %v613
    %v621 = vadd.f32 %v552, %v614
    %v622 = vadd.f32 %v553, %v615
    %v623 = vadd.f32 %v554, %v616
    %v624 = vadd.f32 %v555, %v617
    %v625 = vadd.f32 %v556, %v618
    %v626 = vadd.f32 %v557, %v619
    %s627 = scalar_lea.vmem %s0, 80
    %v628 = vld [vmem:[%s627] sm:$0xf]
    %v629 = vld [vmem:[%s627 + $0x4] sm:$0xf]
    %v630 = vld [vmem:[%s627 + $0x8] sm:$0xf]
    %v631 = vld [vmem:[%s627 + $0xc] sm:$0xf]
    %v632 = vld [vmem:[%s627 + $0x10] sm:$0xf]
    %v633 = vld [vmem:[%s627 + $0x14] sm:$0xf]
    %v634 = vld [vmem:[%s627 + $0x18] sm:$0xf]
    %v635 = vunpack.c.l.bf16 %v628
    %v636 = vunpack.c.l.bf16 %v629
    %v637 = vunpack.c.l.bf16 %v630
    %v638 = vunpack.c.l.bf16 %v631
    %v639 = vunpack.c.l.bf16 %v632
    %v640 = vunpack.c.l.bf16 %v633
    %v641 = vunpack.c.l.bf16 %v634
    %v642 = vld [vmem:[%s1 + $0x8] sm:$0x1]
    %644 = vset.pattern.permute.xlu0 0
    %645 = vperm.xlu0 %644, %v635
    %v646 = vpop.permute.xlu0 %645
    %649 = vset.pattern.permute.xlu0 0
    %650 = vperm.xlu0 %649, %v636
    %v651 = vpop.permute.xlu0 %650
    %654 = vset.pattern.permute.xlu0 0
    %655 = vperm.xlu0 %654, %v637
    %v656 = vpop.permute.xlu0 %655
    %659 = vset.pattern.permute.xlu0 0
    %660 = vperm.xlu0 %659, %v638
    %v661 = vpop.permute.xlu0 %660
    %664 = vset.pattern.permute.xlu0 0
    %665 = vperm.xlu0 %664, %v639
    %v666 = vpop.permute.xlu0 %665
    %669 = vset.pattern.permute.xlu0 0
    %670 = vperm.xlu0 %669, %v640
    %v671 = vpop.permute.xlu0 %670
    %674 = vset.pattern.permute.xlu0 0
    %675 = vperm.xlu0 %674, %v641
    %v676 = vpop.permute.xlu0 %675
    %v678 = vlaneseq
    %v679 = vshrl.u32 %v678, 7
    %v680 = vsub.s32 0, %v679
    %v681 = vrot.slane %v642, %v680
    %v682 = vmul.f32 %v646, %v681
    %v683 = vmul.f32 %v651, %v681
    %v684 = vmul.f32 %v656, %v681
    %v685 = vmul.f32 %v661, %v681
    %v686 = vmul.f32 %v666, %v681
    %v687 = vmul.f32 %v671, %v681
    %v688 = vmul.f32 %v676, %v681
    %v689 = vadd.f32 %v620, %v682
    %v690 = vadd.f32 %v621, %v683
    %v691 = vadd.f32 %v622, %v684
    %v692 = vadd.f32 %v623, %v685
    %v693 = vadd.f32 %v624, %v686
    %v694 = vadd.f32 %v625, %v687
    %v695 = vadd.f32 %v626, %v688
    %v696 = vld [vmem:[%s2] sm:$0x1]
    %v698 = vlaneseq
    %v699 = vshrl.u32 %v698, 7
    %v700 = vsub.s32 0, %v699
    %v701 = vrot.slane %v696, %v700
    %v703 = vadd.f32 %v689, %v701
    %v704 = vadd.f32 %v690, %v701
    %v705 = vadd.f32 %v691, %v701
    %v706 = vadd.f32 %v692, %v701
    %v707 = vadd.f32 %v693, %v701
    %v708 = vadd.f32 %v694, %v701
    %v709 = vadd.f32 %v695, %v701
    %v710 = vmax.f32 %v703, 0.0
    %v711 = vmax.f32 %v704, 0.0
    %v712 = vmax.f32 %v705, 0.0
    %v713 = vmax.f32 %v706, 0.0
    %v714 = vmax.f32 %v707, 0.0
    %v715 = vmax.f32 %v708, 0.0
    %v716 = vmax.f32 %v709, 0.0
    %v717 = vpack.c.bf16 %v710, %v710
    %v718 = vpack.c.bf16 %v711, %v711
    %v719 = vpack.c.bf16 %v712, %v712
    %v720 = vpack.c.bf16 %v713, %v713
    %v721 = vpack.c.bf16 %v714, %v714
    %v722 = vpack.c.bf16 %v715, %v715
    %v723 = vpack.c.bf16 %v716, %v716
    %s724 = scalar_lea.vmem [#allocation2], 40
    %725 = vst.msk [vmem:[%s724] sm:$0xf] %vm49, %v717
    %726 = vst.msk [vmem:[%s724 + $0x4] sm:$0xf] %vm49, %v718
    %727 = vst.msk [vmem:[%s724 + $0x8] sm:$0xf] %vm49, %v719
    %728 = vst.msk [vmem:[%s724 + $0xc] sm:$0xf] %vm49, %v720
    %729 = vst.msk [vmem:[%s724 + $0x10] sm:$0xf] %vm49, %v721
    %730 = vst.msk [vmem:[%s724 + $0x14] sm:$0xf] %vm49, %v722
    %731 = vst.msk [vmem:[%s724 + $0x18] sm:$0xf] %vm49, %v723
    %v732 = vld [vmem:[%s282] sm:$0xf]
    %v733 = vld [vmem:[%s282 + $0x4] sm:$0xf]
    %v734 = vld [vmem:[%s282 + $0x8] sm:$0xf]
    %v735 = vld [vmem:[%s282 + $0xc] sm:$0xf]
    %v736 = vld [vmem:[%s282 + $0x10] sm:$0xf]
    %v737 = vld [vmem:[%s282 + $0x14] sm:$0xf]
    %v738 = vld [vmem:[%s282 + $0x18] sm:$0xf]
    %v739 = vunpack.c.l.bf16 %v732
    %v740 = vunpack.c.l.bf16 %v733
    %v741 = vunpack.c.l.bf16 %v734
    %v742 = vunpack.c.l.bf16 %v735
    %v743 = vunpack.c.l.bf16 %v736
    %v744 = vunpack.c.l.bf16 %v737
    %v745 = vunpack.c.l.bf16 %v738
    %v746 = vld [vmem:[%s1] sm:$0x1]
    %748 = vset.pattern.permute.xlu0 0
    %749 = vperm.xlu0 %748, %v739
    %v750 = vpop.permute.xlu0 %749
    %753 = vset.pattern.permute.xlu0 0
    %754 = vperm.xlu0 %753, %v740
    %v755 = vpop.permute.xlu0 %754
    %758 = vset.pattern.permute.xlu0 0
    %759 = vperm.xlu0 %758, %v741
    %v760 = vpop.permute.xlu0 %759
    %763 = vset.pattern.permute.xlu0 0
    %764 = vperm.xlu0 %763, %v742
    %v765 = vpop.permute.xlu0 %764
    %768 = vset.pattern.permute.xlu0 0
    %769 = vperm.xlu0 %768, %v743
    %v770 = vpop.permute.xlu0 %769
    %773 = vset.pattern.permute.xlu0 0
    %774 = vperm.xlu0 %773, %v744
    %v775 = vpop.permute.xlu0 %774
    %778 = vset.pattern.permute.xlu0 0
    %779 = vperm.xlu0 %778, %v745
    %v780 = vpop.permute.xlu0 %779
    %v782 = vlaneseq
    %v783 = vshrl.u32 %v782, 7
    %v784 = vsub.s32 0, %v783
    %v785 = vrot.slane %v746, %v784
    %v786 = vmul.f32 %v750, %v785
    %v787 = vmul.f32 %v755, %v785
    %v788 = vmul.f32 %v760, %v785
    %v789 = vmul.f32 %v765, %v785
    %v790 = vmul.f32 %v770, %v785
    %v791 = vmul.f32 %v775, %v785
    %v792 = vmul.f32 %v780, %v785
    %v793 = vld [vmem:[%s351] sm:$0xf]
    %v794 = vld [vmem:[%s351 + $0x4] sm:$0xf]
    %v795 = vld [vmem:[%s351 + $0x8] sm:$0xf]
    %v796 = vld [vmem:[%s351 + $0xc] sm:$0xf]
    %v797 = vld [vmem:[%s351 + $0x10] sm:$0xf]
    %v798 = vld [vmem:[%s351 + $0x14] sm:$0xf]
    %v799 = vld [vmem:[%s351 + $0x18] sm:$0xf]
    %v800 = vunpack.c.l.bf16 %v793
    %v801 = vunpack.c.l.bf16 %v794
    %v802 = vunpack.c.l.bf16 %v795
    %v803 = vunpack.c.l.bf16 %v796
    %v804 = vunpack.c.l.bf16 %v797
    %v805 = vunpack.c.l.bf16 %v798
    %v806 = vunpack.c.l.bf16 %v799
    %v807 = vld [vmem:[%s1 + $0x1] sm:$0x1]
    %809 = vset.pattern.permute.xlu0 0
    %810 = vperm.xlu0 %809, %v800
    %v811 = vpop.permute.xlu0 %810
    %814 = vset.pattern.permute.xlu0 0
    %815 = vperm.xlu0 %814, %v801
    %v816 = vpop.permute.xlu0 %815
    %819 = vset.pattern.permute.xlu0 0
    %820 = vperm.xlu0 %819, %v802
    %v821 = vpop.permute.xlu0 %820
    %824 = vset.pattern.permute.xlu0 0
    %825 = vperm.xlu0 %824, %v803
    %v826 = vpop.permute.xlu0 %825
    %829 = vset.pattern.permute.xlu0 0
    %830 = vperm.xlu0 %829, %v804
    %v831 = vpop.permute.xlu0 %830
    %834 = vset.pattern.permute.xlu0 0
    %835 = vperm.xlu0 %834, %v805
    %v836 = vpop.permute.xlu0 %835
    %839 = vset.pattern.permute.xlu0 0
    %840 = vperm.xlu0 %839, %v806
    %v841 = vpop.permute.xlu0 %840
    %v843 = vlaneseq
    %v844 = vshrl.u32 %v843, 7
    %v845 = vsub.s32 0, %v844
    %v846 = vrot.slane %v807, %v845
    %v847 = vmul.f32 %v811, %v846
    %v848 = vmul.f32 %v816, %v846
    %v849 = vmul.f32 %v821, %v846
    %v850 = vmul.f32 %v826, %v846
    %v851 = vmul.f32 %v831, %v846
    %v852 = vmul.f32 %v836, %v846
    %v853 = vmul.f32 %v841, %v846
    %v854 = vadd.f32 %v786, %v847
    %v855 = vadd.f32 %v787, %v848
    %v856 = vadd.f32 %v788, %v849
    %v857 = vadd.f32 %v789, %v850
    %v858 = vadd.f32 %v790, %v851
    %v859 = vadd.f32 %v791, %v852
    %v860 = vadd.f32 %v792, %v853
    %v861 = vld [vmem:[%s420] sm:$0xf]
    %v862 = vld [vmem:[%s420 + $0x4] sm:$0xf]
    %v863 = vld [vmem:[%s420 + $0x8] sm:$0xf]
    %v864 = vld [vmem:[%s420 + $0xc] sm:$0xf]
    %v865 = vld [vmem:[%s420 + $0x10] sm:$0xf]
    %v866 = vld [vmem:[%s420 + $0x14] sm:$0xf]
    %v867 = vld [vmem:[%s420 + $0x18] sm:$0xf]
    %v868 = vunpack.c.l.bf16 %v861
    %v869 = vunpack.c.l.bf16 %v862
    %v870 = vunpack.c.l.bf16 %v863
    %v871 = vunpack.c.l.bf16 %v864
    %v872 = vunpack.c.l.bf16 %v865
    %v873 = vunpack.c.l.bf16 %v866
    %v874 = vunpack.c.l.bf16 %v867
    %v875 = vld [vmem:[%s1 + $0x2] sm:$0x1]
    %877 = vset.pattern.permute.xlu0 0
    %878 = vperm.xlu0 %877, %v868
    %v879 = vpop.permute.xlu0 %878
    %882 = vset.pattern.permute.xlu0 0
    %883 = vperm.xlu0 %882, %v869
    %v884 = vpop.permute.xlu0 %883
    %887 = vset.pattern.permute.xlu0 0
    %888 = vperm.xlu0 %887, %v870
    %v889 = vpop.permute.xlu0 %888
    %892 = vset.pattern.permute.xlu0 0
    %893 = vperm.xlu0 %892, %v871
    %v894 = vpop.permute.xlu0 %893
    %897 = vset.pattern.permute.xlu0 0
    %898 = vperm.xlu0 %897, %v872
    %v899 = vpop.permute.xlu0 %898
    %902 = vset.pattern.permute.xlu0 0
    %903 = vperm.xlu0 %902, %v873
    %v904 = vpop.permute.xlu0 %903
    %907 = vset.pattern.permute.xlu0 0
    %908 = vperm.xlu0 %907, %v874
    %v909 = vpop.permute.xlu0 %908
    %v911 = vlaneseq
    %v912 = vshrl.u32 %v911, 7
    %v913 = vsub.s32 0, %v912
    %v914 = vrot.slane %v875, %v913
    %v915 = vmul.f32 %v879, %v914
    %v916 = vmul.f32 %v884, %v914
    %v917 = vmul.f32 %v889, %v914
    %v918 = vmul.f32 %v894, %v914
    %v919 = vmul.f32 %v899, %v914
    %v920 = vmul.f32 %v904, %v914
    %v921 = vmul.f32 %v909, %v914
    %v922 = vadd.f32 %v854, %v915
    %v923 = vadd.f32 %v855, %v916
    %v924 = vadd.f32 %v856, %v917
    %v925 = vadd.f32 %v857, %v918
    %v926 = vadd.f32 %v858, %v919
    %v927 = vadd.f32 %v859, %v920
    %v928 = vadd.f32 %v860, %v921
    %v929 = vld [vmem:[%s489] sm:$0xf]
    %v930 = vld [vmem:[%s489 + $0x4] sm:$0xf]
    %v931 = vld [vmem:[%s489 + $0x8] sm:$0xf]
    %v932 = vld [vmem:[%s489 + $0xc] sm:$0xf]
    %v933 = vld [vmem:[%s489 + $0x10] sm:$0xf]
    %v934 = vld [vmem:[%s489 + $0x14] sm:$0xf]
    %v935 = vld [vmem:[%s489 + $0x18] sm:$0xf]
    %v936 = vunpack.c.l.bf16 %v929
    %v937 = vunpack.c.l.bf16 %v930
    %v938 = vunpack.c.l.bf16 %v931
    %v939 = vunpack.c.l.bf16 %v932
    %v940 = vunpack.c.l.bf16 %v933
    %v941 = vunpack.c.l.bf16 %v934
    %v942 = vunpack.c.l.bf16 %v935
    %v943 = vld [vmem:[%s1 + $0x3] sm:$0x1]
    %945 = vset.pattern.permute.xlu0 0
    %946 = vperm.xlu0 %945, %v936
    %v947 = vpop.permute.xlu0 %946
    %950 = vset.pattern.permute.xlu0 0
    %951 = vperm.xlu0 %950, %v937
    %v952 = vpop.permute.xlu0 %951
    %955 = vset.pattern.permute.xlu0 0
    %956 = vperm.xlu0 %955, %v938
    %v957 = vpop.permute.xlu0 %956
    %960 = vset.pattern.permute.xlu0 0
    %961 = vperm.xlu0 %960, %v939
    %v962 = vpop.permute.xlu0 %961
    %965 = vset.pattern.permute.xlu0 0
    %966 = vperm.xlu0 %965, %v940
    %v967 = vpop.permute.xlu0 %966
    %970 = vset.pattern.permute.xlu0 0
    %971 = vperm.xlu0 %970, %v941
    %v972 = vpop.permute.xlu0 %971
    %975 = vset.pattern.permute.xlu0 0
    %976 = vperm.xlu0 %975, %v942
    %v977 = vpop.permute.xlu0 %976
    %v979 = vlaneseq
    %v980 = vshrl.u32 %v979, 7
    %v981 = vsub.s32 0, %v980
    %v982 = vrot.slane %v943, %v981
    %v983 = vmul.f32 %v947, %v982
    %v984 = vmul.f32 %v952, %v982
    %v985 = vmul.f32 %v957, %v982
    %v986 = vmul.f32 %v962, %v982
    %v987 = vmul.f32 %v967, %v982
    %v988 = vmul.f32 %v972, %v982
    %v989 = vmul.f32 %v977, %v982
    %v990 = vadd.f32 %v922, %v983
    %v991 = vadd.f32 %v923, %v984
    %v992 = vadd.f32 %v924, %v985
    %v993 = vadd.f32 %v925, %v986
    %v994 = vadd.f32 %v926, %v987
    %v995 = vadd.f32 %v927, %v988
    %v996 = vadd.f32 %v928, %v989
    %v997 = vld [vmem:[%s558] sm:$0xf]
    %v998 = vld [vmem:[%s558 + $0x4] sm:$0xf]
    %v999 = vld [vmem:[%s558 + $0x8] sm:$0xf]
    %v1000 = vld [vmem:[%s558 + $0xc] sm:$0xf]
    %v1001 = vld [vmem:[%s558 + $0x10] sm:$0xf]
    %v1002 = vld [vmem:[%s558 + $0x14] sm:$0xf]
    %v1003 = vld [vmem:[%s558 + $0x18] sm:$0xf]
    %v1004 = vunpack.c.l.bf16 %v997
    %v1005 = vunpack.c.l.bf16 %v998
    %v1006 = vunpack.c.l.bf16 %v999
    %v1007 = vunpack.c.l.bf16 %v1000
    %v1008 = vunpack.c.l.bf16 %v1001
    %v1009 = vunpack.c.l.bf16 %v1002
    %v1010 = vunpack.c.l.bf16 %v1003
    %v1011 = vld [vmem:[%s1 + $0x4] sm:$0x1]
    %1013 = vset.pattern.permute.xlu0 0
    %1014 = vperm.xlu0 %1013, %v1004
    %v1015 = vpop.permute.xlu0 %1014
    %1018 = vset.pattern.permute.xlu0 0
    %1019 = vperm.xlu0 %1018, %v1005
    %v1020 = vpop.permute.xlu0 %1019
    %1023 = vset.pattern.permute.xlu0 0
    %1024 = vperm.xlu0 %1023, %v1006
    %v1025 = vpop.permute.xlu0 %1024
    %1028 = vset.pattern.permute.xlu0 0
    %1029 = vperm.xlu0 %1028, %v1007
    %v1030 = vpop.permute.xlu0 %1029
    %1033 = vset.pattern.permute.xlu0 0
    %1034 = vperm.xlu0 %1033, %v1008
    %v1035 = vpop.permute.xlu0 %1034
    %1038 = vset.pattern.permute.xlu0 0
    %1039 = vperm.xlu0 %1038, %v1009
    %v1040 = vpop.permute.xlu0 %1039
    %1043 = vset.pattern.permute.xlu0 0
    %1044 = vperm.xlu0 %1043, %v1010
    %v1045 = vpop.permute.xlu0 %1044
    %v1047 = vlaneseq
    %v1048 = vshrl.u32 %v1047, 7
    %v1049 = vsub.s32 0, %v1048
    %v1050 = vrot.slane %v1011, %v1049
    %v1051 = vmul.f32 %v1015, %v1050
    %v1052 = vmul.f32 %v1020, %v1050
    %v1053 = vmul.f32 %v1025, %v1050
    %v1054 = vmul.f32 %v1030, %v1050
    %v1055 = vmul.f32 %v1035, %v1050
    %v1056 = vmul.f32 %v1040, %v1050
    %v1057 = vmul.f32 %v1045, %v1050
    %v1058 = vadd.f32 %v990, %v1051
    %v1059 = vadd.f32 %v991, %v1052
    %v1060 = vadd.f32 %v992, %v1053
    %v1061 = vadd.f32 %v993, %v1054
    %v1062 = vadd.f32 %v994, %v1055
    %v1063 = vadd.f32 %v995, %v1056
    %v1064 = vadd.f32 %v996, %v1057
    %v1065 = vld [vmem:[%s627] sm:$0xf]
    %v1066 = vld [vmem:[%s627 + $0x4] sm:$0xf]
    %v1067 = vld [vmem:[%s627 + $0x8] sm:$0xf]
    %v1068 = vld [vmem:[%s627 + $0xc] sm:$0xf]
    %v1069 = vld [vmem:[%s627 + $0x10] sm:$0xf]
    %v1070 = vld [vmem:[%s627 + $0x14] sm:$0xf]
    %v1071 = vld [vmem:[%s627 + $0x18] sm:$0xf]
    %v1072 = vunpack.c.l.bf16 %v1065
    %v1073 = vunpack.c.l.bf16 %v1066
    %v1074 = vunpack.c.l.bf16 %v1067
    %v1075 = vunpack.c.l.bf16 %v1068
    %v1076 = vunpack.c.l.bf16 %v1069
    %v1077 = vunpack.c.l.bf16 %v1070
    %v1078 = vunpack.c.l.bf16 %v1071
    %v1079 = vld [vmem:[%s1 + $0x5] sm:$0x1]
    %1081 = vset.pattern.permute.xlu0 0
    %1082 = vperm.xlu0 %1081, %v1072
    %v1083 = vpop.permute.xlu0 %1082
    %1086 = vset.pattern.permute.xlu0 0
    %1087 = vperm.xlu0 %1086, %v1073
    %v1088 = vpop.permute.xlu0 %1087
    %1091 = vset.pattern.permute.xlu0 0
    %1092 = vperm.xlu0 %1091, %v1074
    %v1093 = vpop.permute.xlu0 %1092
    %1096 = vset.pattern.permute.xlu0 0
    %1097 = vperm.xlu0 %1096, %v1075
    %v1098 = vpop.permute.xlu0 %1097
    %1101 = vset.pattern.permute.xlu0 0
    %1102 = vperm.xlu0 %1101, %v1076
    %v1103 = vpop.permute.xlu0 %1102
    %1106 = vset.pattern.permute.xlu0 0
    %1107 = vperm.xlu0 %1106, %v1077
    %v1108 = vpop.permute.xlu0 %1107
    %1111 = vset.pattern.permute.xlu0 0
    %1112 = vperm.xlu0 %1111, %v1078
    %v1113 = vpop.permute.xlu0 %1112
    %v1115 = vlaneseq
    %v1116 = vshrl.u32 %v1115, 7
    %v1117 = vsub.s32 0, %v1116
    %v1118 = vrot.slane %v1079, %v1117
    %v1119 = vmul.f32 %v1083, %v1118
    %v1120 = vmul.f32 %v1088, %v1118
    %v1121 = vmul.f32 %v1093, %v1118
    %v1122 = vmul.f32 %v1098, %v1118
    %v1123 = vmul.f32 %v1103, %v1118
    %v1124 = vmul.f32 %v1108, %v1118
    %v1125 = vmul.f32 %v1113, %v1118
    %v1126 = vadd.f32 %v1058, %v1119
    %v1127 = vadd.f32 %v1059, %v1120
    %v1128 = vadd.f32 %v1060, %v1121
    %v1129 = vadd.f32 %v1061, %v1122
    %v1130 = vadd.f32 %v1062, %v1123
    %v1131 = vadd.f32 %v1063, %v1124
    %v1132 = vadd.f32 %v1064, %v1125
    %s1133 = scalar_lea.vmem %s0, 108
    %v1134 = vld [vmem:[%s1133] sm:$0xf]
    %v1135 = vld [vmem:[%s1133 + $0x4] sm:$0xf]
    %v1136 = vld [vmem:[%s1133 + $0x8] sm:$0xf]
    %v1137 = vld [vmem:[%s1133 + $0xc] sm:$0xf]
    %v1138 = vld [vmem:[%s1133 + $0x10] sm:$0xf]
    %v1139 = vld [vmem:[%s1133 + $0x14] sm:$0xf]
    %v1140 = vld [vmem:[%s1133 + $0x18] sm:$0xf]
    %v1141 = vunpack.c.l.bf16 %v1134
    %v1142 = vunpack.c.l.bf16 %v1135
    %v1143 = vunpack.c.l.bf16 %v1136
    %v1144 = vunpack.c.l.bf16 %v1137
    %v1145 = vunpack.c.l.bf16 %v1138
    %v1146 = vunpack.c.l.bf16 %v1139
    %v1147 = vunpack.c.l.bf16 %v1140
    %v1148 = vld [vmem:[%s1 + $0x6] sm:$0x1]
    %1150 = vset.pattern.permute.xlu0 0
    %1151 = vperm.xlu0 %1150, %v1141
    %v1152 = vpop.permute.xlu0 %1151
    %1155 = vset.pattern.permute.xlu0 0
    %1156 = vperm.xlu0 %1155, %v1142
    %v1157 = vpop.permute.xlu0 %1156
    %1160 = vset.pattern.permute.xlu0 0
    %1161 = vperm.xlu0 %1160, %v1143
    %v1162 = vpop.permute.xlu0 %1161
    %1165 = vset.pattern.permute.xlu0 0
    %1166 = vperm.xlu0 %1165, %v1144
    %v1167 = vpop.permute.xlu0 %1166
    %1170 = vset.pattern.permute.xlu0 0
    %1171 = vperm.xlu0 %1170, %v1145
    %v1172 = vpop.permute.xlu0 %1171
    %1175 = vset.pattern.permute.xlu0 0
    %1176 = vperm.xlu0 %1175, %v1146
    %v1177 = vpop.permute.xlu0 %1176
    %1180 = vset.pattern.permute.xlu0 0
    %1181 = vperm.xlu0 %1180, %v1147
    %v1182 = vpop.permute.xlu0 %1181
    %v1184 = vlaneseq
    %v1185 = vshrl.u32 %v1184, 7
    %v1186 = vsub.s32 0, %v1185
    %v1187 = vrot.slane %v1148, %v1186
    %v1188 = vmul.f32 %v1152, %v1187
    %v1189 = vmul.f32 %v1157, %v1187
    %v1190 = vmul.f32 %v1162, %v1187
    %v1191 = vmul.f32 %v1167, %v1187
    %v1192 = vmul.f32 %v1172, %v1187
    %v1193 = vmul.f32 %v1177, %v1187
    %v1194 = vmul.f32 %v1182, %v1187
    %v1195 = vadd.f32 %v1126, %v1188
    %v1196 = vadd.f32 %v1127, %v1189
    %v1197 = vadd.f32 %v1128, %v1190
    %v1198 = vadd.f32 %v1129, %v1191
    %v1199 = vadd.f32 %v1130, %v1192
    %v1200 = vadd.f32 %v1131, %v1193
    %v1201 = vadd.f32 %v1132, %v1194
    %s1202 = scalar_lea.vmem %s0, 112
    %v1203 = vld [vmem:[%s1202] sm:$0xf]
    %v1204 = vld [vmem:[%s1202 + $0x4] sm:$0xf]
    %v1205 = vld [vmem:[%s1202 + $0x8] sm:$0xf]
    %v1206 = vld [vmem:[%s1202 + $0xc] sm:$0xf]
    %v1207 = vld [vmem:[%s1202 + $0x10] sm:$0xf]
    %v1208 = vld [vmem:[%s1202 + $0x14] sm:$0xf]
    %v1209 = vld [vmem:[%s1202 + $0x18] sm:$0xf]
    %v1210 = vunpack.c.l.bf16 %v1203
    %v1211 = vunpack.c.l.bf16 %v1204
    %v1212 = vunpack.c.l.bf16 %v1205
    %v1213 = vunpack.c.l.bf16 %v1206
    %v1214 = vunpack.c.l.bf16 %v1207
    %v1215 = vunpack.c.l.bf16 %v1208
    %v1216 = vunpack.c.l.bf16 %v1209
    %v1217 = vld [vmem:[%s1 + $0x7] sm:$0x1]
    %1219 = vset.pattern.permute.xlu0 0
    %1220 = vperm.xlu0 %1219, %v1210
    %v1221 = vpop.permute.xlu0 %1220
    %1224 = vset.pattern.permute.xlu0 0
    %1225 = vperm.xlu0 %1224, %v1211
    %v1226 = vpop.permute.xlu0 %1225
    %1229 = vset.pattern.permute.xlu0 0
    %1230 = vperm.xlu0 %1229, %v1212
    %v1231 = vpop.permute.xlu0 %1230
    %1234 = vset.pattern.permute.xlu0 0
    %1235 = vperm.xlu0 %1234, %v1213
    %v1236 = vpop.permute.xlu0 %1235
    %1239 = vset.pattern.permute.xlu0 0
    %1240 = vperm.xlu0 %1239, %v1214
    %v1241 = vpop.permute.xlu0 %1240
    %1244 = vset.pattern.permute.xlu0 0
    %1245 = vperm.xlu0 %1244, %v1215
    %v1246 = vpop.permute.xlu0 %1245
    %1249 = vset.pattern.permute.xlu0 0
    %1250 = vperm.xlu0 %1249, %v1216
    %v1251 = vpop.permute.xlu0 %1250
    %v1253 = vlaneseq
    %v1254 = vshrl.u32 %v1253, 7
    %v1255 = vsub.s32 0, %v1254
    %v1256 = vrot.slane %v1217, %v1255
    %v1257 = vmul.f32 %v1221, %v1256
    %v1258 = vmul.f32 %v1226, %v1256
    %v1259 = vmul.f32 %v1231, %v1256
    %v1260 = vmul.f32 %v1236, %v1256
    %v1261 = vmul.f32 %v1241, %v1256
    %v1262 = vmul.f32 %v1246, %v1256
    %v1263 = vmul.f32 %v1251, %v1256
    %v1264 = vadd.f32 %v1195, %v1257
    %v1265 = vadd.f32 %v1196, %v1258
    %v1266 = vadd.f32 %v1197, %v1259
    %v1267 = vadd.f32 %v1198, %v1260
    %v1268 = vadd.f32 %v1199, %v1261
    %v1269 = vadd.f32 %v1200, %v1262
    %v1270 = vadd.f32 %v1201, %v1263
    %s1271 = scalar_lea.vmem %s0, 116
    %v1272 = vld [vmem:[%s1271] sm:$0xf]
    %v1273 = vld [vmem:[%s1271 + $0x4] sm:$0xf]
    %v1274 = vld [vmem:[%s1271 + $0x8] sm:$0xf]
    %v1275 = vld [vmem:[%s1271 + $0xc] sm:$0xf]
    %v1276 = vld [vmem:[%s1271 + $0x10] sm:$0xf]
    %v1277 = vld [vmem:[%s1271 + $0x14] sm:$0xf]
    %v1278 = vld [vmem:[%s1271 + $0x18] sm:$0xf]
    %v1279 = vunpack.c.l.bf16 %v1272
    %v1280 = vunpack.c.l.bf16 %v1273
    %v1281 = vunpack.c.l.bf16 %v1274
    %v1282 = vunpack.c.l.bf16 %v1275
    %v1283 = vunpack.c.l.bf16 %v1276
    %v1284 = vunpack.c.l.bf16 %v1277
    %v1285 = vunpack.c.l.bf16 %v1278
    %v1286 = vld [vmem:[%s1 + $0x8] sm:$0x1]
    %1288 = vset.pattern.permute.xlu0 0
    %1289 = vperm.xlu0 %1288, %v1279
    %v1290 = vpop.permute.xlu0 %1289
    %1293 = vset.pattern.permute.xlu0 0
    %1294 = vperm.xlu0 %1293, %v1280
    %v1295 = vpop.permute.xlu0 %1294
    %1298 = vset.pattern.permute.xlu0 0
    %1299 = vperm.xlu0 %1298, %v1281
    %v1300 = vpop.permute.xlu0 %1299
    %1303 = vset.pattern.permute.xlu0 0
    %1304 = vperm.xlu0 %1303, %v1282
    %v1305 = vpop.permute.xlu0 %1304
    %1308 = vset.pattern.permute.xlu0 0
    %1309 = vperm.xlu0 %1308, %v1283
    %v1310 = vpop.permute.xlu0 %1309
    %1313 = vset.pattern.permute.xlu0 0
    %1314 = vperm.xlu0 %1313, %v1284
    %v1315 = vpop.permute.xlu0 %1314
    %1318 = vset.pattern.permute.xlu0 0
    %1319 = vperm.xlu0 %1318, %v1285
    %v1320 = vpop.permute.xlu0 %1319
    %v1322 = vlaneseq
    %v1323 = vshrl.u32 %v1322, 7
    %v1324 = vsub.s32 0, %v1323
    %v1325 = vrot.slane %v1286, %v1324
    %v1326 = vmul.f32 %v1290, %v1325
    %v1327 = vmul.f32 %v1295, %v1325
    %v1328 = vmul.f32 %v1300, %v1325
    %v1329 = vmul.f32 %v1305, %v1325
    %v1330 = vmul.f32 %v1310, %v1325
    %v1331 = vmul.f32 %v1315, %v1325
    %v1332 = vmul.f32 %v1320, %v1325
    %v1333 = vadd.f32 %v1264, %v1326
    %v1334 = vadd.f32 %v1265, %v1327
    %v1335 = vadd.f32 %v1266, %v1328
    %v1336 = vadd.f32 %v1267, %v1329
    %v1337 = vadd.f32 %v1268, %v1330
    %v1338 = vadd.f32 %v1269, %v1331
    %v1339 = vadd.f32 %v1270, %v1332
    %v1340 = vld [vmem:[%s2] sm:$0x1]
    %v1342 = vlaneseq
    %v1343 = vshrl.u32 %v1342, 7
    %v1344 = vsub.s32 0, %v1343
    %v1345 = vrot.slane %v1340, %v1344
    %v1347 = vadd.f32 %v1333, %v1345
    %v1348 = vadd.f32 %v1334, %v1345
    %v1349 = vadd.f32 %v1335, %v1345
    %v1350 = vadd.f32 %v1336, %v1345
    %v1351 = vadd.f32 %v1337, %v1345
    %v1352 = vadd.f32 %v1338, %v1345
    %v1353 = vadd.f32 %v1339, %v1345
    %v1354 = vmax.f32 %v1347, 0.0
    %v1355 = vmax.f32 %v1348, 0.0
    %v1356 = vmax.f32 %v1349, 0.0
    %v1357 = vmax.f32 %v1350, 0.0
    %v1358 = vmax.f32 %v1351, 0.0
    %v1359 = vmax.f32 %v1352, 0.0
    %v1360 = vmax.f32 %v1353, 0.0
    %v1361 = vpack.c.bf16 %v1354, %v1354
    %v1362 = vpack.c.bf16 %v1355, %v1355
    %v1363 = vpack.c.bf16 %v1356, %v1356
    %v1364 = vpack.c.bf16 %v1357, %v1357
    %v1365 = vpack.c.bf16 %v1358, %v1358
    %v1366 = vpack.c.bf16 %v1359, %v1359
    %v1367 = vpack.c.bf16 %v1360, %v1360
    %s1368 = scalar_lea.vmem [#allocation2], 76
    %1369 = vst.msk [vmem:[%s1368] sm:$0xf] %vm49, %v1361
    %1370 = vst.msk [vmem:[%s1368 + $0x4] sm:$0xf] %vm49, %v1362
    %1371 = vst.msk [vmem:[%s1368 + $0x8] sm:$0xf] %vm49, %v1363
    %1372 = vst.msk [vmem:[%s1368 + $0xc] sm:$0xf] %vm49, %v1364
    %1373 = vst.msk [vmem:[%s1368 + $0x10] sm:$0xf] %vm49, %v1365
    %1374 = vst.msk [vmem:[%s1368 + $0x14] sm:$0xf] %vm49, %v1366
    %1375 = vst.msk [vmem:[%s1368 + $0x18] sm:$0xf] %vm49, %v1367
    %v1376 = vld [vmem:[%s489] sm:$0xf]
    %v1377 = vld [vmem:[%s489 + $0x4] sm:$0xf]
    %v1378 = vld [vmem:[%s489 + $0x8] sm:$0xf]
    %v1379 = vld [vmem:[%s489 + $0xc] sm:$0xf]
    %v1380 = vld [vmem:[%s489 + $0x10] sm:$0xf]
    %v1381 = vld [vmem:[%s489 + $0x14] sm:$0xf]
    %v1382 = vld [vmem:[%s489 + $0x18] sm:$0xf]
    %v1383 = vunpack.c.l.bf16 %v1376
    %v1384 = vunpack.c.l.bf16 %v1377
    %v1385 = vunpack.c.l.bf16 %v1378
    %v1386 = vunpack.c.l.bf16 %v1379
    %v1387 = vunpack.c.l.bf16 %v1380
    %v1388 = vunpack.c.l.bf16 %v1381
    %v1389 = vunpack.c.l.bf16 %v1382
    %v1390 = vld [vmem:[%s1] sm:$0x1]
    %1392 = vset.pattern.permute.xlu0 0
    %1393 = vperm.xlu0 %1392, %v1383
    %v1394 = vpop.permute.xlu0 %1393
    %1397 = vset.pattern.permute.xlu0 0
    %1398 = vperm.xlu0 %1397, %v1384
    %v1399 = vpop.permute.xlu0 %1398
    %1402 = vset.pattern.permute.xlu0 0
    %1403 = vperm.xlu0 %1402, %v1385
    %v1404 = vpop.permute.xlu0 %1403
    %1407 = vset.pattern.permute.xlu0 0
    %1408 = vperm.xlu0 %1407, %v1386
    %v1409 = vpop.permute.xlu0 %1408
    %1412 = vset.pattern.permute.xlu0 0
    %1413 = vperm.xlu0 %1412, %v1387
    %v1414 = vpop.permute.xlu0 %1413
    %1417 = vset.pattern.permute.xlu0 0
    %1418 = vperm.xlu0 %1417, %v1388
    %v1419 = vpop.permute.xlu0 %1418
    %1422 = vset.pattern.permute.xlu0 0
    %1423 = vperm.xlu0 %1422, %v1389
    %v1424 = vpop.permute.xlu0 %1423
    %v1426 = vlaneseq
    %v1427 = vshrl.u32 %v1426, 7
    %v1428 = vsub.s32 0, %v1427
    %v1429 = vrot.slane %v1390, %v1428
    %v1430 = vmul.f32 %v1394, %v1429
    %v1431 = vmul.f32 %v1399, %v1429
    %v1432 = vmul.f32 %v1404, %v1429
    %v1433 = vmul.f32 %v1409, %v1429
    %v1434 = vmul.f32 %v1414, %v1429
    %v1435 = vmul.f32 %v1419, %v1429
    %v1436 = vmul.f32 %v1424, %v1429
    %v1437 = vld [vmem:[%s558] sm:$0xf]
    %v1438 = vld [vmem:[%s558 + $0x4] sm:$0xf]
    %v1439 = vld [vmem:[%s558 + $0x8] sm:$0xf]
    %v1440 = vld [vmem:[%s558 + $0xc] sm:$0xf]
    %v1441 = vld [vmem:[%s558 + $0x10] sm:$0xf]
    %v1442 = vld [vmem:[%s558 + $0x14] sm:$0xf]
    %v1443 = vld [vmem:[%s558 + $0x18] sm:$0xf]
    %v1444 = vunpack.c.l.bf16 %v1437
    %v1445 = vunpack.c.l.bf16 %v1438
    %v1446 = vunpack.c.l.bf16 %v1439
    %v1447 = vunpack.c.l.bf16 %v1440
    %v1448 = vunpack.c.l.bf16 %v1441
    %v1449 = vunpack.c.l.bf16 %v1442
    %v1450 = vunpack.c.l.bf16 %v1443
    %v1451 = vld [vmem:[%s1 + $0x1] sm:$0x1]
    %1453 = vset.pattern.permute.xlu0 0
    %1454 = vperm.xlu0 %1453, %v1444
    %v1455 = vpop.permute.xlu0 %1454
    %1458 = vset.pattern.permute.xlu0 0
    %1459 = vperm.xlu0 %1458, %v1445
    %v1460 = vpop.permute.xlu0 %1459
    %1463 = vset.pattern.permute.xlu0 0
    %1464 = vperm.xlu0 %1463, %v1446
    %v1465 = vpop.permute.xlu0 %1464
    %1468 = vset.pattern.permute.xlu0 0
    %1469 = vperm.xlu0 %1468, %v1447
    %v1470 = vpop.permute.xlu0 %1469
    %1473 = vset.pattern.permute.xlu0 0
    %1474 = vperm.xlu0 %1473, %v1448
    %v1475 = vpop.permute.xlu0 %1474
    %1478 = vset.pattern.permute.xlu0 0
    %1479 = vperm.xlu0 %1478, %v1449
    %v1480 = vpop.permute.xlu0 %1479
    %1483 = vset.pattern.permute.xlu0 0
    %1484 = vperm.xlu0 %1483, %v1450
    %v1485 = vpop.permute.xlu0 %1484
    %v1487 = vlaneseq
    %v1488 = vshrl.u32 %v1487, 7
    %v1489 = vsub.s32 0, %v1488
    %v1490 = vrot.slane %v1451, %v1489
    %v1491 = vmul.f32 %v1455, %v1490
    %v1492 = vmul.f32 %v1460, %v1490
    %v1493 = vmul.f32 %v1465, %v1490
    %v1494 = vmul.f32 %v1470, %v1490
    %v1495 = vmul.f32 %v1475, %v1490
    %v1496 = vmul.f32 %v1480, %v1490
    %v1497 = vmul.f32 %v1485, %v1490
    %v1498 = vadd.f32 %v1430, %v1491
    %v1499 = vadd.f32 %v1431, %v1492
    %v1500 = vadd.f32 %v1432, %v1493
    %v1501 = vadd.f32 %v1433, %v1494
    %v1502 = vadd.f32 %v1434, %v1495
    %v1503 = vadd.f32 %v1435, %v1496
    %v1504 = vadd.f32 %v1436, %v1497
    %v1505 = vld [vmem:[%s627] sm:$0xf]
    %v1506 = vld [vmem:[%s627 + $0x4] sm:$0xf]
    %v1507 = vld [vmem:[%s627 + $0x8] sm:$0xf]
    %v1508 = vld [vmem:[%s627 + $0xc] sm:$0xf]
    %v1509 = vld [vmem:[%s627 + $0x10] sm:$0xf]
    %v1510 = vld [vmem:[%s627 + $0x14] sm:$0xf]
    %v1511 = vld [vmem:[%s627 + $0x18] sm:$0xf]
    %v1512 = vunpack.c.l.bf16 %v1505
    %v1513 = vunpack.c.l.bf16 %v1506
    %v1514 = vunpack.c.l.bf16 %v1507
    %v1515 = vunpack.c.l.bf16 %v1508
    %v1516 = vunpack.c.l.bf16 %v1509
    %v1517 = vunpack.c.l.bf16 %v1510
    %v1518 = vunpack.c.l.bf16 %v1511
    %v1519 = vld [vmem:[%s1 + $0x2] sm:$0x1]
    %1521 = vset.pattern.permute.xlu0 0
    %1522 = vperm.xlu0 %1521, %v1512
    %v1523 = vpop.permute.xlu0 %1522
    %1526 = vset.pattern.permute.xlu0 0
    %1527 = vperm.xlu0 %1526, %v1513
    %v1528 = vpop.permute.xlu0 %1527
    %1531 = vset.pattern.permute.xlu0 0
    %1532 = vperm.xlu0 %1531, %v1514
    %v1533 = vpop.permute.xlu0 %1532
    %1536 = vset.pattern.permute.xlu0 0
    %1537 = vperm.xlu0 %1536, %v1515
    %v1538 = vpop.permute.xlu0 %1537
    %1541 = vset.pattern.permute.xlu0 0
    %1542 = vperm.xlu0 %1541, %v1516
    %v1543 = vpop.permute.xlu0 %1542
    %1546 = vset.pattern.permute.xlu0 0
    %1547 = vperm.xlu0 %1546, %v1517
    %v1548 = vpop.permute.xlu0 %1547
    %1551 = vset.pattern.permute.xlu0 0
    %1552 = vperm.xlu0 %1551, %v1518
    %v1553 = vpop.permute.xlu0 %1552
    %v1555 = vlaneseq
    %v1556 = vshrl.u32 %v1555, 7
    %v1557 = vsub.s32 0, %v1556
    %v1558 = vrot.slane %v1519, %v1557
    %v1559 = vmul.f32 %v1523, %v1558
    %v1560 = vmul.f32 %v1528, %v1558
    %v1561 = vmul.f32 %v1533, %v1558
    %v1562 = vmul.f32 %v1538, %v1558
    %v1563 = vmul.f32 %v1543, %v1558
    %v1564 = vmul.f32 %v1548, %v1558
    %v1565 = vmul.f32 %v1553, %v1558
    %v1566 = vadd.f32 %v1498, %v1559
    %v1567 = vadd.f32 %v1499, %v1560
    %v1568 = vadd.f32 %v1500, %v1561
    %v1569 = vadd.f32 %v1501, %v1562
    %v1570 = vadd.f32 %v1502, %v1563
    %v1571 = vadd.f32 %v1503, %v1564
    %v1572 = vadd.f32 %v1504, %v1565
    %v1573 = vld [vmem:[%s1133] sm:$0xf]
    %v1574 = vld [vmem:[%s1133 + $0x4] sm:$0xf]
    %v1575 = vld [vmem:[%s1133 + $0x8] sm:$0xf]
    %v1576 = vld [vmem:[%s1133 + $0xc] sm:$0xf]
    %v1577 = vld [vmem:[%s1133 + $0x10] sm:$0xf]
    %v1578 = vld [vmem:[%s1133 + $0x14] sm:$0xf]
    %v1579 = vld [vmem:[%s1133 + $0x18] sm:$0xf]
    %v1580 = vunpack.c.l.bf16 %v1573
    %v1581 = vunpack.c.l.bf16 %v1574
    %v1582 = vunpack.c.l.bf16 %v1575
    %v1583 = vunpack.c.l.bf16 %v1576
    %v1584 = vunpack.c.l.bf16 %v1577
    %v1585 = vunpack.c.l.bf16 %v1578
    %v1586 = vunpack.c.l.bf16 %v1579
    %v1587 = vld [vmem:[%s1 + $0x3] sm:$0x1]
    %1589 = vset.pattern.permute.xlu0 0
    %1590 = vperm.xlu0 %1589, %v1580
    %v1591 = vpop.permute.xlu0 %1590
    %1594 = vset.pattern.permute.xlu0 0
    %1595 = vperm.xlu0 %1594, %v1581
    %v1596 = vpop.permute.xlu0 %1595
    %1599 = vset.pattern.permute.xlu0 0
    %1600 = vperm.xlu0 %1599, %v1582
    %v1601 = vpop.permute.xlu0 %1600
    %1604 = vset.pattern.permute.xlu0 0
    %1605 = vperm.xlu0 %1604, %v1583
    %v1606 = vpop.permute.xlu0 %1605
    %1609 = vset.pattern.permute.xlu0 0
    %1610 = vperm.xlu0 %1609, %v1584
    %v1611 = vpop.permute.xlu0 %1610
    %1614 = vset.pattern.permute.xlu0 0
    %1615 = vperm.xlu0 %1614, %v1585
    %v1616 = vpop.permute.xlu0 %1615
    %1619 = vset.pattern.permute.xlu0 0
    %1620 = vperm.xlu0 %1619, %v1586
    %v1621 = vpop.permute.xlu0 %1620
    %v1623 = vlaneseq
    %v1624 = vshrl.u32 %v1623, 7
    %v1625 = vsub.s32 0, %v1624
    %v1626 = vrot.slane %v1587, %v1625
    %v1627 = vmul.f32 %v1591, %v1626
    %v1628 = vmul.f32 %v1596, %v1626
    %v1629 = vmul.f32 %v1601, %v1626
    %v1630 = vmul.f32 %v1606, %v1626
    %v1631 = vmul.f32 %v1611, %v1626
    %v1632 = vmul.f32 %v1616, %v1626
    %v1633 = vmul.f32 %v1621, %v1626
    %v1634 = vadd.f32 %v1566, %v1627
    %v1635 = vadd.f32 %v1567, %v1628
    %v1636 = vadd.f32 %v1568, %v1629
    %v1637 = vadd.f32 %v1569, %v1630
    %v1638 = vadd.f32 %v1570, %v1631
    %v1639 = vadd.f32 %v1571, %v1632
    %v1640 = vadd.f32 %v1572, %v1633
    %v1641 = vld [vmem:[%s1202] sm:$0xf]
    %v1642 = vld [vmem:[%s1202 + $0x4] sm:$0xf]
    %v1643 = vld [vmem:[%s1202 + $0x8] sm:$0xf]
    %v1644 = vld [vmem:[%s1202 + $0xc] sm:$0xf]
    %v1645 = vld [vmem:[%s1202 + $0x10] sm:$0xf]
    %v1646 = vld [vmem:[%s1202 + $0x14] sm:$0xf]
    %v1647 = vld [vmem:[%s1202 + $0x18] sm:$0xf]
    %v1648 = vunpack.c.l.bf16 %v1641
    %v1649 = vunpack.c.l.bf16 %v1642
    %v1650 = vunpack.c.l.bf16 %v1643
    %v1651 = vunpack.c.l.bf16 %v1644
    %v1652 = vunpack.c.l.bf16 %v1645
    %v1653 = vunpack.c.l.bf16 %v1646
    %v1654 = vunpack.c.l.bf16 %v1647
    %v1655 = vld [vmem:[%s1 + $0x4] sm:$0x1]
    %1657 = vset.pattern.permute.xlu0 0
    %1658 = vperm.xlu0 %1657, %v1648
    %v1659 = vpop.permute.xlu0 %1658
    %1662 = vset.pattern.permute.xlu0 0
    %1663 = vperm.xlu0 %1662, %v1649
    %v1664 = vpop.permute.xlu0 %1663
    %1667 = vset.pattern.permute.xlu0 0
    %1668 = vperm.xlu0 %1667, %v1650
    %v1669 = vpop.permute.xlu0 %1668
    %1672 = vset.pattern.permute.xlu0 0
    %1673 = vperm.xlu0 %1672, %v1651
    %v1674 = vpop.permute.xlu0 %1673
    %1677 = vset.pattern.permute.xlu0 0
    %1678 = vperm.xlu0 %1677, %v1652
    %v1679 = vpop.permute.xlu0 %1678
    %1682 = vset.pattern.permute.xlu0 0
    %1683 = vperm.xlu0 %1682, %v1653
    %v1684 = vpop.permute.xlu0 %1683
    %1687 = vset.pattern.permute.xlu0 0
    %1688 = vperm.xlu0 %1687, %v1654
    %v1689 = vpop.permute.xlu0 %1688
    %v1691 = vlaneseq
    %v1692 = vshrl.u32 %v1691, 7
    %v1693 = vsub.s32 0, %v1692
    %v1694 = vrot.slane %v1655, %v1693
    %v1695 = vmul.f32 %v1659, %v1694
    %v1696 = vmul.f32 %v1664, %v1694
    %v1697 = vmul.f32 %v1669, %v1694
    %v1698 = vmul.f32 %v1674, %v1694
    %v1699 = vmul.f32 %v1679, %v1694
    %v1700 = vmul.f32 %v1684, %v1694
    %v1701 = vmul.f32 %v1689, %v1694
    %v1702 = vadd.f32 %v1634, %v1695
    %v1703 = vadd.f32 %v1635, %v1696
    %v1704 = vadd.f32 %v1636, %v1697
    %v1705 = vadd.f32 %v1637, %v1698
    %v1706 = vadd.f32 %v1638, %v1699
    %v1707 = vadd.f32 %v1639, %v1700
    %v1708 = vadd.f32 %v1640, %v1701
    %v1709 = vld [vmem:[%s1271] sm:$0xf]
    %v1710 = vld [vmem:[%s1271 + $0x4] sm:$0xf]
    %v1711 = vld [vmem:[%s1271 + $0x8] sm:$0xf]
    %v1712 = vld [vmem:[%s1271 + $0xc] sm:$0xf]
    %v1713 = vld [vmem:[%s1271 + $0x10] sm:$0xf]
    %v1714 = vld [vmem:[%s1271 + $0x14] sm:$0xf]
    %v1715 = vld [vmem:[%s1271 + $0x18] sm:$0xf]
    %v1716 = vunpack.c.l.bf16 %v1709
    %v1717 = vunpack.c.l.bf16 %v1710
    %v1718 = vunpack.c.l.bf16 %v1711
    %v1719 = vunpack.c.l.bf16 %v1712
    %v1720 = vunpack.c.l.bf16 %v1713
    %v1721 = vunpack.c.l.bf16 %v1714
    %v1722 = vunpack.c.l.bf16 %v1715
    %v1723 = vld [vmem:[%s1 + $0x5] sm:$0x1]
    %1725 = vset.pattern.permute.xlu0 0
    %1726 = vperm.xlu0 %1725, %v1716
    %v1727 = vpop.permute.xlu0 %1726
    %1730 = vset.pattern.permute.xlu0 0
    %1731 = vperm.xlu0 %1730, %v1717
    %v1732 = vpop.permute.xlu0 %1731
    %1735 = vset.pattern.permute.xlu0 0
    %1736 = vperm.xlu0 %1735, %v1718
    %v1737 = vpop.permute.xlu0 %1736
    %1740 = vset.pattern.permute.xlu0 0
    %1741 = vperm.xlu0 %1740, %v1719
    %v1742 = vpop.permute.xlu0 %1741
    %1745 = vset.pattern.permute.xlu0 0
    %1746 = vperm.xlu0 %1745, %v1720
    %v1747 = vpop.permute.xlu0 %1746
    %1750 = vset.pattern.permute.xlu0 0
    %1751 = vperm.xlu0 %1750, %v1721
    %v1752 = vpop.permute.xlu0 %1751
    %1755 = vset.pattern.permute.xlu0 0
    %1756 = vperm.xlu0 %1755, %v1722
    %v1757 = vpop.permute.xlu0 %1756
    %v1759 = vlaneseq
    %v1760 = vshrl.u32 %v1759, 7
    %v1761 = vsub.s32 0, %v1760
    %v1762 = vrot.slane %v1723, %v1761
    %v1763 = vmul.f32 %v1727, %v1762
    %v1764 = vmul.f32 %v1732, %v1762
    %v1765 = vmul.f32 %v1737, %v1762
    %v1766 = vmul.f32 %v1742, %v1762
    %v1767 = vmul.f32 %v1747, %v1762
    %v1768 = vmul.f32 %v1752, %v1762
    %v1769 = vmul.f32 %v1757, %v1762
    %v1770 = vadd.f32 %v1702, %v1763
    %v1771 = vadd.f32 %v1703, %v1764
    %v1772 = vadd.f32 %v1704, %v1765
    %v1773 = vadd.f32 %v1705, %v1766
    %v1774 = vadd.f32 %v1706, %v1767
    %v1775 = vadd.f32 %v1707, %v1768
    %v1776 = vadd.f32 %v1708, %v1769
    %s1777 = scalar_lea.vmem %s0, 144
    %v1778 = vld [vmem:[%s1777] sm:$0xf]
    %v1779 = vld [vmem:[%s1777 + $0x4] sm:$0xf]
    %v1780 = vld [vmem:[%s1777 + $0x8] sm:$0xf]
    %v1781 = vld [vmem:[%s1777 + $0xc] sm:$0xf]
    %v1782 = vld [vmem:[%s1777 + $0x10] sm:$0xf]
    %v1783 = vld [vmem:[%s1777 + $0x14] sm:$0xf]
    %v1784 = vld [vmem:[%s1777 + $0x18] sm:$0xf]
    %v1785 = vunpack.c.l.bf16 %v1778
    %v1786 = vunpack.c.l.bf16 %v1779
    %v1787 = vunpack.c.l.bf16 %v1780
    %v1788 = vunpack.c.l.bf16 %v1781
    %v1789 = vunpack.c.l.bf16 %v1782
    %v1790 = vunpack.c.l.bf16 %v1783
    %v1791 = vunpack.c.l.bf16 %v1784
    %v1792 = vld [vmem:[%s1 + $0x6] sm:$0x1]
    %1794 = vset.pattern.permute.xlu0 0
    %1795 = vperm.xlu0 %1794, %v1785
    %v1796 = vpop.permute.xlu0 %1795
    %1799 = vset.pattern.permute.xlu0 0
    %1800 = vperm.xlu0 %1799, %v1786
    %v1801 = vpop.permute.xlu0 %1800
    %1804 = vset.pattern.permute.xlu0 0
    %1805 = vperm.xlu0 %1804, %v1787
    %v1806 = vpop.permute.xlu0 %1805
    %1809 = vset.pattern.permute.xlu0 0
    %1810 = vperm.xlu0 %1809, %v1788
    %v1811 = vpop.permute.xlu0 %1810
    %1814 = vset.pattern.permute.xlu0 0
    %1815 = vperm.xlu0 %1814, %v1789
    %v1816 = vpop.permute.xlu0 %1815
    %1819 = vset.pattern.permute.xlu0 0
    %1820 = vperm.xlu0 %1819, %v1790
    %v1821 = vpop.permute.xlu0 %1820
    %1824 = vset.pattern.permute.xlu0 0
    %1825 = vperm.xlu0 %1824, %v1791
    %v1826 = vpop.permute.xlu0 %1825
    %v1828 = vlaneseq
    %v1829 = vshrl.u32 %v1828, 7
    %v1830 = vsub.s32 0, %v1829
    %v1831 = vrot.slane %v1792, %v1830
    %v1832 = vmul.f32 %v1796, %v1831
    %v1833 = vmul.f32 %v1801, %v1831
    %v1834 = vmul.f32 %v1806, %v1831
    %v1835 = vmul.f32 %v1811, %v1831
    %v1836 = vmul.f32 %v1816, %v1831
    %v1837 = vmul.f32 %v1821, %v1831
    %v1838 = vmul.f32 %v1826, %v1831
    %v1839 = vadd.f32 %v1770, %v1832
    %v1840 = vadd.f32 %v1771, %v1833
    %v1841 = vadd.f32 %v1772, %v1834
    %v1842 = vadd.f32 %v1773, %v1835
    %v1843 = vadd.f32 %v1774, %v1836
    %v1844 = vadd.f32 %v1775, %v1837
    %v1845 = vadd.f32 %v1776, %v1838
    %s1846 = scalar_lea.vmem %s0, 148
    %v1847 = vld [vmem:[%s1846] sm:$0xf]
    %v1848 = vld [vmem:[%s1846 + $0x4] sm:$0xf]
    %v1849 = vld [vmem:[%s1846 + $0x8] sm:$0xf]
    %v1850 = vld [vmem:[%s1846 + $0xc] sm:$0xf]
    %v1851 = vld [vmem:[%s1846 + $0x10] sm:$0xf]
    %v1852 = vld [vmem:[%s1846 + $0x14] sm:$0xf]
    %v1853 = vld [vmem:[%s1846 + $0x18] sm:$0xf]
    %v1854 = vunpack.c.l.bf16 %v1847
    %v1855 = vunpack.c.l.bf16 %v1848
    %v1856 = vunpack.c.l.bf16 %v1849
    %v1857 = vunpack.c.l.bf16 %v1850
    %v1858 = vunpack.c.l.bf16 %v1851
    %v1859 = vunpack.c.l.bf16 %v1852
    %v1860 = vunpack.c.l.bf16 %v1853
    %v1861 = vld [vmem:[%s1 + $0x7] sm:$0x1]
    %1863 = vset.pattern.permute.xlu0 0
    %1864 = vperm.xlu0 %1863, %v1854
    %v1865 = vpop.permute.xlu0 %1864
    %1868 = vset.pattern.permute.xlu0 0
    %1869 = vperm.xlu0 %1868, %v1855
    %v1870 = vpop.permute.xlu0 %1869
    %1873 = vset.pattern.permute.xlu0 0
    %1874 = vperm.xlu0 %1873, %v1856
    %v1875 = vpop.permute.xlu0 %1874
    %1878 = vset.pattern.permute.xlu0 0
    %1879 = vperm.xlu0 %1878, %v1857
    %v1880 = vpop.permute.xlu0 %1879
    %1883 = vset.pattern.permute.xlu0 0
    %1884 = vperm.xlu0 %1883, %v1858
    %v1885 = vpop.permute.xlu0 %1884
    %1888 = vset.pattern.permute.xlu0 0
    %1889 = vperm.xlu0 %1888, %v1859
    %v1890 = vpop.permute.xlu0 %1889
    %1893 = vset.pattern.permute.xlu0 0
    %1894 = vperm.xlu0 %1893, %v1860
    %v1895 = vpop.permute.xlu0 %1894
    %v1897 = vlaneseq
    %v1898 = vshrl.u32 %v1897, 7
    %v1899 = vsub.s32 0, %v1898
    %v1900 = vrot.slane %v1861, %v1899
    %v1901 = vmul.f32 %v1865, %v1900
    %v1902 = vmul.f32 %v1870, %v1900
    %v1903 = vmul.f32 %v1875, %v1900
    %v1904 = vmul.f32 %v1880, %v1900
    %v1905 = vmul.f32 %v1885, %v1900
    %v1906 = vmul.f32 %v1890, %v1900
    %v1907 = vmul.f32 %v1895, %v1900
    %v1908 = vadd.f32 %v1839, %v1901
    %v1909 = vadd.f32 %v1840, %v1902
    %v1910 = vadd.f32 %v1841, %v1903
    %v1911 = vadd.f32 %v1842, %v1904
    %v1912 = vadd.f32 %v1843, %v1905
    %v1913 = vadd.f32 %v1844, %v1906
    %v1914 = vadd.f32 %v1845, %v1907
    %s1915 = scalar_lea.vmem %s0, 152
    %v1916 = vld [vmem:[%s1915] sm:$0xf]
    %v1917 = vld [vmem:[%s1915 + $0x4] sm:$0xf]
    %v1918 = vld [vmem:[%s1915 + $0x8] sm:$0xf]
    %v1919 = vld [vmem:[%s1915 + $0xc] sm:$0xf]
    %v1920 = vld [vmem:[%s1915 + $0x10] sm:$0xf]
    %v1921 = vld [vmem:[%s1915 + $0x14] sm:$0xf]
    %v1922 = vld [vmem:[%s1915 + $0x18] sm:$0xf]
    %v1923 = vunpack.c.l.bf16 %v1916
    %v1924 = vunpack.c.l.bf16 %v1917
    %v1925 = vunpack.c.l.bf16 %v1918
    %v1926 = vunpack.c.l.bf16 %v1919
    %v1927 = vunpack.c.l.bf16 %v1920
    %v1928 = vunpack.c.l.bf16 %v1921
    %v1929 = vunpack.c.l.bf16 %v1922
    %v1930 = vld [vmem:[%s1 + $0x8] sm:$0x1]
    %1932 = vset.pattern.permute.xlu0 0
    %1933 = vperm.xlu0 %1932, %v1923
    %v1934 = vpop.permute.xlu0 %1933
    %1937 = vset.pattern.permute.xlu0 0
    %1938 = vperm.xlu0 %1937, %v1924
    %v1939 = vpop.permute.xlu0 %1938
    %1942 = vset.pattern.permute.xlu0 0
    %1943 = vperm.xlu0 %1942, %v1925
    %v1944 = vpop.permute.xlu0 %1943
    %1947 = vset.pattern.permute.xlu0 0
    %1948 = vperm.xlu0 %1947, %v1926
    %v1949 = vpop.permute.xlu0 %1948
    %1952 = vset.pattern.permute.xlu0 0
    %1953 = vperm.xlu0 %1952, %v1927
    %v1954 = vpop.permute.xlu0 %1953
    %1957 = vset.pattern.permute.xlu0 0
    %1958 = vperm.xlu0 %1957, %v1928
    %v1959 = vpop.permute.xlu0 %1958
    %1962 = vset.pattern.permute.xlu0 0
    %1963 = vperm.xlu0 %1962, %v1929
    %v1964 = vpop.permute.xlu0 %1963
    %v1966 = vlaneseq
    %v1967 = vshrl.u32 %v1966, 7
    %v1968 = vsub.s32 0, %v1967
    %v1969 = vrot.slane %v1930, %v1968
    %v1970 = vmul.f32 %v1934, %v1969
    %v1971 = vmul.f32 %v1939, %v1969
    %v1972 = vmul.f32 %v1944, %v1969
    %v1973 = vmul.f32 %v1949, %v1969
    %v1974 = vmul.f32 %v1954, %v1969
    %v1975 = vmul.f32 %v1959, %v1969
    %v1976 = vmul.f32 %v1964, %v1969
    %v1977 = vadd.f32 %v1908, %v1970
    %v1978 = vadd.f32 %v1909, %v1971
    %v1979 = vadd.f32 %v1910, %v1972
    %v1980 = vadd.f32 %v1911, %v1973
    %v1981 = vadd.f32 %v1912, %v1974
    %v1982 = vadd.f32 %v1913, %v1975
    %v1983 = vadd.f32 %v1914, %v1976
    %v1984 = vld [vmem:[%s2] sm:$0x1]
    %v1986 = vlaneseq
    %v1987 = vshrl.u32 %v1986, 7
    %v1988 = vsub.s32 0, %v1987
    %v1989 = vrot.slane %v1984, %v1988
    %v1991 = vadd.f32 %v1977, %v1989
    %v1992 = vadd.f32 %v1978, %v1989
    %v1993 = vadd.f32 %v1979, %v1989
    %v1994 = vadd.f32 %v1980, %v1989
    %v1995 = vadd.f32 %v1981, %v1989
    %v1996 = vadd.f32 %v1982, %v1989
    %v1997 = vadd.f32 %v1983, %v1989
    %v1998 = vmax.f32 %v1991, 0.0
    %v1999 = vmax.f32 %v1992, 0.0
    %v2000 = vmax.f32 %v1993, 0.0
    %v2001 = vmax.f32 %v1994, 0.0
    %v2002 = vmax.f32 %v1995, 0.0
    %v2003 = vmax.f32 %v1996, 0.0
    %v2004 = vmax.f32 %v1997, 0.0
    %v2005 = vpack.c.bf16 %v1998, %v1998
    %v2006 = vpack.c.bf16 %v1999, %v1999
    %v2007 = vpack.c.bf16 %v2000, %v2000
    %v2008 = vpack.c.bf16 %v2001, %v2001
    %v2009 = vpack.c.bf16 %v2002, %v2002
    %v2010 = vpack.c.bf16 %v2003, %v2003
    %v2011 = vpack.c.bf16 %v2004, %v2004
    %s2012 = scalar_lea.vmem [#allocation2], 112
    %2013 = vst.msk [vmem:[%s2012] sm:$0xf] %vm49, %v2005
    %2014 = vst.msk [vmem:[%s2012 + $0x4] sm:$0xf] %vm49, %v2006
    %2015 = vst.msk [vmem:[%s2012 + $0x8] sm:$0xf] %vm49, %v2007
    %2016 = vst.msk [vmem:[%s2012 + $0xc] sm:$0xf] %vm49, %v2008
    %2017 = vst.msk [vmem:[%s2012 + $0x10] sm:$0xf] %vm49, %v2009
    %2018 = vst.msk [vmem:[%s2012 + $0x14] sm:$0xf] %vm49, %v2010
    %2019 = vst.msk [vmem:[%s2012 + $0x18] sm:$0xf] %vm49, %v2011
    %v2020 = vld [vmem:[%s1133] sm:$0xf]
    %v2021 = vld [vmem:[%s1133 + $0x4] sm:$0xf]
    %v2022 = vld [vmem:[%s1133 + $0x8] sm:$0xf]
    %v2023 = vld [vmem:[%s1133 + $0xc] sm:$0xf]
    %v2024 = vld [vmem:[%s1133 + $0x10] sm:$0xf]
    %v2025 = vld [vmem:[%s1133 + $0x14] sm:$0xf]
    %v2026 = vld [vmem:[%s1133 + $0x18] sm:$0xf]
    %v2027 = vunpack.c.l.bf16 %v2020
    %v2028 = vunpack.c.l.bf16 %v2021
    %v2029 = vunpack.c.l.bf16 %v2022
    %v2030 = vunpack.c.l.bf16 %v2023
    %v2031 = vunpack.c.l.bf16 %v2024
    %v2032 = vunpack.c.l.bf16 %v2025
    %v2033 = vunpack.c.l.bf16 %v2026
    %v2034 = vld [vmem:[%s1] sm:$0x1]
    %2036 = vset.pattern.permute.xlu0 0
    %2037 = vperm.xlu0 %2036, %v2027
    %v2038 = vpop.permute.xlu0 %2037
    %2041 = vset.pattern.permute.xlu0 0
    %2042 = vperm.xlu0 %2041, %v2028
    %v2043 = vpop.permute.xlu0 %2042
    %2046 = vset.pattern.permute.xlu0 0
    %2047 = vperm.xlu0 %2046, %v2029
    %v2048 = vpop.permute.xlu0 %2047
    %2051 = vset.pattern.permute.xlu0 0
    %2052 = vperm.xlu0 %2051, %v2030
    %v2053 = vpop.permute.xlu0 %2052
    %2056 = vset.pattern.permute.xlu0 0
    %2057 = vperm.xlu0 %2056, %v2031
    %v2058 = vpop.permute.xlu0 %2057
    %2061 = vset.pattern.permute.xlu0 0
    %2062 = vperm.xlu0 %2061, %v2032
    %v2063 = vpop.permute.xlu0 %2062
    %2066 = vset.pattern.permute.xlu0 0
    %2067 = vperm.xlu0 %2066, %v2033
    %v2068 = vpop.permute.xlu0 %2067
    %v2070 = vlaneseq
    %v2071 = vshrl.u32 %v2070, 7
    %v2072 = vsub.s32 0, %v2071
    %v2073 = vrot.slane %v2034, %v2072
    %v2074 = vmul.f32 %v2038, %v2073
    %v2075 = vmul.f32 %v2043, %v2073
    %v2076 = vmul.f32 %v2048, %v2073
    %v2077 = vmul.f32 %v2053, %v2073
    %v2078 = vmul.f32 %v2058, %v2073
    %v2079 = vmul.f32 %v2063, %v2073
    %v2080 = vmul.f32 %v2068, %v2073
    %v2081 = vld [vmem:[%s1202] sm:$0xf]
    %v2082 = vld [vmem:[%s1202 + $0x4] sm:$0xf]
    %v2083 = vld [vmem:[%s1202 + $0x8] sm:$0xf]
    %v2084 = vld [vmem:[%s1202 + $0xc] sm:$0xf]
    %v2085 = vld [vmem:[%s1202 + $0x10] sm:$0xf]
    %v2086 = vld [vmem:[%s1202 + $0x14] sm:$0xf]
    %v2087 = vld [vmem:[%s1202 + $0x18] sm:$0xf]
    %v2088 = vunpack.c.l.bf16 %v2081
    %v2089 = vunpack.c.l.bf16 %v2082
    %v2090 = vunpack.c.l.bf16 %v2083
    %v2091 = vunpack.c.l.bf16 %v2084
    %v2092 = vunpack.c.l.bf16 %v2085
    %v2093 = vunpack.c.l.bf16 %v2086
    %v2094 = vunpack.c.l.bf16 %v2087
    %v2095 = vld [vmem:[%s1 + $0x1] sm:$0x1]
    %2097 = vset.pattern.permute.xlu0 0
    %2098 = vperm.xlu0 %2097, %v2088
    %v2099 = vpop.permute.xlu0 %2098
    %2102 = vset.pattern.permute.xlu0 0
    %2103 = vperm.xlu0 %2102, %v2089
    %v2104 = vpop.permute.xlu0 %2103
    %2107 = vset.pattern.permute.xlu0 0
    %2108 = vperm.xlu0 %2107, %v2090
    %v2109 = vpop.permute.xlu0 %2108
    %2112 = vset.pattern.permute.xlu0 0
    %2113 = vperm.xlu0 %2112, %v2091
    %v2114 = vpop.permute.xlu0 %2113
    %2117 = vset.pattern.permute.xlu0 0
    %2118 = vperm.xlu0 %2117, %v2092
    %v2119 = vpop.permute.xlu0 %2118
    %2122 = vset.pattern.permute.xlu0 0
    %2123 = vperm.xlu0 %2122, %v2093
    %v2124 = vpop.permute.xlu0 %2123
    %2127 = vset.pattern.permute.xlu0 0
    %2128 = vperm.xlu0 %2127, %v2094
    %v2129 = vpop.permute.xlu0 %2128
    %v2131 = vlaneseq
    %v2132 = vshrl.u32 %v2131, 7
    %v2133 = vsub.s32 0, %v2132
    %v2134 = vrot.slane %v2095, %v2133
    %v2135 = vmul.f32 %v2099, %v2134
    %v2136 = vmul.f32 %v2104, %v2134
    %v2137 = vmul.f32 %v2109, %v2134
    %v2138 = vmul.f32 %v2114, %v2134
    %v2139 = vmul.f32 %v2119, %v2134
    %v2140 = vmul.f32 %v2124, %v2134
    %v2141 = vmul.f32 %v2129, %v2134
    %v2142 = vadd.f32 %v2074, %v2135
    %v2143 = vadd.f32 %v2075, %v2136
    %v2144 = vadd.f32 %v2076, %v2137
    %v2145 = vadd.f32 %v2077, %v2138
    %v2146 = vadd.f32 %v2078, %v2139
    %v2147 = vadd.f32 %v2079, %v2140
    %v2148 = vadd.f32 %v2080, %v2141
    %v2149 = vld [vmem:[%s1271] sm:$0xf]
    %v2150 = vld [vmem:[%s1271 + $0x4] sm:$0xf]
    %v2151 = vld [vmem:[%s1271 + $0x8] sm:$0xf]
    %v2152 = vld [vmem:[%s1271 + $0xc] sm:$0xf]
    %v2153 = vld [vmem:[%s1271 + $0x10] sm:$0xf]
    %v2154 = vld [vmem:[%s1271 + $0x14] sm:$0xf]
    %v2155 = vld [vmem:[%s1271 + $0x18] sm:$0xf]
    %v2156 = vunpack.c.l.bf16 %v2149
    %v2157 = vunpack.c.l.bf16 %v2150
    %v2158 = vunpack.c.l.bf16 %v2151
    %v2159 = vunpack.c.l.bf16 %v2152
    %v2160 = vunpack.c.l.bf16 %v2153
    %v2161 = vunpack.c.l.bf16 %v2154
    %v2162 = vunpack.c.l.bf16 %v2155
    %v2163 = vld [vmem:[%s1 + $0x2] sm:$0x1]
    %2165 = vset.pattern.permute.xlu0 0
    %2166 = vperm.xlu0 %2165, %v2156
    %v2167 = vpop.permute.xlu0 %2166
    %2170 = vset.pattern.permute.xlu0 0
    %2171 = vperm.xlu0 %2170, %v2157
    %v2172 = vpop.permute.xlu0 %2171
    %2175 = vset.pattern.permute.xlu0 0
    %2176 = vperm.xlu0 %2175, %v2158
    %v2177 = vpop.permute.xlu0 %2176
    %2180 = vset.pattern.permute.xlu0 0
    %2181 = vperm.xlu0 %2180, %v2159
    %v2182 = vpop.permute.xlu0 %2181
    %2185 = vset.pattern.permute.xlu0 0
    %2186 = vperm.xlu0 %2185, %v2160
    %v2187 = vpop.permute.xlu0 %2186
    %2190 = vset.pattern.permute.xlu0 0
    %2191 = vperm.xlu0 %2190, %v2161
    %v2192 = vpop.permute.xlu0 %2191
    %2195 = vset.pattern.permute.xlu0 0
    %2196 = vperm.xlu0 %2195, %v2162
    %v2197 = vpop.permute.xlu0 %2196
    %v2199 = vlaneseq
    %v2200 = vshrl.u32 %v2199, 7
    %v2201 = vsub.s32 0, %v2200
    %v2202 = vrot.slane %v2163, %v2201
    %v2203 = vmul.f32 %v2167, %v2202
    %v2204 = vmul.f32 %v2172, %v2202
    %v2205 = vmul.f32 %v2177, %v2202
    %v2206 = vmul.f32 %v2182, %v2202
    %v2207 = vmul.f32 %v2187, %v2202
    %v2208 = vmul.f32 %v2192, %v2202
    %v2209 = vmul.f32 %v2197, %v2202
    %v2210 = vadd.f32 %v2142, %v2203
    %v2211 = vadd.f32 %v2143, %v2204
    %v2212 = vadd.f32 %v2144, %v2205
    %v2213 = vadd.f32 %v2145, %v2206
    %v2214 = vadd.f32 %v2146, %v2207
    %v2215 = vadd.f32 %v2147, %v2208
    %v2216 = vadd.f32 %v2148, %v2209
    %v2217 = vld [vmem:[%s1777] sm:$0xf]
    %v2218 = vld [vmem:[%s1777 + $0x4] sm:$0xf]
    %v2219 = vld [vmem:[%s1777 + $0x8] sm:$0xf]
    %v2220 = vld [vmem:[%s1777 + $0xc] sm:$0xf]
    %v2221 = vld [vmem:[%s1777 + $0x10] sm:$0xf]
    %v2222 = vld [vmem:[%s1777 + $0x14] sm:$0xf]
    %v2223 = vld [vmem:[%s1777 + $0x18] sm:$0xf]
    %v2224 = vunpack.c.l.bf16 %v2217
    %v2225 = vunpack.c.l.bf16 %v2218
    %v2226 = vunpack.c.l.bf16 %v2219
    %v2227 = vunpack.c.l.bf16 %v2220
    %v2228 = vunpack.c.l.bf16 %v2221
    %v2229 = vunpack.c.l.bf16 %v2222
    %v2230 = vunpack.c.l.bf16 %v2223
    %v2231 = vld [vmem:[%s1 + $0x3] sm:$0x1]
    %2233 = vset.pattern.permute.xlu0 0
    %2234 = vperm.xlu0 %2233, %v2224
    %v2235 = vpop.permute.xlu0 %2234
    %2238 = vset.pattern.permute.xlu0 0
    %2239 = vperm.xlu0 %2238, %v2225
    %v2240 = vpop.permute.xlu0 %2239
    %2243 = vset.pattern.permute.xlu0 0
    %2244 = vperm.xlu0 %2243, %v2226
    %v2245 = vpop.permute.xlu0 %2244
    %2248 = vset.pattern.permute.xlu0 0
    %2249 = vperm.xlu0 %2248, %v2227
    %v2250 = vpop.permute.xlu0 %2249
    %2253 = vset.pattern.permute.xlu0 0
    %2254 = vperm.xlu0 %2253, %v2228
    %v2255 = vpop.permute.xlu0 %2254
    %2258 = vset.pattern.permute.xlu0 0
    %2259 = vperm.xlu0 %2258, %v2229
    %v2260 = vpop.permute.xlu0 %2259
    %2263 = vset.pattern.permute.xlu0 0
    %2264 = vperm.xlu0 %2263, %v2230
    %v2265 = vpop.permute.xlu0 %2264
    %v2267 = vlaneseq
    %v2268 = vshrl.u32 %v2267, 7
    %v2269 = vsub.s32 0, %v2268
    %v2270 = vrot.slane %v2231, %v2269
    %v2271 = vmul.f32 %v2235, %v2270
    %v2272 = vmul.f32 %v2240, %v2270
    %v2273 = vmul.f32 %v2245, %v2270
    %v2274 = vmul.f32 %v2250, %v2270
    %v2275 = vmul.f32 %v2255, %v2270
    %v2276 = vmul.f32 %v2260, %v2270
    %v2277 = vmul.f32 %v2265, %v2270
    %v2278 = vadd.f32 %v2210, %v2271
    %v2279 = vadd.f32 %v2211, %v2272
    %v2280 = vadd.f32 %v2212, %v2273
    %v2281 = vadd.f32 %v2213, %v2274
    %v2282 = vadd.f32 %v2214, %v2275
    %v2283 = vadd.f32 %v2215, %v2276
    %v2284 = vadd.f32 %v2216, %v2277
    %v2285 = vld [vmem:[%s1846] sm:$0xf]
    %v2286 = vld [vmem:[%s1846 + $0x4] sm:$0xf]
    %v2287 = vld [vmem:[%s1846 + $0x8] sm:$0xf]
    %v2288 = vld [vmem:[%s1846 + $0xc] sm:$0xf]
    %v2289 = vld [vmem:[%s1846 + $0x10] sm:$0xf]
    %v2290 = vld [vmem:[%s1846 + $0x14] sm:$0xf]
    %v2291 = vld [vmem:[%s1846 + $0x18] sm:$0xf]
    %v2292 = vunpack.c.l.bf16 %v2285
    %v2293 = vunpack.c.l.bf16 %v2286
    %v2294 = vunpack.c.l.bf16 %v2287
    %v2295 = vunpack.c.l.bf16 %v2288
    %v2296 = vunpack.c.l.bf16 %v2289
    %v2297 = vunpack.c.l.bf16 %v2290
    %v2298 = vunpack.c.l.bf16 %v2291
    %v2299 = vld [vmem:[%s1 + $0x4] sm:$0x1]
    %2301 = vset.pattern.permute.xlu0 0
    %2302 = vperm.xlu0 %2301, %v2292
    %v2303 = vpop.permute.xlu0 %2302
    %2306 = vset.pattern.permute.xlu0 0
    %2307 = vperm.xlu0 %2306, %v2293
    %v2308 = vpop.permute.xlu0 %2307
    %2311 = vset.pattern.permute.xlu0 0
    %2312 = vperm.xlu0 %2311, %v2294
    %v2313 = vpop.permute.xlu0 %2312
    %2316 = vset.pattern.permute.xlu0 0
    %2317 = vperm.xlu0 %2316, %v2295
    %v2318 = vpop.permute.xlu0 %2317
    %2321 = vset.pattern.permute.xlu0 0
    %2322 = vperm.xlu0 %2321, %v2296
    %v2323 = vpop.permute.xlu0 %2322
    %2326 = vset.pattern.permute.xlu0 0
    %2327 = vperm.xlu0 %2326, %v2297
    %v2328 = vpop.permute.xlu0 %2327
    %2331 = vset.pattern.permute.xlu0 0
    %2332 = vperm.xlu0 %2331, %v2298
    %v2333 = vpop.permute.xlu0 %2332
    %v2335 = vlaneseq
    %v2336 = vshrl.u32 %v2335, 7
    %v2337 = vsub.s32 0, %v2336
    %v2338 = vrot.slane %v2299, %v2337
    %v2339 = vmul.f32 %v2303, %v2338
    %v2340 = vmul.f32 %v2308, %v2338
    %v2341 = vmul.f32 %v2313, %v2338
    %v2342 = vmul.f32 %v2318, %v2338
    %v2343 = vmul.f32 %v2323, %v2338
    %v2344 = vmul.f32 %v2328, %v2338
    %v2345 = vmul.f32 %v2333, %v2338
    %v2346 = vadd.f32 %v2278, %v2339
    %v2347 = vadd.f32 %v2279, %v2340
    %v2348 = vadd.f32 %v2280, %v2341
    %v2349 = vadd.f32 %v2281, %v2342
    %v2350 = vadd.f32 %v2282, %v2343
    %v2351 = vadd.f32 %v2283, %v2344
    %v2352 = vadd.f32 %v2284, %v2345
    %v2353 = vld [vmem:[%s1915] sm:$0xf]
    %v2354 = vld [vmem:[%s1915 + $0x4] sm:$0xf]
    %v2355 = vld [vmem:[%s1915 + $0x8] sm:$0xf]
    %v2356 = vld [vmem:[%s1915 + $0xc] sm:$0xf]
    %v2357 = vld [vmem:[%s1915 + $0x10] sm:$0xf]
    %v2358 = vld [vmem:[%s1915 + $0x14] sm:$0xf]
    %v2359 = vld [vmem:[%s1915 + $0x18] sm:$0xf]
    %v2360 = vunpack.c.l.bf16 %v2353
    %v2361 = vunpack.c.l.bf16 %v2354
    %v2362 = vunpack.c.l.bf16 %v2355
    %v2363 = vunpack.c.l.bf16 %v2356
    %v2364 = vunpack.c.l.bf16 %v2357
    %v2365 = vunpack.c.l.bf16 %v2358
    %v2366 = vunpack.c.l.bf16 %v2359
    %v2367 = vld [vmem:[%s1 + $0x5] sm:$0x1]
    %2369 = vset.pattern.permute.xlu0 0
    %2370 = vperm.xlu0 %2369, %v2360
    %v2371 = vpop.permute.xlu0 %2370
    %2374 = vset.pattern.permute.xlu0 0
    %2375 = vperm.xlu0 %2374, %v2361
    %v2376 = vpop.permute.xlu0 %2375
    %2379 = vset.pattern.permute.xlu0 0
    %2380 = vperm.xlu0 %2379, %v2362
    %v2381 = vpop.permute.xlu0 %2380
    %2384 = vset.pattern.permute.xlu0 0
    %2385 = vperm.xlu0 %2384, %v2363
    %v2386 = vpop.permute.xlu0 %2385
    %2389 = vset.pattern.permute.xlu0 0
    %2390 = vperm.xlu0 %2389, %v2364
    %v2391 = vpop.permute.xlu0 %2390
    %2394 = vset.pattern.permute.xlu0 0
    %2395 = vperm.xlu0 %2394, %v2365
    %v2396 = vpop.permute.xlu0 %2395
    %2399 = vset.pattern.permute.xlu0 0
    %2400 = vperm.xlu0 %2399, %v2366
    %v2401 = vpop.permute.xlu0 %2400
    %v2403 = vlaneseq
    %v2404 = vshrl.u32 %v2403, 7
    %v2405 = vsub.s32 0, %v2404
    %v2406 = vrot.slane %v2367, %v2405
    %v2407 = vmul.f32 %v2371, %v2406
    %v2408 = vmul.f32 %v2376, %v2406
    %v2409 = vmul.f32 %v2381, %v2406
    %v2410 = vmul.f32 %v2386, %v2406
    %v2411 = vmul.f32 %v2391, %v2406
    %v2412 = vmul.f32 %v2396, %v2406
    %v2413 = vmul.f32 %v2401, %v2406
    %v2414 = vadd.f32 %v2346, %v2407
    %v2415 = vadd.f32 %v2347, %v2408
    %v2416 = vadd.f32 %v2348, %v2409
    %v2417 = vadd.f32 %v2349, %v2410
    %v2418 = vadd.f32 %v2350, %v2411
    %v2419 = vadd.f32 %v2351, %v2412
    %v2420 = vadd.f32 %v2352, %v2413
    %s2421 = scalar_lea.vmem %s0, 180
    %v2422 = vld [vmem:[%s2421] sm:$0xf]
    %v2423 = vld [vmem:[%s2421 + $0x4] sm:$0xf]
    %v2424 = vld [vmem:[%s2421 + $0x8] sm:$0xf]
    %v2425 = vld [vmem:[%s2421 + $0xc] sm:$0xf]
    %v2426 = vld [vmem:[%s2421 + $0x10] sm:$0xf]
    %v2427 = vld [vmem:[%s2421 + $0x14] sm:$0xf]
    %v2428 = vld [vmem:[%s2421 + $0x18] sm:$0xf]
    %v2429 = vunpack.c.l.bf16 %v2422
    %v2430 = vunpack.c.l.bf16 %v2423
    %v2431 = vunpack.c.l.bf16 %v2424
    %v2432 = vunpack.c.l.bf16 %v2425
    %v2433 = vunpack.c.l.bf16 %v2426
    %v2434 = vunpack.c.l.bf16 %v2427
    %v2435 = vunpack.c.l.bf16 %v2428
    %v2436 = vld [vmem:[%s1 + $0x6] sm:$0x1]
    %2438 = vset.pattern.permute.xlu0 0
    %2439 = vperm.xlu0 %2438, %v2429
    %v2440 = vpop.permute.xlu0 %2439
    %2443 = vset.pattern.permute.xlu0 0
    %2444 = vperm.xlu0 %2443, %v2430
    %v2445 = vpop.permute.xlu0 %2444
    %2448 = vset.pattern.permute.xlu0 0
    %2449 = vperm.xlu0 %2448, %v2431
    %v2450 = vpop.permute.xlu0 %2449
    %2453 = vset.pattern.permute.xlu0 0
    %2454 = vperm.xlu0 %2453, %v2432
    %v2455 = vpop.permute.xlu0 %2454
    %2458 = vset.pattern.permute.xlu0 0
    %2459 = vperm.xlu0 %2458, %v2433
    %v2460 = vpop.permute.xlu0 %2459
    %2463 = vset.pattern.permute.xlu0 0
    %2464 = vperm.xlu0 %2463, %v2434
    %v2465 = vpop.permute.xlu0 %2464
    %2468 = vset.pattern.permute.xlu0 0
    %2469 = vperm.xlu0 %2468, %v2435
    %v2470 = vpop.permute.xlu0 %2469
    %v2472 = vlaneseq
    %v2473 = vshrl.u32 %v2472, 7
    %v2474 = vsub.s32 0, %v2473
    %v2475 = vrot.slane %v2436, %v2474
    %v2476 = vmul.f32 %v2440, %v2475
    %v2477 = vmul.f32 %v2445, %v2475
    %v2478 = vmul.f32 %v2450, %v2475
    %v2479 = vmul.f32 %v2455, %v2475
    %v2480 = vmul.f32 %v2460, %v2475
    %v2481 = vmul.f32 %v2465, %v2475
    %v2482 = vmul.f32 %v2470, %v2475
    %v2483 = vadd.f32 %v2414, %v2476
    %v2484 = vadd.f32 %v2415, %v2477
    %v2485 = vadd.f32 %v2416, %v2478
    %v2486 = vadd.f32 %v2417, %v2479
    %v2487 = vadd.f32 %v2418, %v2480
    %v2488 = vadd.f32 %v2419, %v2481
    %v2489 = vadd.f32 %v2420, %v2482
    %s2490 = scalar_lea.vmem %s0, 184
    %v2491 = vld [vmem:[%s2490] sm:$0xf]
    %v2492 = vld [vmem:[%s2490 + $0x4] sm:$0xf]
    %v2493 = vld [vmem:[%s2490 + $0x8] sm:$0xf]
    %v2494 = vld [vmem:[%s2490 + $0xc] sm:$0xf]
    %v2495 = vld [vmem:[%s2490 + $0x10] sm:$0xf]
    %v2496 = vld [vmem:[%s2490 + $0x14] sm:$0xf]
    %v2497 = vld [vmem:[%s2490 + $0x18] sm:$0xf]
    %v2498 = vunpack.c.l.bf16 %v2491
    %v2499 = vunpack.c.l.bf16 %v2492
    %v2500 = vunpack.c.l.bf16 %v2493
    %v2501 = vunpack.c.l.bf16 %v2494
    %v2502 = vunpack.c.l.bf16 %v2495
    %v2503 = vunpack.c.l.bf16 %v2496
    %v2504 = vunpack.c.l.bf16 %v2497
    %v2505 = vld [vmem:[%s1 + $0x7] sm:$0x1]
    %2507 = vset.pattern.permute.xlu0 0
    %2508 = vperm.xlu0 %2507, %v2498
    %v2509 = vpop.permute.xlu0 %2508
    %2512 = vset.pattern.permute.xlu0 0
    %2513 = vperm.xlu0 %2512, %v2499
    %v2514 = vpop.permute.xlu0 %2513
    %2517 = vset.pattern.permute.xlu0 0
    %2518 = vperm.xlu0 %2517, %v2500
    %v2519 = vpop.permute.xlu0 %2518
    %2522 = vset.pattern.permute.xlu0 0
    %2523 = vperm.xlu0 %2522, %v2501
    %v2524 = vpop.permute.xlu0 %2523
    %2527 = vset.pattern.permute.xlu0 0
    %2528 = vperm.xlu0 %2527, %v2502
    %v2529 = vpop.permute.xlu0 %2528
    %2532 = vset.pattern.permute.xlu0 0
    %2533 = vperm.xlu0 %2532, %v2503
    %v2534 = vpop.permute.xlu0 %2533
    %2537 = vset.pattern.permute.xlu0 0
    %2538 = vperm.xlu0 %2537, %v2504
    %v2539 = vpop.permute.xlu0 %2538
    %v2541 = vlaneseq
    %v2542 = vshrl.u32 %v2541, 7
    %v2543 = vsub.s32 0, %v2542
    %v2544 = vrot.slane %v2505, %v2543
    %v2545 = vmul.f32 %v2509, %v2544
    %v2546 = vmul.f32 %v2514, %v2544
    %v2547 = vmul.f32 %v2519, %v2544
    %v2548 = vmul.f32 %v2524, %v2544
    %v2549 = vmul.f32 %v2529, %v2544
    %v2550 = vmul.f32 %v2534, %v2544
    %v2551 = vmul.f32 %v2539, %v2544
    %v2552 = vadd.f32 %v2483, %v2545
    %v2553 = vadd.f32 %v2484, %v2546
    %v2554 = vadd.f32 %v2485, %v2547
    %v2555 = vadd.f32 %v2486, %v2548
    %v2556 = vadd.f32 %v2487, %v2549
    %v2557 = vadd.f32 %v2488, %v2550
    %v2558 = vadd.f32 %v2489, %v2551
    %s2559 = scalar_lea.vmem %s0, 188
    %v2560 = vld [vmem:[%s2559] sm:$0xf]
    %v2561 = vld [vmem:[%s2559 + $0x4] sm:$0xf]
    %v2562 = vld [vmem:[%s2559 + $0x8] sm:$0xf]
    %v2563 = vld [vmem:[%s2559 + $0xc] sm:$0xf]
    %v2564 = vld [vmem:[%s2559 + $0x10] sm:$0xf]
    %v2565 = vld [vmem:[%s2559 + $0x14] sm:$0xf]
    %v2566 = vld [vmem:[%s2559 + $0x18] sm:$0xf]
    %v2567 = vunpack.c.l.bf16 %v2560
    %v2568 = vunpack.c.l.bf16 %v2561
    %v2569 = vunpack.c.l.bf16 %v2562
    %v2570 = vunpack.c.l.bf16 %v2563
    %v2571 = vunpack.c.l.bf16 %v2564
    %v2572 = vunpack.c.l.bf16 %v2565
    %v2573 = vunpack.c.l.bf16 %v2566
    %v2574 = vld [vmem:[%s1 + $0x8] sm:$0x1]
    %2576 = vset.pattern.permute.xlu0 0
    %2577 = vperm.xlu0 %2576, %v2567
    %v2578 = vpop.permute.xlu0 %2577
    %2581 = vset.pattern.permute.xlu0 0
    %2582 = vperm.xlu0 %2581, %v2568
    %v2583 = vpop.permute.xlu0 %2582
    %2586 = vset.pattern.permute.xlu0 0
    %2587 = vperm.xlu0 %2586, %v2569
    %v2588 = vpop.permute.xlu0 %2587
    %2591 = vset.pattern.permute.xlu0 0
    %2592 = vperm.xlu0 %2591, %v2570
    %v2593 = vpop.permute.xlu0 %2592
    %2596 = vset.pattern.permute.xlu0 0
    %2597 = vperm.xlu0 %2596, %v2571
    %v2598 = vpop.permute.xlu0 %2597
    %2601 = vset.pattern.permute.xlu0 0
    %2602 = vperm.xlu0 %2601, %v2572
    %v2603 = vpop.permute.xlu0 %2602
    %2606 = vset.pattern.permute.xlu0 0
    %2607 = vperm.xlu0 %2606, %v2573
    %v2608 = vpop.permute.xlu0 %2607
    %v2610 = vlaneseq
    %v2611 = vshrl.u32 %v2610, 7
    %v2612 = vsub.s32 0, %v2611
    %v2613 = vrot.slane %v2574, %v2612
    %v2614 = vmul.f32 %v2578, %v2613
    %v2615 = vmul.f32 %v2583, %v2613
    %v2616 = vmul.f32 %v2588, %v2613
    %v2617 = vmul.f32 %v2593, %v2613
    %v2618 = vmul.f32 %v2598, %v2613
    %v2619 = vmul.f32 %v2603, %v2613
    %v2620 = vmul.f32 %v2608, %v2613
    %v2621 = vadd.f32 %v2552, %v2614
    %v2622 = vadd.f32 %v2553, %v2615
    %v2623 = vadd.f32 %v2554, %v2616
    %v2624 = vadd.f32 %v2555, %v2617
    %v2625 = vadd.f32 %v2556, %v2618
    %v2626 = vadd.f32 %v2557, %v2619
    %v2627 = vadd.f32 %v2558, %v2620
    %v2628 = vld [vmem:[%s2] sm:$0x1]
    %v2630 = vlaneseq
    %v2631 = vshrl.u32 %v2630, 7
    %v2632 = vsub.s32 0, %v2631
    %v2633 = vrot.slane %v2628, %v2632
    %v2635 = vadd.f32 %v2621, %v2633
    %v2636 = vadd.f32 %v2622, %v2633
    %v2637 = vadd.f32 %v2623, %v2633
    %v2638 = vadd.f32 %v2624, %v2633
    %v2639 = vadd.f32 %v2625, %v2633
    %v2640 = vadd.f32 %v2626, %v2633
    %v2641 = vadd.f32 %v2627, %v2633
    %v2642 = vmax.f32 %v2635, 0.0
    %v2643 = vmax.f32 %v2636, 0.0
    %v2644 = vmax.f32 %v2637, 0.0
    %v2645 = vmax.f32 %v2638, 0.0
    %v2646 = vmax.f32 %v2639, 0.0
    %v2647 = vmax.f32 %v2640, 0.0
    %v2648 = vmax.f32 %v2641, 0.0
    %v2649 = vpack.c.bf16 %v2642, %v2642
    %v2650 = vpack.c.bf16 %v2643, %v2643
    %v2651 = vpack.c.bf16 %v2644, %v2644
    %v2652 = vpack.c.bf16 %v2645, %v2645
    %v2653 = vpack.c.bf16 %v2646, %v2646
    %v2654 = vpack.c.bf16 %v2647, %v2647
    %v2655 = vpack.c.bf16 %v2648, %v2648
    %s2656 = scalar_lea.vmem [#allocation2], 148
    %2657 = vst.msk [vmem:[%s2656] sm:$0xf] %vm49, %v2649
    %2658 = vst.msk [vmem:[%s2656 + $0x4] sm:$0xf] %vm49, %v2650
    %2659 = vst.msk [vmem:[%s2656 + $0x8] sm:$0xf] %vm49, %v2651
    %2660 = vst.msk [vmem:[%s2656 + $0xc] sm:$0xf] %vm49, %v2652
    %2661 = vst.msk [vmem:[%s2656 + $0x10] sm:$0xf] %vm49, %v2653
    %2662 = vst.msk [vmem:[%s2656 + $0x14] sm:$0xf] %vm49, %v2654
    %2663 = vst.msk [vmem:[%s2656 + $0x18] sm:$0xf] %vm49, %v2655
    %v2664 = vld [vmem:[%s1777] sm:$0xf]
    %v2665 = vld [vmem:[%s1777 + $0x4] sm:$0xf]
    %v2666 = vld [vmem:[%s1777 + $0x8] sm:$0xf]
    %v2667 = vld [vmem:[%s1777 + $0xc] sm:$0xf]
    %v2668 = vld [vmem:[%s1777 + $0x10] sm:$0xf]
    %v2669 = vld [vmem:[%s1777 + $0x14] sm:$0xf]
    %v2670 = vld [vmem:[%s1777 + $0x18] sm:$0xf]
    %v2671 = vunpack.c.l.bf16 %v2664
    %v2672 = vunpack.c.l.bf16 %v2665
    %v2673 = vunpack.c.l.bf16 %v2666
    %v2674 = vunpack.c.l.bf16 %v2667
    %v2675 = vunpack.c.l.bf16 %v2668
    %v2676 = vunpack.c.l.bf16 %v2669
    %v2677 = vunpack.c.l.bf16 %v2670
    %v2678 = vld [vmem:[%s1] sm:$0x1]
    %2680 = vset.pattern.permute.xlu0 0
    %2681 = vperm.xlu0 %2680, %v2671
    %v2682 = vpop.permute.xlu0 %2681
    %2685 = vset.pattern.permute.xlu0 0
    %2686 = vperm.xlu0 %2685, %v2672
    %v2687 = vpop.permute.xlu0 %2686
    %2690 = vset.pattern.permute.xlu0 0
    %2691 = vperm.xlu0 %2690, %v2673
    %v2692 = vpop.permute.xlu0 %2691
    %2695 = vset.pattern.permute.xlu0 0
    %2696 = vperm.xlu0 %2695, %v2674
    %v2697 = vpop.permute.xlu0 %2696
    %2700 = vset.pattern.permute.xlu0 0
    %2701 = vperm.xlu0 %2700, %v2675
    %v2702 = vpop.permute.xlu0 %2701
    %2705 = vset.pattern.permute.xlu0 0
    %2706 = vperm.xlu0 %2705, %v2676
    %v2707 = vpop.permute.xlu0 %2706
    %2710 = vset.pattern.permute.xlu0 0
    %2711 = vperm.xlu0 %2710, %v2677
    %v2712 = vpop.permute.xlu0 %2711
    %v2714 = vlaneseq
    %v2715 = vshrl.u32 %v2714, 7
    %v2716 = vsub.s32 0, %v2715
    %v2717 = vrot.slane %v2678, %v2716
    %v2718 = vmul.f32 %v2682, %v2717
    %v2719 = vmul.f32 %v2687, %v2717
    %v2720 = vmul.f32 %v2692, %v2717
    %v2721 = vmul.f32 %v2697, %v2717
    %v2722 = vmul.f32 %v2702, %v2717
    %v2723 = vmul.f32 %v2707, %v2717
    %v2724 = vmul.f32 %v2712, %v2717
    %v2725 = vld [vmem:[%s1846] sm:$0xf]
    %v2726 = vld [vmem:[%s1846 + $0x4] sm:$0xf]
    %v2727 = vld [vmem:[%s1846 + $0x8] sm:$0xf]
    %v2728 = vld [vmem:[%s1846 + $0xc] sm:$0xf]
    %v2729 = vld [vmem:[%s1846 + $0x10] sm:$0xf]
    %v2730 = vld [vmem:[%s1846 + $0x14] sm:$0xf]
    %v2731 = vld [vmem:[%s1846 + $0x18] sm:$0xf]
    %v2732 = vunpack.c.l.bf16 %v2725
    %v2733 = vunpack.c.l.bf16 %v2726
    %v2734 = vunpack.c.l.bf16 %v2727
    %v2735 = vunpack.c.l.bf16 %v2728
    %v2736 = vunpack.c.l.bf16 %v2729
    %v2737 = vunpack.c.l.bf16 %v2730
    %v2738 = vunpack.c.l.bf16 %v2731
    %v2739 = vld [vmem:[%s1 + $0x1] sm:$0x1]
    %2741 = vset.pattern.permute.xlu0 0
    %2742 = vperm.xlu0 %2741, %v2732
    %v2743 = vpop.permute.xlu0 %2742
    %2746 = vset.pattern.permute.xlu0 0
    %2747 = vperm.xlu0 %2746, %v2733
    %v2748 = vpop.permute.xlu0 %2747
    %2751 = vset.pattern.permute.xlu0 0
    %2752 = vperm.xlu0 %2751, %v2734
    %v2753 = vpop.permute.xlu0 %2752
    %2756 = vset.pattern.permute.xlu0 0
    %2757 = vperm.xlu0 %2756, %v2735
    %v2758 = vpop.permute.xlu0 %2757
    %2761 = vset.pattern.permute.xlu0 0
    %2762 = vperm.xlu0 %2761, %v2736
    %v2763 = vpop.permute.xlu0 %2762
    %2766 = vset.pattern.permute.xlu0 0
    %2767 = vperm.xlu0 %2766, %v2737
    %v2768 = vpop.permute.xlu0 %2767
    %2771 = vset.pattern.permute.xlu0 0
    %2772 = vperm.xlu0 %2771, %v2738
    %v2773 = vpop.permute.xlu0 %2772
    %v2775 = vlaneseq
    %v2776 = vshrl.u32 %v2775, 7
    %v2777 = vsub.s32 0, %v2776
    %v2778 = vrot.slane %v2739, %v2777
    %v2779 = vmul.f32 %v2743, %v2778
    %v2780 = vmul.f32 %v2748, %v2778
    %v2781 = vmul.f32 %v2753, %v2778
    %v2782 = vmul.f32 %v2758, %v2778
    %v2783 = vmul.f32 %v2763, %v2778
    %v2784 = vmul.f32 %v2768, %v2778
    %v2785 = vmul.f32 %v2773, %v2778
    %v2786 = vadd.f32 %v2718, %v2779
    %v2787 = vadd.f32 %v2719, %v2780
    %v2788 = vadd.f32 %v2720, %v2781
    %v2789 = vadd.f32 %v2721, %v2782
    %v2790 = vadd.f32 %v2722, %v2783
    %v2791 = vadd.f32 %v2723, %v2784
    %v2792 = vadd.f32 %v2724, %v2785
    %v2793 = vld [vmem:[%s1915] sm:$0xf]
    %v2794 = vld [vmem:[%s1915 + $0x4] sm:$0xf]
    %v2795 = vld [vmem:[%s1915 + $0x8] sm:$0xf]
    %v2796 = vld [vmem:[%s1915 + $0xc] sm:$0xf]
    %v2797 = vld [vmem:[%s1915 + $0x10] sm:$0xf]
    %v2798 = vld [vmem:[%s1915 + $0x14] sm:$0xf]
    %v2799 = vld [vmem:[%s1915 + $0x18] sm:$0xf]
    %v2800 = vunpack.c.l.bf16 %v2793
    %v2801 = vunpack.c.l.bf16 %v2794
    %v2802 = vunpack.c.l.bf16 %v2795
    %v2803 = vunpack.c.l.bf16 %v2796
    %v2804 = vunpack.c.l.bf16 %v2797
    %v2805 = vunpack.c.l.bf16 %v2798
    %v2806 = vunpack.c.l.bf16 %v2799
    %v2807 = vld [vmem:[%s1 + $0x2] sm:$0x1]
    %2809 = vset.pattern.permute.xlu0 0
    %2810 = vperm.xlu0 %2809, %v2800
    %v2811 = vpop.permute.xlu0 %2810
    %2814 = vset.pattern.permute.xlu0 0
    %2815 = vperm.xlu0 %2814, %v2801
    %v2816 = vpop.permute.xlu0 %2815
    %2819 = vset.pattern.permute.xlu0 0
    %2820 = vperm.xlu0 %2819, %v2802
    %v2821 = vpop.permute.xlu0 %2820
    %2824 = vset.pattern.permute.xlu0 0
    %2825 = vperm.xlu0 %2824, %v2803
    %v2826 = vpop.permute.xlu0 %2825
    %2829 = vset.pattern.permute.xlu0 0
    %2830 = vperm.xlu0 %2829, %v2804
    %v2831 = vpop.permute.xlu0 %2830
    %2834 = vset.pattern.permute.xlu0 0
    %2835 = vperm.xlu0 %2834, %v2805
    %v2836 = vpop.permute.xlu0 %2835
    %2839 = vset.pattern.permute.xlu0 0
    %2840 = vperm.xlu0 %2839, %v2806
    %v2841 = vpop.permute.xlu0 %2840
    %v2843 = vlaneseq
    %v2844 = vshrl.u32 %v2843, 7
    %v2845 = vsub.s32 0, %v2844
    %v2846 = vrot.slane %v2807, %v2845
    %v2847 = vmul.f32 %v2811, %v2846
    %v2848 = vmul.f32 %v2816, %v2846
    %v2849 = vmul.f32 %v2821, %v2846
    %v2850 = vmul.f32 %v2826, %v2846
    %v2851 = vmul.f32 %v2831, %v2846
    %v2852 = vmul.f32 %v2836, %v2846
    %v2853 = vmul.f32 %v2841, %v2846
    %v2854 = vadd.f32 %v2786, %v2847
    %v2855 = vadd.f32 %v2787, %v2848
    %v2856 = vadd.f32 %v2788, %v2849
    %v2857 = vadd.f32 %v2789, %v2850
    %v2858 = vadd.f32 %v2790, %v2851
    %v2859 = vadd.f32 %v2791, %v2852
    %v2860 = vadd.f32 %v2792, %v2853
    %v2861 = vld [vmem:[%s2421] sm:$0xf]
    %v2862 = vld [vmem:[%s2421 + $0x4] sm:$0xf]
    %v2863 = vld [vmem:[%s2421 + $0x8] sm:$0xf]
    %v2864 = vld [vmem:[%s2421 + $0xc] sm:$0xf]
    %v2865 = vld [vmem:[%s2421 + $0x10] sm:$0xf]
    %v2866 = vld [vmem:[%s2421 + $0x14] sm:$0xf]
    %v2867 = vld [vmem:[%s2421 + $0x18] sm:$0xf]
    %v2868 = vunpack.c.l.bf16 %v2861
    %v2869 = vunpack.c.l.bf16 %v2862
    %v2870 = vunpack.c.l.bf16 %v2863
    %v2871 = vunpack.c.l.bf16 %v2864
    %v2872 = vunpack.c.l.bf16 %v2865
    %v2873 = vunpack.c.l.bf16 %v2866
    %v2874 = vunpack.c.l.bf16 %v2867
    %v2875 = vld [vmem:[%s1 + $0x3] sm:$0x1]
    %2877 = vset.pattern.permute.xlu0 0
    %2878 = vperm.xlu0 %2877, %v2868
    %v2879 = vpop.permute.xlu0 %2878
    %2882 = vset.pattern.permute.xlu0 0
    %2883 = vperm.xlu0 %2882, %v2869
    %v2884 = vpop.permute.xlu0 %2883
    %2887 = vset.pattern.permute.xlu0 0
    %2888 = vperm.xlu0 %2887, %v2870
    %v2889 = vpop.permute.xlu0 %2888
    %2892 = vset.pattern.permute.xlu0 0
    %2893 = vperm.xlu0 %2892, %v2871
    %v2894 = vpop.permute.xlu0 %2893
    %2897 = vset.pattern.permute.xlu0 0
    %2898 = vperm.xlu0 %2897, %v2872
    %v2899 = vpop.permute.xlu0 %2898
    %2902 = vset.pattern.permute.xlu0 0
    %2903 = vperm.xlu0 %2902, %v2873
    %v2904 = vpop.permute.xlu0 %2903
    %2907 = vset.pattern.permute.xlu0 0
    %2908 = vperm.xlu0 %2907, %v2874
    %v2909 = vpop.permute.xlu0 %2908
    %v2911 = vlaneseq
    %v2912 = vshrl.u32 %v2911, 7
    %v2913 = vsub.s32 0, %v2912
    %v2914 = vrot.slane %v2875, %v2913
    %v2915 = vmul.f32 %v2879, %v2914
    %v2916 = vmul.f32 %v2884, %v2914
    %v2917 = vmul.f32 %v2889, %v2914
    %v2918 = vmul.f32 %v2894, %v2914
    %v2919 = vmul.f32 %v2899, %v2914
    %v2920 = vmul.f32 %v2904, %v2914
    %v2921 = vmul.f32 %v2909, %v2914
    %v2922 = vadd.f32 %v2854, %v2915
    %v2923 = vadd.f32 %v2855, %v2916
    %v2924 = vadd.f32 %v2856, %v2917
    %v2925 = vadd.f32 %v2857, %v2918
    %v2926 = vadd.f32 %v2858, %v2919
    %v2927 = vadd.f32 %v2859, %v2920
    %v2928 = vadd.f32 %v2860, %v2921
    %v2929 = vld [vmem:[%s2490] sm:$0xf]
    %v2930 = vld [vmem:[%s2490 + $0x4] sm:$0xf]
    %v2931 = vld [vmem:[%s2490 + $0x8] sm:$0xf]
    %v2932 = vld [vmem:[%s2490 + $0xc] sm:$0xf]
    %v2933 = vld [vmem:[%s2490 + $0x10] sm:$0xf]
    %v2934 = vld [vmem:[%s2490 + $0x14] sm:$0xf]
    %v2935 = vld [vmem:[%s2490 + $0x18] sm:$0xf]
    %v2936 = vunpack.c.l.bf16 %v2929
    %v2937 = vunpack.c.l.bf16 %v2930
    %v2938 = vunpack.c.l.bf16 %v2931
    %v2939 = vunpack.c.l.bf16 %v2932
    %v2940 = vunpack.c.l.bf16 %v2933
    %v2941 = vunpack.c.l.bf16 %v2934
    %v2942 = vunpack.c.l.bf16 %v2935
    %v2943 = vld [vmem:[%s1 + $0x4] sm:$0x1]
    %2945 = vset.pattern.permute.xlu0 0
    %2946 = vperm.xlu0 %2945, %v2936
    %v2947 = vpop.permute.xlu0 %2946
    %2950 = vset.pattern.permute.xlu0 0
    %2951 = vperm.xlu0 %2950, %v2937
    %v2952 = vpop.permute.xlu0 %2951
    %2955 = vset.pattern.permute.xlu0 0
    %2956 = vperm.xlu0 %2955, %v2938
    %v2957 = vpop.permute.xlu0 %2956
    %2960 = vset.pattern.permute.xlu0 0
    %2961 = vperm.xlu0 %2960, %v2939
    %v2962 = vpop.permute.xlu0 %2961
    %2965 = vset.pattern.permute.xlu0 0
    %2966 = vperm.xlu0 %2965, %v2940
    %v2967 = vpop.permute.xlu0 %2966
    %2970 = vset.pattern.permute.xlu0 0
    %2971 = vperm.xlu0 %2970, %v2941
    %v2972 = vpop.permute.xlu0 %2971
    %2975 = vset.pattern.permute.xlu0 0
    %2976 = vperm.xlu0 %2975, %v2942
    %v2977 = vpop.permute.xlu0 %2976
    %v2979 = vlaneseq
    %v2980 = vshrl.u32 %v2979, 7
    %v2981 = vsub.s32 0, %v2980
    %v2982 = vrot.slane %v2943, %v2981
    %v2983 = vmul.f32 %v2947, %v2982
    %v2984 = vmul.f32 %v2952, %v2982
    %v2985 = vmul.f32 %v2957, %v2982
    %v2986 = vmul.f32 %v2962, %v2982
    %v2987 = vmul.f32 %v2967, %v2982
    %v2988 = vmul.f32 %v2972, %v2982
    %v2989 = vmul.f32 %v2977, %v2982
    %v2990 = vadd.f32 %v2922, %v2983
    %v2991 = vadd.f32 %v2923, %v2984
    %v2992 = vadd.f32 %v2924, %v2985
    %v2993 = vadd.f32 %v2925, %v2986
    %v2994 = vadd.f32 %v2926, %v2987
    %v2995 = vadd.f32 %v2927, %v2988
    %v2996 = vadd.f32 %v2928, %v2989
    %v2997 = vld [vmem:[%s2559] sm:$0xf]
    %v2998 = vld [vmem:[%s2559 + $0x4] sm:$0xf]
    %v2999 = vld [vmem:[%s2559 + $0x8] sm:$0xf]
    %v3000 = vld [vmem:[%s2559 + $0xc] sm:$0xf]
    %v3001 = vld [vmem:[%s2559 + $0x10] sm:$0xf]
    %v3002 = vld [vmem:[%s2559 + $0x14] sm:$0xf]
    %v3003 = vld [vmem:[%s2559 + $0x18] sm:$0xf]
    %v3004 = vunpack.c.l.bf16 %v2997
    %v3005 = vunpack.c.l.bf16 %v2998
    %v3006 = vunpack.c.l.bf16 %v2999
    %v3007 = vunpack.c.l.bf16 %v3000
    %v3008 = vunpack.c.l.bf16 %v3001
    %v3009 = vunpack.c.l.bf16 %v3002
    %v3010 = vunpack.c.l.bf16 %v3003
    %v3011 = vld [vmem:[%s1 + $0x5] sm:$0x1]
    %3013 = vset.pattern.permute.xlu0 0
    %3014 = vperm.xlu0 %3013, %v3004
    %v3015 = vpop.permute.xlu0 %3014
    %3018 = vset.pattern.permute.xlu0 0
    %3019 = vperm.xlu0 %3018, %v3005
    %v3020 = vpop.permute.xlu0 %3019
    %3023 = vset.pattern.permute.xlu0 0
    %3024 = vperm.xlu0 %3023, %v3006
    %v3025 = vpop.permute.xlu0 %3024
    %3028 = vset.pattern.permute.xlu0 0
    %3029 = vperm.xlu0 %3028, %v3007
    %v3030 = vpop.permute.xlu0 %3029
    %3033 = vset.pattern.permute.xlu0 0
    %3034 = vperm.xlu0 %3033, %v3008
    %v3035 = vpop.permute.xlu0 %3034
    %3038 = vset.pattern.permute.xlu0 0
    %3039 = vperm.xlu0 %3038, %v3009
    %v3040 = vpop.permute.xlu0 %3039
    %3043 = vset.pattern.permute.xlu0 0
    %3044 = vperm.xlu0 %3043, %v3010
    %v3045 = vpop.permute.xlu0 %3044
    %v3047 = vlaneseq
    %v3048 = vshrl.u32 %v3047, 7
    %v3049 = vsub.s32 0, %v3048
    %v3050 = vrot.slane %v3011, %v3049
    %v3051 = vmul.f32 %v3015, %v3050
    %v3052 = vmul.f32 %v3020, %v3050
    %v3053 = vmul.f32 %v3025, %v3050
    %v3054 = vmul.f32 %v3030, %v3050
    %v3055 = vmul.f32 %v3035, %v3050
    %v3056 = vmul.f32 %v3040, %v3050
    %v3057 = vmul.f32 %v3045, %v3050
    %v3058 = vadd.f32 %v2990, %v3051
    %v3059 = vadd.f32 %v2991, %v3052
    %v3060 = vadd.f32 %v2992, %v3053
    %v3061 = vadd.f32 %v2993, %v3054
    %v3062 = vadd.f32 %v2994, %v3055
    %v3063 = vadd.f32 %v2995, %v3056
    %v3064 = vadd.f32 %v2996, %v3057
    %s3065 = scalar_lea.vmem %s0, 216
    %v3066 = vld [vmem:[%s3065] sm:$0xf]
    %v3067 = vld [vmem:[%s3065 + $0x4] sm:$0xf]
    %v3068 = vld [vmem:[%s3065 + $0x8] sm:$0xf]
    %v3069 = vld [vmem:[%s3065 + $0xc] sm:$0xf]
    %v3070 = vld [vmem:[%s3065 + $0x10] sm:$0xf]
    %v3071 = vld [vmem:[%s3065 + $0x14] sm:$0xf]
    %v3072 = vld [vmem:[%s3065 + $0x18] sm:$0xf]
    %v3073 = vunpack.c.l.bf16 %v3066
    %v3074 = vunpack.c.l.bf16 %v3067
    %v3075 = vunpack.c.l.bf16 %v3068
    %v3076 = vunpack.c.l.bf16 %v3069
    %v3077 = vunpack.c.l.bf16 %v3070
    %v3078 = vunpack.c.l.bf16 %v3071
    %v3079 = vunpack.c.l.bf16 %v3072
    %v3080 = vld [vmem:[%s1 + $0x6] sm:$0x1]
    %3082 = vset.pattern.permute.xlu0 0
    %3083 = vperm.xlu0 %3082, %v3073
    %v3084 = vpop.permute.xlu0 %3083
    %3087 = vset.pattern.permute.xlu0 0
    %3088 = vperm.xlu0 %3087, %v3074
    %v3089 = vpop.permute.xlu0 %3088
    %3092 = vset.pattern.permute.xlu0 0
    %3093 = vperm.xlu0 %3092, %v3075
    %v3094 = vpop.permute.xlu0 %3093
    %3097 = vset.pattern.permute.xlu0 0
    %3098 = vperm.xlu0 %3097, %v3076
    %v3099 = vpop.permute.xlu0 %3098
    %3102 = vset.pattern.permute.xlu0 0
    %3103 = vperm.xlu0 %3102, %v3077
    %v3104 = vpop.permute.xlu0 %3103
    %3107 = vset.pattern.permute.xlu0 0
    %3108 = vperm.xlu0 %3107, %v3078
    %v3109 = vpop.permute.xlu0 %3108
    %3112 = vset.pattern.permute.xlu0 0
    %3113 = vperm.xlu0 %3112, %v3079
    %v3114 = vpop.permute.xlu0 %3113
    %v3116 = vlaneseq
    %v3117 = vshrl.u32 %v3116, 7
    %v3118 = vsub.s32 0, %v3117
    %v3119 = vrot.slane %v3080, %v3118
    %v3120 = vmul.f32 %v3084, %v3119
    %v3121 = vmul.f32 %v3089, %v3119
    %v3122 = vmul.f32 %v3094, %v3119
    %v3123 = vmul.f32 %v3099, %v3119
    %v3124 = vmul.f32 %v3104, %v3119
    %v3125 = vmul.f32 %v3109, %v3119
    %v3126 = vmul.f32 %v3114, %v3119
    %v3127 = vadd.f32 %v3058, %v3120
    %v3128 = vadd.f32 %v3059, %v3121
    %v3129 = vadd.f32 %v3060, %v3122
    %v3130 = vadd.f32 %v3061, %v3123
    %v3131 = vadd.f32 %v3062, %v3124
    %v3132 = vadd.f32 %v3063, %v3125
    %v3133 = vadd.f32 %v3064, %v3126
    %s3134 = scalar_lea.vmem %s0, 220
    %v3135 = vld [vmem:[%s3134] sm:$0xf]
    %v3136 = vld [vmem:[%s3134 + $0x4] sm:$0xf]
    %v3137 = vld [vmem:[%s3134 + $0x8] sm:$0xf]
    %v3138 = vld [vmem:[%s3134 + $0xc] sm:$0xf]
    %v3139 = vld [vmem:[%s3134 + $0x10] sm:$0xf]
    %v3140 = vld [vmem:[%s3134 + $0x14] sm:$0xf]
    %v3141 = vld [vmem:[%s3134 + $0x18] sm:$0xf]
    %v3142 = vunpack.c.l.bf16 %v3135
    %v3143 = vunpack.c.l.bf16 %v3136
    %v3144 = vunpack.c.l.bf16 %v3137
    %v3145 = vunpack.c.l.bf16 %v3138
    %v3146 = vunpack.c.l.bf16 %v3139
    %v3147 = vunpack.c.l.bf16 %v3140
    %v3148 = vunpack.c.l.bf16 %v3141
    %v3149 = vld [vmem:[%s1 + $0x7] sm:$0x1]
    %3151 = vset.pattern.permute.xlu0 0
    %3152 = vperm.xlu0 %3151, %v3142
    %v3153 = vpop.permute.xlu0 %3152
    %3156 = vset.pattern.permute.xlu0 0
    %3157 = vperm.xlu0 %3156, %v3143
    %v3158 = vpop.permute.xlu0 %3157
    %3161 = vset.pattern.permute.xlu0 0
    %3162 = vperm.xlu0 %3161, %v3144
    %v3163 = vpop.permute.xlu0 %3162
    %3166 = vset.pattern.permute.xlu0 0
    %3167 = vperm.xlu0 %3166, %v3145
    %v3168 = vpop.permute.xlu0 %3167
    %3171 = vset.pattern.permute.xlu0 0
    %3172 = vperm.xlu0 %3171, %v3146
    %v3173 = vpop.permute.xlu0 %3172
    %3176 = vset.pattern.permute.xlu0 0
    %3177 = vperm.xlu0 %3176, %v3147
    %v3178 = vpop.permute.xlu0 %3177
    %3181 = vset.pattern.permute.xlu0 0
    %3182 = vperm.xlu0 %3181, %v3148
    %v3183 = vpop.permute.xlu0 %3182
    %v3185 = vlaneseq
    %v3186 = vshrl.u32 %v3185, 7
    %v3187 = vsub.s32 0, %v3186
    %v3188 = vrot.slane %v3149, %v3187
    %v3189 = vmul.f32 %v3153, %v3188
    %v3190 = vmul.f32 %v3158, %v3188
    %v3191 = vmul.f32 %v3163, %v3188
    %v3192 = vmul.f32 %v3168, %v3188
    %v3193 = vmul.f32 %v3173, %v3188
    %v3194 = vmul.f32 %v3178, %v3188
    %v3195 = vmul.f32 %v3183, %v3188
    %v3196 = vadd.f32 %v3127, %v3189
    %v3197 = vadd.f32 %v3128, %v3190
    %v3198 = vadd.f32 %v3129, %v3191
    %v3199 = vadd.f32 %v3130, %v3192
    %v3200 = vadd.f32 %v3131, %v3193
    %v3201 = vadd.f32 %v3132, %v3194
    %v3202 = vadd.f32 %v3133, %v3195
    %s3203 = scalar_lea.vmem %s0, 224
    %v3204 = vld [vmem:[%s3203] sm:$0xf]
    %v3205 = vld [vmem:[%s3203 + $0x4] sm:$0xf]
    %v3206 = vld [vmem:[%s3203 + $0x8] sm:$0xf]
    %v3207 = vld [vmem:[%s3203 + $0xc] sm:$0xf]
    %v3208 = vld [vmem:[%s3203 + $0x10] sm:$0xf]
    %v3209 = vld [vmem:[%s3203 + $0x14] sm:$0xf]
    %v3210 = vld [vmem:[%s3203 + $0x18] sm:$0xf]
    %v3211 = vunpack.c.l.bf16 %v3204
    %v3212 = vunpack.c.l.bf16 %v3205
    %v3213 = vunpack.c.l.bf16 %v3206
    %v3214 = vunpack.c.l.bf16 %v3207
    %v3215 = vunpack.c.l.bf16 %v3208
    %v3216 = vunpack.c.l.bf16 %v3209
    %v3217 = vunpack.c.l.bf16 %v3210
    %v3218 = vld [vmem:[%s1 + $0x8] sm:$0x1]
    %3220 = vset.pattern.permute.xlu0 0
    %3221 = vperm.xlu0 %3220, %v3211
    %v3222 = vpop.permute.xlu0 %3221
    %3225 = vset.pattern.permute.xlu0 0
    %3226 = vperm.xlu0 %3225, %v3212
    %v3227 = vpop.permute.xlu0 %3226
    %3230 = vset.pattern.permute.xlu0 0
    %3231 = vperm.xlu0 %3230, %v3213
    %v3232 = vpop.permute.xlu0 %3231
    %3235 = vset.pattern.permute.xlu0 0
    %3236 = vperm.xlu0 %3235, %v3214
    %v3237 = vpop.permute.xlu0 %3236
    %3240 = vset.pattern.permute.xlu0 0
    %3241 = vperm.xlu0 %3240, %v3215
    %v3242 = vpop.permute.xlu0 %3241
    %3245 = vset.pattern.permute.xlu0 0
    %3246 = vperm.xlu0 %3245, %v3216
    %v3247 = vpop.permute.xlu0 %3246
    %3250 = vset.pattern.permute.xlu0 0
    %3251 = vperm.xlu0 %3250, %v3217
    %v3252 = vpop.permute.xlu0 %3251
    %v3254 = vlaneseq
    %v3255 = vshrl.u32 %v3254, 7
    %v3256 = vsub.s32 0, %v3255
    %v3257 = vrot.slane %v3218, %v3256
    %v3258 = vmul.f32 %v3222, %v3257
    %v3259 = vmul.f32 %v3227, %v3257
    %v3260 = vmul.f32 %v3232, %v3257
    %v3261 = vmul.f32 %v3237, %v3257
    %v3262 = vmul.f32 %v3242, %v3257
    %v3263 = vmul.f32 %v3247, %v3257
    %v3264 = vmul.f32 %v3252, %v3257
    %v3265 = vadd.f32 %v3196, %v3258
    %v3266 = vadd.f32 %v3197, %v3259
    %v3267 = vadd.f32 %v3198, %v3260
    %v3268 = vadd.f32 %v3199, %v3261
    %v3269 = vadd.f32 %v3200, %v3262
    %v3270 = vadd.f32 %v3201, %v3263
    %v3271 = vadd.f32 %v3202, %v3264
    %v3272 = vld [vmem:[%s2] sm:$0x1]
    %v3274 = vlaneseq
    %v3275 = vshrl.u32 %v3274, 7
    %v3276 = vsub.s32 0, %v3275
    %v3277 = vrot.slane %v3272, %v3276
    %v3279 = vadd.f32 %v3265, %v3277
    %v3280 = vadd.f32 %v3266, %v3277
    %v3281 = vadd.f32 %v3267, %v3277
    %v3282 = vadd.f32 %v3268, %v3277
    %v3283 = vadd.f32 %v3269, %v3277
    %v3284 = vadd.f32 %v3270, %v3277
    %v3285 = vadd.f32 %v3271, %v3277
    %v3286 = vmax.f32 %v3279, 0.0
    %v3287 = vmax.f32 %v3280, 0.0
    %v3288 = vmax.f32 %v3281, 0.0
    %v3289 = vmax.f32 %v3282, 0.0
    %v3290 = vmax.f32 %v3283, 0.0
    %v3291 = vmax.f32 %v3284, 0.0
    %v3292 = vmax.f32 %v3285, 0.0
    %v3293 = vpack.c.bf16 %v3286, %v3286
    %v3294 = vpack.c.bf16 %v3287, %v3287
    %v3295 = vpack.c.bf16 %v3288, %v3288
    %v3296 = vpack.c.bf16 %v3289, %v3289
    %v3297 = vpack.c.bf16 %v3290, %v3290
    %v3298 = vpack.c.bf16 %v3291, %v3291
    %v3299 = vpack.c.bf16 %v3292, %v3292
    %s3300 = scalar_lea.vmem [#allocation2], 184
    %3301 = vst.msk [vmem:[%s3300] sm:$0xf] %vm49, %v3293
    %3302 = vst.msk [vmem:[%s3300 + $0x4] sm:$0xf] %vm49, %v3294
    %3303 = vst.msk [vmem:[%s3300 + $0x8] sm:$0xf] %vm49, %v3295
    %3304 = vst.msk [vmem:[%s3300 + $0xc] sm:$0xf] %vm49, %v3296
    %3305 = vst.msk [vmem:[%s3300 + $0x10] sm:$0xf] %vm49, %v3297
    %3306 = vst.msk [vmem:[%s3300 + $0x14] sm:$0xf] %vm49, %v3298
    %3307 = vst.msk [vmem:[%s3300 + $0x18] sm:$0xf] %vm49, %v3299
    %v3308 = vld [vmem:[%s2421] sm:$0xf]
    %v3309 = vld [vmem:[%s2421 + $0x4] sm:$0xf]
    %v3310 = vld [vmem:[%s2421 + $0x8] sm:$0xf]
    %v3311 = vld [vmem:[%s2421 + $0xc] sm:$0xf]
    %v3312 = vld [vmem:[%s2421 + $0x10] sm:$0xf]
    %v3313 = vld [vmem:[%s2421 + $0x14] sm:$0xf]
    %v3314 = vld [vmem:[%s2421 + $0x18] sm:$0xf]
    %v3315 = vunpack.c.l.bf16 %v3308
    %v3316 = vunpack.c.l.bf16 %v3309
    %v3317 = vunpack.c.l.bf16 %v3310
    %v3318 = vunpack.c.l.bf16 %v3311
    %v3319 = vunpack.c.l.bf16 %v3312
    %v3320 = vunpack.c.l.bf16 %v3313
    %v3321 = vunpack.c.l.bf16 %v3314
    %v3322 = vld [vmem:[%s1] sm:$0x1]
    %3324 = vset.pattern.permute.xlu0 0
    %3325 = vperm.xlu0 %3324, %v3315
    %v3326 = vpop.permute.xlu0 %3325
    %3329 = vset.pattern.permute.xlu0 0
    %3330 = vperm.xlu0 %3329, %v3316
    %v3331 = vpop.permute.xlu0 %3330
    %3334 = vset.pattern.permute.xlu0 0
    %3335 = vperm.xlu0 %3334, %v3317
    %v3336 = vpop.permute.xlu0 %3335
    %3339 = vset.pattern.permute.xlu0 0
    %3340 = vperm.xlu0 %3339, %v3318
    %v3341 = vpop.permute.xlu0 %3340
    %3344 = vset.pattern.permute.xlu0 0
    %3345 = vperm.xlu0 %3344, %v3319
    %v3346 = vpop.permute.xlu0 %3345
    %3349 = vset.pattern.permute.xlu0 0
    %3350 = vperm.xlu0 %3349, %v3320
    %v3351 = vpop.permute.xlu0 %3350
    %3354 = vset.pattern.permute.xlu0 0
    %3355 = vperm.xlu0 %3354, %v3321
    %v3356 = vpop.permute.xlu0 %3355
    %v3358 = vlaneseq
    %v3359 = vshrl.u32 %v3358, 7
    %v3360 = vsub.s32 0, %v3359
    %v3361 = vrot.slane %v3322, %v3360
    %v3362 = vmul.f32 %v3326, %v3361
    %v3363 = vmul.f32 %v3331, %v3361
    %v3364 = vmul.f32 %v3336, %v3361
    %v3365 = vmul.f32 %v3341, %v3361
    %v3366 = vmul.f32 %v3346, %v3361
    %v3367 = vmul.f32 %v3351, %v3361
    %v3368 = vmul.f32 %v3356, %v3361
    %v3369 = vld [vmem:[%s2490] sm:$0xf]
    %v3370 = vld [vmem:[%s2490 + $0x4] sm:$0xf]
    %v3371 = vld [vmem:[%s2490 + $0x8] sm:$0xf]
    %v3372 = vld [vmem:[%s2490 + $0xc] sm:$0xf]
    %v3373 = vld [vmem:[%s2490 + $0x10] sm:$0xf]
    %v3374 = vld [vmem:[%s2490 + $0x14] sm:$0xf]
    %v3375 = vld [vmem:[%s2490 + $0x18] sm:$0xf]
    %v3376 = vunpack.c.l.bf16 %v3369
    %v3377 = vunpack.c.l.bf16 %v3370
    %v3378 = vunpack.c.l.bf16 %v3371
    %v3379 = vunpack.c.l.bf16 %v3372
    %v3380 = vunpack.c.l.bf16 %v3373
    %v3381 = vunpack.c.l.bf16 %v3374
    %v3382 = vunpack.c.l.bf16 %v3375
    %v3383 = vld [vmem:[%s1 + $0x1] sm:$0x1]
    %3385 = vset.pattern.permute.xlu0 0
    %3386 = vperm.xlu0 %3385, %v3376
    %v3387 = vpop.permute.xlu0 %3386
    %3390 = vset.pattern.permute.xlu0 0
    %3391 = vperm.xlu0 %3390, %v3377
    %v3392 = vpop.permute.xlu0 %3391
    %3395 = vset.pattern.permute.xlu0 0
    %3396 = vperm.xlu0 %3395, %v3378
    %v3397 = vpop.permute.xlu0 %3396
    %3400 = vset.pattern.permute.xlu0 0
    %3401 = vperm.xlu0 %3400, %v3379
    %v3402 = vpop.permute.xlu0 %3401
    %3405 = vset.pattern.permute.xlu0 0
    %3406 = vperm.xlu0 %3405, %v3380
    %v3407 = vpop.permute.xlu0 %3406
    %3410 = vset.pattern.permute.xlu0 0
    %3411 = vperm.xlu0 %3410, %v3381
    %v3412 = vpop.permute.xlu0 %3411
    %3415 = vset.pattern.permute.xlu0 0
    %3416 = vperm.xlu0 %3415, %v3382
    %v3417 = vpop.permute.xlu0 %3416
    %v3419 = vlaneseq
    %v3420 = vshrl.u32 %v3419, 7
    %v3421 = vsub.s32 0, %v3420
    %v3422 = vrot.slane %v3383, %v3421
    %v3423 = vmul.f32 %v3387, %v3422
    %v3424 = vmul.f32 %v3392, %v3422
    %v3425 = vmul.f32 %v3397, %v3422
    %v3426 = vmul.f32 %v3402, %v3422
    %v3427 = vmul.f32 %v3407, %v3422
    %v3428 = vmul.f32 %v3412, %v3422
    %v3429 = vmul.f32 %v3417, %v3422
    %v3430 = vadd.f32 %v3362, %v3423
    %v3431 = vadd.f32 %v3363, %v3424
    %v3432 = vadd.f32 %v3364, %v3425
    %v3433 = vadd.f32 %v3365, %v3426
    %v3434 = vadd.f32 %v3366, %v3427
    %v3435 = vadd.f32 %v3367, %v3428
    %v3436 = vadd.f32 %v3368, %v3429
    %v3437 = vld [vmem:[%s2559] sm:$0xf]
    %v3438 = vld [vmem:[%s2559 + $0x4] sm:$0xf]
    %v3439 = vld [vmem:[%s2559 + $0x8] sm:$0xf]
    %v3440 = vld [vmem:[%s2559 + $0xc] sm:$0xf]
    %v3441 = vld [vmem:[%s2559 + $0x10] sm:$0xf]
    %v3442 = vld [vmem:[%s2559 + $0x14] sm:$0xf]
    %v3443 = vld [vmem:[%s2559 + $0x18] sm:$0xf]
    %v3444 = vunpack.c.l.bf16 %v3437
    %v3445 = vunpack.c.l.bf16 %v3438
    %v3446 = vunpack.c.l.bf16 %v3439
    %v3447 = vunpack.c.l.bf16 %v3440
    %v3448 = vunpack.c.l.bf16 %v3441
    %v3449 = vunpack.c.l.bf16 %v3442
    %v3450 = vunpack.c.l.bf16 %v3443
    %v3451 = vld [vmem:[%s1 + $0x2] sm:$0x1]
    %3453 = vset.pattern.permute.xlu0 0
    %3454 = vperm.xlu0 %3453, %v3444
    %v3455 = vpop.permute.xlu0 %3454
    %3458 = vset.pattern.permute.xlu0 0
    %3459 = vperm.xlu0 %3458, %v3445
    %v3460 = vpop.permute.xlu0 %3459
    %3463 = vset.pattern.permute.xlu0 0
    %3464 = vperm.xlu0 %3463, %v3446
    %v3465 = vpop.permute.xlu0 %3464
    %3468 = vset.pattern.permute.xlu0 0
    %3469 = vperm.xlu0 %3468, %v3447
    %v3470 = vpop.permute.xlu0 %3469
    %3473 = vset.pattern.permute.xlu0 0
    %3474 = vperm.xlu0 %3473, %v3448
    %v3475 = vpop.permute.xlu0 %3474
    %3478 = vset.pattern.permute.xlu0 0
    %3479 = vperm.xlu0 %3478, %v3449
    %v3480 = vpop.permute.xlu0 %3479
    %3483 = vset.pattern.permute.xlu0 0
    %3484 = vperm.xlu0 %3483, %v3450
    %v3485 = vpop.permute.xlu0 %3484
    %v3487 = vlaneseq
    %v3488 = vshrl.u32 %v3487, 7
    %v3489 = vsub.s32 0, %v3488
    %v3490 = vrot.slane %v3451, %v3489
    %v3491 = vmul.f32 %v3455, %v3490
    %v3492 = vmul.f32 %v3460, %v3490
    %v3493 = vmul.f32 %v3465, %v3490
    %v3494 = vmul.f32 %v3470, %v3490
    %v3495 = vmul.f32 %v3475, %v3490
    %v3496 = vmul.f32 %v3480, %v3490
    %v3497 = vmul.f32 %v3485, %v3490
    %v3498 = vadd.f32 %v3430, %v3491
    %v3499 = vadd.f32 %v3431, %v3492
    %v3500 = vadd.f32 %v3432, %v3493
    %v3501 = vadd.f32 %v3433, %v3494
    %v3502 = vadd.f32 %v3434, %v3495
    %v3503 = vadd.f32 %v3435, %v3496
    %v3504 = vadd.f32 %v3436, %v3497
    %v3505 = vld [vmem:[%s3065] sm:$0xf]
    %v3506 = vld [vmem:[%s3065 + $0x4] sm:$0xf]
    %v3507 = vld [vmem:[%s3065 + $0x8] sm:$0xf]
    %v3508 = vld [vmem:[%s3065 + $0xc] sm:$0xf]
    %v3509 = vld [vmem:[%s3065 + $0x10] sm:$0xf]
    %v3510 = vld [vmem:[%s3065 + $0x14] sm:$0xf]
    %v3511 = vld [vmem:[%s3065 + $0x18] sm:$0xf]
    %v3512 = vunpack.c.l.bf16 %v3505
    %v3513 = vunpack.c.l.bf16 %v3506
    %v3514 = vunpack.c.l.bf16 %v3507
    %v3515 = vunpack.c.l.bf16 %v3508
    %v3516 = vunpack.c.l.bf16 %v3509
    %v3517 = vunpack.c.l.bf16 %v3510
    %v3518 = vunpack.c.l.bf16 %v3511
    %v3519 = vld [vmem:[%s1 + $0x3] sm:$0x1]
    %3521 = vset.pattern.permute.xlu0 0
    %3522 = vperm.xlu0 %3521, %v3512
    %v3523 = vpop.permute.xlu0 %3522
    %3526 = vset.pattern.permute.xlu0 0
    %3527 = vperm.xlu0 %3526, %v3513
    %v3528 = vpop.permute.xlu0 %3527
    %3531 = vset.pattern.permute.xlu0 0
    %3532 = vperm.xlu0 %3531, %v3514
    %v3533 = vpop.permute.xlu0 %3532
    %3536 = vset.pattern.permute.xlu0 0
    %3537 = vperm.xlu0 %3536, %v3515
    %v3538 = vpop.permute.xlu0 %3537
    %3541 = vset.pattern.permute.xlu0 0
    %3542 = vperm.xlu0 %3541, %v3516
    %v3543 = vpop.permute.xlu0 %3542
    %3546 = vset.pattern.permute.xlu0 0
    %3547 = vperm.xlu0 %3546, %v3517
    %v3548 = vpop.permute.xlu0 %3547
    %3551 = vset.pattern.permute.xlu0 0
    %3552 = vperm.xlu0 %3551, %v3518
    %v3553 = vpop.permute.xlu0 %3552
    %v3555 = vlaneseq
    %v3556 = vshrl.u32 %v3555, 7
    %v3557 = vsub.s32 0, %v3556
    %v3558 = vrot.slane %v3519, %v3557
    %v3559 = vmul.f32 %v3523, %v3558
    %v3560 = vmul.f32 %v3528, %v3558
    %v3561 = vmul.f32 %v3533, %v3558
    %v3562 = vmul.f32 %v3538, %v3558
    %v3563 = vmul.f32 %v3543, %v3558
    %v3564 = vmul.f32 %v3548, %v3558
    %v3565 = vmul.f32 %v3553, %v3558
    %v3566 = vadd.f32 %v3498, %v3559
    %v3567 = vadd.f32 %v3499, %v3560
    %v3568 = vadd.f32 %v3500, %v3561
    %v3569 = vadd.f32 %v3501, %v3562
    %v3570 = vadd.f32 %v3502, %v3563
    %v3571 = vadd.f32 %v3503, %v3564
    %v3572 = vadd.f32 %v3504, %v3565
    %v3573 = vld [vmem:[%s3134] sm:$0xf]
    %v3574 = vld [vmem:[%s3134 + $0x4] sm:$0xf]
    %v3575 = vld [vmem:[%s3134 + $0x8] sm:$0xf]
    %v3576 = vld [vmem:[%s3134 + $0xc] sm:$0xf]
    %v3577 = vld [vmem:[%s3134 + $0x10] sm:$0xf]
    %v3578 = vld [vmem:[%s3134 + $0x14] sm:$0xf]
    %v3579 = vld [vmem:[%s3134 + $0x18] sm:$0xf]
    %v3580 = vunpack.c.l.bf16 %v3573
    %v3581 = vunpack.c.l.bf16 %v3574
    %v3582 = vunpack.c.l.bf16 %v3575
    %v3583 = vunpack.c.l.bf16 %v3576
    %v3584 = vunpack.c.l.bf16 %v3577
    %v3585 = vunpack.c.l.bf16 %v3578
    %v3586 = vunpack.c.l.bf16 %v3579
    %v3587 = vld [vmem:[%s1 + $0x4] sm:$0x1]
    %3589 = vset.pattern.permute.xlu0 0
    %3590 = vperm.xlu0 %3589, %v3580
    %v3591 = vpop.permute.xlu0 %3590
    %3594 = vset.pattern.permute.xlu0 0
    %3595 = vperm.xlu0 %3594, %v3581
    %v3596 = vpop.permute.xlu0 %3595
    %3599 = vset.pattern.permute.xlu0 0
    %3600 = vperm.xlu0 %3599, %v3582
    %v3601 = vpop.permute.xlu0 %3600
    %3604 = vset.pattern.permute.xlu0 0
    %3605 = vperm.xlu0 %3604, %v3583
    %v3606 = vpop.permute.xlu0 %3605
    %3609 = vset.pattern.permute.xlu0 0
    %3610 = vperm.xlu0 %3609, %v3584
    %v3611 = vpop.permute.xlu0 %3610
    %3614 = vset.pattern.permute.xlu0 0
    %3615 = vperm.xlu0 %3614, %v3585
    %v3616 = vpop.permute.xlu0 %3615
    %3619 = vset.pattern.permute.xlu0 0
    %3620 = vperm.xlu0 %3619, %v3586
    %v3621 = vpop.permute.xlu0 %3620
    %v3623 = vlaneseq
    %v3624 = vshrl.u32 %v3623, 7
    %v3625 = vsub.s32 0, %v3624
    %v3626 = vrot.slane %v3587, %v3625
    %v3627 = vmul.f32 %v3591, %v3626
    %v3628 = vmul.f32 %v3596, %v3626
    %v3629 = vmul.f32 %v3601, %v3626
    %v3630 = vmul.f32 %v3606, %v3626
    %v3631 = vmul.f32 %v3611, %v3626
    %v3632 = vmul.f32 %v3616, %v3626
    %v3633 = vmul.f32 %v3621, %v3626
    %v3634 = vadd.f32 %v3566, %v3627
    %v3635 = vadd.f32 %v3567, %v3628
    %v3636 = vadd.f32 %v3568, %v3629
    %v3637 = vadd.f32 %v3569, %v3630
    %v3638 = vadd.f32 %v3570, %v3631
    %v3639 = vadd.f32 %v3571, %v3632
    %v3640 = vadd.f32 %v3572, %v3633
    %v3641 = vld [vmem:[%s3203] sm:$0xf]
    %v3642 = vld [vmem:[%s3203 + $0x4] sm:$0xf]
    %v3643 = vld [vmem:[%s3203 + $0x8] sm:$0xf]
    %v3644 = vld [vmem:[%s3203 + $0xc] sm:$0xf]
    %v3645 = vld [vmem:[%s3203 + $0x10] sm:$0xf]
    %v3646 = vld [vmem:[%s3203 + $0x14] sm:$0xf]
    %v3647 = vld [vmem:[%s3203 + $0x18] sm:$0xf]
    %v3648 = vunpack.c.l.bf16 %v3641
    %v3649 = vunpack.c.l.bf16 %v3642
    %v3650 = vunpack.c.l.bf16 %v3643
    %v3651 = vunpack.c.l.bf16 %v3644
    %v3652 = vunpack.c.l.bf16 %v3645
    %v3653 = vunpack.c.l.bf16 %v3646
    %v3654 = vunpack.c.l.bf16 %v3647
    %v3655 = vld [vmem:[%s1 + $0x5] sm:$0x1]
    %3657 = vset.pattern.permute.xlu0 0
    %3658 = vperm.xlu0 %3657, %v3648
    %v3659 = vpop.permute.xlu0 %3658
    %3662 = vset.pattern.permute.xlu0 0
    %3663 = vperm.xlu0 %3662, %v3649
    %v3664 = vpop.permute.xlu0 %3663
    %3667 = vset.pattern.permute.xlu0 0
    %3668 = vperm.xlu0 %3667, %v3650
    %v3669 = vpop.permute.xlu0 %3668
    %3672 = vset.pattern.permute.xlu0 0
    %3673 = vperm.xlu0 %3672, %v3651
    %v3674 = vpop.permute.xlu0 %3673
    %3677 = vset.pattern.permute.xlu0 0
    %3678 = vperm.xlu0 %3677, %v3652
    %v3679 = vpop.permute.xlu0 %3678
    %3682 = vset.pattern.permute.xlu0 0
    %3683 = vperm.xlu0 %3682, %v3653
    %v3684 = vpop.permute.xlu0 %3683
    %3687 = vset.pattern.permute.xlu0 0
    %3688 = vperm.xlu0 %3687, %v3654
    %v3689 = vpop.permute.xlu0 %3688
    %v3691 = vlaneseq
    %v3692 = vshrl.u32 %v3691, 7
    %v3693 = vsub.s32 0, %v3692
    %v3694 = vrot.slane %v3655, %v3693
    %v3695 = vmul.f32 %v3659, %v3694
    %v3696 = vmul.f32 %v3664, %v3694
    %v3697 = vmul.f32 %v3669, %v3694
    %v3698 = vmul.f32 %v3674, %v3694
    %v3699 = vmul.f32 %v3679, %v3694
    %v3700 = vmul.f32 %v3684, %v3694
    %v3701 = vmul.f32 %v3689, %v3694
    %v3702 = vadd.f32 %v3634, %v3695
    %v3703 = vadd.f32 %v3635, %v3696
    %v3704 = vadd.f32 %v3636, %v3697
    %v3705 = vadd.f32 %v3637, %v3698
    %v3706 = vadd.f32 %v3638, %v3699
    %v3707 = vadd.f32 %v3639, %v3700
    %v3708 = vadd.f32 %v3640, %v3701
    %s3709 = scalar_lea.vmem %s0, 252
    %v3710 = vld [vmem:[%s3709] sm:$0xf]
    %v3711 = vld [vmem:[%s3709 + $0x4] sm:$0xf]
    %v3712 = vld [vmem:[%s3709 + $0x8] sm:$0xf]
    %v3713 = vld [vmem:[%s3709 + $0xc] sm:$0xf]
    %v3714 = vld [vmem:[%s3709 + $0x10] sm:$0xf]
    %v3715 = vld [vmem:[%s3709 + $0x14] sm:$0xf]
    %v3716 = vld [vmem:[%s3709 + $0x18] sm:$0xf]
    %v3717 = vunpack.c.l.bf16 %v3710
    %v3718 = vunpack.c.l.bf16 %v3711
    %v3719 = vunpack.c.l.bf16 %v3712
    %v3720 = vunpack.c.l.bf16 %v3713
    %v3721 = vunpack.c.l.bf16 %v3714
    %v3722 = vunpack.c.l.bf16 %v3715
    %v3723 = vunpack.c.l.bf16 %v3716
    %v3724 = vld [vmem:[%s1 + $0x6] sm:$0x1]
    %3726 = vset.pattern.permute.xlu0 0
    %3727 = vperm.xlu0 %3726, %v3717
    %v3728 = vpop.permute.xlu0 %3727
    %3731 = vset.pattern.permute.xlu0 0
    %3732 = vperm.xlu0 %3731, %v3718
    %v3733 = vpop.permute.xlu0 %3732
    %3736 = vset.pattern.permute.xlu0 0
    %3737 = vperm.xlu0 %3736, %v3719
    %v3738 = vpop.permute.xlu0 %3737
    %3741 = vset.pattern.permute.xlu0 0
    %3742 = vperm.xlu0 %3741, %v3720
    %v3743 = vpop.permute.xlu0 %3742
    %3746 = vset.pattern.permute.xlu0 0
    %3747 = vperm.xlu0 %3746, %v3721
    %v3748 = vpop.permute.xlu0 %3747
    %3751 = vset.pattern.permute.xlu0 0
    %3752 = vperm.xlu0 %3751, %v3722
    %v3753 = vpop.permute.xlu0 %3752
    %3756 = vset.pattern.permute.xlu0 0
    %3757 = vperm.xlu0 %3756, %v3723
    %v3758 = vpop.permute.xlu0 %3757
    %v3760 = vlaneseq
    %v3761 = vshrl.u32 %v3760, 7
    %v3762 = vsub.s32 0, %v3761
    %v3763 = vrot.slane %v3724, %v3762
    %v3764 = vmul.f32 %v3728, %v3763
    %v3765 = vmul.f32 %v3733, %v3763
    %v3766 = vmul.f32 %v3738, %v3763
    %v3767 = vmul.f32 %v3743, %v3763
    %v3768 = vmul.f32 %v3748, %v3763
    %v3769 = vmul.f32 %v3753, %v3763
    %v3770 = vmul.f32 %v3758, %v3763
    %v3771 = vadd.f32 %v3702, %v3764
    %v3772 = vadd.f32 %v3703, %v3765
    %v3773 = vadd.f32 %v3704, %v3766
    %v3774 = vadd.f32 %v3705, %v3767
    %v3775 = vadd.f32 %v3706, %v3768
    %v3776 = vadd.f32 %v3707, %v3769
    %v3777 = vadd.f32 %v3708, %v3770
    %s3778 = scalar_lea.vmem %s0, 256
    %v3779 = vld [vmem:[%s3778] sm:$0xf]
    %v3780 = vld [vmem:[%s3778 + $0x4] sm:$0xf]
    %v3781 = vld [vmem:[%s3778 + $0x8] sm:$0xf]
    %v3782 = vld [vmem:[%s3778 + $0xc] sm:$0xf]
    %v3783 = vld [vmem:[%s3778 + $0x10] sm:$0xf]
    %v3784 = vld [vmem:[%s3778 + $0x14] sm:$0xf]
    %v3785 = vld [vmem:[%s3778 + $0x18] sm:$0xf]
    %v3786 = vunpack.c.l.bf16 %v3779
    %v3787 = vunpack.c.l.bf16 %v3780
    %v3788 = vunpack.c.l.bf16 %v3781
    %v3789 = vunpack.c.l.bf16 %v3782
    %v3790 = vunpack.c.l.bf16 %v3783
    %v3791 = vunpack.c.l.bf16 %v3784
    %v3792 = vunpack.c.l.bf16 %v3785
    %v3793 = vld [vmem:[%s1 + $0x7] sm:$0x1]
    %3795 = vset.pattern.permute.xlu0 0
    %3796 = vperm.xlu0 %3795, %v3786
    %v3797 = vpop.permute.xlu0 %3796
    %3800 = vset.pattern.permute.xlu0 0
    %3801 = vperm.xlu0 %3800, %v3787
    %v3802 = vpop.permute.xlu0 %3801
    %3805 = vset.pattern.permute.xlu0 0
    %3806 = vperm.xlu0 %3805, %v3788
    %v3807 = vpop.permute.xlu0 %3806
    %3810 = vset.pattern.permute.xlu0 0
    %3811 = vperm.xlu0 %3810, %v3789
    %v3812 = vpop.permute.xlu0 %3811
    %3815 = vset.pattern.permute.xlu0 0
    %3816 = vperm.xlu0 %3815, %v3790
    %v3817 = vpop.permute.xlu0 %3816
    %3820 = vset.pattern.permute.xlu0 0
    %3821 = vperm.xlu0 %3820, %v3791
    %v3822 = vpop.permute.xlu0 %3821
    %3825 = vset.pattern.permute.xlu0 0
    %3826 = vperm.xlu0 %3825, %v3792
    %v3827 = vpop.permute.xlu0 %3826
    %v3829 = vlaneseq
    %v3830 = vshrl.u32 %v3829, 7
    %v3831 = vsub.s32 0, %v3830
    %v3832 = vrot.slane %v3793, %v3831
    %v3833 = vmul.f32 %v3797, %v3832
    %v3834 = vmul.f32 %v3802, %v3832
    %v3835 = vmul.f32 %v3807, %v3832
    %v3836 = vmul.f32 %v3812, %v3832
    %v3837 = vmul.f32 %v3817, %v3832
    %v3838 = vmul.f32 %v3822, %v3832
    %v3839 = vmul.f32 %v3827, %v3832
    %v3840 = vadd.f32 %v3771, %v3833
    %v3841 = vadd.f32 %v3772, %v3834
    %v3842 = vadd.f32 %v3773, %v3835
    %v3843 = vadd.f32 %v3774, %v3836
    %v3844 = vadd.f32 %v3775, %v3837
    %v3845 = vadd.f32 %v3776, %v3838
    %v3846 = vadd.f32 %v3777, %v3839
    %s3847 = scalar_lea.vmem %s0, 260
    %v3848 = vld [vmem:[%s3847] sm:$0xf]
    %v3849 = vld [vmem:[%s3847 + $0x4] sm:$0xf]
    %v3850 = vld [vmem:[%s3847 + $0x8] sm:$0xf]
    %v3851 = vld [vmem:[%s3847 + $0xc] sm:$0xf]
    %v3852 = vld [vmem:[%s3847 + $0x10] sm:$0xf]
    %v3853 = vld [vmem:[%s3847 + $0x14] sm:$0xf]
    %v3854 = vld [vmem:[%s3847 + $0x18] sm:$0xf]
    %v3855 = vunpack.c.l.bf16 %v3848
    %v3856 = vunpack.c.l.bf16 %v3849
    %v3857 = vunpack.c.l.bf16 %v3850
    %v3858 = vunpack.c.l.bf16 %v3851
    %v3859 = vunpack.c.l.bf16 %v3852
    %v3860 = vunpack.c.l.bf16 %v3853
    %v3861 = vunpack.c.l.bf16 %v3854
    %v3862 = vld [vmem:[%s1 + $0x8] sm:$0x1]
    %3864 = vset.pattern.permute.xlu0 0
    %3865 = vperm.xlu0 %3864, %v3855
    %v3866 = vpop.permute.xlu0 %3865
    %3869 = vset.pattern.permute.xlu0 0
    %3870 = vperm.xlu0 %3869, %v3856
    %v3871 = vpop.permute.xlu0 %3870
    %3874 = vset.pattern.permute.xlu0 0
    %3875 = vperm.xlu0 %3874, %v3857
    %v3876 = vpop.permute.xlu0 %3875
    %3879 = vset.pattern.permute.xlu0 0
    %3880 = vperm.xlu0 %3879, %v3858
    %v3881 = vpop.permute.xlu0 %3880
    %3884 = vset.pattern.permute.xlu0 0
    %3885 = vperm.xlu0 %3884, %v3859
    %v3886 = vpop.permute.xlu0 %3885
    %3889 = vset.pattern.permute.xlu0 0
    %3890 = vperm.xlu0 %3889, %v3860
    %v3891 = vpop.permute.xlu0 %3890
    %3894 = vset.pattern.permute.xlu0 0
    %3895 = vperm.xlu0 %3894, %v3861
    %v3896 = vpop.permute.xlu0 %3895
    %v3898 = vlaneseq
    %v3899 = vshrl.u32 %v3898, 7
    %v3900 = vsub.s32 0, %v3899
    %v3901 = vrot.slane %v3862, %v3900
    %v3902 = vmul.f32 %v3866, %v3901
    %v3903 = vmul.f32 %v3871, %v3901
    %v3904 = vmul.f32 %v3876, %v3901
    %v3905 = vmul.f32 %v3881, %v3901
    %v3906 = vmul.f32 %v3886, %v3901
    %v3907 = vmul.f32 %v3891, %v3901
    %v3908 = vmul.f32 %v3896, %v3901
    %v3909 = vadd.f32 %v3840, %v3902
    %v3910 = vadd.f32 %v3841, %v3903
    %v3911 = vadd.f32 %v3842, %v3904
    %v3912 = vadd.f32 %v3843, %v3905
    %v3913 = vadd.f32 %v3844, %v3906
    %v3914 = vadd.f32 %v3845, %v3907
    %v3915 = vadd.f32 %v3846, %v3908
    %v3916 = vld [vmem:[%s2] sm:$0x1]
    %v3918 = vlaneseq
    %v3919 = vshrl.u32 %v3918, 7
    %v3920 = vsub.s32 0, %v3919
    %v3921 = vrot.slane %v3916, %v3920
    %v3923 = vadd.f32 %v3909, %v3921
    %v3924 = vadd.f32 %v3910, %v3921
    %v3925 = vadd.f32 %v3911, %v3921
    %v3926 = vadd.f32 %v3912, %v3921
    %v3927 = vadd.f32 %v3913, %v3921
    %v3928 = vadd.f32 %v3914, %v3921
    %v3929 = vadd.f32 %v3915, %v3921
    %v3930 = vmax.f32 %v3923, 0.0
    %v3931 = vmax.f32 %v3924, 0.0
    %v3932 = vmax.f32 %v3925, 0.0
    %v3933 = vmax.f32 %v3926, 0.0
    %v3934 = vmax.f32 %v3927, 0.0
    %v3935 = vmax.f32 %v3928, 0.0
    %v3936 = vmax.f32 %v3929, 0.0
    %v3937 = vpack.c.bf16 %v3930, %v3930
    %v3938 = vpack.c.bf16 %v3931, %v3931
    %v3939 = vpack.c.bf16 %v3932, %v3932
    %v3940 = vpack.c.bf16 %v3933, %v3933
    %v3941 = vpack.c.bf16 %v3934, %v3934
    %v3942 = vpack.c.bf16 %v3935, %v3935
    %v3943 = vpack.c.bf16 %v3936, %v3936
    %s3944 = scalar_lea.vmem [#allocation2], 220
    %3945 = vst.msk [vmem:[%s3944] sm:$0xf] %vm49, %v3937
    %3946 = vst.msk [vmem:[%s3944 + $0x4] sm:$0xf] %vm49, %v3938
    %3947 = vst.msk [vmem:[%s3944 + $0x8] sm:$0xf] %vm49, %v3939
    %3948 = vst.msk [vmem:[%s3944 + $0xc] sm:$0xf] %vm49, %v3940
    %3949 = vst.msk [vmem:[%s3944 + $0x10] sm:$0xf] %vm49, %v3941
    %3950 = vst.msk [vmem:[%s3944 + $0x14] sm:$0xf] %vm49, %v3942
    %3951 = vst.msk [vmem:[%s3944 + $0x18] sm:$0xf] %vm49, %v3943
    %v3952 = vld [vmem:[#allocation2] sm:$0xf]
    %v3953 = vld [vmem:[#allocation2 + $0x4] sm:$0xf]
    %v3954 = vld [vmem:[#allocation2 + $0x8] sm:$0xf]
    %v3955 = vld [vmem:[#allocation2 + $0xc] sm:$0xf]
    %v3956 = vld [vmem:[#allocation2 + $0x10] sm:$0xf]
    %v3957 = vld [vmem:[#allocation2 + $0x14] sm:$0xf]
    %v3958 = vld [vmem:[#allocation2 + $0x18] sm:$0xf]
    %v3959 = vld [vmem:[#allocation2 + $0x24] sm:$0xf]
    %v3960 = vld [vmem:[#allocation2 + $0x28] sm:$0xf]
    %v3961 = vld [vmem:[#allocation2 + $0x2c] sm:$0xf]
    %v3962 = vld [vmem:[#allocation2 + $0x30] sm:$0xf]
    %v3963 = vld [vmem:[#allocation2 + $0x34] sm:$0xf]
    %v3964 = vld [vmem:[#allocation2 + $0x38] sm:$0xf]
    %v3965 = vld [vmem:[#allocation2 + $0x3c] sm:$0xf]
    %v3966 = vld [vmem:[#allocation2 + $0x48] sm:$0xf]
    %v3967 = vld [vmem:[#allocation2 + $0x4c] sm:$0xf]
    %v3968 = vld [vmem:[#allocation2 + $0x50] sm:$0xf]
    %v3969 = vld [vmem:[#allocation2 + $0x54] sm:$0xf]
    %v3970 = vld [vmem:[#allocation2 + $0x58] sm:$0xf]
    %v3971 = vld [vmem:[#allocation2 + $0x5c] sm:$0xf]
    %v3972 = vld [vmem:[#allocation2 + $0x60] sm:$0xf]
    %v3973 = vld [vmem:[#allocation2 + $0x6c] sm:$0xf]
    %v3974 = vld [vmem:[#allocation2 + $0x70] sm:$0xf]
    %v3975 = vld [vmem:[#allocation2 + $0x74] sm:$0xf]
    %v3976 = vld [vmem:[#allocation2 + $0x78] sm:$0xf]
    %v3977 = vld [vmem:[#allocation2 + $0x7c] sm:$0xf]
    %v3978 = vld [vmem:[#allocation2 + $0x80] sm:$0xf]
    %v3979 = vld [vmem:[#allocation2 + $0x84] sm:$0xf]
    %v3980 = vld [vmem:[#allocation2 + $0x90] sm:$0xf]
    %v3981 = vld [vmem:[#allocation2 + $0x94] sm:$0xf]
    %v3982 = vld [vmem:[#allocation2 + $0x98] sm:$0xf]
    %v3983 = vld [vmem:[#allocation2 + $0x9c] sm:$0xf]
    %v3984 = vld [vmem:[#allocation2 + $0xa0] sm:$0xf]
    %v3985 = vld [vmem:[#allocation2 + $0xa4] sm:$0xf]
    %v3986 = vld [vmem:[#allocation2 + $0xa8] sm:$0xf]
    %v3987 = vld [vmem:[#allocation2 + $0xb4] sm:$0xf]
    %v3988 = vld [vmem:[#allocation2 + $0xb8] sm:$0xf]
    %v3989 = vld [vmem:[#allocation2 + $0xbc] sm:$0xf]
    %v3990 = vld [vmem:[#allocation2 + $0xc0] sm:$0xf]
    %v3991 = vld [vmem:[#allocation2 + $0xc4] sm:$0xf]
    %v3992 = vld [vmem:[#allocation2 + $0xc8] sm:$0xf]
    %v3993 = vld [vmem:[#allocation2 + $0xcc] sm:$0xf]
    %s3994 = scalar_lea.vmem [#allocation2], 4
    %v3995 = vld [vmem:[%s3994] sm:$0xf]
    %v3996 = vld [vmem:[%s3994 + $0x4] sm:$0xf]
    %v3997 = vld [vmem:[%s3994 + $0x8] sm:$0xf]
    %v3998 = vld [vmem:[%s3994 + $0xc] sm:$0xf]
    %v3999 = vld [vmem:[%s3994 + $0x10] sm:$0xf]
    %v4000 = vld [vmem:[%s3994 + $0x14] sm:$0xf]
    %v4001 = vld [vmem:[%s3994 + $0x18] sm:$0xf]
    %v4002 = vld [vmem:[%s3994 + $0x24] sm:$0xf]
    %v4003 = vld [vmem:[%s3994 + $0x28] sm:$0xf]
    %v4004 = vld [vmem:[%s3994 + $0x2c] sm:$0xf]
    %v4005 = vld [vmem:[%s3994 + $0x30] sm:$0xf]
    %v4006 = vld [vmem:[%s3994 + $0x34] sm:$0xf]
    %v4007 = vld [vmem:[%s3994 + $0x38] sm:$0xf]
    %v4008 = vld [vmem:[%s3994 + $0x3c] sm:$0xf]
    %v4009 = vld [vmem:[%s3994 + $0x48] sm:$0xf]
    %v4010 = vld [vmem:[%s3994 + $0x4c] sm:$0xf]
    %v4011 = vld [vmem:[%s3994 + $0x50] sm:$0xf]
    %v4012 = vld [vmem:[%s3994 + $0x54] sm:$0xf]
    %v4013 = vld [vmem:[%s3994 + $0x58] sm:$0xf]
    %v4014 = vld [vmem:[%s3994 + $0x5c] sm:$0xf]
    %v4015 = vld [vmem:[%s3994 + $0x60] sm:$0xf]
    %v4016 = vld [vmem:[%s3994 + $0x6c] sm:$0xf]
    %v4017 = vld [vmem:[%s3994 + $0x70] sm:$0xf]
    %v4018 = vld [vmem:[%s3994 + $0x74] sm:$0xf]
    %v4019 = vld [vmem:[%s3994 + $0x78] sm:$0xf]
    %v4020 = vld [vmem:[%s3994 + $0x7c] sm:$0xf]
    %v4021 = vld [vmem:[%s3994 + $0x80] sm:$0xf]
    %v4022 = vld [vmem:[%s3994 + $0x84] sm:$0xf]
    %v4023 = vld [vmem:[%s3994 + $0x90] sm:$0xf]
    %v4024 = vld [vmem:[%s3994 + $0x94] sm:$0xf]
    %v4025 = vld [vmem:[%s3994 + $0x98] sm:$0xf]
    %v4026 = vld [vmem:[%s3994 + $0x9c] sm:$0xf]
    %v4027 = vld [vmem:[%s3994 + $0xa0] sm:$0xf]
    %v4028 = vld [vmem:[%s3994 + $0xa4] sm:$0xf]
    %v4029 = vld [vmem:[%s3994 + $0xa8] sm:$0xf]
    %v4030 = vld [vmem:[%s3994 + $0xb4] sm:$0xf]
    %v4031 = vld [vmem:[%s3994 + $0xb8] sm:$0xf]
    %v4032 = vld [vmem:[%s3994 + $0xbc] sm:$0xf]
    %v4033 = vld [vmem:[%s3994 + $0xc0] sm:$0xf]
    %v4034 = vld [vmem:[%s3994 + $0xc4] sm:$0xf]
    %v4035 = vld [vmem:[%s3994 + $0xc8] sm:$0xf]
    %v4036 = vld [vmem:[%s3994 + $0xcc] sm:$0xf]
    %s4037 = scalar_lea.vmem [#allocation2], 8
    %v4038 = vld [vmem:[%s4037] sm:$0xf]
    %v4039 = vld [vmem:[%s4037 + $0x4] sm:$0xf]
    %v4040 = vld [vmem:[%s4037 + $0x8] sm:$0xf]
    %v4041 = vld [vmem:[%s4037 + $0xc] sm:$0xf]
    %v4042 = vld [vmem:[%s4037 + $0x10] sm:$0xf]
    %v4043 = vld [vmem:[%s4037 + $0x14] sm:$0xf]
    %v4044 = vld [vmem:[%s4037 + $0x18] sm:$0xf]
    %v4045 = vld [vmem:[%s4037 + $0x24] sm:$0xf]
    %v4046 = vld [vmem:[%s4037 + $0x28] sm:$0xf]
    %v4047 = vld [vmem:[%s4037 + $0x2c] sm:$0xf]
    %v4048 = vld [vmem:[%s4037 + $0x30] sm:$0xf]
    %v4049 = vld [vmem:[%s4037 + $0x34] sm:$0xf]
    %v4050 = vld [vmem:[%s4037 + $0x38] sm:$0xf]
    %v4051 = vld [vmem:[%s4037 + $0x3c] sm:$0xf]
    %v4052 = vld [vmem:[%s4037 + $0x48] sm:$0xf]
    %v4053 = vld [vmem:[%s4037 + $0x4c] sm:$0xf]
    %v4054 = vld [vmem:[%s4037 + $0x50] sm:$0xf]
    %v4055 = vld [vmem:[%s4037 + $0x54] sm:$0xf]
    %v4056 = vld [vmem:[%s4037 + $0x58] sm:$0xf]
    %v4057 = vld [vmem:[%s4037 + $0x5c] sm:$0xf]
    %v4058 = vld [vmem:[%s4037 + $0x60] sm:$0xf]
    %v4059 = vld [vmem:[%s4037 + $0x6c] sm:$0xf]
    %v4060 = vld [vmem:[%s4037 + $0x70] sm:$0xf]
    %v4061 = vld [vmem:[%s4037 + $0x74] sm:$0xf]
    %v4062 = vld [vmem:[%s4037 + $0x78] sm:$0xf]
    %v4063 = vld [vmem:[%s4037 + $0x7c] sm:$0xf]
    %v4064 = vld [vmem:[%s4037 + $0x80] sm:$0xf]
    %v4065 = vld [vmem:[%s4037 + $0x84] sm:$0xf]
    %v4066 = vld [vmem:[%s4037 + $0x90] sm:$0xf]
    %v4067 = vld [vmem:[%s4037 + $0x94] sm:$0xf]
    %v4068 = vld [vmem:[%s4037 + $0x98] sm:$0xf]
    %v4069 = vld [vmem:[%s4037 + $0x9c] sm:$0xf]
    %v4070 = vld [vmem:[%s4037 + $0xa0] sm:$0xf]
    %v4071 = vld [vmem:[%s4037 + $0xa4] sm:$0xf]
    %v4072 = vld [vmem:[%s4037 + $0xa8] sm:$0xf]
    %v4073 = vld [vmem:[%s4037 + $0xb4] sm:$0xf]
    %v4074 = vld [vmem:[%s4037 + $0xb8] sm:$0xf]
    %v4075 = vld [vmem:[%s4037 + $0xbc] sm:$0xf]
    %v4076 = vld [vmem:[%s4037 + $0xc0] sm:$0xf]
    %v4077 = vld [vmem:[%s4037 + $0xc4] sm:$0xf]
    %v4078 = vld [vmem:[%s4037 + $0xc8] sm:$0xf]
    %v4079 = vld [vmem:[%s4037 + $0xcc] sm:$0xf]
    %v4080 = vld [vmem:[%s69] sm:$0xf]
    %v4081 = vld [vmem:[%s69 + $0x4] sm:$0xf]
    %v4082 = vld [vmem:[%s69 + $0x8] sm:$0xf]
    %v4083 = vld [vmem:[%s69 + $0xc] sm:$0xf]
    %v4084 = vld [vmem:[%s69 + $0x10] sm:$0xf]
    %v4085 = vld [vmem:[%s69 + $0x14] sm:$0xf]
    %v4086 = vld [vmem:[%s69 + $0x18] sm:$0xf]
    %v4087 = vld [vmem:[%s69 + $0x24] sm:$0xf]
    %v4088 = vld [vmem:[%s69 + $0x28] sm:$0xf]
    %v4089 = vld [vmem:[%s69 + $0x2c] sm:$0xf]
    %v4090 = vld [vmem:[%s69 + $0x30] sm:$0xf]
    %v4091 = vld [vmem:[%s69 + $0x34] sm:$0xf]
    %v4092 = vld [vmem:[%s69 + $0x38] sm:$0xf]
    %v4093 = vld [vmem:[%s69 + $0x3c] sm:$0xf]
    %v4094 = vld [vmem:[%s69 + $0x48] sm:$0xf]
    %v4095 = vld [vmem:[%s69 + $0x4c] sm:$0xf]
    %v4096 = vld [vmem:[%s69 + $0x50] sm:$0xf]
    %v4097 = vld [vmem:[%s69 + $0x54] sm:$0xf]
    %v4098 = vld [vmem:[%s69 + $0x58] sm:$0xf]
    %v4099 = vld [vmem:[%s69 + $0x5c] sm:$0xf]
    %v4100 = vld [vmem:[%s69 + $0x60] sm:$0xf]
    %v4101 = vld [vmem:[%s69 + $0x6c] sm:$0xf]
    %v4102 = vld [vmem:[%s69 + $0x70] sm:$0xf]
    %v4103 = vld [vmem:[%s69 + $0x74] sm:$0xf]
    %v4104 = vld [vmem:[%s69 + $0x78] sm:$0xf]
    %v4105 = vld [vmem:[%s69 + $0x7c] sm:$0xf]
    %v4106 = vld [vmem:[%s69 + $0x80] sm:$0xf]
    %v4107 = vld [vmem:[%s69 + $0x84] sm:$0xf]
    %v4108 = vld [vmem:[%s69 + $0x90] sm:$0xf]
    %v4109 = vld [vmem:[%s69 + $0x94] sm:$0xf]
    %v4110 = vld [vmem:[%s69 + $0x98] sm:$0xf]
    %v4111 = vld [vmem:[%s69 + $0x9c] sm:$0xf]
    %v4112 = vld [vmem:[%s69 + $0xa0] sm:$0xf]
    %v4113 = vld [vmem:[%s69 + $0xa4] sm:$0xf]
    %v4114 = vld [vmem:[%s69 + $0xa8] sm:$0xf]
    %v4115 = vld [vmem:[%s69 + $0xb4] sm:$0xf]
    %v4116 = vld [vmem:[%s69 + $0xb8] sm:$0xf]
    %v4117 = vld [vmem:[%s69 + $0xbc] sm:$0xf]
    %v4118 = vld [vmem:[%s69 + $0xc0] sm:$0xf]
    %v4119 = vld [vmem:[%s69 + $0xc4] sm:$0xf]
    %v4120 = vld [vmem:[%s69 + $0xc8] sm:$0xf]
    %v4121 = vld [vmem:[%s69 + $0xcc] sm:$0xf]
    %v4122 = vld [vmem:[%s724] sm:$0xf]
    %v4123 = vld [vmem:[%s724 + $0x4] sm:$0xf]
    %v4124 = vld [vmem:[%s724 + $0x8] sm:$0xf]
    %v4125 = vld [vmem:[%s724 + $0xc] sm:$0xf]
    %v4126 = vld [vmem:[%s724 + $0x10] sm:$0xf]
    %v4127 = vld [vmem:[%s724 + $0x14] sm:$0xf]
    %v4128 = vld [vmem:[%s724 + $0x18] sm:$0xf]
    %v4129 = vld [vmem:[%s724 + $0x24] sm:$0xf]
    %v4130 = vld [vmem:[%s724 + $0x28] sm:$0xf]
    %v4131 = vld [vmem:[%s724 + $0x2c] sm:$0xf]
    %v4132 = vld [vmem:[%s724 + $0x30] sm:$0xf]
    %v4133 = vld [vmem:[%s724 + $0x34] sm:$0xf]
    %v4134 = vld [vmem:[%s724 + $0x38] sm:$0xf]
    %v4135 = vld [vmem:[%s724 + $0x3c] sm:$0xf]
    %v4136 = vld [vmem:[%s724 + $0x48] sm:$0xf]
    %v4137 = vld [vmem:[%s724 + $0x4c] sm:$0xf]
    %v4138 = vld [vmem:[%s724 + $0x50] sm:$0xf]
    %v4139 = vld [vmem:[%s724 + $0x54] sm:$0xf]
    %v4140 = vld [vmem:[%s724 + $0x58] sm:$0xf]
    %v4141 = vld [vmem:[%s724 + $0x5c] sm:$0xf]
    %v4142 = vld [vmem:[%s724 + $0x60] sm:$0xf]
    %v4143 = vld [vmem:[%s724 + $0x6c] sm:$0xf]
    %v4144 = vld [vmem:[%s724 + $0x70] sm:$0xf]
    %v4145 = vld [vmem:[%s724 + $0x74] sm:$0xf]
    %v4146 = vld [vmem:[%s724 + $0x78] sm:$0xf]
    %v4147 = vld [vmem:[%s724 + $0x7c] sm:$0xf]
    %v4148 = vld [vmem:[%s724 + $0x80] sm:$0xf]
    %v4149 = vld [vmem:[%s724 + $0x84] sm:$0xf]
    %v4150 = vld [vmem:[%s724 + $0x90] sm:$0xf]
    %v4151 = vld [vmem:[%s724 + $0x94] sm:$0xf]
    %v4152 = vld [vmem:[%s724 + $0x98] sm:$0xf]
    %v4153 = vld [vmem:[%s724 + $0x9c] sm:$0xf]
    %v4154 = vld [vmem:[%s724 + $0xa0] sm:$0xf]
    %v4155 = vld [vmem:[%s724 + $0xa4] sm:$0xf]
    %v4156 = vld [vmem:[%s724 + $0xa8] sm:$0xf]
    %v4157 = vld [vmem:[%s724 + $0xb4] sm:$0xf]
    %v4158 = vld [vmem:[%s724 + $0xb8] sm:$0xf]
    %v4159 = vld [vmem:[%s724 + $0xbc] sm:$0xf]
    %v4160 = vld [vmem:[%s724 + $0xc0] sm:$0xf]
    %v4161 = vld [vmem:[%s724 + $0xc4] sm:$0xf]
    %v4162 = vld [vmem:[%s724 + $0xc8] sm:$0xf]
    %v4163 = vld [vmem:[%s724 + $0xcc] sm:$0xf]
    %s4164 = scalar_lea.vmem [#allocation2], 44
    %v4165 = vld [vmem:[%s4164] sm:$0xf]
    %v4166 = vld [vmem:[%s4164 + $0x4] sm:$0xf]
    %v4167 = vld [vmem:[%s4164 + $0x8] sm:$0xf]
    %v4168 = vld [vmem:[%s4164 + $0xc] sm:$0xf]
    %v4169 = vld [vmem:[%s4164 + $0x10] sm:$0xf]
    %v4170 = vld [vmem:[%s4164 + $0x14] sm:$0xf]
    %v4171 = vld [vmem:[%s4164 + $0x18] sm:$0xf]
    %v4172 = vld [vmem:[%s4164 + $0x24] sm:$0xf]
    %v4173 = vld [vmem:[%s4164 + $0x28] sm:$0xf]
    %v4174 = vld [vmem:[%s4164 + $0x2c] sm:$0xf]
    %v4175 = vld [vmem:[%s4164 + $0x30] sm:$0xf]
    %v4176 = vld [vmem:[%s4164 + $0x34] sm:$0xf]
    %v4177 = vld [vmem:[%s4164 + $0x38] sm:$0xf]
    %v4178 = vld [vmem:[%s4164 + $0x3c] sm:$0xf]
    %v4179 = vld [vmem:[%s4164 + $0x48] sm:$0xf]
    %v4180 = vld [vmem:[%s4164 + $0x4c] sm:$0xf]
    %v4181 = vld [vmem:[%s4164 + $0x50] sm:$0xf]
    %v4182 = vld [vmem:[%s4164 + $0x54] sm:$0xf]
    %v4183 = vld [vmem:[%s4164 + $0x58] sm:$0xf]
    %v4184 = vld [vmem:[%s4164 + $0x5c] sm:$0xf]
    %v4185 = vld [vmem:[%s4164 + $0x60] sm:$0xf]
    %v4186 = vld [vmem:[%s4164 + $0x6c] sm:$0xf]
    %v4187 = vld [vmem:[%s4164 + $0x70] sm:$0xf]
    %v4188 = vld [vmem:[%s4164 + $0x74] sm:$0xf]
    %v4189 = vld [vmem:[%s4164 + $0x78] sm:$0xf]
    %v4190 = vld [vmem:[%s4164 + $0x7c] sm:$0xf]
    %v4191 = vld [vmem:[%s4164 + $0x80] sm:$0xf]
    %v4192 = vld [vmem:[%s4164 + $0x84] sm:$0xf]
    %v4193 = vld [vmem:[%s4164 + $0x90] sm:$0xf]
    %v4194 = vld [vmem:[%s4164 + $0x94] sm:$0xf]
    %v4195 = vld [vmem:[%s4164 + $0x98] sm:$0xf]
    %v4196 = vld [vmem:[%s4164 + $0x9c] sm:$0xf]
    %v4197 = vld [vmem:[%s4164 + $0xa0] sm:$0xf]
    %v4198 = vld [vmem:[%s4164 + $0xa4] sm:$0xf]
    %v4199 = vld [vmem:[%s4164 + $0xa8] sm:$0xf]
    %v4200 = vld [vmem:[%s4164 + $0xb4] sm:$0xf]
    %v4201 = vld [vmem:[%s4164 + $0xb8] sm:$0xf]
    %v4202 = vld [vmem:[%s4164 + $0xbc] sm:$0xf]
    %v4203 = vld [vmem:[%s4164 + $0xc0] sm:$0xf]
    %v4204 = vld [vmem:[%s4164 + $0xc4] sm:$0xf]
    %v4205 = vld [vmem:[%s4164 + $0xc8] sm:$0xf]
    %v4206 = vld [vmem:[%s4164 + $0xcc] sm:$0xf]
    %s4207 = scalar_lea.vmem [#allocation2], 72
    %v4208 = vld [vmem:[%s4207] sm:$0xf]
    %v4209 = vld [vmem:[%s4207 + $0x4] sm:$0xf]
    %v4210 = vld [vmem:[%s4207 + $0x8] sm:$0xf]
    %v4211 = vld [vmem:[%s4207 + $0xc] sm:$0xf]
    %v4212 = vld [vmem:[%s4207 + $0x10] sm:$0xf]
    %v4213 = vld [vmem:[%s4207 + $0x14] sm:$0xf]
    %v4214 = vld [vmem:[%s4207 + $0x18] sm:$0xf]
    %v4215 = vld [vmem:[%s4207 + $0x24] sm:$0xf]
    %v4216 = vld [vmem:[%s4207 + $0x28] sm:$0xf]
    %v4217 = vld [vmem:[%s4207 + $0x2c] sm:$0xf]
    %v4218 = vld [vmem:[%s4207 + $0x30] sm:$0xf]
    %v4219 = vld [vmem:[%s4207 + $0x34] sm:$0xf]
    %v4220 = vld [vmem:[%s4207 + $0x38] sm:$0xf]
    %v4221 = vld [vmem:[%s4207 + $0x3c] sm:$0xf]
    %v4222 = vld [vmem:[%s4207 + $0x48] sm:$0xf]
    %v4223 = vld [vmem:[%s4207 + $0x4c] sm:$0xf]
    %v4224 = vld [vmem:[%s4207 + $0x50] sm:$0xf]
    %v4225 = vld [vmem:[%s4207 + $0x54] sm:$0xf]
    %v4226 = vld [vmem:[%s4207 + $0x58] sm:$0xf]
    %v4227 = vld [vmem:[%s4207 + $0x5c] sm:$0xf]
    %v4228 = vld [vmem:[%s4207 + $0x60] sm:$0xf]
    %v4229 = vld [vmem:[%s4207 + $0x6c] sm:$0xf]
    %v4230 = vld [vmem:[%s4207 + $0x70] sm:$0xf]
    %v4231 = vld [vmem:[%s4207 + $0x74] sm:$0xf]
    %v4232 = vld [vmem:[%s4207 + $0x78] sm:$0xf]
    %v4233 = vld [vmem:[%s4207 + $0x7c] sm:$0xf]
    %v4234 = vld [vmem:[%s4207 + $0x80] sm:$0xf]
    %v4235 = vld [vmem:[%s4207 + $0x84] sm:$0xf]
    %v4236 = vld [vmem:[%s4207 + $0x90] sm:$0xf]
    %v4237 = vld [vmem:[%s4207 + $0x94] sm:$0xf]
    %v4238 = vld [vmem:[%s4207 + $0x98] sm:$0xf]
    %v4239 = vld [vmem:[%s4207 + $0x9c] sm:$0xf]
    %v4240 = vld [vmem:[%s4207 + $0xa0] sm:$0xf]
    %v4241 = vld [vmem:[%s4207 + $0xa4] sm:$0xf]
    %v4242 = vld [vmem:[%s4207 + $0xa8] sm:$0xf]
    %v4243 = vld [vmem:[%s4207 + $0xb4] sm:$0xf]
    %v4244 = vld [vmem:[%s4207 + $0xb8] sm:$0xf]
    %v4245 = vld [vmem:[%s4207 + $0xbc] sm:$0xf]
    %v4246 = vld [vmem:[%s4207 + $0xc0] sm:$0xf]
    %v4247 = vld [vmem:[%s4207 + $0xc4] sm:$0xf]
    %v4248 = vld [vmem:[%s4207 + $0xc8] sm:$0xf]
    %v4249 = vld [vmem:[%s4207 + $0xcc] sm:$0xf]
    %v4250 = vld [vmem:[%s1368] sm:$0xf]
    %v4251 = vld [vmem:[%s1368 + $0x4] sm:$0xf]
    %v4252 = vld [vmem:[%s1368 + $0x8] sm:$0xf]
    %v4253 = vld [vmem:[%s1368 + $0xc] sm:$0xf]
    %v4254 = vld [vmem:[%s1368 + $0x10] sm:$0xf]
    %v4255 = vld [vmem:[%s1368 + $0x14] sm:$0xf]
    %v4256 = vld [vmem:[%s1368 + $0x18] sm:$0xf]
    %v4257 = vld [vmem:[%s1368 + $0x24] sm:$0xf]
    %v4258 = vld [vmem:[%s1368 + $0x28] sm:$0xf]
    %v4259 = vld [vmem:[%s1368 + $0x2c] sm:$0xf]
    %v4260 = vld [vmem:[%s1368 + $0x30] sm:$0xf]
    %v4261 = vld [vmem:[%s1368 + $0x34] sm:$0xf]
    %v4262 = vld [vmem:[%s1368 + $0x38] sm:$0xf]
    %v4263 = vld [vmem:[%s1368 + $0x3c] sm:$0xf]
    %v4264 = vld [vmem:[%s1368 + $0x48] sm:$0xf]
    %v4265 = vld [vmem:[%s1368 + $0x4c] sm:$0xf]
    %v4266 = vld [vmem:[%s1368 + $0x50] sm:$0xf]
    %v4267 = vld [vmem:[%s1368 + $0x54] sm:$0xf]
    %v4268 = vld [vmem:[%s1368 + $0x58] sm:$0xf]
    %v4269 = vld [vmem:[%s1368 + $0x5c] sm:$0xf]
    %v4270 = vld [vmem:[%s1368 + $0x60] sm:$0xf]
    %v4271 = vld [vmem:[%s1368 + $0x6c] sm:$0xf]
    %v4272 = vld [vmem:[%s1368 + $0x70] sm:$0xf]
    %v4273 = vld [vmem:[%s1368 + $0x74] sm:$0xf]
    %v4274 = vld [vmem:[%s1368 + $0x78] sm:$0xf]
    %v4275 = vld [vmem:[%s1368 + $0x7c] sm:$0xf]
    %v4276 = vld [vmem:[%s1368 + $0x80] sm:$0xf]
    %v4277 = vld [vmem:[%s1368 + $0x84] sm:$0xf]
    %v4278 = vld [vmem:[%s1368 + $0x90] sm:$0xf]
    %v4279 = vld [vmem:[%s1368 + $0x94] sm:$0xf]
    %v4280 = vld [vmem:[%s1368 + $0x98] sm:$0xf]
    %v4281 = vld [vmem:[%s1368 + $0x9c] sm:$0xf]
    %v4282 = vld [vmem:[%s1368 + $0xa0] sm:$0xf]
    %v4283 = vld [vmem:[%s1368 + $0xa4] sm:$0xf]
    %v4284 = vld [vmem:[%s1368 + $0xa8] sm:$0xf]
    %v4285 = vld [vmem:[%s1368 + $0xb4] sm:$0xf]
    %v4286 = vld [vmem:[%s1368 + $0xb8] sm:$0xf]
    %v4287 = vld [vmem:[%s1368 + $0xbc] sm:$0xf]
    %v4288 = vld [vmem:[%s1368 + $0xc0] sm:$0xf]
    %v4289 = vld [vmem:[%s1368 + $0xc4] sm:$0xf]
    %v4290 = vld [vmem:[%s1368 + $0xc8] sm:$0xf]
    %v4291 = vld [vmem:[%s1368 + $0xcc] sm:$0xf]
    %s4292 = scalar_lea.vmem [#allocation2], 80
    %v4293 = vld [vmem:[%s4292] sm:$0xf]
    %v4294 = vld [vmem:[%s4292 + $0x4] sm:$0xf]
    %v4295 = vld [vmem:[%s4292 + $0x8] sm:$0xf]
    %v4296 = vld [vmem:[%s4292 + $0xc] sm:$0xf]
    %v4297 = vld [vmem:[%s4292 + $0x10] sm:$0xf]
    %v4298 = vld [vmem:[%s4292 + $0x14] sm:$0xf]
    %v4299 = vld [vmem:[%s4292 + $0x18] sm:$0xf]
    %v4300 = vld [vmem:[%s4292 + $0x24] sm:$0xf]
    %v4301 = vld [vmem:[%s4292 + $0x28] sm:$0xf]
    %v4302 = vld [vmem:[%s4292 + $0x2c] sm:$0xf]
    %v4303 = vld [vmem:[%s4292 + $0x30] sm:$0xf]
    %v4304 = vld [vmem:[%s4292 + $0x34] sm:$0xf]
    %v4305 = vld [vmem:[%s4292 + $0x38] sm:$0xf]
    %v4306 = vld [vmem:[%s4292 + $0x3c] sm:$0xf]
    %v4307 = vld [vmem:[%s4292 + $0x48] sm:$0xf]
    %v4308 = vld [vmem:[%s4292 + $0x4c] sm:$0xf]
    %v4309 = vld [vmem:[%s4292 + $0x50] sm:$0xf]
    %v4310 = vld [vmem:[%s4292 + $0x54] sm:$0xf]
    %v4311 = vld [vmem:[%s4292 + $0x58] sm:$0xf]
    %v4312 = vld [vmem:[%s4292 + $0x5c] sm:$0xf]
    %v4313 = vld [vmem:[%s4292 + $0x60] sm:$0xf]
    %v4314 = vld [vmem:[%s4292 + $0x6c] sm:$0xf]
    %v4315 = vld [vmem:[%s4292 + $0x70] sm:$0xf]
    %v4316 = vld [vmem:[%s4292 + $0x74] sm:$0xf]
    %v4317 = vld [vmem:[%s4292 + $0x78] sm:$0xf]
    %v4318 = vld [vmem:[%s4292 + $0x7c] sm:$0xf]
    %v4319 = vld [vmem:[%s4292 + $0x80] sm:$0xf]
    %v4320 = vld [vmem:[%s4292 + $0x84] sm:$0xf]
    %v4321 = vld [vmem:[%s4292 + $0x90] sm:$0xf]
    %v4322 = vld [vmem:[%s4292 + $0x94] sm:$0xf]
    %v4323 = vld [vmem:[%s4292 + $0x98] sm:$0xf]
    %v4324 = vld [vmem:[%s4292 + $0x9c] sm:$0xf]
    %v4325 = vld [vmem:[%s4292 + $0xa0] sm:$0xf]
    %v4326 = vld [vmem:[%s4292 + $0xa4] sm:$0xf]
    %v4327 = vld [vmem:[%s4292 + $0xa8] sm:$0xf]
    %v4328 = vld [vmem:[%s4292 + $0xb4] sm:$0xf]
    %v4329 = vld [vmem:[%s4292 + $0xb8] sm:$0xf]
    %v4330 = vld [vmem:[%s4292 + $0xbc] sm:$0xf]
    %v4331 = vld [vmem:[%s4292 + $0xc0] sm:$0xf]
    %v4332 = vld [vmem:[%s4292 + $0xc4] sm:$0xf]
    %v4333 = vld [vmem:[%s4292 + $0xc8] sm:$0xf]
    %v4334 = vld [vmem:[%s4292 + $0xcc] sm:$0xf]
    %v4377 = vunpack.c.l.b16 %v3995
    %v4378 = vunpack.c.l.b16 %v3996
    %v4379 = vunpack.c.l.b16 %v3997
    %v4380 = vunpack.c.l.b16 %v3998
    %v4381 = vunpack.c.l.b16 %v3999
    %v4382 = vunpack.c.l.b16 %v4000
    %v4383 = vunpack.c.l.b16 %v4001
    %v4384 = vunpack.c.l.b16 %v4002
    %v4385 = vunpack.c.l.b16 %v4003
    %v4386 = vunpack.c.l.b16 %v4004
    %v4387 = vunpack.c.l.b16 %v4005
    %v4388 = vunpack.c.l.b16 %v4006
    %v4389 = vunpack.c.l.b16 %v4007
    %v4390 = vunpack.c.l.b16 %v4008
    %v4391 = vunpack.c.l.b16 %v4009
    %v4392 = vunpack.c.l.b16 %v4010
    %v4393 = vunpack.c.l.b16 %v4011
    %v4394 = vunpack.c.l.b16 %v4012
    %v4395 = vunpack.c.l.b16 %v4013
    %v4396 = vunpack.c.l.b16 %v4014
    %v4397 = vunpack.c.l.b16 %v4015
    %v4398 = vunpack.c.l.b16 %v4016
    %v4399 = vunpack.c.l.b16 %v4017
    %v4400 = vunpack.c.l.b16 %v4018
    %v4401 = vunpack.c.l.b16 %v4019
    %v4402 = vunpack.c.l.b16 %v4020
    %v4403 = vunpack.c.l.b16 %v4021
    %v4404 = vunpack.c.l.b16 %v4022
    %v4405 = vunpack.c.l.b16 %v4023
    %v4406 = vunpack.c.l.b16 %v4024
    %v4407 = vunpack.c.l.b16 %v4025
    %v4408 = vunpack.c.l.b16 %v4026
    %v4409 = vunpack.c.l.b16 %v4027
    %v4410 = vunpack.c.l.b16 %v4028
    %v4411 = vunpack.c.l.b16 %v4029
    %v4412 = vunpack.c.l.b16 %v4030
    %v4413 = vunpack.c.l.b16 %v4031
    %v4414 = vunpack.c.l.b16 %v4032
    %v4415 = vunpack.c.l.b16 %v4033
    %v4416 = vunpack.c.l.b16 %v4034
    %v4417 = vunpack.c.l.b16 %v4035
    %v4418 = vunpack.c.l.b16 %v4036
    %v4419 = vpack.c.b16 %v4377, %v4377
    %v4420 = vpack.c.b16 %v4378, %v4378
    %v4421 = vpack.c.b16 %v4379, %v4379
    %v4422 = vpack.c.b16 %v4380, %v4380
    %v4423 = vpack.c.b16 %v4381, %v4381
    %v4424 = vpack.c.b16 %v4382, %v4382
    %v4425 = vpack.c.b16 %v4383, %v4383
    %v4426 = vpack.c.b16 %v4384, %v4384
    %v4427 = vpack.c.b16 %v4385, %v4385
    %v4428 = vpack.c.b16 %v4386, %v4386
    %v4429 = vpack.c.b16 %v4387, %v4387
    %v4430 = vpack.c.b16 %v4388, %v4388
    %v4431 = vpack.c.b16 %v4389, %v4389
    %v4432 = vpack.c.b16 %v4390, %v4390
    %v4433 = vpack.c.b16 %v4391, %v4391
    %v4434 = vpack.c.b16 %v4392, %v4392
    %v4435 = vpack.c.b16 %v4393, %v4393
    %v4436 = vpack.c.b16 %v4394, %v4394
    %v4437 = vpack.c.b16 %v4395, %v4395
    %v4438 = vpack.c.b16 %v4396, %v4396
    %v4439 = vpack.c.b16 %v4397, %v4397
    %v4440 = vpack.c.b16 %v4398, %v4398
    %v4441 = vpack.c.b16 %v4399, %v4399
    %v4442 = vpack.c.b16 %v4400, %v4400
    %v4443 = vpack.c.b16 %v4401, %v4401
    %v4444 = vpack.c.b16 %v4402, %v4402
    %v4445 = vpack.c.b16 %v4403, %v4403
    %v4446 = vpack.c.b16 %v4404, %v4404
    %v4447 = vpack.c.b16 %v4405, %v4405
    %v4448 = vpack.c.b16 %v4406, %v4406
    %v4449 = vpack.c.b16 %v4407, %v4407
    %v4450 = vpack.c.b16 %v4408, %v4408
    %v4451 = vpack.c.b16 %v4409, %v4409
    %v4452 = vpack.c.b16 %v4410, %v4410
    %v4453 = vpack.c.b16 %v4411, %v4411
    %v4454 = vpack.c.b16 %v4412, %v4412
    %v4455 = vpack.c.b16 %v4413, %v4413
    %v4456 = vpack.c.b16 %v4414, %v4414
    %v4457 = vpack.c.b16 %v4415, %v4415
    %v4458 = vpack.c.b16 %v4416, %v4416
    %v4459 = vpack.c.b16 %v4417, %v4417
    %v4460 = vpack.c.b16 %v4418, %v4418
    %4461 = vrot.lane.b32.xlu0 %v4419, 32
    %v4462 = vpop.permute.xlu0 %4461
    %4463 = vrot.lane.b32.xlu0 %v4420, 32
    %v4464 = vpop.permute.xlu0 %4463
    %4465 = vrot.lane.b32.xlu0 %v4421, 32
    %v4466 = vpop.permute.xlu0 %4465
    %4467 = vrot.lane.b32.xlu0 %v4422, 32
    %v4468 = vpop.permute.xlu0 %4467
    %4469 = vrot.lane.b32.xlu0 %v4423, 32
    %v4470 = vpop.permute.xlu0 %4469
    %4471 = vrot.lane.b32.xlu0 %v4424, 32
    %v4472 = vpop.permute.xlu0 %4471
    %4473 = vrot.lane.b32.xlu0 %v4425, 32
    %v4474 = vpop.permute.xlu0 %4473
    %4475 = vrot.lane.b32.xlu0 %v4426, 32
    %v4476 = vpop.permute.xlu0 %4475
    %4477 = vrot.lane.b32.xlu0 %v4427, 32
    %v4478 = vpop.permute.xlu0 %4477
    %4479 = vrot.lane.b32.xlu0 %v4428, 32
    %v4480 = vpop.permute.xlu0 %4479
    %4481 = vrot.lane.b32.xlu0 %v4429, 32
    %v4482 = vpop.permute.xlu0 %4481
    %4483 = vrot.lane.b32.xlu0 %v4430, 32
    %v4484 = vpop.permute.xlu0 %4483
    %4485 = vrot.lane.b32.xlu0 %v4431, 32
    %v4486 = vpop.permute.xlu0 %4485
    %4487 = vrot.lane.b32.xlu0 %v4432, 32
    %v4488 = vpop.permute.xlu0 %4487
    %4489 = vrot.lane.b32.xlu0 %v4433, 32
    %v4490 = vpop.permute.xlu0 %4489
    %4491 = vrot.lane.b32.xlu0 %v4434, 32
    %v4492 = vpop.permute.xlu0 %4491
    %4493 = vrot.lane.b32.xlu0 %v4435, 32
    %v4494 = vpop.permute.xlu0 %4493
    %4495 = vrot.lane.b32.xlu0 %v4436, 32
    %v4496 = vpop.permute.xlu0 %4495
    %4497 = vrot.lane.b32.xlu0 %v4437, 32
    %v4498 = vpop.permute.xlu0 %4497
    %4499 = vrot.lane.b32.xlu0 %v4438, 32
    %v4500 = vpop.permute.xlu0 %4499
    %4501 = vrot.lane.b32.xlu0 %v4439, 32
    %v4502 = vpop.permute.xlu0 %4501
    %4503 = vrot.lane.b32.xlu0 %v4440, 32
    %v4504 = vpop.permute.xlu0 %4503
    %4505 = vrot.lane.b32.xlu0 %v4441, 32
    %v4506 = vpop.permute.xlu0 %4505
    %4507 = vrot.lane.b32.xlu0 %v4442, 32
    %v4508 = vpop.permute.xlu0 %4507
    %4509 = vrot.lane.b32.xlu0 %v4443, 32
    %v4510 = vpop.permute.xlu0 %4509
    %4511 = vrot.lane.b32.xlu0 %v4444, 32
    %v4512 = vpop.permute.xlu0 %4511
    %4513 = vrot.lane.b32.xlu0 %v4445, 32
    %v4514 = vpop.permute.xlu0 %4513
    %4515 = vrot.lane.b32.xlu0 %v4446, 32
    %v4516 = vpop.permute.xlu0 %4515
    %4517 = vrot.lane.b32.xlu0 %v4447, 32
    %v4518 = vpop.permute.xlu0 %4517
    %4519 = vrot.lane.b32.xlu0 %v4448, 32
    %v4520 = vpop.permute.xlu0 %4519
    %4521 = vrot.lane.b32.xlu0 %v4449, 32
    %v4522 = vpop.permute.xlu0 %4521
    %4523 = vrot.lane.b32.xlu0 %v4450, 32
    %v4524 = vpop.permute.xlu0 %4523
    %4525 = vrot.lane.b32.xlu0 %v4451, 32
    %v4526 = vpop.permute.xlu0 %4525
    %4527 = vrot.lane.b32.xlu0 %v4452, 32
    %v4528 = vpop.permute.xlu0 %4527
    %4529 = vrot.lane.b32.xlu0 %v4453, 32
    %v4530 = vpop.permute.xlu0 %4529
    %4531 = vrot.lane.b32.xlu0 %v4454, 32
    %v4532 = vpop.permute.xlu0 %4531
    %4533 = vrot.lane.b32.xlu0 %v4455, 32
    %v4534 = vpop.permute.xlu0 %4533
    %4535 = vrot.lane.b32.xlu0 %v4456, 32
    %v4536 = vpop.permute.xlu0 %4535
    %4537 = vrot.lane.b32.xlu0 %v4457, 32
    %v4538 = vpop.permute.xlu0 %4537
    %4539 = vrot.lane.b32.xlu0 %v4458, 32
    %v4540 = vpop.permute.xlu0 %4539
    %4541 = vrot.lane.b32.xlu0 %v4459, 32
    %v4542 = vpop.permute.xlu0 %4541
    %4543 = vrot.lane.b32.xlu0 %v4460, 32
    %v4544 = vpop.permute.xlu0 %4543
    %v4587 = vunpack.c.l.b16 %v4038
    %v4588 = vunpack.c.l.b16 %v4039
    %v4589 = vunpack.c.l.b16 %v4040
    %v4590 = vunpack.c.l.b16 %v4041
    %v4591 = vunpack.c.l.b16 %v4042
    %v4592 = vunpack.c.l.b16 %v4043
    %v4593 = vunpack.c.l.b16 %v4044
    %v4594 = vunpack.c.l.b16 %v4045
    %v4595 = vunpack.c.l.b16 %v4046
    %v4596 = vunpack.c.l.b16 %v4047
    %v4597 = vunpack.c.l.b16 %v4048
    %v4598 = vunpack.c.l.b16 %v4049
    %v4599 = vunpack.c.l.b16 %v4050
    %v4600 = vunpack.c.l.b16 %v4051
    %v4601 = vunpack.c.l.b16 %v4052
    %v4602 = vunpack.c.l.b16 %v4053
    %v4603 = vunpack.c.l.b16 %v4054
    %v4604 = vunpack.c.l.b16 %v4055
    %v4605 = vunpack.c.l.b16 %v4056
    %v4606 = vunpack.c.l.b16 %v4057
    %v4607 = vunpack.c.l.b16 %v4058
    %v4608 = vunpack.c.l.b16 %v4059
    %v4609 = vunpack.c.l.b16 %v4060
    %v4610 = vunpack.c.l.b16 %v4061
    %v4611 = vunpack.c.l.b16 %v4062
    %v4612 = vunpack.c.l.b16 %v4063
    %v4613 = vunpack.c.l.b16 %v4064
    %v4614 = vunpack.c.l.b16 %v4065
    %v4615 = vunpack.c.l.b16 %v4066
    %v4616 = vunpack.c.l.b16 %v4067
    %v4617 = vunpack.c.l.b16 %v4068
    %v4618 = vunpack.c.l.b16 %v4069
    %v4619 = vunpack.c.l.b16 %v4070
    %v4620 = vunpack.c.l.b16 %v4071
    %v4621 = vunpack.c.l.b16 %v4072
    %v4622 = vunpack.c.l.b16 %v4073
    %v4623 = vunpack.c.l.b16 %v4074
    %v4624 = vunpack.c.l.b16 %v4075
    %v4625 = vunpack.c.l.b16 %v4076
    %v4626 = vunpack.c.l.b16 %v4077
    %v4627 = vunpack.c.l.b16 %v4078
    %v4628 = vunpack.c.l.b16 %v4079
    %v4629 = vpack.c.b16 %v4587, %v4587
    %v4630 = vpack.c.b16 %v4588, %v4588
    %v4631 = vpack.c.b16 %v4589, %v4589
    %v4632 = vpack.c.b16 %v4590, %v4590
    %v4633 = vpack.c.b16 %v4591, %v4591
    %v4634 = vpack.c.b16 %v4592, %v4592
    %v4635 = vpack.c.b16 %v4593, %v4593
    %v4636 = vpack.c.b16 %v4594, %v4594
    %v4637 = vpack.c.b16 %v4595, %v4595
    %v4638 = vpack.c.b16 %v4596, %v4596
    %v4639 = vpack.c.b16 %v4597, %v4597
    %v4640 = vpack.c.b16 %v4598, %v4598
    %v4641 = vpack.c.b16 %v4599, %v4599
    %v4642 = vpack.c.b16 %v4600, %v4600
    %v4643 = vpack.c.b16 %v4601, %v4601
    %v4644 = vpack.c.b16 %v4602, %v4602
    %v4645 = vpack.c.b16 %v4603, %v4603
    %v4646 = vpack.c.b16 %v4604, %v4604
    %v4647 = vpack.c.b16 %v4605, %v4605
    %v4648 = vpack.c.b16 %v4606, %v4606
    %v4649 = vpack.c.b16 %v4607, %v4607
    %v4650 = vpack.c.b16 %v4608, %v4608
    %v4651 = vpack.c.b16 %v4609, %v4609
    %v4652 = vpack.c.b16 %v4610, %v4610
    %v4653 = vpack.c.b16 %v4611, %v4611
    %v4654 = vpack.c.b16 %v4612, %v4612
    %v4655 = vpack.c.b16 %v4613, %v4613
    %v4656 = vpack.c.b16 %v4614, %v4614
    %v4657 = vpack.c.b16 %v4615, %v4615
    %v4658 = vpack.c.b16 %v4616, %v4616
    %v4659 = vpack.c.b16 %v4617, %v4617
    %v4660 = vpack.c.b16 %v4618, %v4618
    %v4661 = vpack.c.b16 %v4619, %v4619
    %v4662 = vpack.c.b16 %v4620, %v4620
    %v4663 = vpack.c.b16 %v4621, %v4621
    %v4664 = vpack.c.b16 %v4622, %v4622
    %v4665 = vpack.c.b16 %v4623, %v4623
    %v4666 = vpack.c.b16 %v4624, %v4624
    %v4667 = vpack.c.b16 %v4625, %v4625
    %v4668 = vpack.c.b16 %v4626, %v4626
    %v4669 = vpack.c.b16 %v4627, %v4627
    %v4670 = vpack.c.b16 %v4628, %v4628
    %4671 = vrot.lane.b32.xlu0 %v4629, 64
    %v4672 = vpop.permute.xlu0 %4671
    %4673 = vrot.lane.b32.xlu0 %v4630, 64
    %v4674 = vpop.permute.xlu0 %4673
    %4675 = vrot.lane.b32.xlu0 %v4631, 64
    %v4676 = vpop.permute.xlu0 %4675
    %4677 = vrot.lane.b32.xlu0 %v4632, 64
    %v4678 = vpop.permute.xlu0 %4677
    %4679 = vrot.lane.b32.xlu0 %v4633, 64
    %v4680 = vpop.permute.xlu0 %4679
    %4681 = vrot.lane.b32.xlu0 %v4634, 64
    %v4682 = vpop.permute.xlu0 %4681
    %4683 = vrot.lane.b32.xlu0 %v4635, 64
    %v4684 = vpop.permute.xlu0 %4683
    %4685 = vrot.lane.b32.xlu0 %v4636, 64
    %v4686 = vpop.permute.xlu0 %4685
    %4687 = vrot.lane.b32.xlu0 %v4637, 64
    %v4688 = vpop.permute.xlu0 %4687
    %4689 = vrot.lane.b32.xlu0 %v4638, 64
    %v4690 = vpop.permute.xlu0 %4689
    %4691 = vrot.lane.b32.xlu0 %v4639, 64
    %v4692 = vpop.permute.xlu0 %4691
    %4693 = vrot.lane.b32.xlu0 %v4640, 64
    %v4694 = vpop.permute.xlu0 %4693
    %4695 = vrot.lane.b32.xlu0 %v4641, 64
    %v4696 = vpop.permute.xlu0 %4695
    %4697 = vrot.lane.b32.xlu0 %v4642, 64
    %v4698 = vpop.permute.xlu0 %4697
    %4699 = vrot.lane.b32.xlu0 %v4643, 64
    %v4700 = vpop.permute.xlu0 %4699
    %4701 = vrot.lane.b32.xlu0 %v4644, 64
    %v4702 = vpop.permute.xlu0 %4701
    %4703 = vrot.lane.b32.xlu0 %v4645, 64
    %v4704 = vpop.permute.xlu0 %4703
    %4705 = vrot.lane.b32.xlu0 %v4646, 64
    %v4706 = vpop.permute.xlu0 %4705
    %4707 = vrot.lane.b32.xlu0 %v4647, 64
    %v4708 = vpop.permute.xlu0 %4707
    %4709 = vrot.lane.b32.xlu0 %v4648, 64
    %v4710 = vpop.permute.xlu0 %4709
    %4711 = vrot.lane.b32.xlu0 %v4649, 64
    %v4712 = vpop.permute.xlu0 %4711
    %4713 = vrot.lane.b32.xlu0 %v4650, 64
    %v4714 = vpop.permute.xlu0 %4713
    %4715 = vrot.lane.b32.xlu0 %v4651, 64
    %v4716 = vpop.permute.xlu0 %4715
    %4717 = vrot.lane.b32.xlu0 %v4652, 64
    %v4718 = vpop.permute.xlu0 %4717
    %4719 = vrot.lane.b32.xlu0 %v4653, 64
    %v4720 = vpop.permute.xlu0 %4719
    %4721 = vrot.lane.b32.xlu0 %v4654, 64
    %v4722 = vpop.permute.xlu0 %4721
    %4723 = vrot.lane.b32.xlu0 %v4655, 64
    %v4724 = vpop.permute.xlu0 %4723
    %4725 = vrot.lane.b32.xlu0 %v4656, 64
    %v4726 = vpop.permute.xlu0 %4725
    %4727 = vrot.lane.b32.xlu0 %v4657, 64
    %v4728 = vpop.permute.xlu0 %4727
    %4729 = vrot.lane.b32.xlu0 %v4658, 64
    %v4730 = vpop.permute.xlu0 %4729
    %4731 = vrot.lane.b32.xlu0 %v4659, 64
    %v4732 = vpop.permute.xlu0 %4731
    %4733 = vrot.lane.b32.xlu0 %v4660, 64
    %v4734 = vpop.permute.xlu0 %4733
    %4735 = vrot.lane.b32.xlu0 %v4661, 64
    %v4736 = vpop.permute.xlu0 %4735
    %4737 = vrot.lane.b32.xlu0 %v4662, 64
    %v4738 = vpop.permute.xlu0 %4737
    %4739 = vrot.lane.b32.xlu0 %v4663, 64
    %v4740 = vpop.permute.xlu0 %4739
    %4741 = vrot.lane.b32.xlu0 %v4664, 64
    %v4742 = vpop.permute.xlu0 %4741
    %4743 = vrot.lane.b32.xlu0 %v4665, 64
    %v4744 = vpop.permute.xlu0 %4743
    %4745 = vrot.lane.b32.xlu0 %v4666, 64
    %v4746 = vpop.permute.xlu0 %4745
    %4747 = vrot.lane.b32.xlu0 %v4667, 64
    %v4748 = vpop.permute.xlu0 %4747
    %4749 = vrot.lane.b32.xlu0 %v4668, 64
    %v4750 = vpop.permute.xlu0 %4749
    %4751 = vrot.lane.b32.xlu0 %v4669, 64
    %v4752 = vpop.permute.xlu0 %4751
    %4753 = vrot.lane.b32.xlu0 %v4670, 64
    %v4754 = vpop.permute.xlu0 %4753
    %v4797 = vunpack.c.l.b16 %v4080
    %v4798 = vunpack.c.l.b16 %v4081
    %v4799 = vunpack.c.l.b16 %v4082
    %v4800 = vunpack.c.l.b16 %v4083
    %v4801 = vunpack.c.l.b16 %v4084
    %v4802 = vunpack.c.l.b16 %v4085
    %v4803 = vunpack.c.l.b16 %v4086
    %v4804 = vunpack.c.l.b16 %v4087
    %v4805 = vunpack.c.l.b16 %v4088
    %v4806 = vunpack.c.l.b16 %v4089
    %v4807 = vunpack.c.l.b16 %v4090
    %v4808 = vunpack.c.l.b16 %v4091
    %v4809 = vunpack.c.l.b16 %v4092
    %v4810 = vunpack.c.l.b16 %v4093
    %v4811 = vunpack.c.l.b16 %v4094
    %v4812 = vunpack.c.l.b16 %v4095
    %v4813 = vunpack.c.l.b16 %v4096
    %v4814 = vunpack.c.l.b16 %v4097
    %v4815 = vunpack.c.l.b16 %v4098
    %v4816 = vunpack.c.l.b16 %v4099
    %v4817 = vunpack.c.l.b16 %v4100
    %v4818 = vunpack.c.l.b16 %v4101
    %v4819 = vunpack.c.l.b16 %v4102
    %v4820 = vunpack.c.l.b16 %v4103
    %v4821 = vunpack.c.l.b16 %v4104
    %v4822 = vunpack.c.l.b16 %v4105
    %v4823 = vunpack.c.l.b16 %v4106
    %v4824 = vunpack.c.l.b16 %v4107
    %v4825 = vunpack.c.l.b16 %v4108
    %v4826 = vunpack.c.l.b16 %v4109
    %v4827 = vunpack.c.l.b16 %v4110
    %v4828 = vunpack.c.l.b16 %v4111
    %v4829 = vunpack.c.l.b16 %v4112
    %v4830 = vunpack.c.l.b16 %v4113
    %v4831 = vunpack.c.l.b16 %v4114
    %v4832 = vunpack.c.l.b16 %v4115
    %v4833 = vunpack.c.l.b16 %v4116
    %v4834 = vunpack.c.l.b16 %v4117
    %v4835 = vunpack.c.l.b16 %v4118
    %v4836 = vunpack.c.l.b16 %v4119
    %v4837 = vunpack.c.l.b16 %v4120
    %v4838 = vunpack.c.l.b16 %v4121
    %v4839 = vpack.c.b16 %v4797, %v4797
    %v4840 = vpack.c.b16 %v4798, %v4798
    %v4841 = vpack.c.b16 %v4799, %v4799
    %v4842 = vpack.c.b16 %v4800, %v4800
    %v4843 = vpack.c.b16 %v4801, %v4801
    %v4844 = vpack.c.b16 %v4802, %v4802
    %v4845 = vpack.c.b16 %v4803, %v4803
    %v4846 = vpack.c.b16 %v4804, %v4804
    %v4847 = vpack.c.b16 %v4805, %v4805
    %v4848 = vpack.c.b16 %v4806, %v4806
    %v4849 = vpack.c.b16 %v4807, %v4807
    %v4850 = vpack.c.b16 %v4808, %v4808
    %v4851 = vpack.c.b16 %v4809, %v4809
    %v4852 = vpack.c.b16 %v4810, %v4810
    %v4853 = vpack.c.b16 %v4811, %v4811
    %v4854 = vpack.c.b16 %v4812, %v4812
    %v4855 = vpack.c.b16 %v4813, %v4813
    %v4856 = vpack.c.b16 %v4814, %v4814
    %v4857 = vpack.c.b16 %v4815, %v4815
    %v4858 = vpack.c.b16 %v4816, %v4816
    %v4859 = vpack.c.b16 %v4817, %v4817
    %v4860 = vpack.c.b16 %v4818, %v4818
    %v4861 = vpack.c.b16 %v4819, %v4819
    %v4862 = vpack.c.b16 %v4820, %v4820
    %v4863 = vpack.c.b16 %v4821, %v4821
    %v4864 = vpack.c.b16 %v4822, %v4822
    %v4865 = vpack.c.b16 %v4823, %v4823
    %v4866 = vpack.c.b16 %v4824, %v4824
    %v4867 = vpack.c.b16 %v4825, %v4825
    %v4868 = vpack.c.b16 %v4826, %v4826
    %v4869 = vpack.c.b16 %v4827, %v4827
    %v4870 = vpack.c.b16 %v4828, %v4828
    %v4871 = vpack.c.b16 %v4829, %v4829
    %v4872 = vpack.c.b16 %v4830, %v4830
    %v4873 = vpack.c.b16 %v4831, %v4831
    %v4874 = vpack.c.b16 %v4832, %v4832
    %v4875 = vpack.c.b16 %v4833, %v4833
    %v4876 = vpack.c.b16 %v4834, %v4834
    %v4877 = vpack.c.b16 %v4835, %v4835
    %v4878 = vpack.c.b16 %v4836, %v4836
    %v4879 = vpack.c.b16 %v4837, %v4837
    %v4880 = vpack.c.b16 %v4838, %v4838
    %4881 = vrot.lane.b32.xlu0 %v4839, 96
    %v4882 = vpop.permute.xlu0 %4881
    %4883 = vrot.lane.b32.xlu0 %v4840, 96
    %v4884 = vpop.permute.xlu0 %4883
    %4885 = vrot.lane.b32.xlu0 %v4841, 96
    %v4886 = vpop.permute.xlu0 %4885
    %4887 = vrot.lane.b32.xlu0 %v4842, 96
    %v4888 = vpop.permute.xlu0 %4887
    %4889 = vrot.lane.b32.xlu0 %v4843, 96
    %v4890 = vpop.permute.xlu0 %4889
    %4891 = vrot.lane.b32.xlu0 %v4844, 96
    %v4892 = vpop.permute.xlu0 %4891
    %4893 = vrot.lane.b32.xlu0 %v4845, 96
    %v4894 = vpop.permute.xlu0 %4893
    %4895 = vrot.lane.b32.xlu0 %v4846, 96
    %v4896 = vpop.permute.xlu0 %4895
    %4897 = vrot.lane.b32.xlu0 %v4847, 96
    %v4898 = vpop.permute.xlu0 %4897
    %4899 = vrot.lane.b32.xlu0 %v4848, 96
    %v4900 = vpop.permute.xlu0 %4899
    %4901 = vrot.lane.b32.xlu0 %v4849, 96
    %v4902 = vpop.permute.xlu0 %4901
    %4903 = vrot.lane.b32.xlu0 %v4850, 96
    %v4904 = vpop.permute.xlu0 %4903
    %4905 = vrot.lane.b32.xlu0 %v4851, 96
    %v4906 = vpop.permute.xlu0 %4905
    %4907 = vrot.lane.b32.xlu0 %v4852, 96
    %v4908 = vpop.permute.xlu0 %4907
    %4909 = vrot.lane.b32.xlu0 %v4853, 96
    %v4910 = vpop.permute.xlu0 %4909
    %4911 = vrot.lane.b32.xlu0 %v4854, 96
    %v4912 = vpop.permute.xlu0 %4911
    %4913 = vrot.lane.b32.xlu0 %v4855, 96
    %v4914 = vpop.permute.xlu0 %4913
    %4915 = vrot.lane.b32.xlu0 %v4856, 96
    %v4916 = vpop.permute.xlu0 %4915
    %4917 = vrot.lane.b32.xlu0 %v4857, 96
    %v4918 = vpop.permute.xlu0 %4917
    %4919 = vrot.lane.b32.xlu0 %v4858, 96
    %v4920 = vpop.permute.xlu0 %4919
    %4921 = vrot.lane.b32.xlu0 %v4859, 96
    %v4922 = vpop.permute.xlu0 %4921
    %4923 = vrot.lane.b32.xlu0 %v4860, 96
    %v4924 = vpop.permute.xlu0 %4923
    %4925 = vrot.lane.b32.xlu0 %v4861, 96
    %v4926 = vpop.permute.xlu0 %4925
    %4927 = vrot.lane.b32.xlu0 %v4862, 96
    %v4928 = vpop.permute.xlu0 %4927
    %4929 = vrot.lane.b32.xlu0 %v4863, 96
    %v4930 = vpop.permute.xlu0 %4929
    %4931 = vrot.lane.b32.xlu0 %v4864, 96
    %v4932 = vpop.permute.xlu0 %4931
    %4933 = vrot.lane.b32.xlu0 %v4865, 96
    %v4934 = vpop.permute.xlu0 %4933
    %4935 = vrot.lane.b32.xlu0 %v4866, 96
    %v4936 = vpop.permute.xlu0 %4935
    %4937 = vrot.lane.b32.xlu0 %v4867, 96
    %v4938 = vpop.permute.xlu0 %4937
    %4939 = vrot.lane.b32.xlu0 %v4868, 96
    %v4940 = vpop.permute.xlu0 %4939
    %4941 = vrot.lane.b32.xlu0 %v4869, 96
    %v4942 = vpop.permute.xlu0 %4941
    %4943 = vrot.lane.b32.xlu0 %v4870, 96
    %v4944 = vpop.permute.xlu0 %4943
    %4945 = vrot.lane.b32.xlu0 %v4871, 96
    %v4946 = vpop.permute.xlu0 %4945
    %4947 = vrot.lane.b32.xlu0 %v4872, 96
    %v4948 = vpop.permute.xlu0 %4947
    %4949 = vrot.lane.b32.xlu0 %v4873, 96
    %v4950 = vpop.permute.xlu0 %4949
    %4951 = vrot.lane.b32.xlu0 %v4874, 96
    %v4952 = vpop.permute.xlu0 %4951
    %4953 = vrot.lane.b32.xlu0 %v4875, 96
    %v4954 = vpop.permute.xlu0 %4953
    %4955 = vrot.lane.b32.xlu0 %v4876, 96
    %v4956 = vpop.permute.xlu0 %4955
    %4957 = vrot.lane.b32.xlu0 %v4877, 96
    %v4958 = vpop.permute.xlu0 %4957
    %4959 = vrot.lane.b32.xlu0 %v4878, 96
    %v4960 = vpop.permute.xlu0 %4959
    %4961 = vrot.lane.b32.xlu0 %v4879, 96
    %v4962 = vpop.permute.xlu0 %4961
    %4963 = vrot.lane.b32.xlu0 %v4880, 96
    %v4964 = vpop.permute.xlu0 %4963
    %v5007 = vunpack.c.l.b16 %v4165
    %v5008 = vunpack.c.l.b16 %v4166
    %v5009 = vunpack.c.l.b16 %v4167
    %v5010 = vunpack.c.l.b16 %v4168
    %v5011 = vunpack.c.l.b16 %v4169
    %v5012 = vunpack.c.l.b16 %v4170
    %v5013 = vunpack.c.l.b16 %v4171
    %v5014 = vunpack.c.l.b16 %v4172
    %v5015 = vunpack.c.l.b16 %v4173
    %v5016 = vunpack.c.l.b16 %v4174
    %v5017 = vunpack.c.l.b16 %v4175
    %v5018 = vunpack.c.l.b16 %v4176
    %v5019 = vunpack.c.l.b16 %v4177
    %v5020 = vunpack.c.l.b16 %v4178
    %v5021 = vunpack.c.l.b16 %v4179
    %v5022 = vunpack.c.l.b16 %v4180
    %v5023 = vunpack.c.l.b16 %v4181
    %v5024 = vunpack.c.l.b16 %v4182
    %v5025 = vunpack.c.l.b16 %v4183
    %v5026 = vunpack.c.l.b16 %v4184
    %v5027 = vunpack.c.l.b16 %v4185
    %v5028 = vunpack.c.l.b16 %v4186
    %v5029 = vunpack.c.l.b16 %v4187
    %v5030 = vunpack.c.l.b16 %v4188
    %v5031 = vunpack.c.l.b16 %v4189
    %v5032 = vunpack.c.l.b16 %v4190
    %v5033 = vunpack.c.l.b16 %v4191
    %v5034 = vunpack.c.l.b16 %v4192
    %v5035 = vunpack.c.l.b16 %v4193
    %v5036 = vunpack.c.l.b16 %v4194
    %v5037 = vunpack.c.l.b16 %v4195
    %v5038 = vunpack.c.l.b16 %v4196
    %v5039 = vunpack.c.l.b16 %v4197
    %v5040 = vunpack.c.l.b16 %v4198
    %v5041 = vunpack.c.l.b16 %v4199
    %v5042 = vunpack.c.l.b16 %v4200
    %v5043 = vunpack.c.l.b16 %v4201
    %v5044 = vunpack.c.l.b16 %v4202
    %v5045 = vunpack.c.l.b16 %v4203
    %v5046 = vunpack.c.l.b16 %v4204
    %v5047 = vunpack.c.l.b16 %v4205
    %v5048 = vunpack.c.l.b16 %v4206
    %v5049 = vpack.c.b16 %v5007, %v5007
    %v5050 = vpack.c.b16 %v5008, %v5008
    %v5051 = vpack.c.b16 %v5009, %v5009
    %v5052 = vpack.c.b16 %v5010, %v5010
    %v5053 = vpack.c.b16 %v5011, %v5011
    %v5054 = vpack.c.b16 %v5012, %v5012
    %v5055 = vpack.c.b16 %v5013, %v5013
    %v5056 = vpack.c.b16 %v5014, %v5014
    %v5057 = vpack.c.b16 %v5015, %v5015
    %v5058 = vpack.c.b16 %v5016, %v5016
    %v5059 = vpack.c.b16 %v5017, %v5017
    %v5060 = vpack.c.b16 %v5018, %v5018
    %v5061 = vpack.c.b16 %v5019, %v5019
    %v5062 = vpack.c.b16 %v5020, %v5020
    %v5063 = vpack.c.b16 %v5021, %v5021
    %v5064 = vpack.c.b16 %v5022, %v5022
    %v5065 = vpack.c.b16 %v5023, %v5023
    %v5066 = vpack.c.b16 %v5024, %v5024
    %v5067 = vpack.c.b16 %v5025, %v5025
    %v5068 = vpack.c.b16 %v5026, %v5026
    %v5069 = vpack.c.b16 %v5027, %v5027
    %v5070 = vpack.c.b16 %v5028, %v5028
    %v5071 = vpack.c.b16 %v5029, %v5029
    %v5072 = vpack.c.b16 %v5030, %v5030
    %v5073 = vpack.c.b16 %v5031, %v5031
    %v5074 = vpack.c.b16 %v5032, %v5032
    %v5075 = vpack.c.b16 %v5033, %v5033
    %v5076 = vpack.c.b16 %v5034, %v5034
    %v5077 = vpack.c.b16 %v5035, %v5035
    %v5078 = vpack.c.b16 %v5036, %v5036
    %v5079 = vpack.c.b16 %v5037, %v5037
    %v5080 = vpack.c.b16 %v5038, %v5038
    %v5081 = vpack.c.b16 %v5039, %v5039
    %v5082 = vpack.c.b16 %v5040, %v5040
    %v5083 = vpack.c.b16 %v5041, %v5041
    %v5084 = vpack.c.b16 %v5042, %v5042
    %v5085 = vpack.c.b16 %v5043, %v5043
    %v5086 = vpack.c.b16 %v5044, %v5044
    %v5087 = vpack.c.b16 %v5045, %v5045
    %v5088 = vpack.c.b16 %v5046, %v5046
    %v5089 = vpack.c.b16 %v5047, %v5047
    %v5090 = vpack.c.b16 %v5048, %v5048
    %5091 = vrot.lane.b32.xlu0 %v5049, 32
    %v5092 = vpop.permute.xlu0 %5091
    %5093 = vrot.lane.b32.xlu0 %v5050, 32
    %v5094 = vpop.permute.xlu0 %5093
    %5095 = vrot.lane.b32.xlu0 %v5051, 32
    %v5096 = vpop.permute.xlu0 %5095
    %5097 = vrot.lane.b32.xlu0 %v5052, 32
    %v5098 = vpop.permute.xlu0 %5097
    %5099 = vrot.lane.b32.xlu0 %v5053, 32
    %v5100 = vpop.permute.xlu0 %5099
    %5101 = vrot.lane.b32.xlu0 %v5054, 32
    %v5102 = vpop.permute.xlu0 %5101
    %5103 = vrot.lane.b32.xlu0 %v5055, 32
    %v5104 = vpop.permute.xlu0 %5103
    %5105 = vrot.lane.b32.xlu0 %v5056, 32
    %v5106 = vpop.permute.xlu0 %5105
    %5107 = vrot.lane.b32.xlu0 %v5057, 32
    %v5108 = vpop.permute.xlu0 %5107
    %5109 = vrot.lane.b32.xlu0 %v5058, 32
    %v5110 = vpop.permute.xlu0 %5109
    %5111 = vrot.lane.b32.xlu0 %v5059, 32
    %v5112 = vpop.permute.xlu0 %5111
    %5113 = vrot.lane.b32.xlu0 %v5060, 32
    %v5114 = vpop.permute.xlu0 %5113
    %5115 = vrot.lane.b32.xlu0 %v5061, 32
    %v5116 = vpop.permute.xlu0 %5115
    %5117 = vrot.lane.b32.xlu0 %v5062, 32
    %v5118 = vpop.permute.xlu0 %5117
    %5119 = vrot.lane.b32.xlu0 %v5063, 32
    %v5120 = vpop.permute.xlu0 %5119
    %5121 = vrot.lane.b32.xlu0 %v5064, 32
    %v5122 = vpop.permute.xlu0 %5121
    %5123 = vrot.lane.b32.xlu0 %v5065, 32
    %v5124 = vpop.permute.xlu0 %5123
    %5125 = vrot.lane.b32.xlu0 %v5066, 32
    %v5126 = vpop.permute.xlu0 %5125
    %5127 = vrot.lane.b32.xlu0 %v5067, 32
    %v5128 = vpop.permute.xlu0 %5127
    %5129 = vrot.lane.b32.xlu0 %v5068, 32
    %v5130 = vpop.permute.xlu0 %5129
    %5131 = vrot.lane.b32.xlu0 %v5069, 32
    %v5132 = vpop.permute.xlu0 %5131
    %5133 = vrot.lane.b32.xlu0 %v5070, 32
    %v5134 = vpop.permute.xlu0 %5133
    %5135 = vrot.lane.b32.xlu0 %v5071, 32
    %v5136 = vpop.permute.xlu0 %5135
    %5137 = vrot.lane.b32.xlu0 %v5072, 32
    %v5138 = vpop.permute.xlu0 %5137
    %5139 = vrot.lane.b32.xlu0 %v5073, 32
    %v5140 = vpop.permute.xlu0 %5139
    %5141 = vrot.lane.b32.xlu0 %v5074, 32
    %v5142 = vpop.permute.xlu0 %5141
    %5143 = vrot.lane.b32.xlu0 %v5075, 32
    %v5144 = vpop.permute.xlu0 %5143
    %5145 = vrot.lane.b32.xlu0 %v5076, 32
    %v5146 = vpop.permute.xlu0 %5145
    %5147 = vrot.lane.b32.xlu0 %v5077, 32
    %v5148 = vpop.permute.xlu0 %5147
    %5149 = vrot.lane.b32.xlu0 %v5078, 32
    %v5150 = vpop.permute.xlu0 %5149
    %5151 = vrot.lane.b32.xlu0 %v5079, 32
    %v5152 = vpop.permute.xlu0 %5151
    %5153 = vrot.lane.b32.xlu0 %v5080, 32
    %v5154 = vpop.permute.xlu0 %5153
    %5155 = vrot.lane.b32.xlu0 %v5081, 32
    %v5156 = vpop.permute.xlu0 %5155
    %5157 = vrot.lane.b32.xlu0 %v5082, 32
    %v5158 = vpop.permute.xlu0 %5157
    %5159 = vrot.lane.b32.xlu0 %v5083, 32
    %v5160 = vpop.permute.xlu0 %5159
    %5161 = vrot.lane.b32.xlu0 %v5084, 32
    %v5162 = vpop.permute.xlu0 %5161
    %5163 = vrot.lane.b32.xlu0 %v5085, 32
    %v5164 = vpop.permute.xlu0 %5163
    %5165 = vrot.lane.b32.xlu0 %v5086, 32
    %v5166 = vpop.permute.xlu0 %5165
    %5167 = vrot.lane.b32.xlu0 %v5087, 32
    %v5168 = vpop.permute.xlu0 %5167
    %5169 = vrot.lane.b32.xlu0 %v5088, 32
    %v5170 = vpop.permute.xlu0 %5169
    %5171 = vrot.lane.b32.xlu0 %v5089, 32
    %v5172 = vpop.permute.xlu0 %5171
    %5173 = vrot.lane.b32.xlu0 %v5090, 32
    %v5174 = vpop.permute.xlu0 %5173
    %v5217 = vunpack.c.l.b16 %v4208
    %v5218 = vunpack.c.l.b16 %v4209
    %v5219 = vunpack.c.l.b16 %v4210
    %v5220 = vunpack.c.l.b16 %v4211
    %v5221 = vunpack.c.l.b16 %v4212
    %v5222 = vunpack.c.l.b16 %v4213
    %v5223 = vunpack.c.l.b16 %v4214
    %v5224 = vunpack.c.l.b16 %v4215
    %v5225 = vunpack.c.l.b16 %v4216
    %v5226 = vunpack.c.l.b16 %v4217
    %v5227 = vunpack.c.l.b16 %v4218
    %v5228 = vunpack.c.l.b16 %v4219
    %v5229 = vunpack.c.l.b16 %v4220
    %v5230 = vunpack.c.l.b16 %v4221
    %v5231 = vunpack.c.l.b16 %v4222
    %v5232 = vunpack.c.l.b16 %v4223
    %v5233 = vunpack.c.l.b16 %v4224
    %v5234 = vunpack.c.l.b16 %v4225
    %v5235 = vunpack.c.l.b16 %v4226
    %v5236 = vunpack.c.l.b16 %v4227
    %v5237 = vunpack.c.l.b16 %v4228
    %v5238 = vunpack.c.l.b16 %v4229
    %v5239 = vunpack.c.l.b16 %v4230
    %v5240 = vunpack.c.l.b16 %v4231
    %v5241 = vunpack.c.l.b16 %v4232
    %v5242 = vunpack.c.l.b16 %v4233
    %v5243 = vunpack.c.l.b16 %v4234
    %v5244 = vunpack.c.l.b16 %v4235
    %v5245 = vunpack.c.l.b16 %v4236
    %v5246 = vunpack.c.l.b16 %v4237
    %v5247 = vunpack.c.l.b16 %v4238
    %v5248 = vunpack.c.l.b16 %v4239
    %v5249 = vunpack.c.l.b16 %v4240
    %v5250 = vunpack.c.l.b16 %v4241
    %v5251 = vunpack.c.l.b16 %v4242
    %v5252 = vunpack.c.l.b16 %v4243
    %v5253 = vunpack.c.l.b16 %v4244
    %v5254 = vunpack.c.l.b16 %v4245
    %v5255 = vunpack.c.l.b16 %v4246
    %v5256 = vunpack.c.l.b16 %v4247
    %v5257 = vunpack.c.l.b16 %v4248
    %v5258 = vunpack.c.l.b16 %v4249
    %v5259 = vpack.c.b16 %v5217, %v5217
    %v5260 = vpack.c.b16 %v5218, %v5218
    %v5261 = vpack.c.b16 %v5219, %v5219
    %v5262 = vpack.c.b16 %v5220, %v5220
    %v5263 = vpack.c.b16 %v5221, %v5221
    %v5264 = vpack.c.b16 %v5222, %v5222
    %v5265 = vpack.c.b16 %v5223, %v5223
    %v5266 = vpack.c.b16 %v5224, %v5224
    %v5267 = vpack.c.b16 %v5225, %v5225
    %v5268 = vpack.c.b16 %v5226, %v5226
    %v5269 = vpack.c.b16 %v5227, %v5227
    %v5270 = vpack.c.b16 %v5228, %v5228
    %v5271 = vpack.c.b16 %v5229, %v5229
    %v5272 = vpack.c.b16 %v5230, %v5230
    %v5273 = vpack.c.b16 %v5231, %v5231
    %v5274 = vpack.c.b16 %v5232, %v5232
    %v5275 = vpack.c.b16 %v5233, %v5233
    %v5276 = vpack.c.b16 %v5234, %v5234
    %v5277 = vpack.c.b16 %v5235, %v5235
    %v5278 = vpack.c.b16 %v5236, %v5236
    %v5279 = vpack.c.b16 %v5237, %v5237
    %v5280 = vpack.c.b16 %v5238, %v5238
    %v5281 = vpack.c.b16 %v5239, %v5239
    %v5282 = vpack.c.b16 %v5240, %v5240
    %v5283 = vpack.c.b16 %v5241, %v5241
    %v5284 = vpack.c.b16 %v5242, %v5242
    %v5285 = vpack.c.b16 %v5243, %v5243
    %v5286 = vpack.c.b16 %v5244, %v5244
    %v5287 = vpack.c.b16 %v5245, %v5245
    %v5288 = vpack.c.b16 %v5246, %v5246
    %v5289 = vpack.c.b16 %v5247, %v5247
    %v5290 = vpack.c.b16 %v5248, %v5248
    %v5291 = vpack.c.b16 %v5249, %v5249
    %v5292 = vpack.c.b16 %v5250, %v5250
    %v5293 = vpack.c.b16 %v5251, %v5251
    %v5294 = vpack.c.b16 %v5252, %v5252
    %v5295 = vpack.c.b16 %v5253, %v5253
    %v5296 = vpack.c.b16 %v5254, %v5254
    %v5297 = vpack.c.b16 %v5255, %v5255
    %v5298 = vpack.c.b16 %v5256, %v5256
    %v5299 = vpack.c.b16 %v5257, %v5257
    %v5300 = vpack.c.b16 %v5258, %v5258
    %5301 = vrot.lane.b32.xlu0 %v5259, 64
    %v5302 = vpop.permute.xlu0 %5301
    %5303 = vrot.lane.b32.xlu0 %v5260, 64
    %v5304 = vpop.permute.xlu0 %5303
    %5305 = vrot.lane.b32.xlu0 %v5261, 64
    %v5306 = vpop.permute.xlu0 %5305
    %5307 = vrot.lane.b32.xlu0 %v5262, 64
    %v5308 = vpop.permute.xlu0 %5307
    %5309 = vrot.lane.b32.xlu0 %v5263, 64
    %v5310 = vpop.permute.xlu0 %5309
    %5311 = vrot.lane.b32.xlu0 %v5264, 64
    %v5312 = vpop.permute.xlu0 %5311
    %5313 = vrot.lane.b32.xlu0 %v5265, 64
    %v5314 = vpop.permute.xlu0 %5313
    %5315 = vrot.lane.b32.xlu0 %v5266, 64
    %v5316 = vpop.permute.xlu0 %5315
    %5317 = vrot.lane.b32.xlu0 %v5267, 64
    %v5318 = vpop.permute.xlu0 %5317
    %5319 = vrot.lane.b32.xlu0 %v5268, 64
    %v5320 = vpop.permute.xlu0 %5319
    %5321 = vrot.lane.b32.xlu0 %v5269, 64
    %v5322 = vpop.permute.xlu0 %5321
    %5323 = vrot.lane.b32.xlu0 %v5270, 64
    %v5324 = vpop.permute.xlu0 %5323
    %5325 = vrot.lane.b32.xlu0 %v5271, 64
    %v5326 = vpop.permute.xlu0 %5325
    %5327 = vrot.lane.b32.xlu0 %v5272, 64
    %v5328 = vpop.permute.xlu0 %5327
    %5329 = vrot.lane.b32.xlu0 %v5273, 64
    %v5330 = vpop.permute.xlu0 %5329
    %5331 = vrot.lane.b32.xlu0 %v5274, 64
    %v5332 = vpop.permute.xlu0 %5331
    %5333 = vrot.lane.b32.xlu0 %v5275, 64
    %v5334 = vpop.permute.xlu0 %5333
    %5335 = vrot.lane.b32.xlu0 %v5276, 64
    %v5336 = vpop.permute.xlu0 %5335
    %5337 = vrot.lane.b32.xlu0 %v5277, 64
    %v5338 = vpop.permute.xlu0 %5337
    %5339 = vrot.lane.b32.xlu0 %v5278, 64
    %v5340 = vpop.permute.xlu0 %5339
    %5341 = vrot.lane.b32.xlu0 %v5279, 64
    %v5342 = vpop.permute.xlu0 %5341
    %5343 = vrot.lane.b32.xlu0 %v5280, 64
    %v5344 = vpop.permute.xlu0 %5343
    %5345 = vrot.lane.b32.xlu0 %v5281, 64
    %v5346 = vpop.permute.xlu0 %5345
    %5347 = vrot.lane.b32.xlu0 %v5282, 64
    %v5348 = vpop.permute.xlu0 %5347
    %5349 = vrot.lane.b32.xlu0 %v5283, 64
    %v5350 = vpop.permute.xlu0 %5349
    %5351 = vrot.lane.b32.xlu0 %v5284, 64
    %v5352 = vpop.permute.xlu0 %5351
    %5353 = vrot.lane.b32.xlu0 %v5285, 64
    %v5354 = vpop.permute.xlu0 %5353
    %5355 = vrot.lane.b32.xlu0 %v5286, 64
    %v5356 = vpop.permute.xlu0 %5355
    %5357 = vrot.lane.b32.xlu0 %v5287, 64
    %v5358 = vpop.permute.xlu0 %5357
    %5359 = vrot.lane.b32.xlu0 %v5288, 64
    %v5360 = vpop.permute.xlu0 %5359
    %5361 = vrot.lane.b32.xlu0 %v5289, 64
    %v5362 = vpop.permute.xlu0 %5361
    %5363 = vrot.lane.b32.xlu0 %v5290, 64
    %v5364 = vpop.permute.xlu0 %5363
    %5365 = vrot.lane.b32.xlu0 %v5291, 64
    %v5366 = vpop.permute.xlu0 %5365
    %5367 = vrot.lane.b32.xlu0 %v5292, 64
    %v5368 = vpop.permute.xlu0 %5367
    %5369 = vrot.lane.b32.xlu0 %v5293, 64
    %v5370 = vpop.permute.xlu0 %5369
    %5371 = vrot.lane.b32.xlu0 %v5294, 64
    %v5372 = vpop.permute.xlu0 %5371
    %5373 = vrot.lane.b32.xlu0 %v5295, 64
    %v5374 = vpop.permute.xlu0 %5373
    %5375 = vrot.lane.b32.xlu0 %v5296, 64
    %v5376 = vpop.permute.xlu0 %5375
    %5377 = vrot.lane.b32.xlu0 %v5297, 64
    %v5378 = vpop.permute.xlu0 %5377
    %5379 = vrot.lane.b32.xlu0 %v5298, 64
    %v5380 = vpop.permute.xlu0 %5379
    %5381 = vrot.lane.b32.xlu0 %v5299, 64
    %v5382 = vpop.permute.xlu0 %5381
    %5383 = vrot.lane.b32.xlu0 %v5300, 64
    %v5384 = vpop.permute.xlu0 %5383
    %v5427 = vunpack.c.l.b16 %v4250
    %v5428 = vunpack.c.l.b16 %v4251
    %v5429 = vunpack.c.l.b16 %v4252
    %v5430 = vunpack.c.l.b16 %v4253
    %v5431 = vunpack.c.l.b16 %v4254
    %v5432 = vunpack.c.l.b16 %v4255
    %v5433 = vunpack.c.l.b16 %v4256
    %v5434 = vunpack.c.l.b16 %v4257
    %v5435 = vunpack.c.l.b16 %v4258
    %v5436 = vunpack.c.l.b16 %v4259
    %v5437 = vunpack.c.l.b16 %v4260
    %v5438 = vunpack.c.l.b16 %v4261
    %v5439 = vunpack.c.l.b16 %v4262
    %v5440 = vunpack.c.l.b16 %v4263
    %v5441 = vunpack.c.l.b16 %v4264
    %v5442 = vunpack.c.l.b16 %v4265
    %v5443 = vunpack.c.l.b16 %v4266
    %v5444 = vunpack.c.l.b16 %v4267
    %v5445 = vunpack.c.l.b16 %v4268
    %v5446 = vunpack.c.l.b16 %v4269
    %v5447 = vunpack.c.l.b16 %v4270
    %v5448 = vunpack.c.l.b16 %v4271
    %v5449 = vunpack.c.l.b16 %v4272
    %v5450 = vunpack.c.l.b16 %v4273
    %v5451 = vunpack.c.l.b16 %v4274
    %v5452 = vunpack.c.l.b16 %v4275
    %v5453 = vunpack.c.l.b16 %v4276
    %v5454 = vunpack.c.l.b16 %v4277
    %v5455 = vunpack.c.l.b16 %v4278
    %v5456 = vunpack.c.l.b16 %v4279
    %v5457 = vunpack.c.l.b16 %v4280
    %v5458 = vunpack.c.l.b16 %v4281
    %v5459 = vunpack.c.l.b16 %v4282
    %v5460 = vunpack.c.l.b16 %v4283
    %v5461 = vunpack.c.l.b16 %v4284
    %v5462 = vunpack.c.l.b16 %v4285
    %v5463 = vunpack.c.l.b16 %v4286
    %v5464 = vunpack.c.l.b16 %v4287
    %v5465 = vunpack.c.l.b16 %v4288
    %v5466 = vunpack.c.l.b16 %v4289
    %v5467 = vunpack.c.l.b16 %v4290
    %v5468 = vunpack.c.l.b16 %v4291
    %v5469 = vpack.c.b16 %v5427, %v5427
    %v5470 = vpack.c.b16 %v5428, %v5428
    %v5471 = vpack.c.b16 %v5429, %v5429
    %v5472 = vpack.c.b16 %v5430, %v5430
    %v5473 = vpack.c.b16 %v5431, %v5431
    %v5474 = vpack.c.b16 %v5432, %v5432
    %v5475 = vpack.c.b16 %v5433, %v5433
    %v5476 = vpack.c.b16 %v5434, %v5434
    %v5477 = vpack.c.b16 %v5435, %v5435
    %v5478 = vpack.c.b16 %v5436, %v5436
    %v5479 = vpack.c.b16 %v5437, %v5437
    %v5480 = vpack.c.b16 %v5438, %v5438
    %v5481 = vpack.c.b16 %v5439, %v5439
    %v5482 = vpack.c.b16 %v5440, %v5440
    %v5483 = vpack.c.b16 %v5441, %v5441
    %v5484 = vpack.c.b16 %v5442, %v5442
    %v5485 = vpack.c.b16 %v5443, %v5443
    %v5486 = vpack.c.b16 %v5444, %v5444
    %v5487 = vpack.c.b16 %v5445, %v5445
    %v5488 = vpack.c.b16 %v5446, %v5446
    %v5489 = vpack.c.b16 %v5447, %v5447
    %v5490 = vpack.c.b16 %v5448, %v5448
    %v5491 = vpack.c.b16 %v5449, %v5449
    %v5492 = vpack.c.b16 %v5450, %v5450
    %v5493 = vpack.c.b16 %v5451, %v5451
    %v5494 = vpack.c.b16 %v5452, %v5452
    %v5495 = vpack.c.b16 %v5453, %v5453
    %v5496 = vpack.c.b16 %v5454, %v5454
    %v5497 = vpack.c.b16 %v5455, %v5455
    %v5498 = vpack.c.b16 %v5456, %v5456
    %v5499 = vpack.c.b16 %v5457, %v5457
    %v5500 = vpack.c.b16 %v5458, %v5458
    %v5501 = vpack.c.b16 %v5459, %v5459
    %v5502 = vpack.c.b16 %v5460, %v5460
    %v5503 = vpack.c.b16 %v5461, %v5461
    %v5504 = vpack.c.b16 %v5462, %v5462
    %v5505 = vpack.c.b16 %v5463, %v5463
    %v5506 = vpack.c.b16 %v5464, %v5464
    %v5507 = vpack.c.b16 %v5465, %v5465
    %v5508 = vpack.c.b16 %v5466, %v5466
    %v5509 = vpack.c.b16 %v5467, %v5467
    %v5510 = vpack.c.b16 %v5468, %v5468
    %5511 = vrot.lane.b32.xlu0 %v5469, 96
    %v5512 = vpop.permute.xlu0 %5511
    %5513 = vrot.lane.b32.xlu0 %v5470, 96
    %v5514 = vpop.permute.xlu0 %5513
    %5515 = vrot.lane.b32.xlu0 %v5471, 96
    %v5516 = vpop.permute.xlu0 %5515
    %5517 = vrot.lane.b32.xlu0 %v5472, 96
    %v5518 = vpop.permute.xlu0 %5517
    %5519 = vrot.lane.b32.xlu0 %v5473, 96
    %v5520 = vpop.permute.xlu0 %5519
    %5521 = vrot.lane.b32.xlu0 %v5474, 96
    %v5522 = vpop.permute.xlu0 %5521
    %5523 = vrot.lane.b32.xlu0 %v5475, 96
    %v5524 = vpop.permute.xlu0 %5523
    %5525 = vrot.lane.b32.xlu0 %v5476, 96
    %v5526 = vpop.permute.xlu0 %5525
    %5527 = vrot.lane.b32.xlu0 %v5477, 96
    %v5528 = vpop.permute.xlu0 %5527
    %5529 = vrot.lane.b32.xlu0 %v5478, 96
    %v5530 = vpop.permute.xlu0 %5529
    %5531 = vrot.lane.b32.xlu0 %v5479, 96
    %v5532 = vpop.permute.xlu0 %5531
    %5533 = vrot.lane.b32.xlu0 %v5480, 96
    %v5534 = vpop.permute.xlu0 %5533
    %5535 = vrot.lane.b32.xlu0 %v5481, 96
    %v5536 = vpop.permute.xlu0 %5535
    %5537 = vrot.lane.b32.xlu0 %v5482, 96
    %v5538 = vpop.permute.xlu0 %5537
    %5539 = vrot.lane.b32.xlu0 %v5483, 96
    %v5540 = vpop.permute.xlu0 %5539
    %5541 = vrot.lane.b32.xlu0 %v5484, 96
    %v5542 = vpop.permute.xlu0 %5541
    %5543 = vrot.lane.b32.xlu0 %v5485, 96
    %v5544 = vpop.permute.xlu0 %5543
    %5545 = vrot.lane.b32.xlu0 %v5486, 96
    %v5546 = vpop.permute.xlu0 %5545
    %5547 = vrot.lane.b32.xlu0 %v5487, 96
    %v5548 = vpop.permute.xlu0 %5547
    %5549 = vrot.lane.b32.xlu0 %v5488, 96
    %v5550 = vpop.permute.xlu0 %5549
    %5551 = vrot.lane.b32.xlu0 %v5489, 96
    %v5552 = vpop.permute.xlu0 %5551
    %5553 = vrot.lane.b32.xlu0 %v5490, 96
    %v5554 = vpop.permute.xlu0 %5553
    %5555 = vrot.lane.b32.xlu0 %v5491, 96
    %v5556 = vpop.permute.xlu0 %5555
    %5557 = vrot.lane.b32.xlu0 %v5492, 96
    %v5558 = vpop.permute.xlu0 %5557
    %5559 = vrot.lane.b32.xlu0 %v5493, 96
    %v5560 = vpop.permute.xlu0 %5559
    %5561 = vrot.lane.b32.xlu0 %v5494, 96
    %v5562 = vpop.permute.xlu0 %5561
    %5563 = vrot.lane.b32.xlu0 %v5495, 96
    %v5564 = vpop.permute.xlu0 %5563
    %5565 = vrot.lane.b32.xlu0 %v5496, 96
    %v5566 = vpop.permute.xlu0 %5565
    %5567 = vrot.lane.b32.xlu0 %v5497, 96
    %v5568 = vpop.permute.xlu0 %5567
    %5569 = vrot.lane.b32.xlu0 %v5498, 96
    %v5570 = vpop.permute.xlu0 %5569
    %5571 = vrot.lane.b32.xlu0 %v5499, 96
    %v5572 = vpop.permute.xlu0 %5571
    %5573 = vrot.lane.b32.xlu0 %v5500, 96
    %v5574 = vpop.permute.xlu0 %5573
    %5575 = vrot.lane.b32.xlu0 %v5501, 96
    %v5576 = vpop.permute.xlu0 %5575
    %5577 = vrot.lane.b32.xlu0 %v5502, 96
    %v5578 = vpop.permute.xlu0 %5577
    %5579 = vrot.lane.b32.xlu0 %v5503, 96
    %v5580 = vpop.permute.xlu0 %5579
    %5581 = vrot.lane.b32.xlu0 %v5504, 96
    %v5582 = vpop.permute.xlu0 %5581
    %5583 = vrot.lane.b32.xlu0 %v5505, 96
    %v5584 = vpop.permute.xlu0 %5583
    %5585 = vrot.lane.b32.xlu0 %v5506, 96
    %v5586 = vpop.permute.xlu0 %5585
    %5587 = vrot.lane.b32.xlu0 %v5507, 96
    %v5588 = vpop.permute.xlu0 %5587
    %5589 = vrot.lane.b32.xlu0 %v5508, 96
    %v5590 = vpop.permute.xlu0 %5589
    %5591 = vrot.lane.b32.xlu0 %v5509, 96
    %v5592 = vpop.permute.xlu0 %5591
    %5593 = vrot.lane.b32.xlu0 %v5510, 96
    %v5594 = vpop.permute.xlu0 %5593
    %vm5595 = vcmask 261120
    %v5598 = vsel %vm5595, %v3952, %v4462
    %v5601 = vsel %vm5595, %v3953, %v4464
    %v5604 = vsel %vm5595, %v3954, %v4466
    %v5607 = vsel %vm5595, %v3955, %v4468
    %v5610 = vsel %vm5595, %v3956, %v4470
    %v5613 = vsel %vm5595, %v3957, %v4472
    %v5616 = vsel %vm5595, %v3958, %v4474
    %v5619 = vsel %vm5595, %v3959, %v4476
    %v5622 = vsel %vm5595, %v3960, %v4478
    %v5625 = vsel %vm5595, %v3961, %v4480
    %v5628 = vsel %vm5595, %v3962, %v4482
    %v5631 = vsel %vm5595, %v3963, %v4484
    %v5634 = vsel %vm5595, %v3964, %v4486
    %v5637 = vsel %vm5595, %v3965, %v4488
    %v5640 = vsel %vm5595, %v3966, %v4490
    %v5643 = vsel %vm5595, %v3967, %v4492
    %v5646 = vsel %vm5595, %v3968, %v4494
    %v5649 = vsel %vm5595, %v3969, %v4496
    %v5652 = vsel %vm5595, %v3970, %v4498
    %v5655 = vsel %vm5595, %v3971, %v4500
    %v5658 = vsel %vm5595, %v3972, %v4502
    %v5661 = vsel %vm5595, %v3973, %v4504
    %v5664 = vsel %vm5595, %v3974, %v4506
    %v5667 = vsel %vm5595, %v3975, %v4508
    %v5670 = vsel %vm5595, %v3976, %v4510
    %v5673 = vsel %vm5595, %v3977, %v4512
    %v5676 = vsel %vm5595, %v3978, %v4514
    %v5679 = vsel %vm5595, %v3979, %v4516
    %v5682 = vsel %vm5595, %v3980, %v4518
    %v5685 = vsel %vm5595, %v3981, %v4520
    %v5688 = vsel %vm5595, %v3982, %v4522
    %v5691 = vsel %vm5595, %v3983, %v4524
    %v5694 = vsel %vm5595, %v3984, %v4526
    %v5697 = vsel %vm5595, %v3985, %v4528
    %v5700 = vsel %vm5595, %v3986, %v4530
    %v5703 = vsel %vm5595, %v3987, %v4532
    %v5706 = vsel %vm5595, %v3988, %v4534
    %v5709 = vsel %vm5595, %v3989, %v4536
    %v5712 = vsel %vm5595, %v3990, %v4538
    %v5715 = vsel %vm5595, %v3991, %v4540
    %v5718 = vsel %vm5595, %v3992, %v4542
    %v5721 = vsel %vm5595, %v3993, %v4544
    %vm5722 = vcmask 523264
    %v5724 = vsel %vm5722, %v5598, %v4672
    %v5726 = vsel %vm5722, %v5601, %v4674
    %v5728 = vsel %vm5722, %v5604, %v4676
    %v5730 = vsel %vm5722, %v5607, %v4678
    %v5732 = vsel %vm5722, %v5610, %v4680
    %v5734 = vsel %vm5722, %v5613, %v4682
    %v5736 = vsel %vm5722, %v5616, %v4684
    %v5738 = vsel %vm5722, %v5619, %v4686
    %v5740 = vsel %vm5722, %v5622, %v4688
    %v5742 = vsel %vm5722, %v5625, %v4690
    %v5744 = vsel %vm5722, %v5628, %v4692
    %v5746 = vsel %vm5722, %v5631, %v4694
    %v5748 = vsel %vm5722, %v5634, %v4696
    %v5750 = vsel %vm5722, %v5637, %v4698
    %v5752 = vsel %vm5722, %v5640, %v4700
    %v5754 = vsel %vm5722, %v5643, %v4702
    %v5756 = vsel %vm5722, %v5646, %v4704
    %v5758 = vsel %vm5722, %v5649, %v4706
    %v5760 = vsel %vm5722, %v5652, %v4708
    %v5762 = vsel %vm5722, %v5655, %v4710
    %v5764 = vsel %vm5722, %v5658, %v4712
    %v5766 = vsel %vm5722, %v5661, %v4714
    %v5768 = vsel %vm5722, %v5664, %v4716
    %v5770 = vsel %vm5722, %v5667, %v4718
    %v5772 = vsel %vm5722, %v5670, %v4720
    %v5774 = vsel %vm5722, %v5673, %v4722
    %v5776 = vsel %vm5722, %v5676, %v4724
    %v5778 = vsel %vm5722, %v5679, %v4726
    %v5780 = vsel %vm5722, %v5682, %v4728
    %v5782 = vsel %vm5722, %v5685, %v4730
    %v5784 = vsel %vm5722, %v5688, %v4732
    %v5786 = vsel %vm5722, %v5691, %v4734
    %v5788 = vsel %vm5722, %v5694, %v4736
    %v5790 = vsel %vm5722, %v5697, %v4738
    %v5792 = vsel %vm5722, %v5700, %v4740
    %v5794 = vsel %vm5722, %v5703, %v4742
    %v5796 = vsel %vm5722, %v5706, %v4744
    %v5798 = vsel %vm5722, %v5709, %v4746
    %v5800 = vsel %vm5722, %v5712, %v4748
    %v5802 = vsel %vm5722, %v5715, %v4750
    %v5804 = vsel %vm5722, %v5718, %v4752
    %v5806 = vsel %vm5722, %v5721, %v4754
    %vm5807 = vcmask 785408
    %v5809 = vsel %vm5807, %v5724, %v4882
    %v5811 = vsel %vm5807, %v5726, %v4884
    %v5813 = vsel %vm5807, %v5728, %v4886
    %v5815 = vsel %vm5807, %v5730, %v4888
    %v5817 = vsel %vm5807, %v5732, %v4890
    %v5819 = vsel %vm5807, %v5734, %v4892
    %v5821 = vsel %vm5807, %v5736, %v4894
    %v5823 = vsel %vm5807, %v5738, %v4896
    %v5825 = vsel %vm5807, %v5740, %v4898
    %v5827 = vsel %vm5807, %v5742, %v4900
    %v5829 = vsel %vm5807, %v5744, %v4902
    %v5831 = vsel %vm5807, %v5746, %v4904
    %v5833 = vsel %vm5807, %v5748, %v4906
    %v5835 = vsel %vm5807, %v5750, %v4908
    %v5837 = vsel %vm5807, %v5752, %v4910
    %v5839 = vsel %vm5807, %v5754, %v4912
    %v5841 = vsel %vm5807, %v5756, %v4914
    %v5843 = vsel %vm5807, %v5758, %v4916
    %v5845 = vsel %vm5807, %v5760, %v4918
    %v5847 = vsel %vm5807, %v5762, %v4920
    %v5849 = vsel %vm5807, %v5764, %v4922
    %v5851 = vsel %vm5807, %v5766, %v4924
    %v5853 = vsel %vm5807, %v5768, %v4926
    %v5855 = vsel %vm5807, %v5770, %v4928
    %v5857 = vsel %vm5807, %v5772, %v4930
    %v5859 = vsel %vm5807, %v5774, %v4932
    %v5861 = vsel %vm5807, %v5776, %v4934
    %v5863 = vsel %vm5807, %v5778, %v4936
    %v5865 = vsel %vm5807, %v5780, %v4938
    %v5867 = vsel %vm5807, %v5782, %v4940
    %v5869 = vsel %vm5807, %v5784, %v4942
    %v5871 = vsel %vm5807, %v5786, %v4944
    %v5873 = vsel %vm5807, %v5788, %v4946
    %v5875 = vsel %vm5807, %v5790, %v4948
    %v5877 = vsel %vm5807, %v5792, %v4950
    %v5879 = vsel %vm5807, %v5794, %v4952
    %v5881 = vsel %vm5807, %v5796, %v4954
    %v5883 = vsel %vm5807, %v5798, %v4956
    %v5885 = vsel %vm5807, %v5800, %v4958
    %v5887 = vsel %vm5807, %v5802, %v4960
    %v5889 = vsel %vm5807, %v5804, %v4962
    %v5891 = vsel %vm5807, %v5806, %v4964
    %v5894 = vsel %vm5595, %v4122, %v5092
    %v5897 = vsel %vm5595, %v4123, %v5094
    %v5900 = vsel %vm5595, %v4124, %v5096
    %v5903 = vsel %vm5595, %v4125, %v5098
    %v5906 = vsel %vm5595, %v4126, %v5100
    %v5909 = vsel %vm5595, %v4127, %v5102
    %v5912 = vsel %vm5595, %v4128, %v5104
    %v5915 = vsel %vm5595, %v4129, %v5106
    %v5918 = vsel %vm5595, %v4130, %v5108
    %v5921 = vsel %vm5595, %v4131, %v5110
    %v5924 = vsel %vm5595, %v4132, %v5112
    %v5927 = vsel %vm5595, %v4133, %v5114
    %v5930 = vsel %vm5595, %v4134, %v5116
    %v5933 = vsel %vm5595, %v4135, %v5118
    %v5936 = vsel %vm5595, %v4136, %v5120
    %v5939 = vsel %vm5595, %v4137, %v5122
    %v5942 = vsel %vm5595, %v4138, %v5124
    %v5945 = vsel %vm5595, %v4139, %v5126
    %v5948 = vsel %vm5595, %v4140, %v5128
    %v5951 = vsel %vm5595, %v4141, %v5130
    %v5954 = vsel %vm5595, %v4142, %v5132
    %v5957 = vsel %vm5595, %v4143, %v5134
    %v5960 = vsel %vm5595, %v4144, %v5136
    %v5963 = vsel %vm5595, %v4145, %v5138
    %v5966 = vsel %vm5595, %v4146, %v5140
    %v5969 = vsel %vm5595, %v4147, %v5142
    %v5972 = vsel %vm5595, %v4148, %v5144
    %v5975 = vsel %vm5595, %v4149, %v5146
    %v5978 = vsel %vm5595, %v4150, %v5148
    %v5981 = vsel %vm5595, %v4151, %v5150
    %v5984 = vsel %vm5595, %v4152, %v5152
    %v5987 = vsel %vm5595, %v4153, %v5154
    %v5990 = vsel %vm5595, %v4154, %v5156
    %v5993 = vsel %vm5595, %v4155, %v5158
    %v5996 = vsel %vm5595, %v4156, %v5160
    %v5999 = vsel %vm5595, %v4157, %v5162
    %v6002 = vsel %vm5595, %v4158, %v5164
    %v6005 = vsel %vm5595, %v4159, %v5166
    %v6008 = vsel %vm5595, %v4160, %v5168
    %v6011 = vsel %vm5595, %v4161, %v5170
    %v6014 = vsel %vm5595, %v4162, %v5172
    %v6017 = vsel %vm5595, %v4163, %v5174
    %v6019 = vsel %vm5722, %v5894, %v5302
    %v6021 = vsel %vm5722, %v5897, %v5304
    %v6023 = vsel %vm5722, %v5900, %v5306
    %v6025 = vsel %vm5722, %v5903, %v5308
    %v6027 = vsel %vm5722, %v5906, %v5310
    %v6029 = vsel %vm5722, %v5909, %v5312
    %v6031 = vsel %vm5722, %v5912, %v5314
    %v6033 = vsel %vm5722, %v5915, %v5316
    %v6035 = vsel %vm5722, %v5918, %v5318
    %v6037 = vsel %vm5722, %v5921, %v5320
    %v6039 = vsel %vm5722, %v5924, %v5322
    %v6041 = vsel %vm5722, %v5927, %v5324
    %v6043 = vsel %vm5722, %v5930, %v5326
    %v6045 = vsel %vm5722, %v5933, %v5328
    %v6047 = vsel %vm5722, %v5936, %v5330
    %v6049 = vsel %vm5722, %v5939, %v5332
    %v6051 = vsel %vm5722, %v5942, %v5334
    %v6053 = vsel %vm5722, %v5945, %v5336
    %v6055 = vsel %vm5722, %v5948, %v5338
    %v6057 = vsel %vm5722, %v5951, %v5340
    %v6059 = vsel %vm5722, %v5954, %v5342
    %v6061 = vsel %vm5722, %v5957, %v5344
    %v6063 = vsel %vm5722, %v5960, %v5346
    %v6065 = vsel %vm5722, %v5963, %v5348
    %v6067 = vsel %vm5722, %v5966, %v5350
    %v6069 = vsel %vm5722, %v5969, %v5352
    %v6071 = vsel %vm5722, %v5972, %v5354
    %v6073 = vsel %vm5722, %v5975, %v5356
    %v6075 = vsel %vm5722, %v5978, %v5358
    %v6077 = vsel %vm5722, %v5981, %v5360
    %v6079 = vsel %vm5722, %v5984, %v5362
    %v6081 = vsel %vm5722, %v5987, %v5364
    %v6083 = vsel %vm5722, %v5990, %v5366
    %v6085 = vsel %vm5722, %v5993, %v5368
    %v6087 = vsel %vm5722, %v5996, %v5370
    %v6089 = vsel %vm5722, %v5999, %v5372
    %v6091 = vsel %vm5722, %v6002, %v5374
    %v6093 = vsel %vm5722, %v6005, %v5376
    %v6095 = vsel %vm5722, %v6008, %v5378
    %v6097 = vsel %vm5722, %v6011, %v5380
    %v6099 = vsel %vm5722, %v6014, %v5382
    %v6101 = vsel %vm5722, %v6017, %v5384
    %v6103 = vsel %vm5807, %v6019, %v5512
    %v6105 = vsel %vm5807, %v6021, %v5514
    %v6107 = vsel %vm5807, %v6023, %v5516
    %v6109 = vsel %vm5807, %v6025, %v5518
    %v6111 = vsel %vm5807, %v6027, %v5520
    %v6113 = vsel %vm5807, %v6029, %v5522
    %v6115 = vsel %vm5807, %v6031, %v5524
    %v6117 = vsel %vm5807, %v6033, %v5526
    %v6119 = vsel %vm5807, %v6035, %v5528
    %v6121 = vsel %vm5807, %v6037, %v5530
    %v6123 = vsel %vm5807, %v6039, %v5532
    %v6125 = vsel %vm5807, %v6041, %v5534
    %v6127 = vsel %vm5807, %v6043, %v5536
    %v6129 = vsel %vm5807, %v6045, %v5538
    %v6131 = vsel %vm5807, %v6047, %v5540
    %v6133 = vsel %vm5807, %v6049, %v5542
    %v6135 = vsel %vm5807, %v6051, %v5544
    %v6137 = vsel %vm5807, %v6053, %v5546
    %v6139 = vsel %vm5807, %v6055, %v5548
    %v6141 = vsel %vm5807, %v6057, %v5550
    %v6143 = vsel %vm5807, %v6059, %v5552
    %v6145 = vsel %vm5807, %v6061, %v5554
    %v6147 = vsel %vm5807, %v6063, %v5556
    %v6149 = vsel %vm5807, %v6065, %v5558
    %v6151 = vsel %vm5807, %v6067, %v5560
    %v6153 = vsel %vm5807, %v6069, %v5562
    %v6155 = vsel %vm5807, %v6071, %v5564
    %v6157 = vsel %vm5807, %v6073, %v5566
    %v6159 = vsel %vm5807, %v6075, %v5568
    %v6161 = vsel %vm5807, %v6077, %v5570
    %v6163 = vsel %vm5807, %v6079, %v5572
    %v6165 = vsel %vm5807, %v6081, %v5574
    %v6167 = vsel %vm5807, %v6083, %v5576
    %v6169 = vsel %vm5807, %v6085, %v5578
    %v6171 = vsel %vm5807, %v6087, %v5580
    %v6173 = vsel %vm5807, %v6089, %v5582
    %v6175 = vsel %vm5807, %v6091, %v5584
    %v6177 = vsel %vm5807, %v6093, %v5586
    %v6179 = vsel %vm5807, %v6095, %v5588
    %v6181 = vsel %vm5807, %v6097, %v5590
    %v6183 = vsel %vm5807, %v6099, %v5592
    %v6185 = vsel %vm5807, %v6101, %v5594
    %v6312 = vunpack.c.l.b16 %v5809
    %v6313 = vunpack.c.l.b16 %v6103
    %v6314 = vunpack.c.l.b16 %v4293
    %v6315 = vunpack.c.l.b16 %v5811
    %v6316 = vunpack.c.l.b16 %v6105
    %v6317 = vunpack.c.l.b16 %v4294
    %v6318 = vunpack.c.l.b16 %v5813
    %v6319 = vunpack.c.l.b16 %v6107
    %v6320 = vunpack.c.l.b16 %v4295
    %v6321 = vunpack.c.l.b16 %v5815
    %v6322 = vunpack.c.l.b16 %v6109
    %v6323 = vunpack.c.l.b16 %v4296
    %v6324 = vunpack.c.l.b16 %v5817
    %v6325 = vunpack.c.l.b16 %v6111
    %v6326 = vunpack.c.l.b16 %v4297
    %v6327 = vunpack.c.l.b16 %v5819
    %v6328 = vunpack.c.l.b16 %v6113
    %v6329 = vunpack.c.l.b16 %v4298
    %v6330 = vunpack.c.l.b16 %v5821
    %v6331 = vunpack.c.l.b16 %v6115
    %v6332 = vunpack.c.l.b16 %v4299
    %v6333 = vunpack.c.l.b16 %v5823
    %v6334 = vunpack.c.l.b16 %v6117
    %v6335 = vunpack.c.l.b16 %v4300
    %v6336 = vunpack.c.l.b16 %v5825
    %v6337 = vunpack.c.l.b16 %v6119
    %v6338 = vunpack.c.l.b16 %v4301
    %v6339 = vunpack.c.l.b16 %v5827
    %v6340 = vunpack.c.l.b16 %v6121
    %v6341 = vunpack.c.l.b16 %v4302
    %v6342 = vunpack.c.l.b16 %v5829
    %v6343 = vunpack.c.l.b16 %v6123
    %v6344 = vunpack.c.l.b16 %v4303
    %v6345 = vunpack.c.l.b16 %v5831
    %v6346 = vunpack.c.l.b16 %v6125
    %v6347 = vunpack.c.l.b16 %v4304
    %v6348 = vunpack.c.l.b16 %v5833
    %v6349 = vunpack.c.l.b16 %v6127
    %v6350 = vunpack.c.l.b16 %v4305
    %v6351 = vunpack.c.l.b16 %v5835
    %v6352 = vunpack.c.l.b16 %v6129
    %v6353 = vunpack.c.l.b16 %v4306
    %v6354 = vunpack.c.l.b16 %v5837
    %v6355 = vunpack.c.l.b16 %v6131
    %v6356 = vunpack.c.l.b16 %v4307
    %v6357 = vunpack.c.l.b16 %v5839
    %v6358 = vunpack.c.l.b16 %v6133
    %v6359 = vunpack.c.l.b16 %v4308
    %v6360 = vunpack.c.l.b16 %v5841
    %v6361 = vunpack.c.l.b16 %v6135
    %v6362 = vunpack.c.l.b16 %v4309
    %v6363 = vunpack.c.l.b16 %v5843
    %v6364 = vunpack.c.l.b16 %v6137
    %v6365 = vunpack.c.l.b16 %v4310
    %v6366 = vunpack.c.l.b16 %v5845
    %v6367 = vunpack.c.l.b16 %v6139
    %v6368 = vunpack.c.l.b16 %v4311
    %v6369 = vunpack.c.l.b16 %v5847
    %v6370 = vunpack.c.l.b16 %v6141
    %v6371 = vunpack.c.l.b16 %v4312
    %v6372 = vunpack.c.l.b16 %v5849
    %v6373 = vunpack.c.l.b16 %v6143
    %v6374 = vunpack.c.l.b16 %v4313
    %v6375 = vunpack.c.l.b16 %v5851
    %v6376 = vunpack.c.l.b16 %v6145
    %v6377 = vunpack.c.l.b16 %v4314
    %v6378 = vunpack.c.l.b16 %v5853
    %v6379 = vunpack.c.l.b16 %v6147
    %v6380 = vunpack.c.l.b16 %v4315
    %v6381 = vunpack.c.l.b16 %v5855
    %v6382 = vunpack.c.l.b16 %v6149
    %v6383 = vunpack.c.l.b16 %v4316
    %v6384 = vunpack.c.l.b16 %v5857
    %v6385 = vunpack.c.l.b16 %v6151
    %v6386 = vunpack.c.l.b16 %v4317
    %v6387 = vunpack.c.l.b16 %v5859
    %v6388 = vunpack.c.l.b16 %v6153
    %v6389 = vunpack.c.l.b16 %v4318
    %v6390 = vunpack.c.l.b16 %v5861
    %v6391 = vunpack.c.l.b16 %v6155
    %v6392 = vunpack.c.l.b16 %v4319
    %v6393 = vunpack.c.l.b16 %v5863
    %v6394 = vunpack.c.l.b16 %v6157
    %v6395 = vunpack.c.l.b16 %v4320
    %v6396 = vunpack.c.l.b16 %v5865
    %v6397 = vunpack.c.l.b16 %v6159
    %v6398 = vunpack.c.l.b16 %v4321
    %v6399 = vunpack.c.l.b16 %v5867
    %v6400 = vunpack.c.l.b16 %v6161
    %v6401 = vunpack.c.l.b16 %v4322
    %v6402 = vunpack.c.l.b16 %v5869
    %v6403 = vunpack.c.l.b16 %v6163
    %v6404 = vunpack.c.l.b16 %v4323
    %v6405 = vunpack.c.l.b16 %v5871
    %v6406 = vunpack.c.l.b16 %v6165
    %v6407 = vunpack.c.l.b16 %v4324
    %v6408 = vunpack.c.l.b16 %v5873
    %v6409 = vunpack.c.l.b16 %v6167
    %v6410 = vunpack.c.l.b16 %v4325
    %v6411 = vunpack.c.l.b16 %v5875
    %v6412 = vunpack.c.l.b16 %v6169
    %v6413 = vunpack.c.l.b16 %v4326
    %v6414 = vunpack.c.l.b16 %v5877
    %v6415 = vunpack.c.l.b16 %v6171
    %v6416 = vunpack.c.l.b16 %v4327
    %v6417 = vunpack.c.l.b16 %v5879
    %v6418 = vunpack.c.l.b16 %v6173
    %v6419 = vunpack.c.l.b16 %v4328
    %v6420 = vunpack.c.l.b16 %v5881
    %v6421 = vunpack.c.l.b16 %v6175
    %v6422 = vunpack.c.l.b16 %v4329
    %v6423 = vunpack.c.l.b16 %v5883
    %v6424 = vunpack.c.l.b16 %v6177
    %v6425 = vunpack.c.l.b16 %v4330
    %v6426 = vunpack.c.l.b16 %v5885
    %v6427 = vunpack.c.l.b16 %v6179
    %v6428 = vunpack.c.l.b16 %v4331
    %v6429 = vunpack.c.l.b16 %v5887
    %v6430 = vunpack.c.l.b16 %v6181
    %v6431 = vunpack.c.l.b16 %v4332
    %v6432 = vunpack.c.l.b16 %v5889
    %v6433 = vunpack.c.l.b16 %v6183
    %v6434 = vunpack.c.l.b16 %v4333
    %v6435 = vunpack.c.l.b16 %v5891
    %v6436 = vunpack.c.l.b16 %v6185
    %v6437 = vunpack.c.l.b16 %v4334
    %v6438 = vpack.c.b16 %v6315, %v6312
    %v6439 = vpack.c.b16 %v6316, %v6313
    %v6440 = vpack.c.b16 %v6317, %v6314
    %v6441 = vpack.c.b16 %v6321, %v6318
    %v6442 = vpack.c.b16 %v6322, %v6319
    %v6443 = vpack.c.b16 %v6323, %v6320
    %v6444 = vpack.c.b16 %v6327, %v6324
    %v6445 = vpack.c.b16 %v6328, %v6325
    %v6446 = vpack.c.b16 %v6329, %v6326
    %v6447 = vpack.c.b16 %v6333, %v6330
    %v6448 = vpack.c.b16 %v6334, %v6331
    %v6449 = vpack.c.b16 %v6335, %v6332
    %v6450 = vpack.c.b16 %v6339, %v6336
    %v6451 = vpack.c.b16 %v6340, %v6337
    %v6452 = vpack.c.b16 %v6341, %v6338
    %v6453 = vpack.c.b16 %v6345, %v6342
    %v6454 = vpack.c.b16 %v6346, %v6343
    %v6455 = vpack.c.b16 %v6347, %v6344
    %v6456 = vpack.c.b16 %v6351, %v6348
    %v6457 = vpack.c.b16 %v6352, %v6349
    %v6458 = vpack.c.b16 %v6353, %v6350
    %v6459 = vpack.c.b16 %v6357, %v6354
    %v6460 = vpack.c.b16 %v6358, %v6355
    %v6461 = vpack.c.b16 %v6359, %v6356
    %v6462 = vpack.c.b16 %v6363, %v6360
    %v6463 = vpack.c.b16 %v6364, %v6361
    %v6464 = vpack.c.b16 %v6365, %v6362
    %v6465 = vpack.c.b16 %v6369, %v6366
    %v6466 = vpack.c.b16 %v6370, %v6367
    %v6467 = vpack.c.b16 %v6371, %v6368
    %v6468 = vpack.c.b16 %v6375, %v6372
    %v6469 = vpack.c.b16 %v6376, %v6373
    %v6470 = vpack.c.b16 %v6377, %v6374
    %v6471 = vpack.c.b16 %v6381, %v6378
    %v6472 = vpack.c.b16 %v6382, %v6379
    %v6473 = vpack.c.b16 %v6383, %v6380
    %v6474 = vpack.c.b16 %v6387, %v6384
    %v6475 = vpack.c.b16 %v6388, %v6385
    %v6476 = vpack.c.b16 %v6389, %v6386
    %v6477 = vpack.c.b16 %v6393, %v6390
    %v6478 = vpack.c.b16 %v6394, %v6391
    %v6479 = vpack.c.b16 %v6395, %v6392
    %v6480 = vpack.c.b16 %v6399, %v6396
    %v6481 = vpack.c.b16 %v6400, %v6397
    %v6482 = vpack.c.b16 %v6401, %v6398
    %v6483 = vpack.c.b16 %v6405, %v6402
    %v6484 = vpack.c.b16 %v6406, %v6403
    %v6485 = vpack.c.b16 %v6407, %v6404
    %v6486 = vpack.c.b16 %v6411, %v6408
    %v6487 = vpack.c.b16 %v6412, %v6409
    %v6488 = vpack.c.b16 %v6413, %v6410
    %v6489 = vpack.c.b16 %v6417, %v6414
    %v6490 = vpack.c.b16 %v6418, %v6415
    %v6491 = vpack.c.b16 %v6419, %v6416
    %v6492 = vpack.c.b16 %v6423, %v6420
    %v6493 = vpack.c.b16 %v6424, %v6421
    %v6494 = vpack.c.b16 %v6425, %v6422
    %v6495 = vpack.c.b16 %v6429, %v6426
    %v6496 = vpack.c.b16 %v6430, %v6427
    %v6497 = vpack.c.b16 %v6431, %v6428
    %v6498 = vpack.c.b16 %v6435, %v6432
    %v6499 = vpack.c.b16 %v6436, %v6433
    %v6500 = vpack.c.b16 %v6437, %v6434
    %6564 = vst [vmem:[#allocation3] sm:$0xff] %v6438
    %6565 = vst [vmem:[#allocation3 + $0x8] sm:$0xff] %v6439
    %6566 = vst.msk [vmem:[#allocation3 + $0x10] sm:$0xff] %vm5595, %v6440
    %6567 = vst [vmem:[#allocation3 + $0x18] sm:$0xff] %v6441
    %6568 = vst [vmem:[#allocation3 + $0x20] sm:$0xff] %v6442
    %6569 = vst.msk [vmem:[#allocation3 + $0x28] sm:$0xff] %vm5595, %v6443
    %6570 = vst [vmem:[#allocation3 + $0x30] sm:$0xff] %v6444
    %6571 = vst [vmem:[#allocation3 + $0x38] sm:$0xff] %v6445
    %6572 = vst.msk [vmem:[#allocation3 + $0x40] sm:$0xff] %vm5595, %v6446
    %6573 = vst [vmem:[#allocation3 + $0x48] sm:$0xff] %v6447
    %6574 = vst [vmem:[#allocation3 + $0x50] sm:$0xff] %v6448
    %6575 = vst.msk [vmem:[#allocation3 + $0x58] sm:$0xff] %vm5595, %v6449
    %6576 = vst [vmem:[#allocation3 + $0x60] sm:$0xff] %v6450
    %6577 = vst [vmem:[#allocation3 + $0x68] sm:$0xff] %v6451
    %6578 = vst.msk [vmem:[#allocation3 + $0x70] sm:$0xff] %vm5595, %v6452
    %6579 = vst [vmem:[#allocation3 + $0x78] sm:$0xff] %v6453
    %6580 = vst [vmem:[#allocation3 + $0x80] sm:$0xff] %v6454
    %6581 = vst.msk [vmem:[#allocation3 + $0x88] sm:$0xff] %vm5595, %v6455
    %6582 = vst [vmem:[#allocation3 + $0x90] sm:$0xff] %v6456
    %6583 = vst [vmem:[#allocation3 + $0x98] sm:$0xff] %v6457
    %6584 = vst.msk [vmem:[#allocation3 + $0xa0] sm:$0xff] %vm5595, %v6458
    %6585 = vst [vmem:[#allocation3 + $0xa8] sm:$0xff] %v6459
    %6586 = vst [vmem:[#allocation3 + $0xb0] sm:$0xff] %v6460
    %6587 = vst.msk [vmem:[#allocation3 + $0xb8] sm:$0xff] %vm5595, %v6461
    %6588 = vst [vmem:[#allocation3 + $0xc0] sm:$0xff] %v6462
    %6589 = vst [vmem:[#allocation3 + $0xc8] sm:$0xff] %v6463
    %6590 = vst.msk [vmem:[#allocation3 + $0xd0] sm:$0xff] %vm5595, %v6464
    %6591 = vst [vmem:[#allocation3 + $0xd8] sm:$0xff] %v6465
    %6592 = vst [vmem:[#allocation3 + $0xe0] sm:$0xff] %v6466
    %6593 = vst.msk [vmem:[#allocation3 + $0xe8] sm:$0xff] %vm5595, %v6467
    %6594 = vst [vmem:[#allocation3 + $0xf0] sm:$0xff] %v6468
    %6595 = vst [vmem:[#allocation3 + $0xf8] sm:$0xff] %v6469
    %6596 = vst.msk [vmem:[#allocation3 + $0x100] sm:$0xff] %vm5595, %v6470
    %6597 = vst [vmem:[#allocation3 + $0x108] sm:$0xff] %v6471
    %6598 = vst [vmem:[#allocation3 + $0x110] sm:$0xff] %v6472
    %6599 = vst.msk [vmem:[#allocation3 + $0x118] sm:$0xff] %vm5595, %v6473
    %6600 = vst [vmem:[#allocation3 + $0x120] sm:$0xff] %v6474
    %6601 = vst [vmem:[#allocation3 + $0x128] sm:$0xff] %v6475
    %6602 = vst.msk [vmem:[#allocation3 + $0x130] sm:$0xff] %vm5595, %v6476
    %6603 = vst [vmem:[#allocation3 + $0x138] sm:$0xff] %v6477
    %6604 = vst [vmem:[#allocation3 + $0x140] sm:$0xff] %v6478
    %6605 = vst.msk [vmem:[#allocation3 + $0x148] sm:$0xff] %vm5595, %v6479
    %6606 = vst [vmem:[#allocation3 + $0x150] sm:$0xff] %v6480
    %6607 = vst [vmem:[#allocation3 + $0x158] sm:$0xff] %v6481
    %6608 = vst.msk [vmem:[#allocation3 + $0x160] sm:$0xff] %vm5595, %v6482
    %6609 = vst [vmem:[#allocation3 + $0x168] sm:$0xff] %v6483
    %6610 = vst [vmem:[#allocation3 + $0x170] sm:$0xff] %v6484
    %6611 = vst.msk [vmem:[#allocation3 + $0x178] sm:$0xff] %vm5595, %v6485
    %6612 = vst [vmem:[#allocation3 + $0x180] sm:$0xff] %v6486
    %6613 = vst [vmem:[#allocation3 + $0x188] sm:$0xff] %v6487
    %6614 = vst.msk [vmem:[#allocation3 + $0x190] sm:$0xff] %vm5595, %v6488
    %6615 = vst [vmem:[#allocation3 + $0x198] sm:$0xff] %v6489
    %6616 = vst [vmem:[#allocation3 + $0x1a0] sm:$0xff] %v6490
    %6617 = vst.msk [vmem:[#allocation3 + $0x1a8] sm:$0xff] %vm5595, %v6491
    %6618 = vst [vmem:[#allocation3 + $0x1b0] sm:$0xff] %v6492
    %6619 = vst [vmem:[#allocation3 + $0x1b8] sm:$0xff] %v6493
    %6620 = vst.msk [vmem:[#allocation3 + $0x1c0] sm:$0xff] %vm5595, %v6494
    %6621 = vst [vmem:[#allocation3 + $0x1c8] sm:$0xff] %v6495
    %6622 = vst [vmem:[#allocation3 + $0x1d0] sm:$0xff] %v6496
    %6623 = vst.msk [vmem:[#allocation3 + $0x1d8] sm:$0xff] %vm5595, %v6497
    %6624 = vst [vmem:[#allocation3 + $0x1e0] sm:$0xff] %v6498
    %6625 = vst [vmem:[#allocation3 + $0x1e8] sm:$0xff] %v6499
    %6626 = vst.msk [vmem:[#allocation3 + $0x1f0] sm:$0xff] %vm5595, %v6500
    %v6627 = vld [vmem:[#allocation3] sm:$0xff]
    %v6628 = vld [vmem:[#allocation3 + $0x8] sm:$0xff]
    %v6629 = vld [vmem:[#allocation3 + $0x10] sm:$0xff]
    %v6630 = vld [vmem:[#allocation3 + $0x18] sm:$0xff]
    %v6631 = vld [vmem:[#allocation3 + $0x20] sm:$0xff]
    %v6632 = vld [vmem:[#allocation3 + $0x28] sm:$0xff]
    %v6633 = vld [vmem:[#allocation3 + $0x30] sm:$0xff]
    %v6634 = vld [vmem:[#allocation3 + $0x38] sm:$0xff]
    %v6635 = vld [vmem:[#allocation3 + $0x40] sm:$0xff]
    %v6636 = vld [vmem:[#allocation3 + $0x48] sm:$0xff]
    %v6637 = vld [vmem:[#allocation3 + $0x50] sm:$0xff]
    %v6638 = vld [vmem:[#allocation3 + $0x58] sm:$0xff]
    %v6639 = vld [vmem:[#allocation3 + $0x60] sm:$0xff]
    %v6640 = vld [vmem:[#allocation3 + $0x68] sm:$0xff]
    %v6641 = vld [vmem:[#allocation3 + $0x70] sm:$0xff]
    %v6642 = vld [vmem:[#allocation3 + $0x78] sm:$0xff]
    %v6643 = vld [vmem:[#allocation3 + $0x80] sm:$0xff]
    %v6644 = vld [vmem:[#allocation3 + $0x88] sm:$0xff]
    %v6645 = vld [vmem:[#allocation3 + $0x90] sm:$0xff]
    %v6646 = vld [vmem:[#allocation3 + $0x98] sm:$0xff]
    %v6647 = vld [vmem:[#allocation3 + $0xa0] sm:$0xff]
    %v6648 = vld [vmem:[#allocation3 + $0xa8] sm:$0xff]
    %v6649 = vld [vmem:[#allocation3 + $0xb0] sm:$0xff]
    %v6650 = vld [vmem:[#allocation3 + $0xb8] sm:$0xff]
    %v6651 = vld [vmem:[#allocation3 + $0xc0] sm:$0xff]
    %v6652 = vld [vmem:[#allocation3 + $0xc8] sm:$0xff]
    %v6653 = vld [vmem:[#allocation3 + $0xd0] sm:$0xff]
    %v6654 = vld [vmem:[#allocation3 + $0xd8] sm:$0xff]
    %v6655 = vld [vmem:[#allocation3 + $0xe0] sm:$0xff]
    %v6656 = vld [vmem:[#allocation3 + $0xe8] sm:$0xff]
    %v6657 = vld [vmem:[#allocation3 + $0xf0] sm:$0xff]
    %v6658 = vld [vmem:[#allocation3 + $0xf8] sm:$0xff]
    %v6659 = vld [vmem:[#allocation3 + $0x100] sm:$0xff]
    %v6660 = vld [vmem:[#allocation3 + $0x108] sm:$0xff]
    %v6661 = vld [vmem:[#allocation3 + $0x110] sm:$0xff]
    %v6662 = vld [vmem:[#allocation3 + $0x118] sm:$0xff]
    %v6663 = vld [vmem:[#allocation3 + $0x120] sm:$0xff]
    %v6664 = vld [vmem:[#allocation3 + $0x128] sm:$0xff]
    %v6665 = vld [vmem:[#allocation3 + $0x130] sm:$0xff]
    %v6666 = vld [vmem:[#allocation3 + $0x138] sm:$0xff]
    %v6667 = vld [vmem:[#allocation3 + $0x140] sm:$0xff]
    %v6668 = vld [vmem:[#allocation3 + $0x148] sm:$0xff]
    %v6669 = vld [vmem:[#allocation3 + $0x150] sm:$0xff]
    %v6670 = vld [vmem:[#allocation3 + $0x158] sm:$0xff]
    %v6671 = vld [vmem:[#allocation3 + $0x160] sm:$0xff]
    %v6672 = vld [vmem:[#allocation3 + $0x168] sm:$0xff]
    %v6673 = vld [vmem:[#allocation3 + $0x170] sm:$0xff]
    %v6674 = vld [vmem:[#allocation3 + $0x178] sm:$0xff]
    %v6675 = vld [vmem:[#allocation3 + $0x180] sm:$0xff]
    %v6676 = vld [vmem:[#allocation3 + $0x188] sm:$0xff]
    %v6677 = vld [vmem:[#allocation3 + $0x190] sm:$0xff]
    %v6678 = vld [vmem:[#allocation3 + $0x198] sm:$0xff]
    %v6679 = vld [vmem:[#allocation3 + $0x1a0] sm:$0xff]
    %v6680 = vld [vmem:[#allocation3 + $0x1a8] sm:$0xff]
    %v6681 = vld [vmem:[#allocation3 + $0x1b0] sm:$0xff]
    %v6682 = vld [vmem:[#allocation3 + $0x1b8] sm:$0xff]
    %v6683 = vld [vmem:[#allocation3 + $0x1c0] sm:$0xff]
    %v6684 = vld [vmem:[#allocation3 + $0x1c8] sm:$0xff]
    %v6685 = vld [vmem:[#allocation3 + $0x1d0] sm:$0xff]
    %v6686 = vld [vmem:[#allocation3 + $0x1d8] sm:$0xff]
    %v6687 = vld [vmem:[#allocation3 + $0x1e0] sm:$0xff]
    %v6688 = vld [vmem:[#allocation3 + $0x1e8] sm:$0xff]
    %v6689 = vld [vmem:[#allocation3 + $0x1f0] sm:$0xff]
    %v6690 = vld [vmem:[%s3] sm:$0xf]
    %v6691 = vld [vmem:[%s3 + $0x4] sm:$0xf]
    %v6692 = vld [vmem:[%s3 + $0x8] sm:$0xf]
    %v6693 = vld [vmem:[%s3 + $0xc] sm:$0xf]
    %v6694 = vld [vmem:[%s3 + $0x10] sm:$0xf]
    %v6695 = vld [vmem:[%s3 + $0x14] sm:$0xf]
    %v6696 = vld [vmem:[%s3 + $0x18] sm:$0xf]
    %v6697 = vld [vmem:[%s3 + $0x1c] sm:$0xf]
    %v6698 = vld [vmem:[%s3 + $0x20] sm:$0xf]
    %v6699 = vld [vmem:[%s3 + $0x24] sm:$0xf]
    %v6700 = vld [vmem:[%s3 + $0x28] sm:$0xf]
    %v6701 = vld [vmem:[%s3 + $0x2c] sm:$0xf]
    %v6702 = vld [vmem:[%s3 + $0x30] sm:$0xf]
    %v6703 = vld [vmem:[%s3 + $0x34] sm:$0xf]
    %v6704 = vld [vmem:[%s3 + $0x38] sm:$0xf]
    %v6705 = vld [vmem:[%s3 + $0x3c] sm:$0xf]
    %v6706 = vld [vmem:[%s3 + $0x40] sm:$0xf]
    %v6707 = vld [vmem:[%s3 + $0x44] sm:$0xf]
    %v6708 = vld [vmem:[%s3 + $0x48] sm:$0xf]
    %v6709 = vld [vmem:[%s3 + $0x4c] sm:$0xf]
    %v6710 = vld [vmem:[%s3 + $0x50] sm:$0xf]
    %v6711 = vld [vmem:[%s3 + $0x54] sm:$0xf]
    %v6712 = vld [vmem:[%s3 + $0x58] sm:$0xf]
    %v6713 = vld [vmem:[%s3 + $0x5c] sm:$0xf]
    %v6714 = vld [vmem:[%s3 + $0x60] sm:$0xf]
    %v6715 = vld [vmem:[%s3 + $0x64] sm:$0xf]
    %v6716 = vld [vmem:[%s3 + $0x68] sm:$0xf]
    %v6717 = vld [vmem:[%s3 + $0x6c] sm:$0xf]
    %v6718 = vld [vmem:[%s3 + $0x70] sm:$0xf]
    %v6719 = vld [vmem:[%s3 + $0x74] sm:$0xf]
    %v6720 = vld [vmem:[%s3 + $0x78] sm:$0xf]
    %v6721 = vld [vmem:[%s3 + $0x7c] sm:$0xf]
    %v6722 = vld [vmem:[%s3 + $0x80] sm:$0xf]
    %v6723 = vld [vmem:[%s3 + $0x84] sm:$0xf]
    %v6724 = vld [vmem:[%s3 + $0x88] sm:$0xf]
    %v6725 = vld [vmem:[%s3 + $0x8c] sm:$0xf]
    %v6726 = vld [vmem:[%s4] sm:$0x1]
    %v6728 = vlaneseq
    %v6729 = vshrl.u32 %v6728, 7
    %v6730 = vsub.s32 0, %v6729
    %v6731 = vrot.slane %v6726, %v6730
    %v6769 = vunpack.c.l.b16 %v6690
    %v6770 = vunpack.c.l.b16 %v6691
    %v6771 = vunpack.c.l.b16 %v6692
    %v6772 = vunpack.c.l.b16 %v6693
    %v6773 = vunpack.c.l.b16 %v6694
    %v6774 = vunpack.c.l.b16 %v6695
    %v6775 = vunpack.c.l.b16 %v6696
    %v6776 = vunpack.c.l.b16 %v6697
    %v6777 = vunpack.c.l.b16 %v6698
    %v6778 = vunpack.c.l.b16 %v6699
    %v6779 = vunpack.c.l.b16 %v6700
    %v6780 = vunpack.c.l.b16 %v6701
    %v6781 = vunpack.c.l.b16 %v6702
    %v6782 = vunpack.c.l.b16 %v6703
    %v6783 = vunpack.c.l.b16 %v6704
    %v6784 = vunpack.c.l.b16 %v6705
    %v6785 = vunpack.c.l.b16 %v6706
    %v6786 = vunpack.c.l.b16 %v6707
    %v6787 = vunpack.c.l.b16 %v6708
    %v6788 = vunpack.c.l.b16 %v6709
    %v6789 = vunpack.c.l.b16 %v6710
    %v6790 = vunpack.c.l.b16 %v6711
    %v6791 = vunpack.c.l.b16 %v6712
    %v6792 = vunpack.c.l.b16 %v6713
    %v6793 = vunpack.c.l.b16 %v6714
    %v6794 = vunpack.c.l.b16 %v6715
    %v6795 = vunpack.c.l.b16 %v6716
    %v6796 = vunpack.c.l.b16 %v6717
    %v6797 = vunpack.c.l.b16 %v6718
    %v6798 = vunpack.c.l.b16 %v6719
    %v6799 = vunpack.c.l.b16 %v6720
    %v6800 = vunpack.c.l.b16 %v6721
    %v6801 = vunpack.c.l.b16 %v6722
    %v6802 = vunpack.c.l.b16 %v6723
    %v6803 = vunpack.c.l.b16 %v6724
    %v6804 = vunpack.c.l.b16 %v6725
    %v6805 = vpack.c.b16 %v6770, %v6769
    %v6806 = vpack.c.b16 %v6772, %v6771
    %v6807 = vpack.c.b16 %v6774, %v6773
    %v6808 = vpack.c.b16 %v6776, %v6775
    %v6809 = vpack.c.b16 %v6778, %v6777
    %v6810 = vpack.c.b16 %v6780, %v6779
    %v6811 = vpack.c.b16 %v6782, %v6781
    %v6812 = vpack.c.b16 %v6784, %v6783
    %v6813 = vpack.c.b16 %v6786, %v6785
    %v6814 = vpack.c.b16 %v6788, %v6787
    %v6815 = vpack.c.b16 %v6790, %v6789
    %v6816 = vpack.c.b16 %v6792, %v6791
    %v6817 = vpack.c.b16 %v6794, %v6793
    %v6818 = vpack.c.b16 %v6796, %v6795
    %v6819 = vpack.c.b16 %v6798, %v6797
    %v6820 = vpack.c.b16 %v6800, %v6799
    %v6821 = vpack.c.b16 %v6802, %v6801
    %v6822 = vpack.c.b16 %v6804, %v6803
    %v6842 = vsel %vm5595, %v6629, 0
    %v6845 = vsel %vm5595, %v6632, 0
    %v6848 = vsel %vm5595, %v6635, 0
    %v6851 = vsel %vm5595, %v6638, 0
    %v6854 = vsel %vm5595, %v6641, 0
    %v6857 = vsel %vm5595, %v6644, 0
    %v6860 = vsel %vm5595, %v6647, 0
    %v6863 = vsel %vm5595, %v6650, 0
    %v6866 = vsel %vm5595, %v6653, 0
    %v6869 = vsel %vm5595, %v6656, 0
    %v6872 = vsel %vm5595, %v6659, 0
    %v6875 = vsel %vm5595, %v6662, 0
    %v6878 = vsel %vm5595, %v6665, 0
    %v6881 = vsel %vm5595, %v6668, 0
    %v6884 = vsel %vm5595, %v6671, 0
    %v6887 = vsel %vm5595, %v6674, 0
    %v6890 = vsel %vm5595, %v6677, 0
    %v6893 = vsel %vm5595, %v6680, 0
    %v6896 = vsel %vm5595, %v6683, 0
    %v6899 = vsel %vm5595, %v6686, 0
    %v6902 = vsel %vm5595, %v6689, 0
    %6904 = vmatprep.subr.bf16.mxu0 0
    %6905 = vmatpush1.bf16.msra.mxu0 %v6805
    %6906 = vmatprep.subr.bf16.mxu0 0
    %6907 = vmatpush1.bf16.msra.mxu0 %v6806
    %6908 = vmatprep.subr.bf16.mxu0 0
    %6909 = vmatpush1.bf16.msra.mxu0 %v6807
    %6910 = vmatprep.subr.bf16.mxu0 0
    %6911 = vmatpush1.bf16.msra.mxu0 %v6808
    %6912 = vmatprep.subr.bf16.mxu0 0
    %6913 = vmatpush1.bf16.msra.mxu0 %v6809
    %6914 = vmatprep.subr.bf16.mxu0 0
    %6915 = vmatpush1.bf16.msra.mxu0 %v6810
    %6916 = vmatprep.subr.bf16.mxu0 0
    %6917 = vmatpush1.bf16.msra.mxu0 %v6811
    %6918 = vmatprep.subr.bf16.mxu0 0
    %6919 = vmatpush1.bf16.msra.mxu0 %v6812
    %6920 = vmatprep.subr.bf16.mxu0 0
    %6921 = vmatpush1.bf16.msra.mxu0 %v6813
    %6922 = vmatprep.subr.bf16.mxu0 0
    %6923 = vmatpush1.bf16.msra.mxu0 %v6814
    %6924 = vmatprep.subr.bf16.mxu0 0
    %6925 = vmatpush1.bf16.msra.mxu0 %v6815
    %6926 = vmatprep.subr.bf16.mxu0 0
    %6927 = vmatpush1.bf16.msra.mxu0 %v6816
    %6928 = vmatprep.subr.bf16.mxu0 0
    %6929 = vmatpush1.bf16.msra.mxu0 %v6817
    %6930 = vmatprep.subr.bf16.mxu0 0
    %6931 = vmatpush1.bf16.msra.mxu0 %v6818
    %6932 = vmatprep.subr.bf16.mxu0 0
    %6933 = vmatpush1.bf16.msra.mxu0 %v6819
    %6934 = vmatprep.subr.bf16.mxu0 0
    %6935 = vmatpush1.bf16.msra.mxu0 %v6820
    %6936 = vmatprep.mubr.bf16.mxu0 %v6628
    %6937 = vmatmul.mubr.bf16.gmra.mrb[0].mxu0 %v6627
    %v6938 = vpop.f32.mrb[0].mxu0
    %v6939 = vadd.f32 %v6731, %v6938
    %v6940 = vpop.f32.mrb[0].mxu0
    %v6941 = vpop.f32.mrb[0].mxu0
    %v6942 = vadd.f32 %v6731, %v6941
    %v6943 = vpop.f32.mrb[0].mxu0
    %6944 = vmatprep.mubr.bf16.mxu0 %v6631
    %6945 = vmatmul.mubr.bf16.gmra.mrb[0].mxu0 %v6630
    %v6946 = vpop.f32.mrb[0].mxu0
    %v6947 = vadd.f32 %v6731, %v6946
    %v6948 = vpop.f32.mrb[0].mxu0
    %v6949 = vpop.f32.mrb[0].mxu0
    %v6950 = vadd.f32 %v6731, %v6949
    %v6951 = vpop.f32.mrb[0].mxu0
    %6952 = vmatprep.mubr.bf16.mxu0 %v6634
    %6953 = vmatmul.mubr.bf16.gmra.mrb[0].mxu0 %v6633
    %v6954 = vpop.f32.mrb[0].mxu0
    %v6955 = vadd.f32 %v6731, %v6954
    %v6956 = vpop.f32.mrb[0].mxu0
    %v6957 = vpop.f32.mrb[0].mxu0
    %v6958 = vadd.f32 %v6731, %v6957
    %v6959 = vpop.f32.mrb[0].mxu0
    %6960 = vmatprep.mubr.bf16.mxu0 %v6637
    %6961 = vmatmul.mubr.bf16.gmra.mrb[0].mxu0 %v6636
    %v6962 = vpop.f32.mrb[0].mxu0
    %v6963 = vadd.f32 %v6731, %v6962
    %v6964 = vpop.f32.mrb[0].mxu0
    %v6965 = vpop.f32.mrb[0].mxu0
    %v6966 = vadd.f32 %v6731, %v6965
    %v6967 = vpop.f32.mrb[0].mxu0
    %6968 = vmatprep.mubr.bf16.mxu0 %v6640
    %6969 = vmatmul.mubr.bf16.gmra.mrb[0].mxu0 %v6639
    %v6970 = vpop.f32.mrb[0].mxu0
    %v6971 = vadd.f32 %v6731, %v6970
    %v6972 = vpop.f32.mrb[0].mxu0
    %v6973 = vpop.f32.mrb[0].mxu0
    %v6974 = vadd.f32 %v6731, %v6973
    %v6975 = vpop.f32.mrb[0].mxu0
    %6976 = vmatprep.mubr.bf16.mxu0 %v6643
    %6977 = vmatmul.mubr.bf16.gmra.mrb[0].mxu0 %v6642
    %v6978 = vpop.f32.mrb[0].mxu0
    %v6979 = vadd.f32 %v6731, %v6978
    %v6980 = vpop.f32.mrb[0].mxu0
    %v6981 = vpop.f32.mrb[0].mxu0
    %v6982 = vadd.f32 %v6731, %v6981
    %v6983 = vpop.f32.mrb[0].mxu0
    %6984 = vmatprep.mubr.bf16.mxu0 %v6646
    %6985 = vmatmul.mubr.bf16.gmra.mrb[0].mxu0 %v6645
    %v6986 = vpop.f32.mrb[0].mxu0
    %v6987 = vadd.f32 %v6731, %v6986
    %v6988 = vpop.f32.mrb[0].mxu0
    %v6989 = vpop.f32.mrb[0].mxu0
    %v6990 = vadd.f32 %v6731, %v6989
    %v6991 = vpop.f32.mrb[0].mxu0
    %6992 = vmatprep.mubr.bf16.mxu0 %v6649
    %6993 = vmatmul.mubr.bf16.gmra.mrb[0].mxu0 %v6648
    %v6994 = vpop.f32.mrb[0].mxu0
    %v6995 = vadd.f32 %v6731, %v6994
    %v6996 = vpop.f32.mrb[0].mxu0
    %v6997 = vpop.f32.mrb[0].mxu0
    %v6998 = vadd.f32 %v6731, %v6997
    %v6999 = vpop.f32.mrb[0].mxu0
    %7000 = vmatprep.mubr.bf16.mxu0 %v6652
    %7001 = vmatmul.mubr.bf16.gmra.mrb[0].mxu0 %v6651
    %v7002 = vpop.f32.mrb[0].mxu0
    %v7003 = vadd.f32 %v6731, %v7002
    %v7004 = vpop.f32.mrb[0].mxu0
    %v7005 = vpop.f32.mrb[0].mxu0
    %v7006 = vadd.f32 %v6731, %v7005
    %v7007 = vpop.f32.mrb[0].mxu0
    %7008 = vmatprep.mubr.bf16.mxu0 %v6655
    %7009 = vmatmul.mubr.bf16.gmra.mrb[0].mxu0 %v6654
    %v7010 = vpop.f32.mrb[0].mxu0
    %v7011 = vadd.f32 %v6731, %v7010
    %v7012 = vpop.f32.mrb[0].mxu0
    %v7013 = vpop.f32.mrb[0].mxu0
    %v7014 = vadd.f32 %v6731, %v7013
    %v7015 = vpop.f32.mrb[0].mxu0
    %7016 = vmatprep.mubr.bf16.mxu0 %v6658
    %7017 = vmatmul.mubr.bf16.gmra.mrb[0].mxu0 %v6657
    %v7018 = vpop.f32.mrb[0].mxu0
    %v7019 = vadd.f32 %v6731, %v7018
    %v7020 = vpop.f32.mrb[0].mxu0
    %v7021 = vpop.f32.mrb[0].mxu0
    %v7022 = vadd.f32 %v6731, %v7021
    %v7023 = vpop.f32.mrb[0].mxu0
    %7024 = vmatprep.mubr.bf16.mxu0 %v6661
    %7025 = vmatmul.mubr.bf16.gmra.mrb[0].mxu0 %v6660
    %v7026 = vpop.f32.mrb[0].mxu0
    %v7027 = vadd.f32 %v6731, %v7026
    %v7028 = vpop.f32.mrb[0].mxu0
    %v7029 = vpop.f32.mrb[0].mxu0
    %v7030 = vadd.f32 %v6731, %v7029
    %v7031 = vpop.f32.mrb[0].mxu0
    %7032 = vmatprep.mubr.bf16.mxu0 %v6664
    %7033 = vmatmul.mubr.bf16.gmra.mrb[0].mxu0 %v6663
    %v7034 = vpop.f32.mrb[0].mxu0
    %v7035 = vadd.f32 %v6731, %v7034
    %v7036 = vpop.f32.mrb[0].mxu0
    %v7037 = vpop.f32.mrb[0].mxu0
    %v7038 = vadd.f32 %v6731, %v7037
    %v7039 = vpop.f32.mrb[0].mxu0
    %7040 = vmatprep.mubr.bf16.mxu0 %v6667
    %7041 = vmatmul.mubr.bf16.gmra.mrb[0].mxu0 %v6666
    %v7042 = vpop.f32.mrb[0].mxu0
    %v7043 = vadd.f32 %v6731, %v7042
    %v7044 = vpop.f32.mrb[0].mxu0
    %v7045 = vpop.f32.mrb[0].mxu0
    %v7046 = vadd.f32 %v6731, %v7045
    %v7047 = vpop.f32.mrb[0].mxu0
    %7048 = vmatprep.mubr.bf16.mxu0 %v6670
    %7049 = vmatmul.mubr.bf16.gmra.mrb[0].mxu0 %v6669
    %v7050 = vpop.f32.mrb[0].mxu0
    %v7051 = vadd.f32 %v6731, %v7050
    %v7052 = vpop.f32.mrb[0].mxu0
    %v7053 = vpop.f32.mrb[0].mxu0
    %v7054 = vadd.f32 %v6731, %v7053
    %v7055 = vpop.f32.mrb[0].mxu0
    %7056 = vmatprep.mubr.bf16.mxu0 %v6673
    %7057 = vmatmul.mubr.bf16.gmra.mrb[0].mxu0 %v6672
    %v7058 = vpop.f32.mrb[0].mxu0
    %v7059 = vadd.f32 %v6731, %v7058
    %v7060 = vpop.f32.mrb[0].mxu0
    %v7061 = vpop.f32.mrb[0].mxu0
    %v7062 = vadd.f32 %v6731, %v7061
    %v7063 = vpop.f32.mrb[0].mxu0
    %7064 = vmatprep.mubr.bf16.mxu0 %v6676
    %7065 = vmatmul.mubr.bf16.gmra.mrb[0].mxu0 %v6675
    %v7066 = vpop.f32.mrb[0].mxu0
    %v7067 = vadd.f32 %v6731, %v7066
    %v7068 = vpop.f32.mrb[0].mxu0
    %v7069 = vpop.f32.mrb[0].mxu0
    %v7070 = vadd.f32 %v6731, %v7069
    %v7071 = vpop.f32.mrb[0].mxu0
    %7072 = vmatprep.mubr.bf16.mxu0 %v6679
    %7073 = vmatmul.mubr.bf16.gmra.mrb[0].mxu0 %v6678
    %v7074 = vpop.f32.mrb[0].mxu0
    %v7075 = vadd.f32 %v6731, %v7074
    %v7076 = vpop.f32.mrb[0].mxu0
    %v7077 = vpop.f32.mrb[0].mxu0
    %v7078 = vadd.f32 %v6731, %v7077
    %v7079 = vpop.f32.mrb[0].mxu0
    %7080 = vmatprep.mubr.bf16.mxu0 %v6682
    %7081 = vmatmul.mubr.bf16.gmra.mrb[0].mxu0 %v6681
    %v7082 = vpop.f32.mrb[0].mxu0
    %v7083 = vadd.f32 %v6731, %v7082
    %v7084 = vpop.f32.mrb[0].mxu0
    %v7085 = vpop.f32.mrb[0].mxu0
    %v7086 = vadd.f32 %v6731, %v7085
    %v7087 = vpop.f32.mrb[0].mxu0
    %7088 = vmatprep.mubr.bf16.mxu0 %v6685
    %7089 = vmatmul.mubr.bf16.gmra.mrb[0].mxu0 %v6684
    %v7090 = vpop.f32.mrb[0].mxu0
    %v7091 = vadd.f32 %v6731, %v7090
    %v7092 = vpop.f32.mrb[0].mxu0
    %v7093 = vpop.f32.mrb[0].mxu0
    %v7094 = vadd.f32 %v6731, %v7093
    %v7095 = vpop.f32.mrb[0].mxu0
    %7096 = vmatprep.mubr.bf16.mxu0 %v6688
    %7097 = vmatmul.mubr.bf16.gmra.mrb[0].mxu0 %v6687
    %v7098 = vpop.f32.mrb[0].mxu0
    %v7099 = vadd.f32 %v6731, %v7098
    %v7100 = vpop.f32.mrb[0].mxu0
    %v7101 = vpop.f32.mrb[0].mxu0
    %v7102 = vadd.f32 %v6731, %v7101
    %v7103 = vpop.f32.mrb[0].mxu0
    %7104 = vdwg.mxu0
    %7105 = vmatprep.subr.bf16.mxu0 0
    %7106 = vmatpush1.bf16.msra.mxu0 %v6821
    %7107 = vmatprep.subr.bf16.mxu0 0
    %7108 = vmatpush1.bf16.msra.mxu0 %v6822
    %7109 = vmatprep.subr.bf16.mxu0 0
    %7110 = vmatpush1.bf16.msra.mxu0 0
    %7111 = vmatprep.subr.bf16.mxu0 0
    %7112 = vmatpush1.bf16.msra.mxu0 0
    %7113 = vmatprep.subr.bf16.mxu0 0
    %7114 = vmatpush1.bf16.msra.mxu0 0
    %7115 = vmatprep.subr.bf16.mxu0 0
    %7116 = vmatpush1.bf16.msra.mxu0 0
    %7117 = vmatprep.subr.bf16.mxu0 0
    %7118 = vmatpush1.bf16.msra.mxu0 0
    %7119 = vmatprep.subr.bf16.mxu0 0
    %7120 = vmatpush1.bf16.msra.mxu0 0
    %7121 = vmatprep.subr.bf16.mxu0 0
    %7122 = vmatpush1.bf16.msra.mxu0 0
    %7123 = vmatprep.subr.bf16.mxu0 0
    %7124 = vmatpush1.bf16.msra.mxu0 0
    %7125 = vmatprep.subr.bf16.mxu0 0
    %7126 = vmatpush1.bf16.msra.mxu0 0
    %7127 = vmatprep.subr.bf16.mxu0 0
    %7128 = vmatpush1.bf16.msra.mxu0 0
    %7129 = vmatprep.subr.bf16.mxu0 0
    %7130 = vmatpush1.bf16.msra.mxu0 0
    %7131 = vmatprep.subr.bf16.mxu0 0
    %7132 = vmatpush1.bf16.msra.mxu0 0
    %7133 = vmatprep.subr.bf16.mxu0 0
    %7134 = vmatpush1.bf16.msra.mxu0 0
    %7135 = vmatprep.subr.bf16.mxu0 0
    %7136 = vmatpush1.bf16.msra.mxu0 0
    %7137 = vmatprep.mubr.bf16.mxu0 0
    %7138 = vmatmul.mubr.bf16.gmra.mrb[0].mxu0 %v6842
    %v7139 = vpop.f32.mrb[0].mxu0
    %v7140 = vadd.f32 %v6939, %v7139
    %v7141 = vpop.f32.mrb[0].mxu0
    %v7142 = vpop.f32.mrb[0].mxu0
    %v7143 = vadd.f32 %v6942, %v7142
    %v7144 = vpop.f32.mrb[0].mxu0
    %7145 = vmatprep.mubr.bf16.mxu0 0
    %7146 = vmatmul.mubr.bf16.gmra.mrb[0].mxu0 %v6845
    %v7147 = vpop.f32.mrb[0].mxu0
    %v7148 = vadd.f32 %v6947, %v7147
    %v7149 = vpop.f32.mrb[0].mxu0
    %v7150 = vpop.f32.mrb[0].mxu0
    %v7151 = vadd.f32 %v6950, %v7150
    %v7152 = vpop.f32.mrb[0].mxu0
    %7153 = vmatprep.mubr.bf16.mxu0 0
    %7154 = vmatmul.mubr.bf16.gmra.mrb[0].mxu0 %v6848
    %v7155 = vpop.f32.mrb[0].mxu0
    %v7156 = vadd.f32 %v6955, %v7155
    %v7157 = vpop.f32.mrb[0].mxu0
    %v7158 = vpop.f32.mrb[0].mxu0
    %v7159 = vadd.f32 %v6958, %v7158
    %v7160 = vpop.f32.mrb[0].mxu0
    %7161 = vmatprep.mubr.bf16.mxu0 0
    %7162 = vmatmul.mubr.bf16.gmra.mrb[0].mxu0 %v6851
    %v7163 = vpop.f32.mrb[0].mxu0
    %v7164 = vadd.f32 %v6963, %v7163
    %v7165 = vpop.f32.mrb[0].mxu0
    %v7166 = vpop.f32.mrb[0].mxu0
    %v7167 = vadd.f32 %v6966, %v7166
    %v7168 = vpop.f32.mrb[0].mxu0
    %7169 = vmatprep.mubr.bf16.mxu0 0
    %7170 = vmatmul.mubr.bf16.gmra.mrb[0].mxu0 %v6854
    %v7171 = vpop.f32.mrb[0].mxu0
    %v7172 = vadd.f32 %v6971, %v7171
    %v7173 = vpop.f32.mrb[0].mxu0
    %v7174 = vpop.f32.mrb[0].mxu0
    %v7175 = vadd.f32 %v6974, %v7174
    %v7176 = vpop.f32.mrb[0].mxu0
    %7177 = vmatprep.mubr.bf16.mxu0 0
    %7178 = vmatmul.mubr.bf16.gmra.mrb[0].mxu0 %v6857
    %v7179 = vpop.f32.mrb[0].mxu0
    %v7180 = vadd.f32 %v6979, %v7179
    %v7181 = vpop.f32.mrb[0].mxu0
    %v7182 = vpop.f32.mrb[0].mxu0
    %v7183 = vadd.f32 %v6982, %v7182
    %v7184 = vpop.f32.mrb[0].mxu0
    %7185 = vmatprep.mubr.bf16.mxu0 0
    %7186 = vmatmul.mubr.bf16.gmra.mrb[0].mxu0 %v6860
    %v7187 = vpop.f32.mrb[0].mxu0
    %v7188 = vadd.f32 %v6987, %v7187
    %v7189 = vpop.f32.mrb[0].mxu0
    %v7190 = vpop.f32.mrb[0].mxu0
    %v7191 = vadd.f32 %v6990, %v7190
    %v7192 = vpop.f32.mrb[0].mxu0
    %7193 = vmatprep.mubr.bf16.mxu0 0
    %7194 = vmatmul.mubr.bf16.gmra.mrb[0].mxu0 %v6863
    %v7195 = vpop.f32.mrb[0].mxu0
    %v7196 = vadd.f32 %v6995, %v7195
    %v7197 = vpop.f32.mrb[0].mxu0
    %v7198 = vpop.f32.mrb[0].mxu0
    %v7199 = vadd.f32 %v6998, %v7198
    %v7200 = vpop.f32.mrb[0].mxu0
    %7201 = vmatprep.mubr.bf16.mxu0 0
    %7202 = vmatmul.mubr.bf16.gmra.mrb[0].mxu0 %v6866
    %v7203 = vpop.f32.mrb[0].mxu0
    %v7204 = vadd.f32 %v7003, %v7203
    %v7205 = vpop.f32.mrb[0].mxu0
    %v7206 = vpop.f32.mrb[0].mxu0
    %v7207 = vadd.f32 %v7006, %v7206
    %v7208 = vpop.f32.mrb[0].mxu0
    %7209 = vmatprep.mubr.bf16.mxu0 0
    %7210 = vmatmul.mubr.bf16.gmra.mrb[0].mxu0 %v6869
    %v7211 = vpop.f32.mrb[0].mxu0
    %v7212 = vadd.f32 %v7011, %v7211
    %v7213 = vpop.f32.mrb[0].mxu0
    %v7214 = vpop.f32.mrb[0].mxu0
    %v7215 = vadd.f32 %v7014, %v7214
    %v7216 = vpop.f32.mrb[0].mxu0
    %7217 = vmatprep.mubr.bf16.mxu0 0
    %7218 = vmatmul.mubr.bf16.gmra.mrb[0].mxu0 %v6872
    %v7219 = vpop.f32.mrb[0].mxu0
    %v7220 = vadd.f32 %v7019, %v7219
    %v7221 = vpop.f32.mrb[0].mxu0
    %v7222 = vpop.f32.mrb[0].mxu0
    %v7223 = vadd.f32 %v7022, %v7222
    %v7224 = vpop.f32.mrb[0].mxu0
    %7225 = vmatprep.mubr.bf16.mxu0 0
    %7226 = vmatmul.mubr.bf16.gmra.mrb[0].mxu0 %v6875
    %v7227 = vpop.f32.mrb[0].mxu0
    %v7228 = vadd.f32 %v7027, %v7227
    %v7229 = vpop.f32.mrb[0].mxu0
    %v7230 = vpop.f32.mrb[0].mxu0
    %v7231 = vadd.f32 %v7030, %v7230
    %v7232 = vpop.f32.mrb[0].mxu0
    %7233 = vmatprep.mubr.bf16.mxu0 0
    %7234 = vmatmul.mubr.bf16.gmra.mrb[0].mxu0 %v6878
    %v7235 = vpop.f32.mrb[0].mxu0
    %v7236 = vadd.f32 %v7035, %v7235
    %v7237 = vpop.f32.mrb[0].mxu0
    %v7238 = vpop.f32.mrb[0].mxu0
    %v7239 = vadd.f32 %v7038, %v7238
    %v7240 = vpop.f32.mrb[0].mxu0
    %7241 = vmatprep.mubr.bf16.mxu0 0
    %7242 = vmatmul.mubr.bf16.gmra.mrb[0].mxu0 %v6881
    %v7243 = vpop.f32.mrb[0].mxu0
    %v7244 = vadd.f32 %v7043, %v7243
    %v7245 = vpop.f32.mrb[0].mxu0
    %v7246 = vpop.f32.mrb[0].mxu0
    %v7247 = vadd.f32 %v7046, %v7246
    %v7248 = vpop.f32.mrb[0].mxu0
    %7249 = vmatprep.mubr.bf16.mxu0 0
    %7250 = vmatmul.mubr.bf16.gmra.mrb[0].mxu0 %v6884
    %v7251 = vpop.f32.mrb[0].mxu0
    %v7252 = vadd.f32 %v7051, %v7251
    %v7253 = vpop.f32.mrb[0].mxu0
    %v7254 = vpop.f32.mrb[0].mxu0
    %v7255 = vadd.f32 %v7054, %v7254
    %v7256 = vpop.f32.mrb[0].mxu0
    %7257 = vmatprep.mubr.bf16.mxu0 0
    %7258 = vmatmul.mubr.bf16.gmra.mrb[0].mxu0 %v6887
    %v7259 = vpop.f32.mrb[0].mxu0
    %v7260 = vadd.f32 %v7059, %v7259
    %v7261 = vpop.f32.mrb[0].mxu0
    %v7262 = vpop.f32.mrb[0].mxu0
    %v7263 = vadd.f32 %v7062, %v7262
    %v7264 = vpop.f32.mrb[0].mxu0
    %7265 = vmatprep.mubr.bf16.mxu0 0
    %7266 = vmatmul.mubr.bf16.gmra.mrb[0].mxu0 %v6890
    %v7267 = vpop.f32.mrb[0].mxu0
    %v7268 = vadd.f32 %v7067, %v7267
    %v7269 = vpop.f32.mrb[0].mxu0
    %v7270 = vpop.f32.mrb[0].mxu0
    %v7271 = vadd.f32 %v7070, %v7270
    %v7272 = vpop.f32.mrb[0].mxu0
    %7273 = vmatprep.mubr.bf16.mxu0 0
    %7274 = vmatmul.mubr.bf16.gmra.mrb[0].mxu0 %v6893
    %v7275 = vpop.f32.mrb[0].mxu0
    %v7276 = vadd.f32 %v7075, %v7275
    %v7277 = vpop.f32.mrb[0].mxu0
    %v7278 = vpop.f32.mrb[0].mxu0
    %v7279 = vadd.f32 %v7078, %v7278
    %v7280 = vpop.f32.mrb[0].mxu0
    %7281 = vmatprep.mubr.bf16.mxu0 0
    %7282 = vmatmul.mubr.bf16.gmra.mrb[0].mxu0 %v6896
    %v7283 = vpop.f32.mrb[0].mxu0
    %v7284 = vadd.f32 %v7083, %v7283
    %v7285 = vpop.f32.mrb[0].mxu0
    %v7286 = vpop.f32.mrb[0].mxu0
    %v7287 = vadd.f32 %v7086, %v7286
    %v7288 = vpop.f32.mrb[0].mxu0
    %7289 = vmatprep.mubr.bf16.mxu0 0
    %7290 = vmatmul.mubr.bf16.gmra.mrb[0].mxu0 %v6899
    %v7291 = vpop.f32.mrb[0].mxu0
    %v7292 = vadd.f32 %v7091, %v7291
    %v7293 = vpop.f32.mrb[0].mxu0
    %v7294 = vpop.f32.mrb[0].mxu0
    %v7295 = vadd.f32 %v7094, %v7294
    %v7296 = vpop.f32.mrb[0].mxu0
    %7297 = vmatprep.mubr.bf16.mxu0 0
    %7298 = vmatmul.mubr.bf16.gmra.mrb[0].mxu0 %v6902
    %v7299 = vpop.f32.mrb[0].mxu0
    %v7300 = vadd.f32 %v7099, %v7299
    %v7301 = vpop.f32.mrb[0].mxu0
    %v7302 = vpop.f32.mrb[0].mxu0
    %v7303 = vadd.f32 %v7102, %v7302
    %v7304 = vpop.f32.mrb[0].mxu0
    %7305 = vdwg.mxu0
    %v7306 = vmax.f32 %v7140, 0.0
    %v7307 = vmax.f32 %v7143, 0.0
    %v7308 = vmax.f32 %v7148, 0.0
    %v7309 = vmax.f32 %v7151, 0.0
    %v7310 = vmax.f32 %v7156, 0.0
    %v7311 = vmax.f32 %v7159, 0.0
    %v7312 = vmax.f32 %v7164, 0.0
    %v7313 = vmax.f32 %v7167, 0.0
    %v7314 = vmax.f32 %v7172, 0.0
    %v7315 = vmax.f32 %v7175, 0.0
    %v7316 = vmax.f32 %v7180, 0.0
    %v7317 = vmax.f32 %v7183, 0.0
    %v7318 = vmax.f32 %v7188, 0.0
    %v7319 = vmax.f32 %v7191, 0.0
    %v7320 = vmax.f32 %v7196, 0.0
    %v7321 = vmax.f32 %v7199, 0.0
    %v7322 = vmax.f32 %v7204, 0.0
    %v7323 = vmax.f32 %v7207, 0.0
    %v7324 = vmax.f32 %v7212, 0.0
    %v7325 = vmax.f32 %v7215, 0.0
    %v7326 = vmax.f32 %v7220, 0.0
    %v7327 = vmax.f32 %v7223, 0.0
    %v7328 = vmax.f32 %v7228, 0.0
    %v7329 = vmax.f32 %v7231, 0.0
    %v7330 = vmax.f32 %v7236, 0.0
    %v7331 = vmax.f32 %v7239, 0.0
    %v7332 = vmax.f32 %v7244, 0.0
    %v7333 = vmax.f32 %v7247, 0.0
    %v7334 = vmax.f32 %v7252, 0.0
    %v7335 = vmax.f32 %v7255, 0.0
    %v7336 = vmax.f32 %v7260, 0.0
    %v7337 = vmax.f32 %v7263, 0.0
    %v7338 = vmax.f32 %v7268, 0.0
    %v7339 = vmax.f32 %v7271, 0.0
    %v7340 = vmax.f32 %v7276, 0.0
    %v7341 = vmax.f32 %v7279, 0.0
    %v7342 = vmax.f32 %v7284, 0.0
    %v7343 = vmax.f32 %v7287, 0.0
    %v7344 = vmax.f32 %v7292, 0.0
    %v7345 = vmax.f32 %v7295, 0.0
    %v7346 = vmax.f32 %v7300, 0.0
    %v7347 = vmax.f32 %v7303, 0.0
    %v7348 = vpack.c.bf16 %v7307, %v7306
    %v7349 = vpack.c.bf16 %v7309, %v7308
    %v7350 = vpack.c.bf16 %v7311, %v7310
    %v7351 = vpack.c.bf16 %v7313, %v7312
    %v7352 = vpack.c.bf16 %v7315, %v7314
    %v7353 = vpack.c.bf16 %v7317, %v7316
    %v7354 = vpack.c.bf16 %v7319, %v7318
    %v7355 = vpack.c.bf16 %v7321, %v7320
    %v7356 = vpack.c.bf16 %v7323, %v7322
    %v7357 = vpack.c.bf16 %v7325, %v7324
    %v7358 = vpack.c.bf16 %v7327, %v7326
    %v7359 = vpack.c.bf16 %v7329, %v7328
    %v7360 = vpack.c.bf16 %v7331, %v7330
    %v7361 = vpack.c.bf16 %v7333, %v7332
    %v7362 = vpack.c.bf16 %v7335, %v7334
    %v7363 = vpack.c.bf16 %v7337, %v7336
    %v7364 = vpack.c.bf16 %v7339, %v7338
    %v7365 = vpack.c.bf16 %v7341, %v7340
    %v7366 = vpack.c.bf16 %v7343, %v7342
    %v7367 = vpack.c.bf16 %v7345, %v7344
    %v7368 = vpack.c.bf16 %v7347, %v7346
    %7369 = vst.msk [vmem:[#allocation4] sm:$0xff] %vm5722, %v7348
    %7370 = vst.msk [vmem:[#allocation4 + $0x8] sm:$0xff] %vm5722, %v7349
    %7371 = vst.msk [vmem:[#allocation4 + $0x10] sm:$0xff] %vm5722, %v7350
    %7372 = vst.msk [vmem:[#allocation4 + $0x18] sm:$0xff] %vm5722, %v7351
    %7373 = vst.msk [vmem:[#allocation4 + $0x20] sm:$0xff] %vm5722, %v7352
    %7374 = vst.msk [vmem:[#allocation4 + $0x28] sm:$0xff] %vm5722, %v7353
    %7375 = vst.msk [vmem:[#allocation4 + $0x30] sm:$0xff] %vm5722, %v7354
    %7376 = vst.msk [vmem:[#allocation4 + $0x38] sm:$0xff] %vm5722, %v7355
    %7377 = vst.msk [vmem:[#allocation4 + $0x40] sm:$0xff] %vm5722, %v7356
    %7378 = vst.msk [vmem:[#allocation4 + $0x48] sm:$0xff] %vm5722, %v7357
    %7379 = vst.msk [vmem:[#allocation4 + $0x50] sm:$0xff] %vm5722, %v7358
    %7380 = vst.msk [vmem:[#allocation4 + $0x58] sm:$0xff] %vm5722, %v7359
    %7381 = vst.msk [vmem:[#allocation4 + $0x60] sm:$0xff] %vm5722, %v7360
    %7382 = vst.msk [vmem:[#allocation4 + $0x68] sm:$0xff] %vm5722, %v7361
    %7383 = vst.msk [vmem:[#allocation4 + $0x70] sm:$0xff] %vm5722, %v7362
    %7384 = vst.msk [vmem:[#allocation4 + $0x78] sm:$0xff] %vm5722, %v7363
    %7385 = vst.msk [vmem:[#allocation4 + $0x80] sm:$0xff] %vm5722, %v7364
    %7386 = vst.msk [vmem:[#allocation4 + $0x88] sm:$0xff] %vm5722, %v7365
    %7387 = vst.msk [vmem:[#allocation4 + $0x90] sm:$0xff] %vm5722, %v7366
    %7388 = vst.msk [vmem:[#allocation4 + $0x98] sm:$0xff] %vm5722, %v7367
    %7389 = vst.msk [vmem:[#allocation4 + $0xa0] sm:$0xff] %vm5722, %v7368
    %v7390 = vld [vmem:[#allocation4] sm:$0xf]
    %vm7391 = vcmask 519168
    %7392 = vst.msk [vmem:[#allocation5] sm:$0xf] %vm7391, %v7390
    %v7393 = vld [vmem:[#allocation4] sm:$0xf0]
    %v7395 = vunpack.c.h.b16 %v7393
    %v7396 = vpack.c.b16 %v7395, %v7395
    %7397 = vrot.lane.b32.xlu0 %v7396, 64
    %v7398 = vpop.permute.xlu0 %7397
    %vm7400 = vcmask 1043968
    %7401 = vst.msk [vmem:[#allocation5] sm:$0xf] %vm7400, %v7398
    %v7402 = vld [vmem:[#allocation4 + $0x8] sm:$0xf]
    %7403 = vst.msk [vmem:[#allocation5 + $0x4] sm:$0xf] %vm7391, %v7402
    %v7404 = vld [vmem:[#allocation4 + $0x8] sm:$0xf0]
    %v7406 = vunpack.c.h.b16 %v7404
    %v7407 = vpack.c.b16 %v7406, %v7406
    %7408 = vrot.lane.b32.xlu0 %v7407, 64
    %v7409 = vpop.permute.xlu0 %7408
    %7411 = vst.msk [vmem:[#allocation5 + $0x4] sm:$0xf] %vm7400, %v7409
    %v7412 = vld [vmem:[#allocation4 + $0x10] sm:$0xf]
    %7413 = vst.msk [vmem:[#allocation5 + $0x8] sm:$0xf] %vm7391, %v7412
    %v7414 = vld [vmem:[#allocation4 + $0x10] sm:$0xf0]
    %v7416 = vunpack.c.h.b16 %v7414
    %v7417 = vpack.c.b16 %v7416, %v7416
    %7418 = vrot.lane.b32.xlu0 %v7417, 64
    %v7419 = vpop.permute.xlu0 %7418
    %7421 = vst.msk [vmem:[#allocation5 + $0x8] sm:$0xf] %vm7400, %v7419
    %v7422 = vld [vmem:[#allocation4 + $0x18] sm:$0xf]
    %7423 = vst.msk [vmem:[#allocation5 + $0xc] sm:$0xf] %vm7391, %v7422
    %v7424 = vld [vmem:[#allocation4 + $0x18] sm:$0xf0]
    %v7426 = vunpack.c.h.b16 %v7424
    %v7427 = vpack.c.b16 %v7426, %v7426
    %7428 = vrot.lane.b32.xlu0 %v7427, 64
    %v7429 = vpop.permute.xlu0 %7428
    %7431 = vst.msk [vmem:[#allocation5 + $0xc] sm:$0xf] %vm7400, %v7429
    %v7432 = vld [vmem:[#allocation4 + $0x20] sm:$0xf]
    %7433 = vst.msk [vmem:[#allocation5 + $0x10] sm:$0xf] %vm7391, %v7432
    %v7434 = vld [vmem:[#allocation4 + $0x20] sm:$0xf0]
    %v7436 = vunpack.c.h.b16 %v7434
    %v7437 = vpack.c.b16 %v7436, %v7436
    %7438 = vrot.lane.b32.xlu0 %v7437, 64
    %v7439 = vpop.permute.xlu0 %7438
    %7441 = vst.msk [vmem:[#allocation5 + $0x10] sm:$0xf] %vm7400, %v7439
    %v7442 = vld [vmem:[#allocation4 + $0x28] sm:$0xf]
    %7443 = vst.msk [vmem:[#allocation5 + $0x14] sm:$0xf] %vm7391, %v7442
    %v7444 = vld [vmem:[#allocation4 + $0x28] sm:$0xf0]
    %v7446 = vunpack.c.h.b16 %v7444
    %v7447 = vpack.c.b16 %v7446, %v7446
    %7448 = vrot.lane.b32.xlu0 %v7447, 64
    %v7449 = vpop.permute.xlu0 %7448
    %7451 = vst.msk [vmem:[#allocation5 + $0x14] sm:$0xf] %vm7400, %v7449
    %v7452 = vld [vmem:[#allocation4 + $0x30] sm:$0xf]
    %7453 = vst.msk [vmem:[#allocation5 + $0x18] sm:$0xf] %vm7391, %v7452
    %v7454 = vld [vmem:[#allocation4 + $0x30] sm:$0xf0]
    %v7456 = vunpack.c.h.b16 %v7454
    %v7457 = vpack.c.b16 %v7456, %v7456
    %7458 = vrot.lane.b32.xlu0 %v7457, 64
    %v7459 = vpop.permute.xlu0 %7458
    %7461 = vst.msk [vmem:[#allocation5 + $0x18] sm:$0xf] %vm7400, %v7459
    %v7462 = vld [vmem:[#allocation4 + $0x38] sm:$0xf]
    %7463 = vst.msk [vmem:[#allocation5 + $0x1c] sm:$0xf] %vm7391, %v7462
    %v7464 = vld [vmem:[#allocation4 + $0x38] sm:$0xf0]
    %v7466 = vunpack.c.h.b16 %v7464
    %v7467 = vpack.c.b16 %v7466, %v7466
    %7468 = vrot.lane.b32.xlu0 %v7467, 64
    %v7469 = vpop.permute.xlu0 %7468
    %7471 = vst.msk [vmem:[#allocation5 + $0x1c] sm:$0xf] %vm7400, %v7469
    %v7472 = vld [vmem:[#allocation4 + $0x40] sm:$0xf]
    %7473 = vst.msk [vmem:[#allocation5 + $0x20] sm:$0xf] %vm7391, %v7472
    %v7474 = vld [vmem:[#allocation4 + $0x40] sm:$0xf0]
    %v7476 = vunpack.c.h.b16 %v7474
    %v7477 = vpack.c.b16 %v7476, %v7476
    %7478 = vrot.lane.b32.xlu0 %v7477, 64
    %v7479 = vpop.permute.xlu0 %7478
    %7481 = vst.msk [vmem:[#allocation5 + $0x20] sm:$0xf] %vm7400, %v7479
    %v7482 = vld [vmem:[#allocation4 + $0x48] sm:$0xf]
    %7483 = vst.msk [vmem:[#allocation5 + $0x24] sm:$0xf] %vm7391, %v7482
    %v7484 = vld [vmem:[#allocation4 + $0x48] sm:$0xf0]
    %v7486 = vunpack.c.h.b16 %v7484
    %v7487 = vpack.c.b16 %v7486, %v7486
    %7488 = vrot.lane.b32.xlu0 %v7487, 64
    %v7489 = vpop.permute.xlu0 %7488
    %7491 = vst.msk [vmem:[#allocation5 + $0x24] sm:$0xf] %vm7400, %v7489
    %v7492 = vld [vmem:[#allocation4 + $0x50] sm:$0xf]
    %7493 = vst.msk [vmem:[#allocation5 + $0x28] sm:$0xf] %vm7391, %v7492
    %v7494 = vld [vmem:[#allocation4 + $0x50] sm:$0xf0]
    %v7496 = vunpack.c.h.b16 %v7494
    %v7497 = vpack.c.b16 %v7496, %v7496
    %7498 = vrot.lane.b32.xlu0 %v7497, 64
    %v7499 = vpop.permute.xlu0 %7498
    %7501 = vst.msk [vmem:[#allocation5 + $0x28] sm:$0xf] %vm7400, %v7499
    %v7502 = vld [vmem:[#allocation4 + $0x58] sm:$0xf]
    %7503 = vst.msk [vmem:[#allocation5 + $0x2c] sm:$0xf] %vm7391, %v7502
    %v7504 = vld [vmem:[#allocation4 + $0x58] sm:$0xf0]
    %v7506 = vunpack.c.h.b16 %v7504
    %v7507 = vpack.c.b16 %v7506, %v7506
    %7508 = vrot.lane.b32.xlu0 %v7507, 64
    %v7509 = vpop.permute.xlu0 %7508
    %7511 = vst.msk [vmem:[#allocation5 + $0x2c] sm:$0xf] %vm7400, %v7509
    %v7512 = vld [vmem:[#allocation4 + $0x60] sm:$0xf]
    %7513 = vst.msk [vmem:[#allocation5 + $0x30] sm:$0xf] %vm7391, %v7512
    %v7514 = vld [vmem:[#allocation4 + $0x60] sm:$0xf0]
    %v7516 = vunpack.c.h.b16 %v7514
    %v7517 = vpack.c.b16 %v7516, %v7516
    %7518 = vrot.lane.b32.xlu0 %v7517, 64
    %v7519 = vpop.permute.xlu0 %7518
    %7521 = vst.msk [vmem:[#allocation5 + $0x30] sm:$0xf] %vm7400, %v7519
    %v7522 = vld [vmem:[#allocation4 + $0x68] sm:$0xf]
    %7523 = vst.msk [vmem:[#allocation5 + $0x34] sm:$0xf] %vm7391, %v7522
    %v7524 = vld [vmem:[#allocation4 + $0x68] sm:$0xf0]
    %v7526 = vunpack.c.h.b16 %v7524
    %v7527 = vpack.c.b16 %v7526, %v7526
    %7528 = vrot.lane.b32.xlu0 %v7527, 64
    %v7529 = vpop.permute.xlu0 %7528
    %7531 = vst.msk [vmem:[#allocation5 + $0x34] sm:$0xf] %vm7400, %v7529
    %v7532 = vld [vmem:[#allocation4 + $0x70] sm:$0xf]
    %7533 = vst.msk [vmem:[#allocation5 + $0x38] sm:$0xf] %vm7391, %v7532
    %v7534 = vld [vmem:[#allocation4 + $0x70] sm:$0xf0]
    %v7536 = vunpack.c.h.b16 %v7534
    %v7537 = vpack.c.b16 %v7536, %v7536
    %7538 = vrot.lane.b32.xlu0 %v7537, 64
    %v7539 = vpop.permute.xlu0 %7538
    %7541 = vst.msk [vmem:[#allocation5 + $0x38] sm:$0xf] %vm7400, %v7539
    %v7542 = vld [vmem:[#allocation4 + $0x78] sm:$0xf]
    %7543 = vst.msk [vmem:[#allocation5 + $0x3c] sm:$0xf] %vm7391, %v7542
    %v7544 = vld [vmem:[#allocation4 + $0x78] sm:$0xf0]
    %v7546 = vunpack.c.h.b16 %v7544
    %v7547 = vpack.c.b16 %v7546, %v7546
    %7548 = vrot.lane.b32.xlu0 %v7547, 64
    %v7549 = vpop.permute.xlu0 %7548
    %7551 = vst.msk [vmem:[#allocation5 + $0x3c] sm:$0xf] %vm7400, %v7549
    %v7552 = vld [vmem:[#allocation4 + $0x80] sm:$0xf]
    %7553 = vst.msk [vmem:[#allocation5 + $0x40] sm:$0xf] %vm7391, %v7552
    %v7554 = vld [vmem:[#allocation4 + $0x80] sm:$0xf0]
    %v7556 = vunpack.c.h.b16 %v7554
    %v7557 = vpack.c.b16 %v7556, %v7556
    %7558 = vrot.lane.b32.xlu0 %v7557, 64
    %v7559 = vpop.permute.xlu0 %7558
    %7561 = vst.msk [vmem:[#allocation5 + $0x40] sm:$0xf] %vm7400, %v7559
    %v7562 = vld [vmem:[#allocation4 + $0x88] sm:$0xf]
    %7563 = vst.msk [vmem:[#allocation5 + $0x44] sm:$0xf] %vm7391, %v7562
    %v7564 = vld [vmem:[#allocation4 + $0x88] sm:$0xf0]
    %v7566 = vunpack.c.h.b16 %v7564
    %v7567 = vpack.c.b16 %v7566, %v7566
    %7568 = vrot.lane.b32.xlu0 %v7567, 64
    %v7569 = vpop.permute.xlu0 %7568
    %7571 = vst.msk [vmem:[#allocation5 + $0x44] sm:$0xf] %vm7400, %v7569
    %v7572 = vld [vmem:[#allocation4 + $0x90] sm:$0xf]
    %7573 = vst.msk [vmem:[#allocation5 + $0x48] sm:$0xf] %vm7391, %v7572
    %v7574 = vld [vmem:[#allocation4 + $0x90] sm:$0xf0]
    %v7576 = vunpack.c.h.b16 %v7574
    %v7577 = vpack.c.b16 %v7576, %v7576
    %7578 = vrot.lane.b32.xlu0 %v7577, 64
    %v7579 = vpop.permute.xlu0 %7578
    %7581 = vst.msk [vmem:[#allocation5 + $0x48] sm:$0xf] %vm7400, %v7579
    %v7582 = vld [vmem:[#allocation4 + $0x98] sm:$0xf]
    %7583 = vst.msk [vmem:[#allocation5 + $0x4c] sm:$0xf] %vm7391, %v7582
    %v7584 = vld [vmem:[#allocation4 + $0x98] sm:$0xf0]
    %v7586 = vunpack.c.h.b16 %v7584
    %v7587 = vpack.c.b16 %v7586, %v7586
    %7588 = vrot.lane.b32.xlu0 %v7587, 64
    %v7589 = vpop.permute.xlu0 %7588
    %7591 = vst.msk [vmem:[#allocation5 + $0x4c] sm:$0xf] %vm7400, %v7589
    %v7592 = vld [vmem:[#allocation4 + $0xa0] sm:$0xf]
    %7593 = vst.msk [vmem:[#allocation5 + $0x50] sm:$0xf] %vm7391, %v7592
    %v7594 = vld [vmem:[#allocation4 + $0xa0] sm:$0xf0]
    %v7596 = vunpack.c.h.b16 %v7594
    %v7597 = vpack.c.b16 %v7596, %v7596
    %7598 = vrot.lane.b32.xlu0 %v7597, 64
    %v7599 = vpop.permute.xlu0 %7598
    %7601 = vst.msk [vmem:[#allocation5 + $0x50] sm:$0xf] %vm7400, %v7599
    %v7602 = vld [vmem:[#allocation5] sm:$0xff]
    %v7603 = vld [vmem:[#allocation5 + $0x8] sm:$0xff]
    %v7604 = vld [vmem:[#allocation5 + $0x10] sm:$0xff]
    %v7605 = vld [vmem:[#allocation5 + $0x18] sm:$0xff]
    %v7606 = vld [vmem:[#allocation5 + $0x20] sm:$0xff]
    %v7607 = vld [vmem:[#allocation5 + $0x28] sm:$0xff]
    %v7608 = vld [vmem:[#allocation5 + $0x30] sm:$0xff]
    %v7609 = vld [vmem:[#allocation5 + $0x38] sm:$0xff]
    %v7610 = vld [vmem:[#allocation5 + $0x40] sm:$0xff]
    %v7611 = vld [vmem:[#allocation5 + $0x48] sm:$0xff]
    %v7612 = vld [vmem:[#allocation5 + $0x50] sm:$0xf]
    %v7613 = vld [vmem:[#allocation7] sm:$0xf]
    %v7614 = vld [vmem:[#allocation7 + $0x4] sm:$0xf]
    %v7615 = vld [vmem:[#allocation7 + $0x8] sm:$0xf]
    %v7616 = vld [vmem:[#allocation7 + $0xc] sm:$0xf]
    %v7617 = vld [vmem:[#allocation7 + $0x10] sm:$0xf]
    %v7618 = vld [vmem:[#allocation7 + $0x14] sm:$0xf]
    %v7619 = vld [vmem:[#allocation7 + $0x18] sm:$0xf]
    %v7620 = vld [vmem:[#allocation7 + $0x1c] sm:$0xf]
    %v7621 = vld [vmem:[#allocation7 + $0x20] sm:$0xf]
    %v7622 = vld [vmem:[#allocation7 + $0x24] sm:$0xf]
    %v7623 = vld [vmem:[#allocation7 + $0x28] sm:$0xf]
    %v7624 = vld [vmem:[#allocation7 + $0x2c] sm:$0xf]
    %v7625 = vld [vmem:[#allocation7 + $0x30] sm:$0xf]
    %v7626 = vld [vmem:[#allocation7 + $0x34] sm:$0xf]
    %v7627 = vld [vmem:[#allocation7 + $0x38] sm:$0xf]
    %v7628 = vld [vmem:[#allocation7 + $0x3c] sm:$0xf]
    %v7629 = vld [vmem:[#allocation7 + $0x40] sm:$0xf]
    %v7630 = vld [vmem:[#allocation7 + $0x44] sm:$0xf]
    %v7631 = vld [vmem:[#allocation7 + $0x48] sm:$0xf]
    %v7632 = vld [vmem:[#allocation7 + $0x4c] sm:$0xf]
    %v7633 = vld [vmem:[#allocation7 + $0x50] sm:$0xf]
    %v7634 = vld [vmem:[#allocation7 + $0x54] sm:$0xf]
    %v7635 = vld [vmem:[#allocation7 + $0x58] sm:$0xf]
    %v7636 = vld [vmem:[#allocation7 + $0x5c] sm:$0xf]
    %v7637 = vld [vmem:[#allocation7 + $0x60] sm:$0xf]
    %v7638 = vld [vmem:[#allocation7 + $0x64] sm:$0xf]
    %v7639 = vld [vmem:[#allocation7 + $0x68] sm:$0xf]
    %v7640 = vld [vmem:[#allocation7 + $0x6c] sm:$0xf]
    %v7641 = vld [vmem:[#allocation7 + $0x70] sm:$0xf]
    %v7642 = vld [vmem:[#allocation7 + $0x74] sm:$0xf]
    %v7643 = vld [vmem:[#allocation7 + $0x78] sm:$0xf]
    %v7644 = vld [vmem:[#allocation7 + $0x7c] sm:$0xf]
    %v7645 = vld [vmem:[#allocation7 + $0x80] sm:$0xf]
    %v7646 = vld [vmem:[#allocation7 + $0x84] sm:$0xf]
    %v7647 = vld [vmem:[#allocation7 + $0x88] sm:$0xf]
    %v7648 = vld [vmem:[#allocation7 + $0x8c] sm:$0xf]
    %v7649 = vld [vmem:[#allocation7 + $0x90] sm:$0xf]
    %v7650 = vld [vmem:[#allocation7 + $0x94] sm:$0xf]
    %v7651 = vld [vmem:[#allocation7 + $0x98] sm:$0xf]
    %v7652 = vld [vmem:[#allocation7 + $0x9c] sm:$0xf]
    %v7653 = vld [vmem:[#allocation7 + $0xa0] sm:$0xf]
    %v7654 = vld [vmem:[#allocation7 + $0xa4] sm:$0xf]
    %v7655 = vld [vmem:[#allocation7 + $0xa8] sm:$0xf]
    %v7656 = vld [vmem:[#allocation7 + $0xac] sm:$0xf]
    %v7657 = vld [vmem:[#allocation7 + $0xb0] sm:$0xf]
    %v7658 = vld [vmem:[#allocation7 + $0xb4] sm:$0xf]
    %v7659 = vld [vmem:[#allocation7 + $0xb8] sm:$0xf]
    %v7660 = vld [vmem:[#allocation7 + $0xbc] sm:$0xf]
    %v7661 = vld [vmem:[#allocation7 + $0xc0] sm:$0xf]
    %v7662 = vld [vmem:[#allocation7 + $0xc4] sm:$0xf]
    %v7663 = vld [vmem:[#allocation7 + $0xc8] sm:$0xf]
    %v7664 = vld [vmem:[#allocation7 + $0xcc] sm:$0xf]
    %v7665 = vld [vmem:[#allocation7 + $0xd0] sm:$0xf]
    %v7666 = vld [vmem:[#allocation7 + $0xd4] sm:$0xf]
    %v7667 = vld [vmem:[#allocation7 + $0xd8] sm:$0xf]
    %v7668 = vld [vmem:[#allocation7 + $0xdc] sm:$0xf]
    %v7669 = vld [vmem:[#allocation7 + $0xe0] sm:$0xf]
    %v7670 = vld [vmem:[#allocation7 + $0xe4] sm:$0xf]
    %v7671 = vld [vmem:[#allocation7 + $0xe8] sm:$0xf]
    %v7672 = vld [vmem:[#allocation7 + $0xec] sm:$0xf]
    %v7673 = vld [vmem:[#allocation7 + $0xf0] sm:$0xf]
    %v7674 = vld [vmem:[#allocation7 + $0xf4] sm:$0xf]
    %v7675 = vld [vmem:[#allocation7 + $0xf8] sm:$0xf]
    %v7676 = vld [vmem:[#allocation7 + $0xfc] sm:$0xf]
    %v7677 = vld [vmem:[#allocation7 + $0x100] sm:$0xf]
    %v7678 = vld [vmem:[#allocation7 + $0x104] sm:$0xf]
    %v7679 = vld [vmem:[#allocation7 + $0x108] sm:$0xf]
    %v7680 = vld [vmem:[#allocation7 + $0x10c] sm:$0xf]
    %v7681 = vld [vmem:[#allocation7 + $0x110] sm:$0xf]
    %v7682 = vld [vmem:[#allocation7 + $0x114] sm:$0xf]
    %v7683 = vld [vmem:[#allocation7 + $0x118] sm:$0xf]
    %v7684 = vld [vmem:[#allocation7 + $0x11c] sm:$0xf]
    %v7685 = vld [vmem:[#allocation7 + $0x120] sm:$0xf]
    %v7686 = vld [vmem:[#allocation7 + $0x124] sm:$0xf]
    %v7687 = vld [vmem:[#allocation7 + $0x128] sm:$0xf]
    %v7688 = vld [vmem:[#allocation7 + $0x12c] sm:$0xf]
    %v7689 = vld [vmem:[#allocation7 + $0x130] sm:$0xf]
    %v7690 = vld [vmem:[#allocation7 + $0x134] sm:$0xf]
    %v7691 = vld [vmem:[#allocation7 + $0x138] sm:$0xf]
    %v7692 = vld [vmem:[#allocation7 + $0x13c] sm:$0xf]
    %v7693 = vld [vmem:[#allocation7 + $0x140] sm:$0xf]
    %v7694 = vld [vmem:[#allocation7 + $0x144] sm:$0xf]
    %v7695 = vld [vmem:[#allocation7 + $0x148] sm:$0xf]
    %v7696 = vld [vmem:[#allocation7 + $0x14c] sm:$0xf]
    %v7697 = vld [vmem:[#allocation7 + $0x150] sm:$0xf]
    %v7698 = vld [vmem:[#allocation7 + $0x154] sm:$0xf]
    %v7699 = vld [vmem:[#allocation7 + $0x158] sm:$0xf]
    %v7700 = vld [vmem:[#allocation7 + $0x15c] sm:$0xf]
    %v7701 = vld [vmem:[#allocation7 + $0x160] sm:$0xf]
    %v7702 = vld [vmem:[#allocation7 + $0x164] sm:$0xf]
    %v7703 = vld [vmem:[#allocation7 + $0x168] sm:$0xf]
    %v7704 = vld [vmem:[#allocation7 + $0x16c] sm:$0xf]
    %v7705 = vld [vmem:[#allocation7 + $0x170] sm:$0xf]
    %v7706 = vld [vmem:[#allocation7 + $0x174] sm:$0xf]
    %v7707 = vld [vmem:[#allocation7 + $0x178] sm:$0xf]
    %v7708 = vld [vmem:[#allocation7 + $0x17c] sm:$0xf]
    %v7709 = vld [vmem:[#allocation7 + $0x180] sm:$0xf]
    %v7710 = vld [vmem:[#allocation7 + $0x184] sm:$0xf]
    %v7711 = vld [vmem:[#allocation7 + $0x188] sm:$0xf]
    %v7712 = vld [vmem:[#allocation7 + $0x18c] sm:$0xf]
    %v7713 = vld [vmem:[#allocation7 + $0x190] sm:$0xf]
    %v7714 = vld [vmem:[#allocation7 + $0x194] sm:$0xf]
    %v7715 = vld [vmem:[#allocation7 + $0x198] sm:$0xf]
    %v7716 = vld [vmem:[#allocation7 + $0x19c] sm:$0xf]
    %v7717 = vld [vmem:[#allocation7 + $0x1a0] sm:$0xf]
    %v7718 = vld [vmem:[#allocation7 + $0x1a4] sm:$0xf]
    %v7719 = vld [vmem:[#allocation7 + $0x1a8] sm:$0xf]
    %v7720 = vld [vmem:[#allocation7 + $0x1ac] sm:$0xf]
    %v7721 = vld [vmem:[#allocation7 + $0x1b0] sm:$0xf]
    %v7722 = vld [vmem:[#allocation7 + $0x1b4] sm:$0xf]
    %v7723 = vld [vmem:[#allocation7 + $0x1b8] sm:$0xf]
    %v7724 = vld [vmem:[#allocation7 + $0x1bc] sm:$0xf]
    %v7725 = vld [vmem:[#allocation7 + $0x1c0] sm:$0xf]
    %v7726 = vld [vmem:[#allocation7 + $0x1c4] sm:$0xf]
    %v7727 = vld [vmem:[#allocation7 + $0x1c8] sm:$0xf]
    %v7728 = vld [vmem:[#allocation7 + $0x1cc] sm:$0xf]
    %v7729 = vld [vmem:[#allocation7 + $0x1d0] sm:$0xf]
    %v7730 = vld [vmem:[#allocation7 + $0x1d4] sm:$0xf]
    %v7731 = vld [vmem:[#allocation7 + $0x1d8] sm:$0xf]
    %v7732 = vld [vmem:[#allocation7 + $0x1dc] sm:$0xf]
    %v7733 = vld [vmem:[#allocation7 + $0x1e0] sm:$0xf]
    %v7734 = vld [vmem:[#allocation7 + $0x1e4] sm:$0xf]
    %v7735 = vld [vmem:[#allocation7 + $0x1e8] sm:$0xf]
    %v7736 = vld [vmem:[#allocation7 + $0x1ec] sm:$0xf]
    %v7737 = vld [vmem:[#allocation7 + $0x1f0] sm:$0xf]
    %v7738 = vld [vmem:[#allocation7 + $0x1f4] sm:$0xf]
    %v7739 = vld [vmem:[#allocation7 + $0x1f8] sm:$0xf]
    %v7740 = vld [vmem:[#allocation7 + $0x1fc] sm:$0xf]
    %v7741 = vld [vmem:[#allocation7 + $0x200] sm:$0xf]
    %v7742 = vld [vmem:[#allocation7 + $0x204] sm:$0xf]
    %v7743 = vld [vmem:[#allocation7 + $0x208] sm:$0xf]
    %v7744 = vld [vmem:[#allocation7 + $0x20c] sm:$0xf]
    %v7745 = vld [vmem:[#allocation7 + $0x210] sm:$0xf]
    %v7746 = vld [vmem:[#allocation7 + $0x214] sm:$0xf]
    %v7747 = vld [vmem:[#allocation7 + $0x218] sm:$0xf]
    %v7748 = vld [vmem:[#allocation7 + $0x21c] sm:$0xf]
    %v7749 = vld [vmem:[#allocation7 + $0x220] sm:$0xf]
    %v7750 = vld [vmem:[#allocation7 + $0x224] sm:$0xf]
    %v7751 = vld [vmem:[#allocation7 + $0x228] sm:$0xf]
    %v7752 = vld [vmem:[#allocation7 + $0x22c] sm:$0xf]
    %v7753 = vld [vmem:[#allocation7 + $0x230] sm:$0xf]
    %v7754 = vld [vmem:[#allocation7 + $0x234] sm:$0xf]
    %v7755 = vld [vmem:[#allocation7 + $0x238] sm:$0xf]
    %v7756 = vld [vmem:[#allocation7 + $0x23c] sm:$0xf]
    %v7757 = vld [vmem:[#allocation7 + $0x240] sm:$0xf]
    %v7758 = vld [vmem:[#allocation7 + $0x244] sm:$0xf]
    %v7759 = vld [vmem:[#allocation7 + $0x248] sm:$0xf]
    %v7760 = vld [vmem:[#allocation7 + $0x24c] sm:$0xf]
    %v7761 = vld [vmem:[#allocation7 + $0x250] sm:$0xf]
    %v7762 = vld [vmem:[#allocation7 + $0x254] sm:$0xf]
    %v7763 = vld [vmem:[#allocation7 + $0x258] sm:$0xf]
    %v7764 = vld [vmem:[#allocation7 + $0x25c] sm:$0xf]
    %v7765 = vld [vmem:[#allocation7 + $0x260] sm:$0xf]
    %v7766 = vld [vmem:[#allocation7 + $0x264] sm:$0xf]
    %v7767 = vld [vmem:[#allocation7 + $0x268] sm:$0xf]
    %v7768 = vld [vmem:[#allocation7 + $0x26c] sm:$0xf]
    %v7769 = vld [vmem:[#allocation7 + $0x270] sm:$0xf]
    %v7770 = vld [vmem:[#allocation7 + $0x274] sm:$0xf]
    %v7771 = vld [vmem:[#allocation7 + $0x278] sm:$0xf]
    %v7772 = vld [vmem:[#allocation7 + $0x27c] sm:$0xf]
    %v7773 = vld [vmem:[#allocation7 + $0x280] sm:$0xf]
    %v7774 = vld [vmem:[#allocation7 + $0x284] sm:$0xf]
    %v7775 = vld [vmem:[#allocation7 + $0x288] sm:$0xf]
    %v7776 = vld [vmem:[#allocation7 + $0x28c] sm:$0xf]
    %v7777 = vld [vmem:[#allocation7 + $0x290] sm:$0xf]
    %v7778 = vld [vmem:[#allocation7 + $0x294] sm:$0xf]
    %v7779 = vld [vmem:[#allocation7 + $0x298] sm:$0xf]
    %v7780 = vld [vmem:[#allocation7 + $0x29c] sm:$0xf]
    %v7781 = vld [vmem:[#allocation7 + $0x2a0] sm:$0xf]
    %v7782 = vld [vmem:[#allocation7 + $0x2a4] sm:$0xf]
    %v7783 = vld [vmem:[#allocation7 + $0x2a8] sm:$0xf]
    %v7784 = vld [vmem:[#allocation7 + $0x2ac] sm:$0xf]
    %v7785 = vld [vmem:[#allocation7 + $0x2b0] sm:$0xf]
    %v7786 = vld [vmem:[#allocation7 + $0x2b4] sm:$0xf]
    %v7787 = vld [vmem:[#allocation7 + $0x2b8] sm:$0xf]
    %v7788 = vld [vmem:[#allocation7 + $0x2bc] sm:$0xf]
    %v7789 = vld [vmem:[#allocation7 + $0x2c0] sm:$0xf]
    %v7790 = vld [vmem:[#allocation7 + $0x2c4] sm:$0xf]
    %v7791 = vld [vmem:[#allocation7 + $0x2c8] sm:$0xf]
    %v7792 = vld [vmem:[#allocation7 + $0x2cc] sm:$0xf]
    %v7793 = vld [vmem:[#allocation7 + $0x2d0] sm:$0xf]
    %v7794 = vld [vmem:[#allocation7 + $0x2d4] sm:$0xf]
    %v7795 = vld [vmem:[#allocation7 + $0x2d8] sm:$0xf]
    %v7796 = vld [vmem:[#allocation7 + $0x2dc] sm:$0xf]
    %v7797 = vld [vmem:[#allocation7 + $0x2e0] sm:$0xf]
    %v7798 = vld [vmem:[#allocation7 + $0x2e4] sm:$0xf]
    %v7799 = vld [vmem:[#allocation7 + $0x2e8] sm:$0xf]
    %v7800 = vld [vmem:[#allocation7 + $0x2ec] sm:$0xf]
    %v7801 = vld [vmem:[#allocation7 + $0x2f0] sm:$0xf]
    %v7802 = vld [vmem:[#allocation7 + $0x2f4] sm:$0xf]
    %v7803 = vld [vmem:[#allocation7 + $0x2f8] sm:$0xf]
    %v7804 = vld [vmem:[#allocation7 + $0x2fc] sm:$0xf]
    %v7805 = vld [vmem:[#allocation7 + $0x300] sm:$0xf]
    %v7806 = vld [vmem:[#allocation7 + $0x304] sm:$0xf]
    %v7807 = vld [vmem:[#allocation7 + $0x308] sm:$0xf]
    %v7808 = vld [vmem:[#allocation7 + $0x30c] sm:$0xf]
    %v7809 = vld [vmem:[#allocation7 + $0x310] sm:$0xf]
    %v7810 = vld [vmem:[#allocation7 + $0x314] sm:$0xf]
    %v7811 = vld [vmem:[#allocation7 + $0x318] sm:$0xf]
    %v7812 = vld [vmem:[#allocation7 + $0x31c] sm:$0xf]
    %v7813 = vld [vmem:[#allocation7 + $0x320] sm:$0xf]
    %v7814 = vld [vmem:[#allocation7 + $0x324] sm:$0xf]
    %v7815 = vld [vmem:[#allocation7 + $0x328] sm:$0xf]
    %v7816 = vld [vmem:[#allocation7 + $0x32c] sm:$0xf]
    %v7817 = vld [vmem:[#allocation7 + $0x330] sm:$0xf]
    %v7818 = vld [vmem:[#allocation7 + $0x334] sm:$0xf]
    %v7819 = vld [vmem:[#allocation7 + $0x338] sm:$0xf]
    %v7820 = vld [vmem:[#allocation7 + $0x33c] sm:$0xf]
    %v7821 = vld [vmem:[#allocation7 + $0x340] sm:$0xf]
    %v7822 = vld [vmem:[#allocation7 + $0x344] sm:$0xf]
    %v7823 = vld [vmem:[#allocation7 + $0x348] sm:$0xf]
    %v7824 = vld [vmem:[#allocation7 + $0x34c] sm:$0xf]
    %v7825 = vld [vmem:[#allocation7 + $0x350] sm:$0xf]
    %v7826 = vld [vmem:[#allocation7 + $0x354] sm:$0xf]
    %v7827 = vld [vmem:[#allocation7 + $0x358] sm:$0xf]
    %v7828 = vld [vmem:[#allocation7 + $0x35c] sm:$0xf]
    %v7829 = vld [vmem:[#allocation7 + $0x360] sm:$0xf]
    %v7830 = vld [vmem:[#allocation7 + $0x364] sm:$0xf]
    %v7831 = vld [vmem:[#allocation7 + $0x368] sm:$0xf]
    %v7832 = vld [vmem:[#allocation7 + $0x36c] sm:$0xf]
    %v7833 = vld [vmem:[#allocation7 + $0x370] sm:$0xf]
    %v7834 = vld [vmem:[#allocation7 + $0x374] sm:$0xf]
    %v7835 = vld [vmem:[#allocation7 + $0x378] sm:$0xf]
    %v7836 = vld [vmem:[#allocation7 + $0x37c] sm:$0xf]
    %v7837 = vld [vmem:[#allocation7 + $0x380] sm:$0xf]
    %v7838 = vld [vmem:[#allocation7 + $0x384] sm:$0xf]
    %v7839 = vld [vmem:[#allocation7 + $0x388] sm:$0xf]
    %v7840 = vld [vmem:[#allocation7 + $0x38c] sm:$0xf]
    %v7841 = vld [vmem:[#allocation7 + $0x390] sm:$0xf]
    %v7842 = vld [vmem:[#allocation7 + $0x394] sm:$0xf]
    %v7843 = vld [vmem:[#allocation7 + $0x398] sm:$0xf]
    %v7844 = vld [vmem:[#allocation7 + $0x39c] sm:$0xf]
    %v7845 = vld [vmem:[#allocation7 + $0x3a0] sm:$0xf]
    %v7846 = vld [vmem:[#allocation7 + $0x3a4] sm:$0xf]
    %v7847 = vld [vmem:[#allocation7 + $0x3a8] sm:$0xf]
    %v7848 = vld [vmem:[#allocation7 + $0x3ac] sm:$0xf]
    %v7849 = vld [vmem:[#allocation7 + $0x3b0] sm:$0xf]
    %v7850 = vld [vmem:[#allocation7 + $0x3b4] sm:$0xf]
    %v7851 = vld [vmem:[#allocation7 + $0x3b8] sm:$0xf]
    %v7852 = vld [vmem:[#allocation7 + $0x3bc] sm:$0xf]
    %v7853 = vld [vmem:[#allocation7 + $0x3c0] sm:$0xf]
    %v7854 = vld [vmem:[#allocation7 + $0x3c4] sm:$0xf]
    %v7855 = vld [vmem:[#allocation7 + $0x3c8] sm:$0xf]
    %v7856 = vld [vmem:[#allocation7 + $0x3cc] sm:$0xf]
    %v7857 = vld [vmem:[#allocation7 + $0x3d0] sm:$0xf]
    %v7858 = vld [vmem:[#allocation7 + $0x3d4] sm:$0xf]
    %v7859 = vld [vmem:[#allocation7 + $0x3d8] sm:$0xf]
    %v7860 = vld [vmem:[#allocation7 + $0x3dc] sm:$0xf]
    %v7861 = vld [vmem:[#allocation7 + $0x3e0] sm:$0xf]
    %v7862 = vld [vmem:[#allocation7 + $0x3e4] sm:$0xf]
    %v7863 = vld [vmem:[#allocation7 + $0x3e8] sm:$0xf]
    %v7864 = vld [vmem:[#allocation7 + $0x3ec] sm:$0xf]
    %v7865 = vld [vmem:[#allocation7 + $0x3f0] sm:$0xf]
    %v7866 = vld [vmem:[#allocation7 + $0x3f4] sm:$0xf]
    %v7867 = vld [vmem:[#allocation7 + $0x3f8] sm:$0xf]
    %v7868 = vld [vmem:[#allocation7 + $0x3fc] sm:$0xf]
    %v7869 = vld [vmem:[#allocation7 + $0x400] sm:$0xf]
    %v7870 = vld [vmem:[#allocation7 + $0x404] sm:$0xf]
    %v7871 = vld [vmem:[#allocation7 + $0x408] sm:$0xf]
    %v7872 = vld [vmem:[#allocation7 + $0x40c] sm:$0xf]
    %v7873 = vld [vmem:[#allocation7 + $0x410] sm:$0xf]
    %v7874 = vld [vmem:[#allocation7 + $0x414] sm:$0xf]
    %v7875 = vld [vmem:[#allocation7 + $0x418] sm:$0xf]
    %v7876 = vld [vmem:[#allocation7 + $0x41c] sm:$0xf]
    %v7877 = vld [vmem:[#allocation7 + $0x420] sm:$0xf]
    %v7878 = vld [vmem:[#allocation7 + $0x424] sm:$0xf]
    %v7879 = vld [vmem:[#allocation7 + $0x428] sm:$0xf]
    %v7880 = vld [vmem:[#allocation7 + $0x42c] sm:$0xf]
    %v7881 = vld [vmem:[#allocation7 + $0x430] sm:$0xf]
    %v7882 = vld [vmem:[#allocation7 + $0x434] sm:$0xf]
    %v7883 = vld [vmem:[#allocation7 + $0x438] sm:$0xf]
    %v7884 = vld [vmem:[#allocation7 + $0x43c] sm:$0xf]
    %v7885 = vld [vmem:[#allocation7 + $0x440] sm:$0xf]
    %v7886 = vld [vmem:[#allocation7 + $0x444] sm:$0xf]
    %v7887 = vld [vmem:[#allocation7 + $0x448] sm:$0xf]
    %v7888 = vld [vmem:[#allocation7 + $0x44c] sm:$0xf]
    %v7889 = vld [vmem:[#allocation7 + $0x450] sm:$0xf]
    %v7890 = vld [vmem:[#allocation7 + $0x454] sm:$0xf]
    %v7891 = vld [vmem:[#allocation7 + $0x458] sm:$0xf]
    %v7892 = vld [vmem:[#allocation7 + $0x45c] sm:$0xf]
    %v7893 = vld [vmem:[#allocation7 + $0x460] sm:$0xf]
    %v7894 = vld [vmem:[#allocation7 + $0x464] sm:$0xf]
    %v7895 = vld [vmem:[#allocation7 + $0x468] sm:$0xf]
    %v7896 = vld [vmem:[#allocation7 + $0x46c] sm:$0xf]
    %v7897 = vld [vmem:[#allocation7 + $0x470] sm:$0xf]
    %v7898 = vld [vmem:[#allocation7 + $0x474] sm:$0xf]
    %v7899 = vld [vmem:[#allocation7 + $0x478] sm:$0xf]
    %v7900 = vld [vmem:[#allocation7 + $0x47c] sm:$0xf]
    %v7901 = vld [vmem:[#allocation7 + $0x480] sm:$0xf]
    %v7902 = vld [vmem:[#allocation7 + $0x484] sm:$0xf]
    %v7903 = vld [vmem:[#allocation7 + $0x488] sm:$0xf]
    %v7904 = vld [vmem:[#allocation7 + $0x48c] sm:$0xf]
    %v7905 = vld [vmem:[#allocation7 + $0x490] sm:$0xf]
    %v7906 = vld [vmem:[#allocation7 + $0x494] sm:$0xf]
    %v7907 = vld [vmem:[#allocation7 + $0x498] sm:$0xf]
    %v7908 = vld [vmem:[#allocation7 + $0x49c] sm:$0xf]
    %v7909 = vld [vmem:[#allocation7 + $0x4a0] sm:$0xf]
    %v7910 = vld [vmem:[#allocation7 + $0x4a4] sm:$0xf]
    %v7911 = vld [vmem:[#allocation7 + $0x4a8] sm:$0xf]
    %v7912 = vld [vmem:[#allocation7 + $0x4ac] sm:$0xf]
    %v7913 = vld [vmem:[#allocation7 + $0x4b0] sm:$0xf]
    %v7914 = vld [vmem:[#allocation7 + $0x4b4] sm:$0xf]
    %v7915 = vld [vmem:[#allocation7 + $0x4b8] sm:$0xf]
    %v7916 = vld [vmem:[#allocation7 + $0x4bc] sm:$0xf]
    %v7917 = vld [vmem:[#allocation7 + $0x4c0] sm:$0xf]
    %v7918 = vld [vmem:[#allocation7 + $0x4c4] sm:$0xf]
    %v7919 = vld [vmem:[#allocation7 + $0x4c8] sm:$0xf]
    %v7920 = vld [vmem:[#allocation7 + $0x4cc] sm:$0xf]
    %v7921 = vld [vmem:[#allocation7 + $0x4d0] sm:$0xf]
    %v7922 = vld [vmem:[#allocation7 + $0x4d4] sm:$0xf]
    %v7923 = vld [vmem:[#allocation7 + $0x4d8] sm:$0xf]
    %v7924 = vld [vmem:[#allocation7 + $0x4dc] sm:$0xf]
    %v7925 = vld [vmem:[#allocation7 + $0x4e0] sm:$0xf]
    %v7926 = vld [vmem:[#allocation7 + $0x4e4] sm:$0xf]
    %v7927 = vld [vmem:[#allocation7 + $0x4e8] sm:$0xf]
    %v7928 = vld [vmem:[#allocation7 + $0x4ec] sm:$0xf]
    %v7929 = vld [vmem:[#allocation7 + $0x4f0] sm:$0xf]
    %v7930 = vld [vmem:[#allocation7 + $0x4f4] sm:$0xf]
    %v7931 = vld [vmem:[#allocation7 + $0x4f8] sm:$0xf]
    %v7932 = vld [vmem:[#allocation7 + $0x4fc] sm:$0xf]
    %v7933 = vld [vmem:[#allocation7 + $0x500] sm:$0xf]
    %v7934 = vld [vmem:[#allocation7 + $0x504] sm:$0xf]
    %v7935 = vld [vmem:[#allocation7 + $0x508] sm:$0xf]
    %v7936 = vld [vmem:[#allocation7 + $0x50c] sm:$0xf]
    %v7937 = vld [vmem:[#allocation7 + $0x510] sm:$0xf]
    %v7938 = vld [vmem:[#allocation7 + $0x514] sm:$0xf]
    %v7939 = vld [vmem:[#allocation7 + $0x518] sm:$0xf]
    %v7940 = vld [vmem:[#allocation7 + $0x51c] sm:$0xf]
    %v7941 = vld [vmem:[#allocation7 + $0x520] sm:$0xf]
    %v7942 = vld [vmem:[#allocation7 + $0x524] sm:$0xf]
    %v7943 = vld [vmem:[#allocation7 + $0x528] sm:$0xf]
    %v7944 = vld [vmem:[#allocation7 + $0x52c] sm:$0xf]
    %v7945 = vld [vmem:[#allocation7 + $0x530] sm:$0xf]
    %v7946 = vld [vmem:[#allocation7 + $0x534] sm:$0xf]
    %v7947 = vld [vmem:[#allocation7 + $0x538] sm:$0xf]
    %v7948 = vld [vmem:[#allocation7 + $0x53c] sm:$0xf]
    %v7949 = vld [vmem:[%s6] sm:$0x1]
    %v7951 = vlaneseq
    %v7952 = vshrl.u32 %v7951, 7
    %v7953 = vsub.s32 0, %v7952
    %v7954 = vrot.slane %v7949, %v7953
    %v7967 = vunpack.c.l.b16 %v7602
    %v7968 = vunpack.c.h.b16 %v7602
    %v7969 = vunpack.c.l.b16 %v7603
    %v7970 = vunpack.c.h.b16 %v7603
    %v7971 = vunpack.c.l.b16 %v7604
    %v7972 = vunpack.c.h.b16 %v7604
    %v7973 = vunpack.c.l.b16 %v7605
    %v7974 = vunpack.c.h.b16 %v7605
    %v7975 = vunpack.c.l.b16 %v7606
    %v7976 = vunpack.c.h.b16 %v7606
    %v7977 = vunpack.c.l.b16 %v7607
    %v7978 = vunpack.c.h.b16 %v7607
    %v7979 = vunpack.c.l.b16 %v7608
    %v7980 = vunpack.c.h.b16 %v7608
    %v7981 = vunpack.c.l.b16 %v7609
    %v7982 = vunpack.c.h.b16 %v7609
    %v7983 = vunpack.c.l.b16 %v7610
    %v7984 = vunpack.c.h.b16 %v7610
    %v7985 = vunpack.c.l.b16 %v7611
    %v7986 = vunpack.c.h.b16 %v7611
    %v7987 = vunpack.c.l.b16 %v7612
    %v7988 = vpack.c.b16 %v7967, %v7967
    %v7989 = vpack.c.b16 %v7968, %v7968
    %v7990 = vpack.c.b16 %v7969, %v7969
    %v7991 = vpack.c.b16 %v7970, %v7970
    %v7992 = vpack.c.b16 %v7971, %v7971
    %v7993 = vpack.c.b16 %v7972, %v7972
    %v7994 = vpack.c.b16 %v7973, %v7973
    %v7995 = vpack.c.b16 %v7974, %v7974
    %v7996 = vpack.c.b16 %v7975, %v7975
    %v7997 = vpack.c.b16 %v7976, %v7976
    %v7998 = vpack.c.b16 %v7977, %v7977
    %v7999 = vpack.c.b16 %v7978, %v7978
    %v8000 = vpack.c.b16 %v7979, %v7979
    %v8001 = vpack.c.b16 %v7980, %v7980
    %v8002 = vpack.c.b16 %v7981, %v7981
    %v8003 = vpack.c.b16 %v7982, %v7982
    %v8004 = vpack.c.b16 %v7983, %v7983
    %v8005 = vpack.c.b16 %v7984, %v7984
    %v8006 = vpack.c.b16 %v7985, %v7985
    %v8007 = vpack.c.b16 %v7986, %v7986
    %v8008 = vpack.c.b16 %v7987, %v7987
    %v8366 = vunpack.c.l.b16 %v7613
    %v8367 = vunpack.c.l.b16 %v7614
    %v8368 = vunpack.c.l.b16 %v7615
    %v8369 = vunpack.c.l.b16 %v7616
    %v8370 = vunpack.c.l.b16 %v7617
    %v8371 = vunpack.c.l.b16 %v7618
    %v8372 = vunpack.c.l.b16 %v7619
    %v8373 = vunpack.c.l.b16 %v7620
    %v8374 = vunpack.c.l.b16 %v7621
    %v8375 = vunpack.c.l.b16 %v7622
    %v8376 = vunpack.c.l.b16 %v7623
    %v8377 = vunpack.c.l.b16 %v7624
    %v8378 = vunpack.c.l.b16 %v7625
    %v8379 = vunpack.c.l.b16 %v7626
    %v8380 = vunpack.c.l.b16 %v7627
    %v8381 = vunpack.c.l.b16 %v7628
    %v8382 = vunpack.c.l.b16 %v7629
    %v8383 = vunpack.c.l.b16 %v7630
    %v8384 = vunpack.c.l.b16 %v7631
    %v8385 = vunpack.c.l.b16 %v7632
    %v8386 = vunpack.c.l.b16 %v7633
    %v8387 = vunpack.c.l.b16 %v7634
    %v8388 = vunpack.c.l.b16 %v7635
    %v8389 = vunpack.c.l.b16 %v7636
    %v8390 = vunpack.c.l.b16 %v7637
    %v8391 = vunpack.c.l.b16 %v7638
    %v8392 = vunpack.c.l.b16 %v7639
    %v8393 = vunpack.c.l.b16 %v7640
    %v8394 = vunpack.c.l.b16 %v7641
    %v8395 = vunpack.c.l.b16 %v7642
    %v8396 = vunpack.c.l.b16 %v7643
    %v8397 = vunpack.c.l.b16 %v7644
    %v8398 = vunpack.c.l.b16 %v7645
    %v8399 = vunpack.c.l.b16 %v7646
    %v8400 = vunpack.c.l.b16 %v7647
    %v8401 = vunpack.c.l.b16 %v7648
    %v8402 = vunpack.c.l.b16 %v7649
    %v8403 = vunpack.c.l.b16 %v7650
    %v8404 = vunpack.c.l.b16 %v7651
    %v8405 = vunpack.c.l.b16 %v7652
    %v8406 = vunpack.c.l.b16 %v7653
    %v8407 = vunpack.c.l.b16 %v7654
    %v8408 = vunpack.c.l.b16 %v7655
    %v8409 = vunpack.c.l.b16 %v7656
    %v8410 = vunpack.c.l.b16 %v7657
    %v8411 = vunpack.c.l.b16 %v7658
    %v8412 = vunpack.c.l.b16 %v7659
    %v8413 = vunpack.c.l.b16 %v7660
    %v8414 = vunpack.c.l.b16 %v7661
    %v8415 = vunpack.c.l.b16 %v7662
    %v8416 = vunpack.c.l.b16 %v7663
    %v8417 = vunpack.c.l.b16 %v7664
    %v8418 = vunpack.c.l.b16 %v7665
    %v8419 = vunpack.c.l.b16 %v7666
    %v8420 = vunpack.c.l.b16 %v7667
    %v8421 = vunpack.c.l.b16 %v7668
    %v8422 = vunpack.c.l.b16 %v7669
    %v8423 = vunpack.c.l.b16 %v7670
    %v8424 = vunpack.c.l.b16 %v7671
    %v8425 = vunpack.c.l.b16 %v7672
    %v8426 = vunpack.c.l.b16 %v7673
    %v8427 = vunpack.c.l.b16 %v7674
    %v8428 = vunpack.c.l.b16 %v7675
    %v8429 = vunpack.c.l.b16 %v7676
    %v8430 = vunpack.c.l.b16 %v7677
    %v8431 = vunpack.c.l.b16 %v7678
    %v8432 = vunpack.c.l.b16 %v7679
    %v8433 = vunpack.c.l.b16 %v7680
    %v8434 = vunpack.c.l.b16 %v7681
    %v8435 = vunpack.c.l.b16 %v7682
    %v8436 = vunpack.c.l.b16 %v7683
    %v8437 = vunpack.c.l.b16 %v7684
    %v8438 = vunpack.c.l.b16 %v7685
    %v8439 = vunpack.c.l.b16 %v7686
    %v8440 = vunpack.c.l.b16 %v7687
    %v8441 = vunpack.c.l.b16 %v7688
    %v8442 = vunpack.c.l.b16 %v7689
    %v8443 = vunpack.c.l.b16 %v7690
    %v8444 = vunpack.c.l.b16 %v7691
    %v8445 = vunpack.c.l.b16 %v7692
    %v8446 = vunpack.c.l.b16 %v7693
    %v8447 = vunpack.c.l.b16 %v7694
    %v8448 = vunpack.c.l.b16 %v7695
    %v8449 = vunpack.c.l.b16 %v7696
    %v8450 = vunpack.c.l.b16 %v7697
    %v8451 = vunpack.c.l.b16 %v7698
    %v8452 = vunpack.c.l.b16 %v7699
    %v8453 = vunpack.c.l.b16 %v7700
    %v8454 = vunpack.c.l.b16 %v7701
    %v8455 = vunpack.c.l.b16 %v7702
    %v8456 = vunpack.c.l.b16 %v7703
    %v8457 = vunpack.c.l.b16 %v7704
    %v8458 = vunpack.c.l.b16 %v7705
    %v8459 = vunpack.c.l.b16 %v7706
    %v8460 = vunpack.c.l.b16 %v7707
    %v8461 = vunpack.c.l.b16 %v7708
    %v8462 = vunpack.c.l.b16 %v7709
    %v8463 = vunpack.c.l.b16 %v7710
    %v8464 = vunpack.c.l.b16 %v7711
    %v8465 = vunpack.c.l.b16 %v7712
    %v8466 = vunpack.c.l.b16 %v7713
    %v8467 = vunpack.c.l.b16 %v7714
    %v8468 = vunpack.c.l.b16 %v7715
    %v8469 = vunpack.c.l.b16 %v7716
    %v8470 = vunpack.c.l.b16 %v7717
    %v8471 = vunpack.c.l.b16 %v7718
    %v8472 = vunpack.c.l.b16 %v7719
    %v8473 = vunpack.c.l.b16 %v7720
    %v8474 = vunpack.c.l.b16 %v7721
    %v8475 = vunpack.c.l.b16 %v7722
    %v8476 = vunpack.c.l.b16 %v7723
    %v8477 = vunpack.c.l.b16 %v7724
    %v8478 = vunpack.c.l.b16 %v7725
    %v8479 = vunpack.c.l.b16 %v7726
    %v8480 = vunpack.c.l.b16 %v7727
    %v8481 = vunpack.c.l.b16 %v7728
    %v8482 = vunpack.c.l.b16 %v7729
    %v8483 = vunpack.c.l.b16 %v7730
    %v8484 = vunpack.c.l.b16 %v7731
    %v8485 = vunpack.c.l.b16 %v7732
    %v8486 = vunpack.c.l.b16 %v7733
    %v8487 = vunpack.c.l.b16 %v7734
    %v8488 = vunpack.c.l.b16 %v7735
    %v8489 = vunpack.c.l.b16 %v7736
    %v8490 = vunpack.c.l.b16 %v7737
    %v8491 = vunpack.c.l.b16 %v7738
    %v8492 = vunpack.c.l.b16 %v7739
    %v8493 = vunpack.c.l.b16 %v7740
    %v8494 = vunpack.c.l.b16 %v7741
    %v8495 = vunpack.c.l.b16 %v7742
    %v8496 = vunpack.c.l.b16 %v7743
    %v8497 = vunpack.c.l.b16 %v7744
    %v8498 = vunpack.c.l.b16 %v7745
    %v8499 = vunpack.c.l.b16 %v7746
    %v8500 = vunpack.c.l.b16 %v7747
    %v8501 = vunpack.c.l.b16 %v7748
    %v8502 = vunpack.c.l.b16 %v7749
    %v8503 = vunpack.c.l.b16 %v7750
    %v8504 = vunpack.c.l.b16 %v7751
    %v8505 = vunpack.c.l.b16 %v7752
    %v8506 = vunpack.c.l.b16 %v7753
    %v8507 = vunpack.c.l.b16 %v7754
    %v8508 = vunpack.c.l.b16 %v7755
    %v8509 = vunpack.c.l.b16 %v7756
    %v8510 = vunpack.c.l.b16 %v7757
    %v8511 = vunpack.c.l.b16 %v7758
    %v8512 = vunpack.c.l.b16 %v7759
    %v8513 = vunpack.c.l.b16 %v7760
    %v8514 = vunpack.c.l.b16 %v7761
    %v8515 = vunpack.c.l.b16 %v7762
    %v8516 = vunpack.c.l.b16 %v7763
    %v8517 = vunpack.c.l.b16 %v7764
    %v8518 = vunpack.c.l.b16 %v7765
    %v8519 = vunpack.c.l.b16 %v7766
    %v8520 = vunpack.c.l.b16 %v7767
    %v8521 = vunpack.c.l.b16 %v7768
    %v8522 = vunpack.c.l.b16 %v7769
    %v8523 = vunpack.c.l.b16 %v7770
    %v8524 = vunpack.c.l.b16 %v7771
    %v8525 = vunpack.c.l.b16 %v7772
    %v8526 = vunpack.c.l.b16 %v7773
    %v8527 = vunpack.c.l.b16 %v7774
    %v8528 = vunpack.c.l.b16 %v7775
    %v8529 = vunpack.c.l.b16 %v7776
    %v8530 = vunpack.c.l.b16 %v7777
    %v8531 = vunpack.c.l.b16 %v7778
    %v8532 = vunpack.c.l.b16 %v7779
    %v8533 = vunpack.c.l.b16 %v7780
    %v8534 = vunpack.c.l.b16 %v7781
    %v8535 = vunpack.c.l.b16 %v7782
    %v8536 = vunpack.c.l.b16 %v7783
    %v8537 = vunpack.c.l.b16 %v7784
    %v8538 = vunpack.c.l.b16 %v7785
    %v8539 = vunpack.c.l.b16 %v7786
    %v8540 = vunpack.c.l.b16 %v7787
    %v8541 = vunpack.c.l.b16 %v7788
    %v8542 = vunpack.c.l.b16 %v7789
    %v8543 = vunpack.c.l.b16 %v7790
    %v8544 = vunpack.c.l.b16 %v7791
    %v8545 = vunpack.c.l.b16 %v7792
    %v8546 = vunpack.c.l.b16 %v7793
    %v8547 = vunpack.c.l.b16 %v7794
    %v8548 = vunpack.c.l.b16 %v7795
    %v8549 = vunpack.c.l.b16 %v7796
    %v8550 = vunpack.c.l.b16 %v7797
    %v8551 = vunpack.c.l.b16 %v7798
    %v8552 = vunpack.c.l.b16 %v7799
    %v8553 = vunpack.c.l.b16 %v7800
    %v8554 = vunpack.c.l.b16 %v7801
    %v8555 = vunpack.c.l.b16 %v7802
    %v8556 = vunpack.c.l.b16 %v7803
    %v8557 = vunpack.c.l.b16 %v7804
    %v8558 = vunpack.c.l.b16 %v7805
    %v8559 = vunpack.c.l.b16 %v7806
    %v8560 = vunpack.c.l.b16 %v7807
    %v8561 = vunpack.c.l.b16 %v7808
    %v8562 = vunpack.c.l.b16 %v7809
    %v8563 = vunpack.c.l.b16 %v7810
    %v8564 = vunpack.c.l.b16 %v7811
    %v8565 = vunpack.c.l.b16 %v7812
    %v8566 = vunpack.c.l.b16 %v7813
    %v8567 = vunpack.c.l.b16 %v7814
    %v8568 = vunpack.c.l.b16 %v7815
    %v8569 = vunpack.c.l.b16 %v7816
    %v8570 = vunpack.c.l.b16 %v7817
    %v8571 = vunpack.c.l.b16 %v7818
    %v8572 = vunpack.c.l.b16 %v7819
    %v8573 = vunpack.c.l.b16 %v7820
    %v8574 = vunpack.c.l.b16 %v7821
    %v8575 = vunpack.c.l.b16 %v7822
    %v8576 = vunpack.c.l.b16 %v7823
    %v8577 = vunpack.c.l.b16 %v7824
    %v8578 = vunpack.c.l.b16 %v7825
    %v8579 = vunpack.c.l.b16 %v7826
    %v8580 = vunpack.c.l.b16 %v7827
    %v8581 = vunpack.c.l.b16 %v7828
    %v8582 = vunpack.c.l.b16 %v7829
    %v8583 = vunpack.c.l.b16 %v7830
    %v8584 = vunpack.c.l.b16 %v7831
    %v8585 = vunpack.c.l.b16 %v7832
    %v8586 = vunpack.c.l.b16 %v7833
    %v8587 = vunpack.c.l.b16 %v7834
    %v8588 = vunpack.c.l.b16 %v7835
    %v8589 = vunpack.c.l.b16 %v7836
    %v8590 = vunpack.c.l.b16 %v7837
    %v8591 = vunpack.c.l.b16 %v7838
    %v8592 = vunpack.c.l.b16 %v7839
    %v8593 = vunpack.c.l.b16 %v7840
    %v8594 = vunpack.c.l.b16 %v7841
    %v8595 = vunpack.c.l.b16 %v7842
    %v8596 = vunpack.c.l.b16 %v7843
    %v8597 = vunpack.c.l.b16 %v7844
    %v8598 = vunpack.c.l.b16 %v7845
    %v8599 = vunpack.c.l.b16 %v7846
    %v8600 = vunpack.c.l.b16 %v7847
    %v8601 = vunpack.c.l.b16 %v7848
    %v8602 = vunpack.c.l.b16 %v7849
    %v8603 = vunpack.c.l.b16 %v7850
    %v8604 = vunpack.c.l.b16 %v7851
    %v8605 = vunpack.c.l.b16 %v7852
    %v8606 = vunpack.c.l.b16 %v7853
    %v8607 = vunpack.c.l.b16 %v7854
    %v8608 = vunpack.c.l.b16 %v7855
    %v8609 = vunpack.c.l.b16 %v7856
    %v8610 = vunpack.c.l.b16 %v7857
    %v8611 = vunpack.c.l.b16 %v7858
    %v8612 = vunpack.c.l.b16 %v7859
    %v8613 = vunpack.c.l.b16 %v7860
    %v8614 = vunpack.c.l.b16 %v7861
    %v8615 = vunpack.c.l.b16 %v7862
    %v8616 = vunpack.c.l.b16 %v7863
    %v8617 = vunpack.c.l.b16 %v7864
    %v8618 = vunpack.c.l.b16 %v7865
    %v8619 = vunpack.c.l.b16 %v7866
    %v8620 = vunpack.c.l.b16 %v7867
    %v8621 = vunpack.c.l.b16 %v7868
    %v8622 = vunpack.c.l.b16 %v7869
    %v8623 = vunpack.c.l.b16 %v7870
    %v8624 = vunpack.c.l.b16 %v7871
    %v8625 = vunpack.c.l.b16 %v7872
    %v8626 = vunpack.c.l.b16 %v7873
    %v8627 = vunpack.c.l.b16 %v7874
    %v8628 = vunpack.c.l.b16 %v7875
    %v8629 = vunpack.c.l.b16 %v7876
    %v8630 = vunpack.c.l.b16 %v7877
    %v8631 = vunpack.c.l.b16 %v7878
    %v8632 = vunpack.c.l.b16 %v7879
    %v8633 = vunpack.c.l.b16 %v7880
    %v8634 = vunpack.c.l.b16 %v7881
    %v8635 = vunpack.c.l.b16 %v7882
    %v8636 = vunpack.c.l.b16 %v7883
    %v8637 = vunpack.c.l.b16 %v7884
    %v8638 = vunpack.c.l.b16 %v7885
    %v8639 = vunpack.c.l.b16 %v7886
    %v8640 = vunpack.c.l.b16 %v7887
    %v8641 = vunpack.c.l.b16 %v7888
    %v8642 = vunpack.c.l.b16 %v7889
    %v8643 = vunpack.c.l.b16 %v7890
    %v8644 = vunpack.c.l.b16 %v7891
    %v8645 = vunpack.c.l.b16 %v7892
    %v8646 = vunpack.c.l.b16 %v7893
    %v8647 = vunpack.c.l.b16 %v7894
    %v8648 = vunpack.c.l.b16 %v7895
    %v8649 = vunpack.c.l.b16 %v7896
    %v8650 = vunpack.c.l.b16 %v7897
    %v8651 = vunpack.c.l.b16 %v7898
    %v8652 = vunpack.c.l.b16 %v7899
    %v8653 = vunpack.c.l.b16 %v7900
    %v8654 = vunpack.c.l.b16 %v7901
    %v8655 = vunpack.c.l.b16 %v7902
    %v8656 = vunpack.c.l.b16 %v7903
    %v8657 = vunpack.c.l.b16 %v7904
    %v8658 = vunpack.c.l.b16 %v7905
    %v8659 = vunpack.c.l.b16 %v7906
    %v8660 = vunpack.c.l.b16 %v7907
    %v8661 = vunpack.c.l.b16 %v7908
    %v8662 = vunpack.c.l.b16 %v7909
    %v8663 = vunpack.c.l.b16 %v7910
    %v8664 = vunpack.c.l.b16 %v7911
    %v8665 = vunpack.c.l.b16 %v7912
    %v8666 = vunpack.c.l.b16 %v7913
    %v8667 = vunpack.c.l.b16 %v7914
    %v8668 = vunpack.c.l.b16 %v7915
    %v8669 = vunpack.c.l.b16 %v7916
    %v8670 = vunpack.c.l.b16 %v7917
    %v8671 = vunpack.c.l.b16 %v7918
    %v8672 = vunpack.c.l.b16 %v7919
    %v8673 = vunpack.c.l.b16 %v7920
    %v8674 = vunpack.c.l.b16 %v7921
    %v8675 = vunpack.c.l.b16 %v7922
    %v8676 = vunpack.c.l.b16 %v7923
    %v8677 = vunpack.c.l.b16 %v7924
    %v8678 = vunpack.c.l.b16 %v7925
    %v8679 = vunpack.c.l.b16 %v7926
    %v8680 = vunpack.c.l.b16 %v7927
    %v8681 = vunpack.c.l.b16 %v7928
    %v8682 = vunpack.c.l.b16 %v7929
    %v8683 = vunpack.c.l.b16 %v7930
    %v8684 = vunpack.c.l.b16 %v7931
    %v8685 = vunpack.c.l.b16 %v7932
    %v8686 = vunpack.c.l.b16 %v7933
    %v8687 = vunpack.c.l.b16 %v7934
    %v8688 = vunpack.c.l.b16 %v7935
    %v8689 = vunpack.c.l.b16 %v7936
    %v8690 = vunpack.c.l.b16 %v7937
    %v8691 = vunpack.c.l.b16 %v7938
    %v8692 = vunpack.c.l.b16 %v7939
    %v8693 = vunpack.c.l.b16 %v7940
    %v8694 = vunpack.c.l.b16 %v7941
    %v8695 = vunpack.c.l.b16 %v7942
    %v8696 = vunpack.c.l.b16 %v7943
    %v8697 = vunpack.c.l.b16 %v7944
    %v8698 = vunpack.c.l.b16 %v7945
    %v8699 = vunpack.c.l.b16 %v7946
    %v8700 = vunpack.c.l.b16 %v7947
    %v8701 = vunpack.c.l.b16 %v7948
    %v8702 = vpack.c.b16 %v8367, %v8366
    %v8703 = vpack.c.b16 %v8369, %v8368
    %v8704 = vpack.c.b16 %v8371, %v8370
    %v8705 = vpack.c.b16 %v8373, %v8372
    %v8706 = vpack.c.b16 %v8375, %v8374
    %v8707 = vpack.c.b16 %v8377, %v8376
    %v8708 = vpack.c.b16 %v8379, %v8378
    %v8709 = vpack.c.b16 %v8381, %v8380
    %v8710 = vpack.c.b16 %v8383, %v8382
    %v8711 = vpack.c.b16 %v8385, %v8384
    %v8712 = vpack.c.b16 %v8387, %v8386
    %v8713 = vpack.c.b16 %v8389, %v8388
    %v8714 = vpack.c.b16 %v8391, %v8390
    %v8715 = vpack.c.b16 %v8393, %v8392
    %v8716 = vpack.c.b16 %v8395, %v8394
    %v8717 = vpack.c.b16 %v8397, %v8396
    %v8718 = vpack.c.b16 %v8399, %v8398
    %v8719 = vpack.c.b16 %v8401, %v8400
    %v8720 = vpack.c.b16 %v8403, %v8402
    %v8721 = vpack.c.b16 %v8405, %v8404
    %v8722 = vpack.c.b16 %v8407, %v8406
    %v8723 = vpack.c.b16 %v8409, %v8408
    %v8724 = vpack.c.b16 %v8411, %v8410
    %v8725 = vpack.c.b16 %v8413, %v8412
    %v8726 = vpack.c.b16 %v8415, %v8414
    %v8727 = vpack.c.b16 %v8417, %v8416
    %v8728 = vpack.c.b16 %v8419, %v8418
    %v8729 = vpack.c.b16 %v8421, %v8420
    %v8730 = vpack.c.b16 %v8423, %v8422
    %v8731 = vpack.c.b16 %v8425, %v8424
    %v8732 = vpack.c.b16 %v8427, %v8426
    %v8733 = vpack.c.b16 %v8429, %v8428
    %v8734 = vpack.c.b16 %v8431, %v8430
    %v8735 = vpack.c.b16 %v8433, %v8432
    %v8736 = vpack.c.b16 %v8435, %v8434
    %v8737 = vpack.c.b16 %v8437, %v8436
    %v8738 = vpack.c.b16 %v8439, %v8438
    %v8739 = vpack.c.b16 %v8441, %v8440
    %v8740 = vpack.c.b16 %v8443, %v8442
    %v8741 = vpack.c.b16 %v8445, %v8444
    %v8742 = vpack.c.b16 %v8447, %v8446
    %v8743 = vpack.c.b16 %v8449, %v8448
    %v8744 = vpack.c.b16 %v8451, %v8450
    %v8745 = vpack.c.b16 %v8453, %v8452
    %v8746 = vpack.c.b16 %v8455, %v8454
    %v8747 = vpack.c.b16 %v8457, %v8456
    %v8748 = vpack.c.b16 %v8459, %v8458
    %v8749 = vpack.c.b16 %v8461, %v8460
    %v8750 = vpack.c.b16 %v8463, %v8462
    %v8751 = vpack.c.b16 %v8465, %v8464
    %v8752 = vpack.c.b16 %v8467, %v8466
    %v8753 = vpack.c.b16 %v8469, %v8468
    %v8754 = vpack.c.b16 %v8471, %v8470
    %v8755 = vpack.c.b16 %v8473, %v8472
    %v8756 = vpack.c.b16 %v8475, %v8474
    %v8757 = vpack.c.b16 %v8477, %v8476
    %v8758 = vpack.c.b16 %v8479, %v8478
    %v8759 = vpack.c.b16 %v8481, %v8480
    %v8760 = vpack.c.b16 %v8483, %v8482
    %v8761 = vpack.c.b16 %v8485, %v8484
    %v8762 = vpack.c.b16 %v8487, %v8486
    %v8763 = vpack.c.b16 %v8489, %v8488
    %v8764 = vpack.c.b16 %v8491, %v8490
    %v8765 = vpack.c.b16 %v8493, %v8492
    %v8766 = vpack.c.b16 %v8495, %v8494
    %v8767 = vpack.c.b16 %v8497, %v8496
    %v8768 = vpack.c.b16 %v8499, %v8498
    %v8769 = vpack.c.b16 %v8501, %v8500
    %v8770 = vpack.c.b16 %v8503, %v8502
    %v8771 = vpack.c.b16 %v8505, %v8504
    %v8772 = vpack.c.b16 %v8507, %v8506
    %v8773 = vpack.c.b16 %v8509, %v8508
    %v8774 = vpack.c.b16 %v8511, %v8510
    %v8775 = vpack.c.b16 %v8513, %v8512
    %v8776 = vpack.c.b16 %v8515, %v8514
    %v8777 = vpack.c.b16 %v8517, %v8516
    %v8778 = vpack.c.b16 %v8519, %v8518
    %v8779 = vpack.c.b16 %v8521, %v8520
    %v8780 = vpack.c.b16 %v8523, %v8522
    %v8781 = vpack.c.b16 %v8525, %v8524
    %v8782 = vpack.c.b16 %v8527, %v8526
    %v8783 = vpack.c.b16 %v8529, %v8528
    %v8784 = vpack.c.b16 %v8531, %v8530
    %v8785 = vpack.c.b16 %v8533, %v8532
    %v8786 = vpack.c.b16 %v8535, %v8534
    %v8787 = vpack.c.b16 %v8537, %v8536
    %v8788 = vpack.c.b16 %v8539, %v8538
    %v8789 = vpack.c.b16 %v8541, %v8540
    %v8790 = vpack.c.b16 %v8543, %v8542
    %v8791 = vpack.c.b16 %v8545, %v8544
    %v8792 = vpack.c.b16 %v8547, %v8546
    %v8793 = vpack.c.b16 %v8549, %v8548
    %v8794 = vpack.c.b16 %v8551, %v8550
    %v8795 = vpack.c.b16 %v8553, %v8552
    %v8796 = vpack.c.b16 %v8555, %v8554
    %v8797 = vpack.c.b16 %v8557, %v8556
    %v8798 = vpack.c.b16 %v8559, %v8558
    %v8799 = vpack.c.b16 %v8561, %v8560
    %v8800 = vpack.c.b16 %v8563, %v8562
    %v8801 = vpack.c.b16 %v8565, %v8564
    %v8802 = vpack.c.b16 %v8567, %v8566
    %v8803 = vpack.c.b16 %v8569, %v8568
    %v8804 = vpack.c.b16 %v8571, %v8570
    %v8805 = vpack.c.b16 %v8573, %v8572
    %v8806 = vpack.c.b16 %v8575, %v8574
    %v8807 = vpack.c.b16 %v8577, %v8576
    %v8808 = vpack.c.b16 %v8579, %v8578
    %v8809 = vpack.c.b16 %v8581, %v8580
    %v8810 = vpack.c.b16 %v8583, %v8582
    %v8811 = vpack.c.b16 %v8585, %v8584
    %v8812 = vpack.c.b16 %v8587, %v8586
    %v8813 = vpack.c.b16 %v8589, %v8588
    %v8814 = vpack.c.b16 %v8591, %v8590
    %v8815 = vpack.c.b16 %v8593, %v8592
    %v8816 = vpack.c.b16 %v8595, %v8594
    %v8817 = vpack.c.b16 %v8597, %v8596
    %v8818 = vpack.c.b16 %v8599, %v8598
    %v8819 = vpack.c.b16 %v8601, %v8600
    %v8820 = vpack.c.b16 %v8603, %v8602
    %v8821 = vpack.c.b16 %v8605, %v8604
    %v8822 = vpack.c.b16 %v8607, %v8606
    %v8823 = vpack.c.b16 %v8609, %v8608
    %v8824 = vpack.c.b16 %v8611, %v8610
    %v8825 = vpack.c.b16 %v8613, %v8612
    %v8826 = vpack.c.b16 %v8615, %v8614
    %v8827 = vpack.c.b16 %v8617, %v8616
    %v8828 = vpack.c.b16 %v8619, %v8618
    %v8829 = vpack.c.b16 %v8621, %v8620
    %v8830 = vpack.c.b16 %v8623, %v8622
    %v8831 = vpack.c.b16 %v8625, %v8624
    %v8832 = vpack.c.b16 %v8627, %v8626
    %v8833 = vpack.c.b16 %v8629, %v8628
    %v8834 = vpack.c.b16 %v8631, %v8630
    %v8835 = vpack.c.b16 %v8633, %v8632
    %v8836 = vpack.c.b16 %v8635, %v8634
    %v8837 = vpack.c.b16 %v8637, %v8636
    %v8838 = vpack.c.b16 %v8639, %v8638
    %v8839 = vpack.c.b16 %v8641, %v8640
    %v8840 = vpack.c.b16 %v8643, %v8642
    %v8841 = vpack.c.b16 %v8645, %v8644
    %v8842 = vpack.c.b16 %v8647, %v8646
    %v8843 = vpack.c.b16 %v8649, %v8648
    %v8844 = vpack.c.b16 %v8651, %v8650
    %v8845 = vpack.c.b16 %v8653, %v8652
    %v8846 = vpack.c.b16 %v8655, %v8654
    %v8847 = vpack.c.b16 %v8657, %v8656
    %v8848 = vpack.c.b16 %v8659, %v8658
    %v8849 = vpack.c.b16 %v8661, %v8660
    %v8850 = vpack.c.b16 %v8663, %v8662
    %v8851 = vpack.c.b16 %v8665, %v8664
    %v8852 = vpack.c.b16 %v8667, %v8666
    %v8853 = vpack.c.b16 %v8669, %v8668
    %v8854 = vpack.c.b16 %v8671, %v8670
    %v8855 = vpack.c.b16 %v8673, %v8672
    %v8856 = vpack.c.b16 %v8675, %v8674
    %v8857 = vpack.c.b16 %v8677, %v8676
    %v8858 = vpack.c.b16 %v8679, %v8678
    %v8859 = vpack.c.b16 %v8681, %v8680
    %v8860 = vpack.c.b16 %v8683, %v8682
    %v8861 = vpack.c.b16 %v8685, %v8684
    %v8862 = vpack.c.b16 %v8687, %v8686
    %v8863 = vpack.c.b16 %v8689, %v8688
    %v8864 = vpack.c.b16 %v8691, %v8690
    %v8865 = vpack.c.b16 %v8693, %v8692
    %v8866 = vpack.c.b16 %v8695, %v8694
    %v8867 = vpack.c.b16 %v8697, %v8696
    %v8868 = vpack.c.b16 %v8699, %v8698
    %v8869 = vpack.c.b16 %v8701, %v8700
    %9038 = vmatprep.subr.bf16.mxu0 0
    %9039 = vmatpush1.bf16.msra.mxu0 %v8702
    %9040 = vmatprep.subr.bf16.mxu0 0
    %9041 = vmatpush1.bf16.msra.mxu0 %v8703
    %9042 = vmatprep.subr.bf16.mxu0 0
    %9043 = vmatpush1.bf16.msra.mxu0 %v8704
    %9044 = vmatprep.subr.bf16.mxu0 0
    %9045 = vmatpush1.bf16.msra.mxu0 %v8705
    %9046 = vmatprep.subr.bf16.mxu0 0
    %9047 = vmatpush1.bf16.msra.mxu0 %v8706
    %9048 = vmatprep.subr.bf16.mxu0 0
    %9049 = vmatpush1.bf16.msra.mxu0 %v8707
    %9050 = vmatprep.subr.bf16.mxu0 0
    %9051 = vmatpush1.bf16.msra.mxu0 %v8708
    %9052 = vmatprep.subr.bf16.mxu0 0
    %9053 = vmatpush1.bf16.msra.mxu0 %v8709
    %9054 = vmatprep.subr.bf16.mxu0 0
    %9055 = vmatpush1.bf16.msra.mxu0 %v8710
    %9056 = vmatprep.subr.bf16.mxu0 0
    %9057 = vmatpush1.bf16.msra.mxu0 %v8711
    %9058 = vmatprep.subr.bf16.mxu0 0
    %9059 = vmatpush1.bf16.msra.mxu0 %v8712
    %9060 = vmatprep.subr.bf16.mxu0 0
    %9061 = vmatpush1.bf16.msra.mxu0 %v8713
    %9062 = vmatprep.subr.bf16.mxu0 0
    %9063 = vmatpush1.bf16.msra.mxu0 %v8714
    %9064 = vmatprep.subr.bf16.mxu0 0
    %9065 = vmatpush1.bf16.msra.mxu0 %v8715
    %9066 = vmatprep.subr.bf16.mxu0 0
    %9067 = vmatpush1.bf16.msra.mxu0 %v8716
    %9068 = vmatprep.subr.bf16.mxu0 0
    %9069 = vmatpush1.bf16.msra.mxu0 %v8717
    %9070 = vmatprep.mubr.bf16.mxu0 %v7989
    %9071 = vmatmul.mubr.bf16.gmra.mrb[0].mxu0 %v7988
    %v9072 = vpop.f32.mrb[0].mxu0
    %v9073 = vadd.f32 %v7954, %v9072
    %v9074 = vpop.f32.mrb[0].mxu0
    %v9075 = vpop.f32.mrb[0].mxu0
    %v9076 = vpop.f32.mrb[0].mxu0
    %9077 = vdwg.mxu0
    %9078 = vmatprep.subr.bf16.mxu0 0
    %9079 = vmatpush1.bf16.msra.mxu0 %v8718
    %9080 = vmatprep.subr.bf16.mxu0 0
    %9081 = vmatpush1.bf16.msra.mxu0 %v8719
    %9082 = vmatprep.subr.bf16.mxu0 0
    %9083 = vmatpush1.bf16.msra.mxu0 %v8720
    %9084 = vmatprep.subr.bf16.mxu0 0
    %9085 = vmatpush1.bf16.msra.mxu0 %v8721
    %9086 = vmatprep.subr.bf16.mxu0 0
    %9087 = vmatpush1.bf16.msra.mxu0 %v8722
    %9088 = vmatprep.subr.bf16.mxu0 0
    %9089 = vmatpush1.bf16.msra.mxu0 %v8723
    %9090 = vmatprep.subr.bf16.mxu0 0
    %9091 = vmatpush1.bf16.msra.mxu0 %v8724
    %9092 = vmatprep.subr.bf16.mxu0 0
    %9093 = vmatpush1.bf16.msra.mxu0 %v8725
    %9094 = vmatprep.subr.bf16.mxu0 0
    %9095 = vmatpush1.bf16.msra.mxu0 %v8726
    %9096 = vmatprep.subr.bf16.mxu0 0
    %9097 = vmatpush1.bf16.msra.mxu0 %v8727
    %9098 = vmatprep.subr.bf16.mxu0 0
    %9099 = vmatpush1.bf16.msra.mxu0 %v8728
    %9100 = vmatprep.subr.bf16.mxu0 0
    %9101 = vmatpush1.bf16.msra.mxu0 %v8729
    %9102 = vmatprep.subr.bf16.mxu0 0
    %9103 = vmatpush1.bf16.msra.mxu0 %v8730
    %9104 = vmatprep.subr.bf16.mxu0 0
    %9105 = vmatpush1.bf16.msra.mxu0 %v8731
    %9106 = vmatprep.subr.bf16.mxu0 0
    %9107 = vmatpush1.bf16.msra.mxu0 %v8732
    %9108 = vmatprep.subr.bf16.mxu0 0
    %9109 = vmatpush1.bf16.msra.mxu0 %v8733
    %9110 = vmatprep.mubr.bf16.mxu0 %v7991
    %9111 = vmatmul.mubr.bf16.gmra.mrb[0].mxu0 %v7990
    %v9112 = vpop.f32.mrb[0].mxu0
    %v9113 = vadd.f32 %v9073, %v9112
    %v9114 = vpop.f32.mrb[0].mxu0
    %v9115 = vpop.f32.mrb[0].mxu0
    %v9116 = vpop.f32.mrb[0].mxu0
    %9117 = vdwg.mxu0
    %9118 = vmatprep.subr.bf16.mxu0 0
    %9119 = vmatpush1.bf16.msra.mxu0 %v8734
    %9120 = vmatprep.subr.bf16.mxu0 0
    %9121 = vmatpush1.bf16.msra.mxu0 %v8735
    %9122 = vmatprep.subr.bf16.mxu0 0
    %9123 = vmatpush1.bf16.msra.mxu0 %v8736
    %9124 = vmatprep.subr.bf16.mxu0 0
    %9125 = vmatpush1.bf16.msra.mxu0 %v8737
    %9126 = vmatprep.subr.bf16.mxu0 0
    %9127 = vmatpush1.bf16.msra.mxu0 %v8738
    %9128 = vmatprep.subr.bf16.mxu0 0
    %9129 = vmatpush1.bf16.msra.mxu0 %v8739
    %9130 = vmatprep.subr.bf16.mxu0 0
    %9131 = vmatpush1.bf16.msra.mxu0 %v8740
    %9132 = vmatprep.subr.bf16.mxu0 0
    %9133 = vmatpush1.bf16.msra.mxu0 %v8741
    %9134 = vmatprep.subr.bf16.mxu0 0
    %9135 = vmatpush1.bf16.msra.mxu0 %v8742
    %9136 = vmatprep.subr.bf16.mxu0 0
    %9137 = vmatpush1.bf16.msra.mxu0 %v8743
    %9138 = vmatprep.subr.bf16.mxu0 0
    %9139 = vmatpush1.bf16.msra.mxu0 %v8744
    %9140 = vmatprep.subr.bf16.mxu0 0
    %9141 = vmatpush1.bf16.msra.mxu0 %v8745
    %9142 = vmatprep.subr.bf16.mxu0 0
    %9143 = vmatpush1.bf16.msra.mxu0 %v8746
    %9144 = vmatprep.subr.bf16.mxu0 0
    %9145 = vmatpush1.bf16.msra.mxu0 %v8747
    %9146 = vmatprep.subr.bf16.mxu0 0
    %9147 = vmatpush1.bf16.msra.mxu0 %v8748
    %9148 = vmatprep.subr.bf16.mxu0 0
    %9149 = vmatpush1.bf16.msra.mxu0 %v8749
    %9150 = vmatprep.mubr.bf16.mxu0 %v7993
    %9151 = vmatmul.mubr.bf16.gmra.mrb[0].mxu0 %v7992
    %v9152 = vpop.f32.mrb[0].mxu0
    %v9153 = vadd.f32 %v9113, %v9152
    %v9154 = vpop.f32.mrb[0].mxu0
    %v9155 = vpop.f32.mrb[0].mxu0
    %v9156 = vpop.f32.mrb[0].mxu0
    %9157 = vdwg.mxu0
    %9158 = vmatprep.subr.bf16.mxu0 0
    %9159 = vmatpush1.bf16.msra.mxu0 %v8750
    %9160 = vmatprep.subr.bf16.mxu0 0
    %9161 = vmatpush1.bf16.msra.mxu0 %v8751
    %9162 = vmatprep.subr.bf16.mxu0 0
    %9163 = vmatpush1.bf16.msra.mxu0 %v8752
    %9164 = vmatprep.subr.bf16.mxu0 0
    %9165 = vmatpush1.bf16.msra.mxu0 %v8753
    %9166 = vmatprep.subr.bf16.mxu0 0
    %9167 = vmatpush1.bf16.msra.mxu0 %v8754
    %9168 = vmatprep.subr.bf16.mxu0 0
    %9169 = vmatpush1.bf16.msra.mxu0 %v8755
    %9170 = vmatprep.subr.bf16.mxu0 0
    %9171 = vmatpush1.bf16.msra.mxu0 %v8756
    %9172 = vmatprep.subr.bf16.mxu0 0
    %9173 = vmatpush1.bf16.msra.mxu0 %v8757
    %9174 = vmatprep.subr.bf16.mxu0 0
    %9175 = vmatpush1.bf16.msra.mxu0 %v8758
    %9176 = vmatprep.subr.bf16.mxu0 0
    %9177 = vmatpush1.bf16.msra.mxu0 %v8759
    %9178 = vmatprep.subr.bf16.mxu0 0
    %9179 = vmatpush1.bf16.msra.mxu0 %v8760
    %9180 = vmatprep.subr.bf16.mxu0 0
    %9181 = vmatpush1.bf16.msra.mxu0 %v8761
    %9182 = vmatprep.subr.bf16.mxu0 0
    %9183 = vmatpush1.bf16.msra.mxu0 %v8762
    %9184 = vmatprep.subr.bf16.mxu0 0
    %9185 = vmatpush1.bf16.msra.mxu0 %v8763
    %9186 = vmatprep.subr.bf16.mxu0 0
    %9187 = vmatpush1.bf16.msra.mxu0 %v8764
    %9188 = vmatprep.subr.bf16.mxu0 0
    %9189 = vmatpush1.bf16.msra.mxu0 %v8765
    %9190 = vmatprep.mubr.bf16.mxu0 %v7995
    %9191 = vmatmul.mubr.bf16.gmra.mrb[0].mxu0 %v7994
    %v9192 = vpop.f32.mrb[0].mxu0
    %v9193 = vadd.f32 %v9153, %v9192
    %v9194 = vpop.f32.mrb[0].mxu0
    %v9195 = vpop.f32.mrb[0].mxu0
    %v9196 = vpop.f32.mrb[0].mxu0
    %9197 = vdwg.mxu0
    %9198 = vmatprep.subr.bf16.mxu0 0
    %9199 = vmatpush1.bf16.msra.mxu0 %v8766
    %9200 = vmatprep.subr.bf16.mxu0 0
    %9201 = vmatpush1.bf16.msra.mxu0 %v8767
    %9202 = vmatprep.subr.bf16.mxu0 0
    %9203 = vmatpush1.bf16.msra.mxu0 %v8768
    %9204 = vmatprep.subr.bf16.mxu0 0
    %9205 = vmatpush1.bf16.msra.mxu0 %v8769
    %9206 = vmatprep.subr.bf16.mxu0 0
    %9207 = vmatpush1.bf16.msra.mxu0 %v8770
    %9208 = vmatprep.subr.bf16.mxu0 0
    %9209 = vmatpush1.bf16.msra.mxu0 %v8771
    %9210 = vmatprep.subr.bf16.mxu0 0
    %9211 = vmatpush1.bf16.msra.mxu0 %v8772
    %9212 = vmatprep.subr.bf16.mxu0 0
    %9213 = vmatpush1.bf16.msra.mxu0 %v8773
    %9214 = vmatprep.subr.bf16.mxu0 0
    %9215 = vmatpush1.bf16.msra.mxu0 %v8774
    %9216 = vmatprep.subr.bf16.mxu0 0
    %9217 = vmatpush1.bf16.msra.mxu0 %v8775
    %9218 = vmatprep.subr.bf16.mxu0 0
    %9219 = vmatpush1.bf16.msra.mxu0 %v8776
    %9220 = vmatprep.subr.bf16.mxu0 0
    %9221 = vmatpush1.bf16.msra.mxu0 %v8777
    %9222 = vmatprep.subr.bf16.mxu0 0
    %9223 = vmatpush1.bf16.msra.mxu0 %v8778
    %9224 = vmatprep.subr.bf16.mxu0 0
    %9225 = vmatpush1.bf16.msra.mxu0 %v8779
    %9226 = vmatprep.subr.bf16.mxu0 0
    %9227 = vmatpush1.bf16.msra.mxu0 %v8780
    %9228 = vmatprep.subr.bf16.mxu0 0
    %9229 = vmatpush1.bf16.msra.mxu0 %v8781
    %9230 = vmatprep.mubr.bf16.mxu0 %v7997
    %9231 = vmatmul.mubr.bf16.gmra.mrb[0].mxu0 %v7996
    %v9232 = vpop.f32.mrb[0].mxu0
    %v9233 = vadd.f32 %v9193, %v9232
    %v9234 = vpop.f32.mrb[0].mxu0
    %v9235 = vpop.f32.mrb[0].mxu0
    %v9236 = vpop.f32.mrb[0].mxu0
    %9237 = vdwg.mxu0
    %9238 = vmatprep.subr.bf16.mxu0 0
    %9239 = vmatpush1.bf16.msra.mxu0 %v8782
    %9240 = vmatprep.subr.bf16.mxu0 0
    %9241 = vmatpush1.bf16.msra.mxu0 %v8783
    %9242 = vmatprep.subr.bf16.mxu0 0
    %9243 = vmatpush1.bf16.msra.mxu0 %v8784
    %9244 = vmatprep.subr.bf16.mxu0 0
    %9245 = vmatpush1.bf16.msra.mxu0 %v8785
    %9246 = vmatprep.subr.bf16.mxu0 0
    %9247 = vmatpush1.bf16.msra.mxu0 %v8786
    %9248 = vmatprep.subr.bf16.mxu0 0
    %9249 = vmatpush1.bf16.msra.mxu0 %v8787
    %9250 = vmatprep.subr.bf16.mxu0 0
    %9251 = vmatpush1.bf16.msra.mxu0 %v8788
    %9252 = vmatprep.subr.bf16.mxu0 0
    %9253 = vmatpush1.bf16.msra.mxu0 %v8789
    %9254 = vmatprep.subr.bf16.mxu0 0
    %9255 = vmatpush1.bf16.msra.mxu0 %v8790
    %9256 = vmatprep.subr.bf16.mxu0 0
    %9257 = vmatpush1.bf16.msra.mxu0 %v8791
    %9258 = vmatprep.subr.bf16.mxu0 0
    %9259 = vmatpush1.bf16.msra.mxu0 %v8792
    %9260 = vmatprep.subr.bf16.mxu0 0
    %9261 = vmatpush1.bf16.msra.mxu0 %v8793
    %9262 = vmatprep.subr.bf16.mxu0 0
    %9263 = vmatpush1.bf16.msra.mxu0 %v8794
    %9264 = vmatprep.subr.bf16.mxu0 0
    %9265 = vmatpush1.bf16.msra.mxu0 %v8795
    %9266 = vmatprep.subr.bf16.mxu0 0
    %9267 = vmatpush1.bf16.msra.mxu0 %v8796
    %9268 = vmatprep.subr.bf16.mxu0 0
    %9269 = vmatpush1.bf16.msra.mxu0 %v8797
    %9270 = vmatprep.mubr.bf16.mxu0 %v7999
    %9271 = vmatmul.mubr.bf16.gmra.mrb[0].mxu0 %v7998
    %v9272 = vpop.f32.mrb[0].mxu0
    %v9273 = vadd.f32 %v9233, %v9272
    %v9274 = vpop.f32.mrb[0].mxu0
    %v9275 = vpop.f32.mrb[0].mxu0
    %v9276 = vpop.f32.mrb[0].mxu0
    %9277 = vdwg.mxu0
    %9278 = vmatprep.subr.bf16.mxu0 0
    %9279 = vmatpush1.bf16.msra.mxu0 %v8798
    %9280 = vmatprep.subr.bf16.mxu0 0
    %9281 = vmatpush1.bf16.msra.mxu0 %v8799
    %9282 = vmatprep.subr.bf16.mxu0 0
    %9283 = vmatpush1.bf16.msra.mxu0 %v8800
    %9284 = vmatprep.subr.bf16.mxu0 0
    %9285 = vmatpush1.bf16.msra.mxu0 %v8801
    %9286 = vmatprep.subr.bf16.mxu0 0
    %9287 = vmatpush1.bf16.msra.mxu0 %v8802
    %9288 = vmatprep.subr.bf16.mxu0 0
    %9289 = vmatpush1.bf16.msra.mxu0 %v8803
    %9290 = vmatprep.subr.bf16.mxu0 0
    %9291 = vmatpush1.bf16.msra.mxu0 %v8804
    %9292 = vmatprep.subr.bf16.mxu0 0
    %9293 = vmatpush1.bf16.msra.mxu0 %v8805
    %9294 = vmatprep.subr.bf16.mxu0 0
    %9295 = vmatpush1.bf16.msra.mxu0 %v8806
    %9296 = vmatprep.subr.bf16.mxu0 0
    %9297 = vmatpush1.bf16.msra.mxu0 %v8807
    %9298 = vmatprep.subr.bf16.mxu0 0
    %9299 = vmatpush1.bf16.msra.mxu0 %v8808
    %9300 = vmatprep.subr.bf16.mxu0 0
    %9301 = vmatpush1.bf16.msra.mxu0 %v8809
    %9302 = vmatprep.subr.bf16.mxu0 0
    %9303 = vmatpush1.bf16.msra.mxu0 %v8810
    %9304 = vmatprep.subr.bf16.mxu0 0
    %9305 = vmatpush1.bf16.msra.mxu0 %v8811
    %9306 = vmatprep.subr.bf16.mxu0 0
    %9307 = vmatpush1.bf16.msra.mxu0 %v8812
    %9308 = vmatprep.subr.bf16.mxu0 0
    %9309 = vmatpush1.bf16.msra.mxu0 %v8813
    %9310 = vmatprep.mubr.bf16.mxu0 %v8001
    %9311 = vmatmul.mubr.bf16.gmra.mrb[0].mxu0 %v8000
    %v9312 = vpop.f32.mrb[0].mxu0
    %v9313 = vadd.f32 %v9273, %v9312
    %v9314 = vpop.f32.mrb[0].mxu0
    %v9315 = vpop.f32.mrb[0].mxu0
    %v9316 = vpop.f32.mrb[0].mxu0
    %9317 = vdwg.mxu0
    %9318 = vmatprep.subr.bf16.mxu0 0
    %9319 = vmatpush1.bf16.msra.mxu0 %v8814
    %9320 = vmatprep.subr.bf16.mxu0 0
    %9321 = vmatpush1.bf16.msra.mxu0 %v8815
    %9322 = vmatprep.subr.bf16.mxu0 0
    %9323 = vmatpush1.bf16.msra.mxu0 %v8816
    %9324 = vmatprep.subr.bf16.mxu0 0
    %9325 = vmatpush1.bf16.msra.mxu0 %v8817
    %9326 = vmatprep.subr.bf16.mxu0 0
    %9327 = vmatpush1.bf16.msra.mxu0 %v8818
    %9328 = vmatprep.subr.bf16.mxu0 0
    %9329 = vmatpush1.bf16.msra.mxu0 %v8819
    %9330 = vmatprep.subr.bf16.mxu0 0
    %9331 = vmatpush1.bf16.msra.mxu0 %v8820
    %9332 = vmatprep.subr.bf16.mxu0 0
    %9333 = vmatpush1.bf16.msra.mxu0 %v8821
    %9334 = vmatprep.subr.bf16.mxu0 0
    %9335 = vmatpush1.bf16.msra.mxu0 %v8822
    %9336 = vmatprep.subr.bf16.mxu0 0
    %9337 = vmatpush1.bf16.msra.mxu0 %v8823
    %9338 = vmatprep.subr.bf16.mxu0 0
    %9339 = vmatpush1.bf16.msra.mxu0 %v8824
    %9340 = vmatprep.subr.bf16.mxu0 0
    %9341 = vmatpush1.bf16.msra.mxu0 %v8825
    %9342 = vmatprep.subr.bf16.mxu0 0
    %9343 = vmatpush1.bf16.msra.mxu0 %v8826
    %9344 = vmatprep.subr.bf16.mxu0 0
    %9345 = vmatpush1.bf16.msra.mxu0 %v8827
    %9346 = vmatprep.subr.bf16.mxu0 0
    %9347 = vmatpush1.bf16.msra.mxu0 %v8828
    %9348 = vmatprep.subr.bf16.mxu0 0
    %9349 = vmatpush1.bf16.msra.mxu0 %v8829
    %9350 = vmatprep.mubr.bf16.mxu0 %v8003
    %9351 = vmatmul.mubr.bf16.gmra.mrb[0].mxu0 %v8002
    %v9352 = vpop.f32.mrb[0].mxu0
    %v9353 = vadd.f32 %v9313, %v9352
    %v9354 = vpop.f32.mrb[0].mxu0
    %v9355 = vpop.f32.mrb[0].mxu0
    %v9356 = vpop.f32.mrb[0].mxu0
    %9357 = vdwg.mxu0
    %9358 = vmatprep.subr.bf16.mxu0 0
    %9359 = vmatpush1.bf16.msra.mxu0 %v8830
    %9360 = vmatprep.subr.bf16.mxu0 0
    %9361 = vmatpush1.bf16.msra.mxu0 %v8831
    %9362 = vmatprep.subr.bf16.mxu0 0
    %9363 = vmatpush1.bf16.msra.mxu0 %v8832
    %9364 = vmatprep.subr.bf16.mxu0 0
    %9365 = vmatpush1.bf16.msra.mxu0 %v8833
    %9366 = vmatprep.subr.bf16.mxu0 0
    %9367 = vmatpush1.bf16.msra.mxu0 %v8834
    %9368 = vmatprep.subr.bf16.mxu0 0
    %9369 = vmatpush1.bf16.msra.mxu0 %v8835
    %9370 = vmatprep.subr.bf16.mxu0 0
    %9371 = vmatpush1.bf16.msra.mxu0 %v8836
    %9372 = vmatprep.subr.bf16.mxu0 0
    %9373 = vmatpush1.bf16.msra.mxu0 %v8837
    %9374 = vmatprep.subr.bf16.mxu0 0
    %9375 = vmatpush1.bf16.msra.mxu0 %v8838
    %9376 = vmatprep.subr.bf16.mxu0 0
    %9377 = vmatpush1.bf16.msra.mxu0 %v8839
    %9378 = vmatprep.subr.bf16.mxu0 0
    %9379 = vmatpush1.bf16.msra.mxu0 %v8840
    %9380 = vmatprep.subr.bf16.mxu0 0
    %9381 = vmatpush1.bf16.msra.mxu0 %v8841
    %9382 = vmatprep.subr.bf16.mxu0 0
    %9383 = vmatpush1.bf16.msra.mxu0 %v8842
    %9384 = vmatprep.subr.bf16.mxu0 0
    %9385 = vmatpush1.bf16.msra.mxu0 %v8843
    %9386 = vmatprep.subr.bf16.mxu0 0
    %9387 = vmatpush1.bf16.msra.mxu0 %v8844
    %9388 = vmatprep.subr.bf16.mxu0 0
    %9389 = vmatpush1.bf16.msra.mxu0 %v8845
    %9390 = vmatprep.mubr.bf16.mxu0 %v8005
    %9391 = vmatmul.mubr.bf16.gmra.mrb[0].mxu0 %v8004
    %v9392 = vpop.f32.mrb[0].mxu0
    %v9393 = vadd.f32 %v9353, %v9392
    %v9394 = vpop.f32.mrb[0].mxu0
    %v9395 = vpop.f32.mrb[0].mxu0
    %v9396 = vpop.f32.mrb[0].mxu0
    %9397 = vdwg.mxu0
    %9398 = vmatprep.subr.bf16.mxu0 0
    %9399 = vmatpush1.bf16.msra.mxu0 %v8846
    %9400 = vmatprep.subr.bf16.mxu0 0
    %9401 = vmatpush1.bf16.msra.mxu0 %v8847
    %9402 = vmatprep.subr.bf16.mxu0 0
    %9403 = vmatpush1.bf16.msra.mxu0 %v8848
    %9404 = vmatprep.subr.bf16.mxu0 0
    %9405 = vmatpush1.bf16.msra.mxu0 %v8849
    %9406 = vmatprep.subr.bf16.mxu0 0
    %9407 = vmatpush1.bf16.msra.mxu0 %v8850
    %9408 = vmatprep.subr.bf16.mxu0 0
    %9409 = vmatpush1.bf16.msra.mxu0 %v8851
    %9410 = vmatprep.subr.bf16.mxu0 0
    %9411 = vmatpush1.bf16.msra.mxu0 %v8852
    %9412 = vmatprep.subr.bf16.mxu0 0
    %9413 = vmatpush1.bf16.msra.mxu0 %v8853
    %9414 = vmatprep.subr.bf16.mxu0 0
    %9415 = vmatpush1.bf16.msra.mxu0 %v8854
    %9416 = vmatprep.subr.bf16.mxu0 0
    %9417 = vmatpush1.bf16.msra.mxu0 %v8855
    %9418 = vmatprep.subr.bf16.mxu0 0
    %9419 = vmatpush1.bf16.msra.mxu0 %v8856
    %9420 = vmatprep.subr.bf16.mxu0 0
    %9421 = vmatpush1.bf16.msra.mxu0 %v8857
    %9422 = vmatprep.subr.bf16.mxu0 0
    %9423 = vmatpush1.bf16.msra.mxu0 %v8858
    %9424 = vmatprep.subr.bf16.mxu0 0
    %9425 = vmatpush1.bf16.msra.mxu0 %v8859
    %9426 = vmatprep.subr.bf16.mxu0 0
    %9427 = vmatpush1.bf16.msra.mxu0 %v8860
    %9428 = vmatprep.subr.bf16.mxu0 0
    %9429 = vmatpush1.bf16.msra.mxu0 %v8861
    %9430 = vmatprep.mubr.bf16.mxu0 %v8007
    %9431 = vmatmul.mubr.bf16.gmra.mrb[0].mxu0 %v8006
    %v9432 = vpop.f32.mrb[0].mxu0
    %v9433 = vadd.f32 %v9393, %v9432
    %v9434 = vpop.f32.mrb[0].mxu0
    %v9435 = vpop.f32.mrb[0].mxu0
    %v9436 = vpop.f32.mrb[0].mxu0
    %9437 = vdwg.mxu0
    %9438 = vmatprep.subr.bf16.mxu0 0
    %9439 = vmatpush1.bf16.msra.mxu0 %v8862
    %9440 = vmatprep.subr.bf16.mxu0 0
    %9441 = vmatpush1.bf16.msra.mxu0 %v8863
    %9442 = vmatprep.subr.bf16.mxu0 0
    %9443 = vmatpush1.bf16.msra.mxu0 %v8864
    %9444 = vmatprep.subr.bf16.mxu0 0
    %9445 = vmatpush1.bf16.msra.mxu0 %v8865
    %9446 = vmatprep.subr.bf16.mxu0 0
    %9447 = vmatpush1.bf16.msra.mxu0 %v8866
    %9448 = vmatprep.subr.bf16.mxu0 0
    %9449 = vmatpush1.bf16.msra.mxu0 %v8867
    %9450 = vmatprep.subr.bf16.mxu0 0
    %9451 = vmatpush1.bf16.msra.mxu0 %v8868
    %9452 = vmatprep.subr.bf16.mxu0 0
    %9453 = vmatpush1.bf16.msra.mxu0 %v8869
    %9454 = vmatprep.subr.bf16.mxu0 0
    %9455 = vmatpush1.bf16.msra.mxu0 0
    %9456 = vmatprep.subr.bf16.mxu0 0
    %9457 = vmatpush1.bf16.msra.mxu0 0
    %9458 = vmatprep.subr.bf16.mxu0 0
    %9459 = vmatpush1.bf16.msra.mxu0 0
    %9460 = vmatprep.subr.bf16.mxu0 0
    %9461 = vmatpush1.bf16.msra.mxu0 0
    %9462 = vmatprep.subr.bf16.mxu0 0
    %9463 = vmatpush1.bf16.msra.mxu0 0
    %9464 = vmatprep.subr.bf16.mxu0 0
    %9465 = vmatpush1.bf16.msra.mxu0 0
    %9466 = vmatprep.subr.bf16.mxu0 0
    %9467 = vmatpush1.bf16.msra.mxu0 0
    %9468 = vmatprep.subr.bf16.mxu0 0
    %9469 = vmatpush1.bf16.msra.mxu0 0
    %9470 = vmatprep.mubr.bf16.mxu0 0
    %9471 = vmatmul.mubr.bf16.gmra.mrb[0].mxu0 %v8008
    %v9472 = vpop.f32.mrb[0].mxu0
    %v9473 = vadd.f32 %v9433, %v9472
    %v9474 = vpop.f32.mrb[0].mxu0
    %v9475 = vpop.f32.mrb[0].mxu0
    %v9476 = vpop.f32.mrb[0].mxu0
    %9477 = vdwg.mxu0
    %v9478 = vmax.f32 %v9473, 0.0
    %v9479 = vld [vmem:[%s7] sm:$0x1]
    %v9481 = vlaneseq
    %v9482 = vshrl.u32 %v9481, 7
    %v9483 = vsub.s32 0, %v9482
    %v9484 = vrot.slane %v9479, %v9483
    %v9486 = vmul.f32 %v9478, %v9484
    %9487 = vadd.xlane.f32.xlu0 %v9486
    %v9488 = vpop.xlane.xlu0 %9487
    %v9489 = vld [vmem:[#allocation6] sm:$0x1]
    %v9491 = vlaneseq
    %v9492 = vshrl.u32 %v9491, 7
    %v9493 = vsub.s32 0, %v9492
    %v9494 = vrot.slane %v9489, %v9493
    %v9496 = vadd.f32 %v9488, %v9494
    %9498 = vset.pattern.permute.xlu0 0
    %9499 = vperm.xlu0 %9498, %v9496
    %v9500 = vpop.permute.xlu0 %9499
    %9502 = vst [vmem:[%s9] sm:$0xff] %v9500
    // Predicated region
    $region42: #{connect_four_cnn_forward.1} parent=1 // pred_check
      _
    $region43: #{connect_four_cnn_forward.1} parent=1 // pred_check_branch
      %9504 = sbr.rel (0) target = $region45
    $region44: #{connect_four_cnn_forward.1} parent=1 // pred_region
      _
    $region45: #{connect_four_cnn_forward.1} parent=1 // pred_fallthru
      _
    // Predicated region
    $region46: #{connect_four_cnn_forward.1} parent=1 // pred_check
      _
    $region47: #{connect_four_cnn_forward.1} parent=1 // pred_check_branch
      %9506 = sbr.rel (0) target = $region49
    $region48: #{connect_four_cnn_forward.1} parent=1 // pred_region
      _
    $region49: #{connect_four_cnn_forward.1} parent=1 // pred_fallthru
      _
    %9507 = vsyncpa [#allocation8], 1

</llo_original>
